<compile_context>
chip_gen: v5e
topology: v5e:2x2
jax: 0.10.0
libtpu: 0.0.40
codegen_flags: <defaults>
</compile_context>

<pallas_src>
import math
import functools

import jax
import jax.numpy as jnp
from jax.experimental import pallas as pl
from jax.experimental.pallas import tpu as pltpu


# ---------------------------------------------------------------------------
# helpers
# ---------------------------------------------------------------------------
def _layernorm(x, g, b, eps):
    # x: [S, D] f32, g/b: [D] f32
    mean = jnp.mean(x, axis=-1, keepdims=True)
    var = jnp.mean(jnp.square(x - mean), axis=-1, keepdims=True)
    return (x - mean) * jax.lax.rsqrt(var + eps) * g + b


def _rep_spec(shape):
    """BlockSpec for a small parameter that is replicated to every grid step."""
    zeros = (0,) * len(shape)
    return pl.BlockSpec(shape, lambda *_: zeros)


def _choose_tile(n, cap):
    for t in (cap, 512, 256, 128, 64, 32, 16, 8):
        if t <= cap and t <= n and n % t == 0:
            return t
    return n  # fall back to the full extent (always a legal block)


def _split_heads(x, num_heads):      # [B,S,D] -> [B,H,S,dh]   (XLA glue)
    B, S, D = x.shape
    return x.reshape(B, S, num_heads, D // num_heads).transpose(0, 2, 1, 3)


def _merge_heads(x):                 # [B,H,S,dh] -> [B,S,D]    (XLA glue)
    B, H, S, dh = x.shape
    return x.transpose(0, 2, 1, 3).reshape(B, S, H * dh)


# ---------------------------------------------------------------------------
# kernel 1: LN1 + fused QKV projection  (grid: batch x seq tiles)
# ---------------------------------------------------------------------------
def ln_qkv_kernel(x_ref, g_ref, b_ref, w_ref, bias_ref, qkv_ref, *, eps):
    x = x_ref[0]                                                     # [TS, D] f32
    h = _layernorm(x, g_ref[0], b_ref[0], eps).astype(jnp.bfloat16)  # bf16 MXU input
    qkv = jnp.dot(h, w_ref[...], preferred_element_type=jnp.float32) + bias_ref[0]
    qkv_ref[0] = qkv.astype(qkv_ref.dtype)                           # single lane-dense store


def run_ln_qkv(x, g, b, w, bias, *, eps):
    B, S, D = x.shape
    ts = _choose_tile(S, 256)
    kernel = functools.partial(ln_qkv_kernel, eps=eps)
    return pl.pallas_call(
        kernel,
        grid=(B, S // ts),
        in_specs=[pl.BlockSpec((1, ts, D), lambda bi, si: (bi, si, 0)),
                  _rep_spec(g.shape), _rep_spec(b.shape),
                  _rep_spec(w.shape), _rep_spec(bias.shape)],
        out_specs=pl.BlockSpec((1, ts, 3 * D), lambda bi, si: (bi, si, 0)),
        out_shape=jax.ShapeDtypeStruct((B, S, 3 * D), jnp.bfloat16),
        compiler_params=pltpu.CompilerParams(
            dimension_semantics=("parallel", "parallel")),
    )(x, g, b, w, bias)


# ---------------------------------------------------------------------------
# kernel 2: flash-style causal attention, heads batched in one einsum
#           grid: (batch, q tiles, kv tiles["arbitrary" reduction])
# ---------------------------------------------------------------------------
def flash_attn_kernel(q_ref, k_ref, v_ref, o_ref, m_sc, l_sc, acc_sc, *, scale):
    _, H, TQ, dh = q_ref.shape
    TK = k_ref.shape[2]
    qi = pl.program_id(1)
    ki = pl.program_id(2)

    @pl.when(ki == 0)
    def _init():
        m_sc[...] = jnp.full(m_sc.shape, -jnp.inf, jnp.float32)
        l_sc[...] = jnp.zeros(l_sc.shape, jnp.float32)
        acc_sc[...] = jnp.zeros(acc_sc.shape, jnp.float32)

    q_start = qi * TQ
    k_start = ki * TK

    # causal: skip KV tiles that lie entirely in the future of this query tile
    @pl.when(k_start < q_start + TQ)
    def _compute():
        q = q_ref[0] * scale                                         # [H, TQ, dh] bf16 (pre-scaled)
        k = k_ref[0]                                                 # [H, TK, dh] bf16
        v = v_ref[0]
        s = jnp.einsum("hqd,hkd->hqk", q, k,
                       preferred_element_type=jnp.float32)           # [H, TQ, TK] f32
        q_idx = q_start + jax.lax.broadcasted_iota(jnp.int32, (TQ, TK), 0)
        k_idx = k_start + jax.lax.broadcasted_iota(jnp.int32, (TQ, TK), 1)
        s = jnp.where((k_idx <= q_idx)[None], s, jnp.float32(-1e30))

        m_prev = m_sc[...]                                           # [H, TQ, 1]
        m_new = jnp.maximum(m_prev, jnp.max(s, axis=-1, keepdims=True))
        alpha = jnp.exp(m_prev - m_new)
        p = jnp.exp(s - m_new)                                       # f32 softmax math
        l_sc[...] = alpha * l_sc[...] + jnp.sum(p, axis=-1, keepdims=True)
        acc_sc[...] = alpha * acc_sc[...] + jnp.einsum(
            "hqk,hkd->hqd", p.astype(v.dtype), v,
            preferred_element_type=jnp.float32)
        m_sc[...] = m_new

    @pl.when(ki == pl.num_programs(2) - 1)
    def _finalize():
        inv_l = pl.reciprocal(l_sc[...], approx=True)                # EUP reciprocal
        o_ref[0] = (acc_sc[...] * inv_l).astype(o_ref.dtype)


def run_flash_attention(q, k, v):
    B, H, S, dh = q.shape
    tq = _choose_tile(S, 256)
    tk = _choose_tile(S, 256)
    scale = 1.0 / math.sqrt(dh)
    kernel = functools.partial(flash_attn_kernel, scale=scale)
    return pl.pallas_call(
        kernel,
        grid=(B, S // tq, S // tk),
        in_specs=[pl.BlockSpec((1, H, tq, dh), lambda b, qi, ki: (b, 0, qi, 0)),
                  pl.BlockSpec((1, H, tk, dh), lambda b, qi, ki: (b, 0, ki, 0)),
                  pl.BlockSpec((1, H, tk, dh), lambda b, qi, ki: (b, 0, ki, 0))],
        out_specs=pl.BlockSpec((1, H, tq, dh), lambda b, qi, ki: (b, 0, qi, 0)),
        out_shape=jax.ShapeDtypeStruct((B, H, S, dh), jnp.bfloat16),
        scratch_shapes=[pltpu.VMEM((H, tq, 1), jnp.float32),   # running max
                        pltpu.VMEM((H, tq, 1), jnp.float32),   # running sum
                        pltpu.VMEM((H, tq, dh), jnp.float32)], # context accumulator
        compiler_params=pltpu.CompilerParams(
            dimension_semantics=("parallel", "parallel", "arbitrary")),
    )(q, k, v)


# ---------------------------------------------------------------------------
# kernel 3: attention output proj + residual + LN2 + GELU MLP + residual
#           (grid: batch x seq tiles, single output store)
# ---------------------------------------------------------------------------
def attn_out_mlp_kernel(x_ref, ctx_ref, wo_ref, bo_ref, g2_ref, b2_ref,
                        wfc_ref, bfc_ref, wproj_ref, bproj_ref, o_ref, *, eps):
    x = x_ref[0]                                                     # [TS, D] f32 residual
    attn = jnp.dot(ctx_ref[0], wo_ref[...],
                   preferred_element_type=jnp.float32) + bo_ref[0]
    x = x + attn
    h = _layernorm(x, g2_ref[0], b2_ref[0], eps).astype(jnp.bfloat16)
    f = jnp.dot(h, wfc_ref[...], preferred_element_type=jnp.float32) + bfc_ref[0]
    # TODO(synk): GPT-2-style tanh GELU assumed (TransformerBlock source not provided).
    f = jax.nn.gelu(f, approximate=True).astype(jnp.bfloat16)
    f = jnp.dot(f, wproj_ref[...], preferred_element_type=jnp.float32) + bproj_ref[0]
    o_ref[0] = (x + f).astype(o_ref.dtype)


def run_attn_out_mlp(x, ctx, wo, bo, g2, b2, wfc, bfc, wproj, bproj, *, eps):
    B, S, D = x.shape
    ts = _choose_tile(S, 256)
    kernel = functools.partial(attn_out_mlp_kernel, eps=eps)
    act_spec = pl.BlockSpec((1, ts, D), lambda bi, si: (bi, si, 0))
    return pl.pallas_call(
        kernel,
        grid=(B, S // ts),
        in_specs=[act_spec, act_spec,
                  _rep_spec(wo.shape), _rep_spec(bo.shape),
                  _rep_spec(g2.shape), _rep_spec(b2.shape),
                  _rep_spec(wfc.shape), _rep_spec(bfc.shape),
                  _rep_spec(wproj.shape), _rep_spec(bproj.shape)],
        out_specs=act_spec,
        out_shape=jax.ShapeDtypeStruct((B, S, D), jnp.float32),
        compiler_params=pltpu.CompilerParams(
            dimension_semantics=("parallel", "parallel")),
    )(x, ctx, wo, bo, g2, b2, wfc, bfc, wproj, bproj)


# ---------------------------------------------------------------------------
# kernel 4: final LayerNorm + logits, tiled over (batch, seq tiles, vocab tiles)
# ---------------------------------------------------------------------------
def final_ln_logits_kernel(x_ref, g_ref, b_ref, w_ref, bl_ref, o_ref, *, eps):
    h = _layernorm(x_ref[0], g_ref[0], b_ref[0], eps).astype(jnp.bfloat16)
    o_ref[0] = (jnp.dot(h, w_ref[...], preferred_element_type=jnp.float32)
                + bl_ref[0]).astype(o_ref.dtype)


def run_final_ln_logits(x, g, b, w, bl, *, eps):
    B, S, D = x.shape
    V = w.shape[1]
    ts = _choose_tile(S, 256)
    tv = _choose_tile(V, 256)   # vocab tiling keeps W_logits out of VMEM at real vocab sizes
    kernel = functools.partial(final_ln_logits_kernel, eps=eps)
    return pl.pallas_call(
        kernel,
        grid=(B, S // ts, V // tv),
        in_specs=[pl.BlockSpec((1, ts, D), lambda bi, si, vi: (bi, si, 0)),
                  _rep_spec(g.shape), _rep_spec(b.shape),
                  pl.BlockSpec((D, tv), lambda bi, si, vi: (0, vi)),
                  pl.BlockSpec((1, tv), lambda bi, si, vi: (0, vi))],
        out_specs=pl.BlockSpec((1, ts, tv), lambda bi, si, vi: (bi, si, vi)),
        out_shape=jax.ShapeDtypeStruct((B, S, V), jnp.float32),
        compiler_params=pltpu.CompilerParams(
            dimension_semantics=("parallel", "parallel", "parallel")),
    )(x, g, b, w, bl)


# ---------------------------------------------------------------------------
# full model forward (glue in plain JAX, hot paths in Pallas)
# ---------------------------------------------------------------------------
def transformer_block_forward(x, p, *, num_heads, eps):
    B, S, D = x.shape
    qkv = run_ln_qkv(x, p["ln1_g"], p["ln1_b"], p["w_qkv"], p["b_qkv"], eps=eps)
    # head split / merge is cheap XLA layout glue around the flash kernel
    q = _split_heads(qkv[..., :D], num_heads)
    k = _split_heads(qkv[..., D:2 * D], num_heads)
    v = _split_heads(qkv[..., 2 * D:], num_heads)
    ctx = _merge_heads(run_flash_attention(q, k, v))                 # [B,S,D] bf16
    return run_attn_out_mlp(
        x, ctx, p["w_out"], p["b_out"], p["ln2_g"], p["ln2_b"],
        p["w_fc"], p["b_fc"], p["w_proj"], p["b_proj"], eps=eps)


def transformer_forward(X, params, args):
    eps = args["layernorm_eps"]
    # embedding lookup (gather) left to XLA glue
    hidden = jnp.take(params["emb"], X, axis=0)                      # [B, S, D] f32

    if args["swap_batch_len_and_seq_len"]:
        hidden = jnp.swapaxes(hidden, 0, 1)

    for p in params["blocks"]:
        hidden = transformer_block_forward(hidden, p,
                                           num_heads=args["num_heads"], eps=eps)

    if args["swap_batch_len_and_seq_len"]:
        hidden = jnp.swapaxes(hidden, 0, 1)

    return run_final_ln_logits(hidden, params["final_ln_g"], params["final_ln_b"],
                               params["w_logits"], params["b_logits"], eps=eps)


# ---------------------------------------------------------------------------
# deterministic parameter init (matmul weights in bf16, biases/LN/residual in f32)
# ---------------------------------------------------------------------------
def init_params(key, args):
    V, D, depth = args["vocab_len"], args["embedding_dim"], args["depth"]
    Hm = 4 * D
    keys = iter(jax.random.split(key, 2 + depth * 4))

    def nrm(k, shape, scale=0.02, dtype=jnp.bfloat16):
        return (scale * jax.random.normal(k, shape, dtype=jnp.float32)).astype(dtype)

    params = {
        "emb": nrm(next(keys), (V, D), dtype=jnp.float32),
        "final_ln_g": jnp.ones((1, D), jnp.float32),
        "final_ln_b": jnp.zeros((1, D), jnp.float32),
        "w_logits": nrm(next(keys), (D, V)),
        "b_logits": jnp.zeros((1, V), jnp.float32),
        "blocks": [],
    }
    for _ in range(depth):
        params["blocks"].append({
            "ln1_g": jnp.ones((1, D), jnp.float32),
            "ln1_b": jnp.zeros((1, D), jnp.float32),
            "w_qkv": nrm(next(keys), (D, 3 * D)),
            "b_qkv": jnp.zeros((1, 3 * D), jnp.float32),
            "w_out": nrm(next(keys), (D, D)),
            "b_out": jnp.zeros((1, D), jnp.float32),
            "ln2_g": jnp.ones((1, D), jnp.float32),
            "ln2_b": jnp.zeros((1, D), jnp.float32),
            "w_fc": nrm(next(keys), (D, Hm)),
            "b_fc": jnp.zeros((1, Hm), jnp.float32),
            "w_proj": nrm(next(keys), (Hm, D)),
            "b_proj": jnp.zeros((1, D), jnp.float32),
        })
    return params


# ---------------------------------------------------------------------------
if __name__ == "__main__":
    args = {
        "use_cache": False,                      # TODO(synk): KV-cache path not implemented
        "swap_batch_len_and_seq_len": False,
        "vocab_len": 512,
        "embedding_dim": 128,
        "num_heads": 4,
        "depth": 2,
        "layernorm_eps": 1e-5,
    }
    B, S = 2, 128                                # lane-aligned small test shapes

    key = jax.random.PRNGKey(0)
    k_tok, k_par = jax.random.split(key)
    X = jax.random.randint(k_tok, (B, S), 0, args["vocab_len"], dtype=jnp.int32)
    params = init_params(k_par, args)

    fwd = jax.jit(functools.partial(transformer_forward, args=args))
    logits = jax.block_until_ready(fwd(X, params))

    assert logits.shape == (B, S, args["vocab_len"])
    assert logits.dtype == jnp.float32
    assert bool(jnp.all(jnp.isfinite(logits)))
    print("KERNEL_OK")
</pallas_src>

<mosaic_0001>
module attributes {stable_mosaic.version = 11 : i64} {
  func.func @flash_attn_kernel(%arg0: i32, %arg1: i32, %arg2: i32, %arg3: memref<1x4x128x32xbf16, #tpu.memory_space<vmem>>, %arg4: memref<1x4x128x32xbf16, #tpu.memory_space<vmem>>, %arg5: memref<1x4x128x32xbf16, #tpu.memory_space<vmem>>, %arg6: memref<1x4x128x32xbf16, #tpu.memory_space<vmem>>, %arg7: memref<4x128x1xf32, #tpu.memory_space<vmem>>, %arg8: memref<4x128x1xf32, #tpu.memory_space<vmem>>, %arg9: memref<4x128x32xf32, #tpu.memory_space<vmem>>) attributes {dimension_semantics = [#tpu.dimension_semantics<parallel>, #tpu.dimension_semantics<parallel>, #tpu.dimension_semantics<arbitrary>], iteration_bounds = array<i64: 2, 1, 1>, scalar_prefetch = 0 : i64, scratch_operands = 3 : i64, tpu.core_type = #tpu.core_type<tc>, window_params = [{transform_indices = @transform_0, window_bounds = array<i64: 1, 4, 128, 32>}, {transform_indices = @transform_1, window_bounds = array<i64: 1, 4, 128, 32>}, {transform_indices = @transform_2, window_bounds = array<i64: 1, 4, 128, 32>}, {transform_indices = @transform_3, window_bounds = array<i64: 1, 4, 128, 32>}]} {
    %c0_i32 = arith.constant 0 : i32
    %0 = arith.cmpi eq, %arg2, %c0_i32 : i32
    %1 = arith.extui %0 : i1 to i32
    %c0_i32_0 = arith.constant 0 : i32
    %2 = arith.cmpi ne, %1, %c0_i32_0 : i32
    scf.if %2 {
      %cst = arith.constant 0xFF800000 : f32
      %12 = vector.broadcast %cst : f32 to vector<4x128x1xf32>
      %c0 = arith.constant 0 : index
      %c0_6 = arith.constant 0 : index
      %c0_7 = arith.constant 0 : index
      %13 = vector.load %arg7[%c0, %c0_6, %c0_7] : memref<4x128x1xf32, #tpu.memory_space<vmem>>, vector<4x128x1xf32>
      tpu.vector_store %arg7[%c0, %c0_6, %c0_7], %12 {strides = array<i32>} : memref<4x128x1xf32, #tpu.memory_space<vmem>>, vector<4x128x1xf32>,
      %cst_8 = arith.constant 0.000000e+00 : f32
      %14 = vector.broadcast %cst_8 : f32 to vector<4x128x1xf32>
      %c0_9 = arith.constant 0 : index
      %c0_10 = arith.constant 0 : index
      %c0_11 = arith.constant 0 : index
      %15 = vector.load %arg8[%c0_9, %c0_10, %c0_11] : memref<4x128x1xf32, #tpu.memory_space<vmem>>, vector<4x128x1xf32>
      tpu.vector_store %arg8[%c0_9, %c0_10, %c0_11], %14 {strides = array<i32>} : memref<4x128x1xf32, #tpu.memory_space<vmem>>, vector<4x128x1xf32>,
      %cst_12 = arith.constant 0.000000e+00 : f32
      %16 = vector.broadcast %cst_12 : f32 to vector<4x128x32xf32>
      %c0_13 = arith.constant 0 : index
      %c0_14 = arith.constant 0 : index
      %c0_15 = arith.constant 0 : index
      %17 = vector.load %arg9[%c0_13, %c0_14, %c0_15] : memref<4x128x32xf32, #tpu.memory_space<vmem>>, vector<4x128x32xf32>
      tpu.vector_store %arg9[%c0_13, %c0_14, %c0_15], %16 {strides = array<i32>} : memref<4x128x32xf32, #tpu.memory_space<vmem>>, vector<4x128x32xf32>,
    } else {
    }
    %c128_i32 = arith.constant 128 : i32
    %3 = arith.muli %arg1, %c128_i32 : i32
    %c128_i32_1 = arith.constant 128 : i32
    %4 = arith.muli %arg2, %c128_i32_1 : i32
    %c128_i32_2 = arith.constant 128 : i32
    %5 = arith.addi %3, %c128_i32_2 : i32
    %6 = arith.cmpi slt, %4, %5 : i32
    %7 = arith.extui %6 : i1 to i32
    %c0_i32_3 = arith.constant 0 : i32
    %8 = arith.cmpi ne, %7, %c0_i32_3 : i32
    scf.if %8 {
      %c0 = arith.constant 0 : index
      %c0_6 = arith.constant 0 : index
      %c0_7 = arith.constant 0 : index
      %c0_8 = arith.constant 0 : index
      %12 = vector.load %arg3[%c0, %c0_6, %c0_7, %c0_8] : memref<1x4x128x32xbf16, #tpu.memory_space<vmem>>, vector<1x4x128x32xbf16>
      %13 = vector.shape_cast %12 : vector<1x4x128x32xbf16> to vector<4x128x32xbf16>
      %cst = arith.constant 1.767580e-01 : bf16
      %14 = vector.broadcast %cst : bf16 to vector<4x128x32xbf16>
      %15 = arith.mulf %13, %14 : vector<4x128x32xbf16>
      %c0_9 = arith.constant 0 : index
      %c0_10 = arith.constant 0 : index
      %c0_11 = arith.constant 0 : index
      %c0_12 = arith.constant 0 : index
      %16 = vector.load %arg4[%c0_9, %c0_10, %c0_11, %c0_12] : memref<1x4x128x32xbf16, #tpu.memory_space<vmem>>, vector<1x4x128x32xbf16>
      %17 = vector.shape_cast %16 : vector<1x4x128x32xbf16> to vector<4x128x32xbf16>
      %c0_13 = arith.constant 0 : index
      %c0_14 = arith.constant 0 : index
      %c0_15 = arith.constant 0 : index
      %c0_16 = arith.constant 0 : index
      %18 = vector.load %arg5[%c0_13, %c0_14, %c0_15, %c0_16] : memref<1x4x128x32xbf16, #tpu.memory_space<vmem>>, vector<1x4x128x32xbf16>
      %19 = vector.shape_cast %18 : vector<1x4x128x32xbf16> to vector<4x128x32xbf16>
      "tpu.trace_start"() <{level = 10 : i32, message = "hqd,hkd->hqk"}> : () -> ()
      %cst_17 = arith.constant dense<0.000000e+00> : vector<4x128x128xf32>
      %20 = tpu.matmul %15, %17, %cst_17 {dimension_numbers = #tpu.dot_dimension_numbers<[2], [2], [1], [1], [0, 0, 0, 1, 1, 1], [0], [0]>} : vector<4x128x32xbf16>, vector<4x128x32xbf16>, vector<4x128x128xf32> -> vector<4x128x128xf32>
      "tpu.trace_stop"() : () -> ()
      %21 = tpu.iota {dimensions = array<i32: 0>} : vector<128x128xi32>
      %22 = vector.broadcast %3 : i32 to vector<128x128xi32>
      %23 = arith.addi %22, %21 : vector<128x128xi32>
      %24 = tpu.iota {dimensions = array<i32: 1>} : vector<128x128xi32>
      %25 = vector.broadcast %4 : i32 to vector<128x128xi32>
      %26 = arith.addi %25, %24 : vector<128x128xi32>
      %27 = arith.cmpi sle, %26, %23 : vector<128x128xi32>
      %28 = vector.shape_cast %27 : vector<128x128xi1> to vector<1x128x128xi1>
      %cst_18 = arith.constant -1.000000e+30 : f32
      %29 = vector.shape_cast %28 : vector<1x128x128xi1> to vector<1x128x128xi1>
      %30 = vector.broadcast %29 : vector<1x128x128xi1> to vector<4x128x128xi1>
      %31 = vector.broadcast %cst_18 : f32 to vector<4x128x128xf32>
      %32 = arith.select %30, %20, %31 : vector<4x128x128xi1>, vector<4x128x128xf32>
      %c0_19 = arith.constant 0 : index
      %c0_20 = arith.constant 0 : index
      %c0_21 = arith.constant 0 : index
      %33 = vector.load %arg7[%c0_19, %c0_20, %c0_21] : memref<4x128x1xf32, #tpu.memory_space<vmem>>, vector<4x128x1xf32>
      %cst_22 = arith.constant dense<0xFF800000> : vector<4x128xf32>
      %34 = vector.multi_reduction <maximumf>, %32, %cst_22 [2] : vector<4x128x128xf32> to vector<4x128xf32>
      %35 = vector.shape_cast %34 : vector<4x128xf32> to vector<4x128x1xf32>
      %36 = arith.maximumf %33, %35 : vector<4x128x1xf32>
      %37 = arith.subf %33, %36 : vector<4x128x1xf32>
      %38 = math.exp %37 : vector<4x128x1xf32>
      %39 = vector.broadcast %36 : vector<4x128x1xf32> to vector<4x128x128xf32>
      %40 = arith.subf %32, %39 : vector<4x128x128xf32>
      %41 = math.exp %40 : vector<4x128x128xf32>
      %c0_23 = arith.constant 0 : index
      %c0_24 = arith.constant 0 : index
      %c0_25 = arith.constant 0 : index
      %42 = vector.load %arg8[%c0_23, %c0_24, %c0_25] : memref<4x128x1xf32, #tpu.memory_space<vmem>>, vector<4x128x1xf32>
      %43 = arith.mulf %38, %42 : vector<4x128x1xf32>
      %cst_26 = arith.constant dense<0.000000e+00> : vector<4x128xf32>
      %44 = vector.multi_reduction <add>, %41, %cst_26 [2] : vector<4x128x128xf32> to vector<4x128xf32>
      %45 = vector.shape_cast %44 : vector<4x128xf32> to vector<4x128x1xf32>
      %46 = arith.addf %43, %45 : vector<4x128x1xf32>
      %c0_27 = arith.constant 0 : index
      %c0_28 = arith.constant 0 : index
      %c0_29 = arith.constant 0 : index
      %47 = vector.load %arg8[%c0_27, %c0_28, %c0_29] : memref<4x128x1xf32, #tpu.memory_space<vmem>>, vector<4x128x1xf32>
      tpu.vector_store %arg8[%c0_27, %c0_28, %c0_29], %46 {strides = array<i32>} : memref<4x128x1xf32, #tpu.memory_space<vmem>>, vector<4x128x1xf32>,
      %c0_30 = arith.constant 0 : index
      %c0_31 = arith.constant 0 : index
      %c0_32 = arith.constant 0 : index
      %48 = vector.load %arg9[%c0_30, %c0_31, %c0_32] : memref<4x128x32xf32, #tpu.memory_space<vmem>>, vector<4x128x32xf32>
      %49 = vector.broadcast %38 : vector<4x128x1xf32> to vector<4x128x32xf32>
      %50 = arith.mulf %49, %48 : vector<4x128x32xf32>
      %51 = arith.truncf %41 : vector<4x128x128xf32> to vector<4x128x128xbf16>
      "tpu.trace_start"() <{level = 10 : i32, message = "hqk,hkd->hqd"}> : () -> ()
      %cst_33 = arith.constant dense<0.000000e+00> : vector<4x128x32xf32>
      %52 = tpu.matmul %51, %19, %cst_33 {dimension_numbers = #tpu.dot_dimension_numbers<[2], [1], [1], [2], [0, 0, 0, 1, 1, 2], [0], [0]>} : vector<4x128x128xbf16>, vector<4x128x32xbf16>, vector<4x128x32xf32> -> vector<4x128x32xf32>
      "tpu.trace_stop"() : () -> ()
      %53 = arith.addf %50, %52 : vector<4x128x32xf32>
      %c0_34 = arith.constant 0 : index
      %c0_35 = arith.constant 0 : index
      %c0_36 = arith.constant 0 : index
      %54 = vector.load %arg9[%c0_34, %c0_35, %c0_36] : memref<4x128x32xf32, #tpu.memory_space<vmem>>, vector<4x128x32xf32>
      tpu.vector_store %arg9[%c0_34, %c0_35, %c0_36], %53 {strides = array<i32>} : memref<4x128x32xf32, #tpu.memory_space<vmem>>, vector<4x128x32xf32>,
      %c0_37 = arith.constant 0 : index
      %c0_38 = arith.constant 0 : index
      %c0_39 = arith.constant 0 : index
      %55 = vector.load %arg7[%c0_37, %c0_38, %c0_39] : memref<4x128x1xf32, #tpu.memory_space<vmem>>, vector<4x128x1xf32>
      tpu.vector_store %arg7[%c0_37, %c0_38, %c0_39], %36 {strides = array<i32>} : memref<4x128x1xf32, #tpu.memory_space<vmem>>, vector<4x128x1xf32>,
    } else {
    }
    %c0_i32_4 = arith.constant 0 : i32
    %9 = arith.cmpi eq, %arg2, %c0_i32_4 : i32
    %10 = arith.extui %9 : i1 to i32
    %c0_i32_5 = arith.constant 0 : i32
    %11 = arith.cmpi ne, %10, %c0_i32_5 : i32
    scf.if %11 {
      %c0 = arith.constant 0 : index
      %c0_6 = arith.constant 0 : index
      %c0_7 = arith.constant 0 : index
      %12 = vector.load %arg8[%c0, %c0_6, %c0_7] : memref<4x128x1xf32, #tpu.memory_space<vmem>>, vector<4x128x1xf32>
      %13 = tpu.reciprocal %12 {approx = true} : vector<4x128x1xf32> -> vector<4x128x1xf32>
      %c0_8 = arith.constant 0 : index
      %c0_9 = arith.constant 0 : index
      %c0_10 = arith.constant 0 : index
      %14 = vector.load %arg9[%c0_8, %c0_9, %c0_10] : memref<4x128x32xf32, #tpu.memory_space<vmem>>, vector<4x128x32xf32>
      %15 = vector.broadcast %13 : vector<4x128x1xf32> to vector<4x128x32xf32>
      %16 = arith.mulf %14, %15 : vector<4x128x32xf32>
      %17 = arith.truncf %16 : vector<4x128x32xf32> to vector<4x128x32xbf16>
      %c0_11 = arith.constant 0 : index
      %c0_12 = arith.constant 0 : index
      %c0_13 = arith.constant 0 : index
      %c0_14 = arith.constant 0 : index
      %18 = vector.load %arg6[%c0_11, %c0_12, %c0_13, %c0_14] : memref<1x4x128x32xbf16, #tpu.memory_space<vmem>>, vector<1x4x128x32xbf16>
      %19 = vector.shape_cast %18 : vector<1x4x128x32xbf16> to vector<4x128x32xbf16>
      %20 = vector.shape_cast %17 : vector<4x128x32xbf16> to vector<1x4x128x32xbf16>
      tpu.vector_store %arg6[%c0_11, %c0_12, %c0_13, %c0_14], %20 {strides = array<i32>} : memref<1x4x128x32xbf16, #tpu.memory_space<vmem>>, vector<1x4x128x32xbf16>,
    } else {
    }
    return
  }
  func.func @transform_0(%arg0: i32, %arg1: i32, %arg2: i32) -> (i32, i32, i32, i32) {
    %c0_i32 = arith.constant 0 : i32
    %c0_i32_0 = arith.constant 0 : i32
    %c0_i32_1 = arith.constant 0 : i32
    return %arg0, %c0_i32, %arg1, %c0_i32_0 : i32, i32, i32, i32
  }
  func.func @transform_1(%arg0: i32, %arg1: i32, %arg2: i32) -> (i32, i32, i32, i32) {
    %c0_i32 = arith.constant 0 : i32
    %c0_i32_0 = arith.constant 0 : i32
    %c0_i32_1 = arith.constant 0 : i32
    return %arg0, %c0_i32, %arg2, %c0_i32_0 : i32, i32, i32, i32
  }
  func.func @transform_2(%arg0: i32, %arg1: i32, %arg2: i32) -> (i32, i32, i32, i32) {
    %c0_i32 = arith.constant 0 : i32
    %c0_i32_0 = arith.constant 0 : i32
    %c0_i32_1 = arith.constant 0 : i32
    return %arg0, %c0_i32, %arg2, %c0_i32_0 : i32, i32, i32, i32
  }
  func.func @transform_3(%arg0: i32, %arg1: i32, %arg2: i32) -> (i32, i32, i32, i32) {
    %c0_i32 = arith.constant 0 : i32
    %c0_i32_0 = arith.constant 0 : i32
    %c0_i32_1 = arith.constant 0 : i32
    return %arg0, %c0_i32, %arg1, %c0_i32_0 : i32, i32, i32, i32
  }
}

module attributes {stable_mosaic.version = 11 : i64} {
  func.func @ln_qkv_kernel(%arg0: i32, %arg1: i32, %arg2: memref<1x128x128xf32, #tpu.memory_space<vmem>>, %arg3: memref<1x128xf32, #tpu.memory_space<vmem>>, %arg4: memref<1x128xf32, #tpu.memory_space<vmem>>, %arg5: memref<128x384xbf16, #tpu.memory_space<vmem>>, %arg6: memref<1x384xf32, #tpu.memory_space<vmem>>, %arg7: memref<1x128x384xbf16, #tpu.memory_space<vmem>>) attributes {dimension_semantics = [#tpu.dimension_semantics<parallel>, #tpu.dimension_semantics<parallel>], iteration_bounds = array<i64: 2, 1>, scalar_prefetch = 0 : i64, scratch_operands = 0 : i64, tpu.core_type = #tpu.core_type<tc>, window_params = [{transform_indices = @transform_0, window_bounds = array<i64: 1, 128, 128>}, {pipeline_mode = #tpu.pipeline_mode<synchronous>, transform_indices = @transform_1, window_bounds = array<i64: 1, 128>}, {pipeline_mode = #tpu.pipeline_mode<synchronous>, transform_indices = @transform_2, window_bounds = array<i64: 1, 128>}, {pipeline_mode = #tpu.pipeline_mode<synchronous>, transform_indices = @transform_3, window_bounds = array<i64: 128, 384>}, {pipeline_mode = #tpu.pipeline_mode<synchronous>, transform_indices = @transform_4, window_bounds = array<i64: 1, 384>}, {transform_indices = @transform_5, window_bounds = array<i64: 1, 128, 384>}]} {
    %c0 = arith.constant 0 : index
    %c0_0 = arith.constant 0 : index
    %c0_1 = arith.constant 0 : index
    %0 = vector.load %arg2[%c0, %c0_0, %c0_1] : memref<1x128x128xf32, #tpu.memory_space<vmem>>, vector<1x128x128xf32>
    %1 = vector.shape_cast %0 : vector<1x128x128xf32> to vector<128x128xf32>
    %c0_2 = arith.constant 0 : index
    %c0_3 = arith.constant 0 : index
    %2 = vector.load %arg3[%c0_2, %c0_3] : memref<1x128xf32, #tpu.memory_space<vmem>>, vector<1x128xf32>
    %3 = vector.shape_cast %2 : vector<1x128xf32> to vector<128xf32>
    %c0_4 = arith.constant 0 : index
    %c0_5 = arith.constant 0 : index
    %4 = vector.load %arg4[%c0_4, %c0_5] : memref<1x128xf32, #tpu.memory_space<vmem>>, vector<1x128xf32>
    %5 = vector.shape_cast %4 : vector<1x128xf32> to vector<128xf32>
    %cst = arith.constant dense<0.000000e+00> : vector<128xf32>
    %6 = vector.multi_reduction <add>, %1, %cst [1] : vector<128x128xf32> to vector<128xf32>
    %7 = vector.shape_cast %6 : vector<128xf32> to vector<128x1xf32>
    %cst_6 = arith.constant 1.280000e+02 : f32
    %8 = vector.broadcast %cst_6 : f32 to vector<128x1xf32>
    %9 = arith.divf %7, %8 : vector<128x1xf32>
    %10 = vector.broadcast %9 : vector<128x1xf32> to vector<128x128xf32>
    %11 = arith.subf %1, %10 : vector<128x128xf32>
    %12 = arith.mulf %11, %11 : vector<128x128xf32>
    %cst_7 = arith.constant dense<0.000000e+00> : vector<128xf32>
    %13 = vector.multi_reduction <add>, %12, %cst_7 [1] : vector<128x128xf32> to vector<128xf32>
    %14 = vector.shape_cast %13 : vector<128xf32> to vector<128x1xf32>
    %cst_8 = arith.constant 1.280000e+02 : f32
    %15 = vector.broadcast %cst_8 : f32 to vector<128x1xf32>
    %16 = arith.divf %14, %15 : vector<128x1xf32>
    %17 = vector.broadcast %9 : vector<128x1xf32> to vector<128x128xf32>
    %18 = arith.subf %1, %17 : vector<128x128xf32>
    %cst_9 = arith.constant 9.99999974E-6 : f32
    %19 = vector.broadcast %cst_9 : f32 to vector<128x1xf32>
    %20 = arith.addf %16, %19 : vector<128x1xf32>
    %21 = math.rsqrt %20 : vector<128x1xf32>
    %22 = vector.broadcast %21 : vector<128x1xf32> to vector<128x128xf32>
    %23 = arith.mulf %18, %22 : vector<128x128xf32>
    %24 = vector.shape_cast %3 : vector<128xf32> to vector<1x128xf32>
    %25 = vector.broadcast %24 : vector<1x128xf32> to vector<128x128xf32>
    %26 = arith.mulf %23, %25 : vector<128x128xf32>
    %27 = vector.shape_cast %5 : vector<128xf32> to vector<1x128xf32>
    %28 = vector.broadcast %27 : vector<1x128xf32> to vector<128x128xf32>
    %29 = arith.addf %26, %28 : vector<128x128xf32>
    %30 = arith.truncf %29 : vector<128x128xf32> to vector<128x128xbf16>
    %c0_10 = arith.constant 0 : index
    %c0_11 = arith.constant 0 : index
    %31 = vector.load %arg5[%c0_10, %c0_11] : memref<128x384xbf16, #tpu.memory_space<vmem>>, vector<128x384xbf16>
    %cst_12 = arith.constant dense<0.000000e+00> : vector<128x384xf32>
    %32 = tpu.matmul %30, %31, %cst_12 {dimension_numbers = #tpu.dot_dimension_numbers<[1], [0], [0], [1], [0, 0, 1, 1], [], []>} : vector<128x128xbf16>, vector<128x384xbf16>, vector<128x384xf32> -> vector<128x384xf32>
    %c0_13 = arith.constant 0 : index
    %c0_14 = arith.constant 0 : index
    %33 = vector.load %arg6[%c0_13, %c0_14] : memref<1x384xf32, #tpu.memory_space<vmem>>, vector<1x384xf32>
    %34 = vector.shape_cast %33 : vector<1x384xf32> to vector<384xf32>
    %35 = vector.shape_cast %34 : vector<384xf32> to vector<1x384xf32>
    %36 = vector.broadcast %35 : vector<1x384xf32> to vector<128x384xf32>
    %37 = arith.addf %32, %36 : vector<128x384xf32>
    %38 = arith.truncf %37 : vector<128x384xf32> to vector<128x384xbf16>
    %c0_15 = arith.constant 0 : index
    %c0_16 = arith.constant 0 : index
    %c0_17 = arith.constant 0 : index
    %39 = vector.load %arg7[%c0_15, %c0_16, %c0_17] : memref<1x128x384xbf16, #tpu.memory_space<vmem>>, vector<1x128x384xbf16>
    %40 = vector.shape_cast %39 : vector<1x128x384xbf16> to vector<128x384xbf16>
    %41 = vector.shape_cast %38 : vector<128x384xbf16> to vector<1x128x384xbf16>
    tpu.vector_store %arg7[%c0_15, %c0_16, %c0_17], %41 {strides = array<i32>} : memref<1x128x384xbf16, #tpu.memory_space<vmem>>, vector<1x128x384xbf16>,
    return
  }
  func.func @transform_0(%arg0: i32, %arg1: i32) -> (i32, i32, i32) {
    %c0_i32 = arith.constant 0 : i32
    %c0_i32_0 = arith.constant 0 : i32
    return %arg0, %arg1, %c0_i32 : i32, i32, i32
  }
  func.func @transform_1(%arg0: i32, %arg1: i32) -> (i32, i32) {
    %c0_i32 = arith.constant 0 : i32
    %c0_i32_0 = arith.constant 0 : i32
    %c0_i32_1 = arith.constant 0 : i32
    return %c0_i32, %c0_i32_0 : i32, i32
  }
  func.func @transform_2(%arg0: i32, %arg1: i32) -> (i32, i32) {
    %c0_i32 = arith.constant 0 : i32
    %c0_i32_0 = arith.constant 0 : i32
    %c0_i32_1 = arith.constant 0 : i32
    return %c0_i32, %c0_i32_0 : i32, i32
  }
  func.func @transform_3(%arg0: i32, %arg1: i32) -> (i32, i32) {
    %c0_i32 = arith.constant 0 : i32
    %c0_i32_0 = arith.constant 0 : i32
    %c0_i32_1 = arith.constant 0 : i32
    return %c0_i32, %c0_i32_0 : i32, i32
  }
  func.func @transform_4(%arg0: i32, %arg1: i32) -> (i32, i32) {
    %c0_i32 = arith.constant 0 : i32
    %c0_i32_0 = arith.constant 0 : i32
    %c0_i32_1 = arith.constant 0 : i32
    return %c0_i32, %c0_i32_0 : i32, i32
  }
  func.func @transform_5(%arg0: i32, %arg1: i32) -> (i32, i32, i32) {
    %c0_i32 = arith.constant 0 : i32
    %c0_i32_0 = arith.constant 0 : i32
    return %arg0, %arg1, %c0_i32 : i32, i32, i32
  }
}

module attributes {stable_mosaic.version = 11 : i64} {
  func.func @attn_out_mlp_kernel(%arg0: i32, %arg1: i32, %arg2: memref<1x128x128xf32, #tpu.memory_space<vmem>>, %arg3: memref<1x128x128xbf16, #tpu.memory_space<vmem>>, %arg4: memref<128x128xbf16, #tpu.memory_space<vmem>>, %arg5: memref<1x128xf32, #tpu.memory_space<vmem>>, %arg6: memref<1x128xf32, #tpu.memory_space<vmem>>, %arg7: memref<1x128xf32, #tpu.memory_space<vmem>>, %arg8: memref<128x512xbf16, #tpu.memory_space<vmem>>, %arg9: memref<1x512xf32, #tpu.memory_space<vmem>>, %arg10: memref<512x128xbf16, #tpu.memory_space<vmem>>, %arg11: memref<1x128xf32, #tpu.memory_space<vmem>>, %arg12: memref<1x128x128xf32, #tpu.memory_space<vmem>>) attributes {dimension_semantics = [#tpu.dimension_semantics<parallel>, #tpu.dimension_semantics<parallel>], iteration_bounds = array<i64: 2, 1>, scalar_prefetch = 0 : i64, scratch_operands = 0 : i64, tpu.core_type = #tpu.core_type<tc>, window_params = [{transform_indices = @transform_0, window_bounds = array<i64: 1, 128, 128>}, {transform_indices = @transform_1, window_bounds = array<i64: 1, 128, 128>}, {pipeline_mode = #tpu.pipeline_mode<synchronous>, transform_indices = @transform_2, window_bounds = array<i64: 128, 128>}, {pipeline_mode = #tpu.pipeline_mode<synchronous>, transform_indices = @transform_3, window_bounds = array<i64: 1, 128>}, {pipeline_mode = #tpu.pipeline_mode<synchronous>, transform_indices = @transform_4, window_bounds = array<i64: 1, 128>}, {pipeline_mode = #tpu.pipeline_mode<synchronous>, transform_indices = @transform_5, window_bounds = array<i64: 1, 128>}, {pipeline_mode = #tpu.pipeline_mode<synchronous>, transform_indices = @transform_6, window_bounds = array<i64: 128, 512>}, {pipeline_mode = #tpu.pipeline_mode<synchronous>, transform_indices = @transform_7, window_bounds = array<i64: 1, 512>}, {pipeline_mode = #tpu.pipeline_mode<synchronous>, transform_indices = @transform_8, window_bounds = array<i64: 512, 128>}, {pipeline_mode = #tpu.pipeline_mode<synchronous>, transform_indices = @transform_9, window_bounds = array<i64: 1, 128>}, {transform_indices = @transform_10, window_bounds = array<i64: 1, 128, 128>}]} {
    %c0 = arith.constant 0 : index
    %c0_0 = arith.constant 0 : index
    %c0_1 = arith.constant 0 : index
    %0 = vector.load %arg2[%c0, %c0_0, %c0_1] : memref<1x128x128xf32, #tpu.memory_space<vmem>>, vector<1x128x128xf32>
    %1 = vector.shape_cast %0 : vector<1x128x128xf32> to vector<128x128xf32>
    %c0_2 = arith.constant 0 : index
    %c0_3 = arith.constant 0 : index
    %c0_4 = arith.constant 0 : index
    %2 = vector.load %arg3[%c0_2, %c0_3, %c0_4] : memref<1x128x128xbf16, #tpu.memory_space<vmem>>, vector<1x128x128xbf16>
    %3 = vector.shape_cast %2 : vector<1x128x128xbf16> to vector<128x128xbf16>
    %c0_5 = arith.constant 0 : index
    %c0_6 = arith.constant 0 : index
    %4 = vector.load %arg4[%c0_5, %c0_6] : memref<128x128xbf16, #tpu.memory_space<vmem>>, vector<128x128xbf16>
    %cst = arith.constant dense<0.000000e+00> : vector<128x128xf32>
    %5 = tpu.matmul %3, %4, %cst {dimension_numbers = #tpu.dot_dimension_numbers<[1], [0], [0], [1], [0, 0, 1, 1], [], []>} : vector<128x128xbf16>, vector<128x128xbf16>, vector<128x128xf32> -> vector<128x128xf32>
    %c0_7 = arith.constant 0 : index
    %c0_8 = arith.constant 0 : index
    %6 = vector.load %arg5[%c0_7, %c0_8] : memref<1x128xf32, #tpu.memory_space<vmem>>, vector<1x128xf32>
    %7 = vector.shape_cast %6 : vector<1x128xf32> to vector<128xf32>
    %8 = vector.shape_cast %7 : vector<128xf32> to vector<1x128xf32>
    %9 = vector.broadcast %8 : vector<1x128xf32> to vector<128x128xf32>
    %10 = arith.addf %5, %9 : vector<128x128xf32>
    %11 = arith.addf %1, %10 : vector<128x128xf32>
    %c0_9 = arith.constant 0 : index
    %c0_10 = arith.constant 0 : index
    %12 = vector.load %arg6[%c0_9, %c0_10] : memref<1x128xf32, #tpu.memory_space<vmem>>, vector<1x128xf32>
    %13 = vector.shape_cast %12 : vector<1x128xf32> to vector<128xf32>
    %c0_11 = arith.constant 0 : index
    %c0_12 = arith.constant 0 : index
    %14 = vector.load %arg7[%c0_11, %c0_12] : memref<1x128xf32, #tpu.memory_space<vmem>>, vector<1x128xf32>
    %15 = vector.shape_cast %14 : vector<1x128xf32> to vector<128xf32>
    %cst_13 = arith.constant dense<0.000000e+00> : vector<128xf32>
    %16 = vector.multi_reduction <add>, %11, %cst_13 [1] : vector<128x128xf32> to vector<128xf32>
    %17 = vector.shape_cast %16 : vector<128xf32> to vector<128x1xf32>
    %cst_14 = arith.constant 1.280000e+02 : f32
    %18 = vector.broadcast %cst_14 : f32 to vector<128x1xf32>
    %19 = arith.divf %17, %18 : vector<128x1xf32>
    %20 = vector.broadcast %19 : vector<128x1xf32> to vector<128x128xf32>
    %21 = arith.subf %11, %20 : vector<128x128xf32>
    %22 = arith.mulf %21, %21 : vector<128x128xf32>
    %cst_15 = arith.constant dense<0.000000e+00> : vector<128xf32>
    %23 = vector.multi_reduction <add>, %22, %cst_15 [1] : vector<128x128xf32> to vector<128xf32>
    %24 = vector.shape_cast %23 : vector<128xf32> to vector<128x1xf32>
    %cst_16 = arith.constant 1.280000e+02 : f32
    %25 = vector.broadcast %cst_16 : f32 to vector<128x1xf32>
    %26 = arith.divf %24, %25 : vector<128x1xf32>
    %27 = vector.broadcast %19 : vector<128x1xf32> to vector<128x128xf32>
    %28 = arith.subf %11, %27 : vector<128x128xf32>
    %cst_17 = arith.constant 9.99999974E-6 : f32
    %29 = vector.broadcast %cst_17 : f32 to vector<128x1xf32>
    %30 = arith.addf %26, %29 : vector<128x1xf32>
    %31 = math.rsqrt %30 : vector<128x1xf32>
    %32 = vector.broadcast %31 : vector<128x1xf32> to vector<128x128xf32>
    %33 = arith.mulf %28, %32 : vector<128x128xf32>
    %34 = vector.shape_cast %13 : vector<128xf32> to vector<1x128xf32>
    %35 = vector.broadcast %34 : vector<1x128xf32> to vector<128x128xf32>
    %36 = arith.mulf %33, %35 : vector<128x128xf32>
    %37 = vector.shape_cast %15 : vector<128xf32> to vector<1x128xf32>
    %38 = vector.broadcast %37 : vector<1x128xf32> to vector<128x128xf32>
    %39 = arith.addf %36, %38 : vector<128x128xf32>
    %40 = arith.truncf %39 : vector<128x128xf32> to vector<128x128xbf16>
    %c0_18 = arith.constant 0 : index
    %c0_19 = arith.constant 0 : index
    %41 = vector.load %arg8[%c0_18, %c0_19] : memref<128x512xbf16, #tpu.memory_space<vmem>>, vector<128x512xbf16>
    %cst_20 = arith.constant dense<0.000000e+00> : vector<128x512xf32>
    %42 = tpu.matmul %40, %41, %cst_20 {dimension_numbers = #tpu.dot_dimension_numbers<[1], [0], [0], [1], [0, 0, 1, 1], [], []>} : vector<128x128xbf16>, vector<128x512xbf16>, vector<128x512xf32> -> vector<128x512xf32>
    %c0_21 = arith.constant 0 : index
    %c0_22 = arith.constant 0 : index
    %43 = vector.load %arg9[%c0_21, %c0_22] : memref<1x512xf32, #tpu.memory_space<vmem>>, vector<1x512xf32>
    %44 = vector.shape_cast %43 : vector<1x512xf32> to vector<512xf32>
    %45 = vector.shape_cast %44 : vector<512xf32> to vector<1x512xf32>
    %46 = vector.broadcast %45 : vector<1x512xf32> to vector<128x512xf32>
    %47 = arith.addf %42, %46 : vector<128x512xf32>
    %48 = arith.mulf %47, %47 : vector<128x512xf32>
    %49 = arith.mulf %47, %48 : vector<128x512xf32>
    %cst_23 = arith.constant 4.471500e-02 : f32
    %50 = vector.broadcast %cst_23 : f32 to vector<128x512xf32>
    %51 = arith.mulf %50, %49 : vector<128x512xf32>
    %52 = arith.addf %47, %51 : vector<128x512xf32>
    %cst_24 = arith.constant 0.797884583 : f32
    %53 = vector.broadcast %cst_24 : f32 to vector<128x512xf32>
    %54 = arith.mulf %53, %52 : vector<128x512xf32>
    %55 = math.tanh %54 : vector<128x512xf32>
    %cst_25 = arith.constant 1.000000e+00 : f32
    %56 = vector.broadcast %cst_25 : f32 to vector<128x512xf32>
    %57 = arith.addf %56, %55 : vector<128x512xf32>
    %cst_26 = arith.constant 5.000000e-01 : f32
    %58 = vector.broadcast %cst_26 : f32 to vector<128x512xf32>
    %59 = arith.mulf %58, %57 : vector<128x512xf32>
    %60 = arith.mulf %47, %59 : vector<128x512xf32>
    %61 = arith.truncf %60 : vector<128x512xf32> to vector<128x512xbf16>
    %c0_27 = arith.constant 0 : index
    %c0_28 = arith.constant 0 : index
    %62 = vector.load %arg10[%c0_27, %c0_28] : memref<512x128xbf16, #tpu.memory_space<vmem>>, vector<512x128xbf16>
    %cst_29 = arith.constant dense<0.000000e+00> : vector<128x128xf32>
    %63 = tpu.matmul %61, %62, %cst_29 {dimension_numbers = #tpu.dot_dimension_numbers<[1], [0], [0], [1], [0, 0, 1, 1], [], []>} : vector<128x512xbf16>, vector<512x128xbf16>, vector<128x128xf32> -> vector<128x128xf32>
    %c0_30 = arith.constant 0 : index
    %c0_31 = arith.constant 0 : index
    %64 = vector.load %arg11[%c0_30, %c0_31] : memref<1x128xf32, #tpu.memory_space<vmem>>, vector<1x128xf32>
    %65 = vector.shape_cast %64 : vector<1x128xf32> to vector<128xf32>
    %66 = vector.shape_cast %65 : vector<128xf32> to vector<1x128xf32>
    %67 = vector.broadcast %66 : vector<1x128xf32> to vector<128x128xf32>
    %68 = arith.addf %63, %67 : vector<128x128xf32>
    %69 = arith.addf %11, %68 : vector<128x128xf32>
    %c0_32 = arith.constant 0 : index
    %c0_33 = arith.constant 0 : index
    %c0_34 = arith.constant 0 : index
    %70 = vector.load %arg12[%c0_32, %c0_33, %c0_34] : memref<1x128x128xf32, #tpu.memory_space<vmem>>, vector<1x128x128xf32>
    %71 = vector.shape_cast %70 : vector<1x128x128xf32> to vector<128x128xf32>
    %72 = vector.shape_cast %69 : vector<128x128xf32> to vector<1x128x128xf32>
    tpu.vector_store %arg12[%c0_32, %c0_33, %c0_34], %72 {strides = array<i32>} : memref<1x128x128xf32, #tpu.memory_space<vmem>>, vector<1x128x128xf32>,
    return
  }
  func.func @transform_0(%arg0: i32, %arg1: i32) -> (i32, i32, i32) {
    %c0_i32 = arith.constant 0 : i32
    %c0_i32_0 = arith.constant 0 : i32
    return %arg0, %arg1, %c0_i32 : i32, i32, i32
  }
  func.func @transform_1(%arg0: i32, %arg1: i32) -> (i32, i32, i32) {
    %c0_i32 = arith.constant 0 : i32
    %c0_i32_0 = arith.constant 0 : i32
    return %arg0, %arg1, %c0_i32 : i32, i32, i32
  }
  func.func @transform_2(%arg0: i32, %arg1: i32) -> (i32, i32) {
    %c0_i32 = arith.constant 0 : i32
    %c0_i32_0 = arith.constant 0 : i32
    %c0_i32_1 = arith.constant 0 : i32
    return %c0_i32, %c0_i32_0 : i32, i32
  }
  func.func @transform_3(%arg0: i32, %arg1: i32) -> (i32, i32) {
    %c0_i32 = arith.constant 0 : i32
    %c0_i32_0 = arith.constant 0 : i32
    %c0_i32_1 = arith.constant 0 : i32
    return %c0_i32, %c0_i32_0 : i32, i32
  }
  func.func @transform_4(%arg0: i32, %arg1: i32) -> (i32, i32) {
    %c0_i32 = arith.constant 0 : i32
    %c0_i32_0 = arith.constant 0 : i32
    %c0_i32_1 = arith.constant 0 : i32
    return %c0_i32, %c0_i32_0 : i32, i32
  }
  func.func @transform_5(%arg0: i32, %arg1: i32) -> (i32, i32) {
    %c0_i32 = arith.constant 0 : i32
    %c0_i32_0 = arith.constant 0 : i32
    %c0_i32_1 = arith.constant 0 : i32
    return %c0_i32, %c0_i32_0 : i32, i32
  }
  func.func @transform_6(%arg0: i32, %arg1: i32) -> (i32, i32) {
    %c0_i32 = arith.constant 0 : i32
    %c0_i32_0 = arith.constant 0 : i32
    %c0_i32_1 = arith.constant 0 : i32
    return %c0_i32, %c0_i32_0 : i32, i32
  }
  func.func @transform_7(%arg0: i32, %arg1: i32) -> (i32, i32) {
    %c0_i32 = arith.constant 0 : i32
    %c0_i32_0 = arith.constant 0 : i32
    %c0_i32_1 = arith.constant 0 : i32
    return %c0_i32, %c0_i32_0 : i32, i32
  }
  func.func @transform_8(%arg0: i32, %arg1: i32) -> (i32, i32) {
    %c0_i32 = arith.constant 0 : i32
    %c0_i32_0 = arith.constant 0 : i32
    %c0_i32_1 = arith.constant 0 : i32
    return %c0_i32, %c0_i32_0 : i32, i32
  }
  func.func @transform_9(%arg0: i32, %arg1: i32) -> (i32, i32) {
    %c0_i32 = arith.constant 0 : i32
    %c0_i32_0 = arith.constant 0 : i32
    %c0_i32_1 = arith.constant 0 : i32
    return %c0_i32, %c0_i32_0 : i32, i32
  }
  func.func @transform_10(%arg0: i32, %arg1: i32) -> (i32, i32, i32) {
    %c0_i32 = arith.constant 0 : i32
    %c0_i32_0 = arith.constant 0 : i32
    return %arg0, %arg1, %c0_i32 : i32, i32, i32
  }
}

module attributes {stable_mosaic.version = 11 : i64} {
  func.func @final_ln_logits_kernel(%arg0: i32, %arg1: i32, %arg2: i32, %arg3: memref<1x128x128xf32, #tpu.memory_space<vmem>>, %arg4: memref<1x128xf32, #tpu.memory_space<vmem>>, %arg5: memref<1x128xf32, #tpu.memory_space<vmem>>, %arg6: memref<128x256xbf16, #tpu.memory_space<vmem>>, %arg7: memref<1x256xf32, #tpu.memory_space<vmem>>, %arg8: memref<1x128x256xf32, #tpu.memory_space<vmem>>) attributes {dimension_semantics = [#tpu.dimension_semantics<parallel>, #tpu.dimension_semantics<parallel>, #tpu.dimension_semantics<parallel>], iteration_bounds = array<i64: 2, 1, 2>, scalar_prefetch = 0 : i64, scratch_operands = 0 : i64, tpu.core_type = #tpu.core_type<tc>, window_params = [{transform_indices = @transform_0, window_bounds = array<i64: 1, 128, 128>}, {pipeline_mode = #tpu.pipeline_mode<synchronous>, transform_indices = @transform_1, window_bounds = array<i64: 1, 128>}, {pipeline_mode = #tpu.pipeline_mode<synchronous>, transform_indices = @transform_2, window_bounds = array<i64: 1, 128>}, {transform_indices = @transform_3, window_bounds = array<i64: 128, 256>}, {transform_indices = @transform_4, window_bounds = array<i64: 1, 256>}, {transform_indices = @transform_5, window_bounds = array<i64: 1, 128, 256>}]} {
    %c0 = arith.constant 0 : index
    %c0_0 = arith.constant 0 : index
    %c0_1 = arith.constant 0 : index
    %0 = vector.load %arg3[%c0, %c0_0, %c0_1] : memref<1x128x128xf32, #tpu.memory_space<vmem>>, vector<1x128x128xf32>
    %1 = vector.shape_cast %0 : vector<1x128x128xf32> to vector<128x128xf32>
    %c0_2 = arith.constant 0 : index
    %c0_3 = arith.constant 0 : index
    %2 = vector.load %arg4[%c0_2, %c0_3] : memref<1x128xf32, #tpu.memory_space<vmem>>, vector<1x128xf32>
    %3 = vector.shape_cast %2 : vector<1x128xf32> to vector<128xf32>
    %c0_4 = arith.constant 0 : index
    %c0_5 = arith.constant 0 : index
    %4 = vector.load %arg5[%c0_4, %c0_5] : memref<1x128xf32, #tpu.memory_space<vmem>>, vector<1x128xf32>
    %5 = vector.shape_cast %4 : vector<1x128xf32> to vector<128xf32>
    %cst = arith.constant dense<0.000000e+00> : vector<128xf32>
    %6 = vector.multi_reduction <add>, %1, %cst [1] : vector<128x128xf32> to vector<128xf32>
    %7 = vector.shape_cast %6 : vector<128xf32> to vector<128x1xf32>
    %cst_6 = arith.constant 1.280000e+02 : f32
    %8 = vector.broadcast %cst_6 : f32 to vector<128x1xf32>
    %9 = arith.divf %7, %8 : vector<128x1xf32>
    %10 = vector.broadcast %9 : vector<128x1xf32> to vector<128x128xf32>
    %11 = arith.subf %1, %10 : vector<128x128xf32>
    %12 = arith.mulf %11, %11 : vector<128x128xf32>
    %cst_7 = arith.constant dense<0.000000e+00> : vector<128xf32>
    %13 = vector.multi_reduction <add>, %12, %cst_7 [1] : vector<128x128xf32> to vector<128xf32>
    %14 = vector.shape_cast %13 : vector<128xf32> to vector<128x1xf32>
    %cst_8 = arith.constant 1.280000e+02 : f32
    %15 = vector.broadcast %cst_8 : f32 to vector<128x1xf32>
    %16 = arith.divf %14, %15 : vector<128x1xf32>
    %17 = vector.broadcast %9 : vector<128x1xf32> to vector<128x128xf32>
    %18 = arith.subf %1, %17 : vector<128x128xf32>
    %cst_9 = arith.constant 9.99999974E-6 : f32
    %19 = vector.broadcast %cst_9 : f32 to vector<128x1xf32>
    %20 = arith.addf %16, %19 : vector<128x1xf32>
    %21 = math.rsqrt %20 : vector<128x1xf32>
    %22 = vector.broadcast %21 : vector<128x1xf32> to vector<128x128xf32>
    %23 = arith.mulf %18, %22 : vector<128x128xf32>
    %24 = vector.shape_cast %3 : vector<128xf32> to vector<1x128xf32>
    %25 = vector.broadcast %24 : vector<1x128xf32> to vector<128x128xf32>
    %26 = arith.mulf %23, %25 : vector<128x128xf32>
    %27 = vector.shape_cast %5 : vector<128xf32> to vector<1x128xf32>
    %28 = vector.broadcast %27 : vector<1x128xf32> to vector<128x128xf32>
    %29 = arith.addf %26, %28 : vector<128x128xf32>
    %30 = arith.truncf %29 : vector<128x128xf32> to vector<128x128xbf16>
    %c0_10 = arith.constant 0 : index
    %c0_11 = arith.constant 0 : index
    %31 = vector.load %arg6[%c0_10, %c0_11] : memref<128x256xbf16, #tpu.memory_space<vmem>>, vector<128x256xbf16>
    %cst_12 = arith.constant dense<0.000000e+00> : vector<128x256xf32>
    %32 = tpu.matmul %30, %31, %cst_12 {dimension_numbers = #tpu.dot_dimension_numbers<[1], [0], [0], [1], [0, 0, 1, 1], [], []>} : vector<128x128xbf16>, vector<128x256xbf16>, vector<128x256xf32> -> vector<128x256xf32>
    %c0_13 = arith.constant 0 : index
    %c0_14 = arith.constant 0 : index
    %33 = vector.load %arg7[%c0_13, %c0_14] : memref<1x256xf32, #tpu.memory_space<vmem>>, vector<1x256xf32>
    %34 = vector.shape_cast %33 : vector<1x256xf32> to vector<256xf32>
    %35 = vector.shape_cast %34 : vector<256xf32> to vector<1x256xf32>
    %36 = vector.broadcast %35 : vector<1x256xf32> to vector<128x256xf32>
    %37 = arith.addf %32, %36 : vector<128x256xf32>
    %c0_15 = arith.constant 0 : index
    %c0_16 = arith.constant 0 : index
    %c0_17 = arith.constant 0 : index
    %38 = vector.load %arg8[%c0_15, %c0_16, %c0_17] : memref<1x128x256xf32, #tpu.memory_space<vmem>>, vector<1x128x256xf32>
    %39 = vector.shape_cast %38 : vector<1x128x256xf32> to vector<128x256xf32>
    %40 = vector.shape_cast %37 : vector<128x256xf32> to vector<1x128x256xf32>
    tpu.vector_store %arg8[%c0_15, %c0_16, %c0_17], %40 {strides = array<i32>} : memref<1x128x256xf32, #tpu.memory_space<vmem>>, vector<1x128x256xf32>,
    return
  }
  func.func @transform_0(%arg0: i32, %arg1: i32, %arg2: i32) -> (i32, i32, i32) {
    %c0_i32 = arith.constant 0 : i32
    %c0_i32_0 = arith.constant 0 : i32
    return %arg0, %arg1, %c0_i32 : i32, i32, i32
  }
  func.func @transform_1(%arg0: i32, %arg1: i32, %arg2: i32) -> (i32, i32) {
    %c0_i32 = arith.constant 0 : i32
    %c0_i32_0 = arith.constant 0 : i32
    %c0_i32_1 = arith.constant 0 : i32
    return %c0_i32, %c0_i32_0 : i32, i32
  }
  func.func @transform_2(%arg0: i32, %arg1: i32, %arg2: i32) -> (i32, i32) {
    %c0_i32 = arith.constant 0 : i32
    %c0_i32_0 = arith.constant 0 : i32
    %c0_i32_1 = arith.constant 0 : i32
    return %c0_i32, %c0_i32_0 : i32, i32
  }
  func.func @transform_3(%arg0: i32, %arg1: i32, %arg2: i32) -> (i32, i32) {
    %c0_i32 = arith.constant 0 : i32
    %c0_i32_0 = arith.constant 0 : i32
    return %c0_i32, %arg2 : i32, i32
  }
  func.func @transform_4(%arg0: i32, %arg1: i32, %arg2: i32) -> (i32, i32) {
    %c0_i32 = arith.constant 0 : i32
    %c0_i32_0 = arith.constant 0 : i32
    return %c0_i32, %arg2 : i32, i32
  }
  func.func @transform_5(%arg0: i32, %arg1: i32, %arg2: i32) -> (i32, i32, i32) {
    %c0_i32 = arith.constant 0 : i32
    return %arg0, %arg1, %arg2 : i32, i32, i32
  }
}

</mosaic_0001>

<llo_original>
// kernel: transformer_forward.7
$region0: #{transformer_forward.7}
  #allocation0 [shape = 'u32[]', space=smem, size = 0x4, offset = 0x4, fixed_abs, tag = 'smem constant byte address 0x4 - core index']
  #allocation1 [shape = 'u32[72,128]{1,0:T(1,128)}', space=vmem, size = 0x9000, scoped, tag = 'internal scratch']
  %s0 = inlined_call_operand.vmem [shape: f32[2,128,128], index: 0, kind: input, shape index: {}]
  %s1 = inlined_call_operand.vmem [shape: f32[1,128], index: 1, kind: input, shape index: {}]
  %s2 = inlined_call_operand.vmem [shape: f32[1,128], index: 2, kind: input, shape index: {}]
  %s3 = inlined_call_operand.vmem [shape: bf16[128,384], index: 3, kind: input, shape index: {}]
  %s4 = inlined_call_operand.vmem [shape: f32[1,384], index: 4, kind: input, shape index: {}]
  %s5 = inlined_call_operand.vmem [shape: bf16[2,128,384], index: 5, kind: output, shape index: {}]
  %s6 = sld [smem:[#allocation0]]
  $region53: #{transformer_forward.7} parent=0
    _
  %s8 = ssub.s32 1, %s6
  %s9 = scalar_select 0, %s8, %s6
  loop: start=0, step=1, limit=4
  $region2: #{transformer_forward.7} parent=0 // loop_pre_header
    _
  $region3: #{transformer_forward.7} parent=0 // loop_header
    %s11 = sphi 0, %s15
    %p12 = scmp.ge.s32.totalorder %s11, 4
    %s18 = sphi 0, %s30
    %s19 = sphi 0, %s26
    %s20 = sphi 0, %s18
    %s21 = sphi 0, %s19
    %s22 = sphi 0, %s20
    %s23 = sphi 0, %s21
    %s35 = sphi 0, %s37
    %s38 = sphi 0, %s35
    %s39 = sphi 0, %s38
    %s55 = sphi 0, %s39
    %s59 = sphi 0, %s59
    %s61 = sphi 0, %s59
    %s62 = sphi 0, %s61
    %s76 = sphi 0, %s62
    %s80 = sphi 0, %s80
    %s82 = sphi 0, %s80
    %s83 = sphi 0, %s82
    %s97 = sphi 0, %s83
    %s101 = sphi 0, %s101
    %s103 = sphi 0, %s101
    %s104 = sphi 0, %s103
    %s118 = sphi 0, %s104
    %s122 = sphi 0, %s122
    %s124 = sphi 0, %s122
    %s125 = sphi 0, %s124
    %s139 = sphi 0, %s125
    %s147 = sphi 0, %s149
    %s150 = sphi 0, %s147
    %s151 = sphi 0, %s150
    %s167 = sphi 0, %s151
  $region4: #{transformer_forward.7} parent=0 // loop_header_branch
    %14 = sbr.rel (%p12) target = $region8
  $region5: #{transformer_forward.7} parent=0 // loop_body
    %s16 = ssub.s32 %s11, 1
    %s17 = ssub.s32 %s11, 2
    %s24 = sadd.s32 1, %s19
    %p25 = scmp.ge.s32.totalorder %s24, 1
    %s26 = scalar_select %p25, 0, %s24
    %s27 = sadd.s32 1, %s18
    %s28 = scalar_select %p25, %s27, %s18
    %p29 = scmp.ge.s32.totalorder %s28, 2
    %s30 = scalar_select %p29, 0, %s28
    %s31 = ssub.s32 %s18, %s30
    %s32 = ssub.s32 %s19, %s26
    %s33 = sor.u32 %s31, %s32
    %p34 = scmp.eq.s32.totalorder %s33, 0
    %s36 = sadd.s32 %s35, 1
    %s37 = scalar_select %p34, %s35, %s36
    %p40 = pneg %p34
    %p41 = scmp.eq.s32.totalorder %s11, 1
    %p42 = por %p40, %p41
    %p43 = scmp.ne.s32.totalorder %s35, %s38
    %p44 = scmp.eq.s32.totalorder %s11, 0
    %p45 = por %p43, %p44
    %p46 = scmp.ne.s32.totalorder %s35, %s38
    %p47 = scmp.eq.s32.totalorder %s16, 1
    %p48 = por %p46, %p47
    %p49 = scmp.ne.s32.totalorder %s38, %s39
    %p50 = scmp.eq.s32.totalorder %s16, 0
    %p51 = por %p49, %p50
    %p52 = scmp.ne.s32.totalorder %s38, %s39
    %p53 = scmp.eq.s32.totalorder %s17, 1
    %p54 = por %p52, %p53
    %p56 = scmp.ne.s32.totalorder %s39, %s55
    %p57 = scmp.eq.s32.totalorder %s17, 0
    %p58 = por %p56, %p57
    %s60 = sadd.s32 %s59, 1
    %p63 = scmp.eq.s32.totalorder %s11, 1
    %p64 = scmp.ne.s32.totalorder %s59, %s61
    %p65 = scmp.eq.s32.totalorder %s11, 0
    %p66 = por %p64, %p65
    %p67 = scmp.ne.s32.totalorder %s59, %s61
    %p68 = scmp.eq.s32.totalorder %s16, 1
    %p69 = por %p67, %p68
    %p70 = scmp.ne.s32.totalorder %s61, %s62
    %p71 = scmp.eq.s32.totalorder %s16, 0
    %p72 = por %p70, %p71
    %p73 = scmp.ne.s32.totalorder %s61, %s62
    %p74 = scmp.eq.s32.totalorder %s17, 1
    %p75 = por %p73, %p74
    %p77 = scmp.ne.s32.totalorder %s62, %s76
    %p78 = scmp.eq.s32.totalorder %s17, 0
    %p79 = por %p77, %p78
    %s81 = sadd.s32 %s80, 1
    %p84 = scmp.eq.s32.totalorder %s11, 1
    %p85 = scmp.ne.s32.totalorder %s80, %s82
    %p86 = scmp.eq.s32.totalorder %s11, 0
    %p87 = por %p85, %p86
    %p88 = scmp.ne.s32.totalorder %s80, %s82
    %p89 = scmp.eq.s32.totalorder %s16, 1
    %p90 = por %p88, %p89
    %p91 = scmp.ne.s32.totalorder %s82, %s83
    %p92 = scmp.eq.s32.totalorder %s16, 0
    %p93 = por %p91, %p92
    %p94 = scmp.ne.s32.totalorder %s82, %s83
    %p95 = scmp.eq.s32.totalorder %s17, 1
    %p96 = por %p94, %p95
    %p98 = scmp.ne.s32.totalorder %s83, %s97
    %p99 = scmp.eq.s32.totalorder %s17, 0
    %p100 = por %p98, %p99
    %s102 = sadd.s32 %s101, 1
    %p105 = scmp.eq.s32.totalorder %s11, 1
    %p106 = scmp.ne.s32.totalorder %s101, %s103
    %p107 = scmp.eq.s32.totalorder %s11, 0
    %p108 = por %p106, %p107
    %p109 = scmp.ne.s32.totalorder %s101, %s103
    %p110 = scmp.eq.s32.totalorder %s16, 1
    %p111 = por %p109, %p110
    %p112 = scmp.ne.s32.totalorder %s103, %s104
    %p113 = scmp.eq.s32.totalorder %s16, 0
    %p114 = por %p112, %p113
    %p115 = scmp.ne.s32.totalorder %s103, %s104
    %p116 = scmp.eq.s32.totalorder %s17, 1
    %p117 = por %p115, %p116
    %p119 = scmp.ne.s32.totalorder %s104, %s118
    %p120 = scmp.eq.s32.totalorder %s17, 0
    %p121 = por %p119, %p120
    %s123 = sadd.s32 %s122, 1
    %p126 = scmp.eq.s32.totalorder %s11, 1
    %p127 = scmp.ne.s32.totalorder %s122, %s124
    %p128 = scmp.eq.s32.totalorder %s11, 0
    %p129 = por %p127, %p128
    %p130 = scmp.ne.s32.totalorder %s122, %s124
    %p131 = scmp.eq.s32.totalorder %s16, 1
    %p132 = por %p130, %p131
    %p133 = scmp.ne.s32.totalorder %s124, %s125
    %p134 = scmp.eq.s32.totalorder %s16, 0
    %p135 = por %p133, %p134
    %p136 = scmp.ne.s32.totalorder %s124, %s125
    %p137 = scmp.eq.s32.totalorder %s17, 1
    %p138 = por %p136, %p137
    %p140 = scmp.ne.s32.totalorder %s125, %s139
    %p141 = scmp.eq.s32.totalorder %s17, 0
    %p142 = por %p140, %p141
    %s143 = ssub.s32 %s18, %s30
    %s144 = ssub.s32 %s19, %s26
    %s145 = sor.u32 %s143, %s144
    %p146 = scmp.eq.s32.totalorder %s145, 0
    %s148 = sadd.s32 %s147, 1
    %s149 = scalar_select %p146, %s147, %s148
    %p152 = pneg %p146
    %p153 = scmp.eq.s32.totalorder %s11, 1
    %p154 = por %p152, %p153
    %p155 = scmp.ne.s32.totalorder %s147, %s150
    %p156 = scmp.eq.s32.totalorder %s11, 0
    %p157 = por %p155, %p156
    %p158 = scmp.ne.s32.totalorder %s147, %s150
    %p159 = scmp.eq.s32.totalorder %s16, 1
    %p160 = por %p158, %p159
    %p161 = scmp.ne.s32.totalorder %s150, %s151
    %p162 = scmp.eq.s32.totalorder %s16, 0
    %p163 = por %p161, %p162
    %p164 = scmp.ne.s32.totalorder %s150, %s151
    %p165 = scmp.eq.s32.totalorder %s17, 1
    %p166 = por %p164, %p165
    %p168 = scmp.ne.s32.totalorder %s151, %s167
    %p169 = scmp.eq.s32.totalorder %s17, 0
    %p170 = por %p168, %p169
    %p171 = scmp.le.s32.totalorder 1, %s11
    %p172 = scmp.lt.s32.totalorder %s11, 3
    %p173 = pnand %p171, %p172
    %p174 = pneg %p173
    // Predicated region
    $region9: #{transformer_forward.7} parent=5 // pred_check
      _
    $region10: #{transformer_forward.7} parent=5 // pred_check_branch
      %176 = sbr.rel (%p173) target = $region12
    $region11: #{transformer_forward.7} parent=5 // pred_region
      %s177 = ssub.s32 %s11, 1
      // Predicated region
      $region13: #{transformer_forward.7} parent=11 // pred_check
        %p178 = pneg %p72
      $region14: #{transformer_forward.7} parent=11 // pred_check_branch
        %180 = sbr.rel (%p178) target = $region16
      $region15: #{transformer_forward.7} parent=11 // pred_region
        _
      $region16: #{transformer_forward.7} parent=11 // pred_fallthru
        _
      // Predicated region
      $region17: #{transformer_forward.7} parent=11 // pred_check
        %p181 = pneg %p93
      $region18: #{transformer_forward.7} parent=11 // pred_check_branch
        %183 = sbr.rel (%p181) target = $region20
      $region19: #{transformer_forward.7} parent=11 // pred_region
        _
      $region20: #{transformer_forward.7} parent=11 // pred_fallthru
        _
      // Predicated region
      $region21: #{transformer_forward.7} parent=11 // pred_check
        %p184 = pneg %p114
      $region22: #{transformer_forward.7} parent=11 // pred_check_branch
        %186 = sbr.rel (%p184) target = $region24
      $region23: #{transformer_forward.7} parent=11 // pred_region
        _
      $region24: #{transformer_forward.7} parent=11 // pred_fallthru
        _
      // Predicated region
      $region25: #{transformer_forward.7} parent=11 // pred_check
        %p187 = pneg %p135
      $region26: #{transformer_forward.7} parent=11 // pred_check_branch
        %189 = sbr.rel (%p187) target = $region28
      $region27: #{transformer_forward.7} parent=11 // pred_region
        _
      $region28: #{transformer_forward.7} parent=11 // pred_fallthru
        _
    $region12: #{transformer_forward.7} parent=5 // pred_fallthru
      _
    %p190 = scmp.lt.s32.totalorder %s11, 2
    // Predicated region
    $region29: #{transformer_forward.7} parent=5 // pred_check
      %p191 = pneg %p190
    $region30: #{transformer_forward.7} parent=5 // pred_check_branch
      %193 = sbr.rel (%p191) target = $region32
    $region31: #{transformer_forward.7} parent=5 // pred_region
      // Predicated region
      $region33: #{transformer_forward.7} parent=31 // pred_check
        %p194 = pneg %p45
      $region34: #{transformer_forward.7} parent=31 // pred_check_branch
        %196 = sbr.rel (%p194) target = $region36
      $region35: #{transformer_forward.7} parent=31 // pred_region
        %s197 = smul.u32 16, %s19
        %p198 = scmp.lt.s32.totalorder %s18, 1
        %s199 = scalar_select %p198, %s18, 1
        %p200 = scmp.lt.s32.totalorder %s197, 15
        %s201 = scalar_select %p200, %s197, 15
        %s202 = smul.addr %s199, 16
        %s203 = sadd.s32 %s201, %s202
        %s204 = smul.addr %s203, 8
        %s205 = scalar_lea.vmem %s0, %s204
        %s206 = smul.u32 16, %s19
      $region36: #{transformer_forward.7} parent=31 // pred_fallthru
        _
    $region32: #{transformer_forward.7} parent=5 // pred_fallthru
      _
    %p207 = scmp.le.s32.totalorder 1, %s11
    %p208 = scmp.lt.s32.totalorder %s11, 3
    %p209 = pnand %p207, %p208
    %p210 = pneg %p209
    // Predicated region
    $region37: #{transformer_forward.7} parent=5 // pred_check
      _
    $region38: #{transformer_forward.7} parent=5 // pred_check_branch
      %212 = sbr.rel (%p209) target = $region40
    $region39: #{transformer_forward.7} parent=5 // pred_region
      %s213 = ssub.s32 %s11, 1
      %s214 = smul.u32 16, %s21
      %p215 = scmp.lt.s32.totalorder %s20, 1
      %s216 = scalar_select %p215, %s20, 1
      %p217 = scmp.lt.s32.totalorder %s214, 15
      %s218 = scalar_select %p217, %s214, 15
      %s219 = smul.addr %s216, 16
      %s220 = sadd.s32 %s218, %s219
      %s221 = smul.addr %s220, 8
      %s222 = scalar_lea.vmem %s0, %s221
      %p223 = pneg %p51
      %p224 = pneg %p48
      %p225 = pneg %p72
      %p226 = pneg %p69
      %p227 = pneg %p93
      %p228 = pneg %p90
      %p229 = pneg %p114
      %p230 = pneg %p111
      %p231 = pneg %p135
      %p232 = pneg %p132
      %p233 = pneg %p163
      %p234 = pneg %p160
      %s235 = smul.u32 16, %s21
      %p236 = scmp.lt.s32.totalorder %s20, 1
      %s237 = scalar_select %p236, %s20, 1
      %p238 = scmp.lt.s32.totalorder %s235, 15
      %s239 = scalar_select %p238, %s235, 15
      %s240 = smul.addr %s239, 3
      %s241 = smul.addr %s237, 48
      %s242 = sadd.s32 %s240, %s241
      %s243 = smul.addr %s242, 4
      %s244 = scalar_lea.vmem %s5, %s243
      %s245 = smul.u32 16, %s21
      %p246 = scmp.lt.s32.totalorder %s20, 1
      %s247 = scalar_select %p246, %s20, 1
      %p248 = scmp.lt.s32.totalorder %s245, 15
      %s249 = scalar_select %p248, %s245, 15
      %s250 = smul.addr %s247, 16
      %s251 = sadd.s32 %s249, %s250
      %s252 = smul.addr %s251, 8
      %s253 = scalar_lea.vmem %s0, %s252
      %s254 = smul.u32 16, %s21
      %s255 = smul.u32 16, %s21
      %p256 = scmp.lt.s32.totalorder %s20, 1
      %s257 = scalar_select %p256, %s20, 1
      %p258 = scmp.lt.s32.totalorder %s255, 15
      %s259 = scalar_select %p258, %s255, 15
      %s260 = smul.addr %s259, 3
      %s261 = smul.addr %s257, 48
      %s262 = sadd.s32 %s260, %s261
      %s263 = smul.addr %s262, 4
      %s264 = scalar_lea.vmem %s5, %s263
      %s265 = smul.u32 16, %s21
      %v266 = vld [vmem:[%s253] sm:$0xff]
      %v267 = vld [vmem:[%s253 + $0x8] sm:$0xff]
      %v268 = vld [vmem:[%s253 + $0x10] sm:$0xff]
      %v269 = vld [vmem:[%s253 + $0x18] sm:$0xff]
      %v270 = vld [vmem:[%s253 + $0x20] sm:$0xff]
      %v271 = vld [vmem:[%s253 + $0x28] sm:$0xff]
      %v272 = vld [vmem:[%s253 + $0x30] sm:$0xff]
      %v273 = vld [vmem:[%s253 + $0x38] sm:$0xff]
      %v274 = vld [vmem:[%s253 + $0x40] sm:$0xff]
      %v275 = vld [vmem:[%s253 + $0x48] sm:$0xff]
      %v276 = vld [vmem:[%s253 + $0x50] sm:$0xff]
      %v277 = vld [vmem:[%s253 + $0x58] sm:$0xff]
      %v278 = vld [vmem:[%s253 + $0x60] sm:$0xff]
      %v279 = vld [vmem:[%s253 + $0x68] sm:$0xff]
      %v280 = vld [vmem:[%s253 + $0x70] sm:$0xff]
      %v281 = vld [vmem:[%s253 + $0x78] sm:$0xff]
      %v282 = vld [vmem:[%s1] sm:$0x1]
      %v283 = vld [vmem:[%s2] sm:$0x1]
      %284 = vadd.xlane.f32.xlu0 %v266
      %v285 = vpop.xlane.xlu0 %284
      %286 = vadd.xlane.f32.xlu0 %v267
      %v287 = vpop.xlane.xlu0 %286
      %288 = vadd.xlane.f32.xlu0 %v268
      %v289 = vpop.xlane.xlu0 %288
      %290 = vadd.xlane.f32.xlu0 %v269
      %v291 = vpop.xlane.xlu0 %290
      %292 = vadd.xlane.f32.xlu0 %v270
      %v293 = vpop.xlane.xlu0 %292
      %294 = vadd.xlane.f32.xlu0 %v271
      %v295 = vpop.xlane.xlu0 %294
      %296 = vadd.xlane.f32.xlu0 %v272
      %v297 = vpop.xlane.xlu0 %296
      %298 = vadd.xlane.f32.xlu0 %v273
      %v299 = vpop.xlane.xlu0 %298
      %300 = vadd.xlane.f32.xlu0 %v274
      %v301 = vpop.xlane.xlu0 %300
      %302 = vadd.xlane.f32.xlu0 %v275
      %v303 = vpop.xlane.xlu0 %302
      %304 = vadd.xlane.f32.xlu0 %v276
      %v305 = vpop.xlane.xlu0 %304
      %306 = vadd.xlane.f32.xlu0 %v277
      %v307 = vpop.xlane.xlu0 %306
      %308 = vadd.xlane.f32.xlu0 %v278
      %v309 = vpop.xlane.xlu0 %308
      %310 = vadd.xlane.f32.xlu0 %v279
      %v311 = vpop.xlane.xlu0 %310
      %312 = vadd.xlane.f32.xlu0 %v280
      %v313 = vpop.xlane.xlu0 %312
      %314 = vadd.xlane.f32.xlu0 %v281
      %v315 = vpop.xlane.xlu0 %314
      %v316 = vrcp.pop 128.0
      %v317 = vmul.f32 128.0, %v316
      %v318 = vsub.f32 1.0, %v317
      %v319 = vmul.f32 %v316, %v318
      %v320 = vadd.f32 %v316, %v319
      %vm321 = vweird.f32 %v316
      %v322 = vsel %vm321, %v316, %v320
      %v323 = vmul.f32 %v285, %v322
      %v324 = vmul.f32 %v287, %v322
      %v325 = vmul.f32 %v289, %v322
      %v326 = vmul.f32 %v291, %v322
      %v327 = vmul.f32 %v293, %v322
      %v328 = vmul.f32 %v295, %v322
      %v329 = vmul.f32 %v297, %v322
      %v330 = vmul.f32 %v299, %v322
      %v331 = vmul.f32 %v301, %v322
      %v332 = vmul.f32 %v303, %v322
      %v333 = vmul.f32 %v305, %v322
      %v334 = vmul.f32 %v307, %v322
      %v335 = vmul.f32 %v309, %v322
      %v336 = vmul.f32 %v311, %v322
      %v337 = vmul.f32 %v313, %v322
      %v338 = vmul.f32 %v315, %v322
      %v339 = vsub.f32 %v266, %v323
      %v340 = vsub.f32 %v267, %v324
      %v341 = vsub.f32 %v268, %v325
      %v342 = vsub.f32 %v269, %v326
      %v343 = vsub.f32 %v270, %v327
      %v344 = vsub.f32 %v271, %v328
      %v345 = vsub.f32 %v272, %v329
      %v346 = vsub.f32 %v273, %v330
      %v347 = vsub.f32 %v274, %v331
      %v348 = vsub.f32 %v275, %v332
      %v349 = vsub.f32 %v276, %v333
      %v350 = vsub.f32 %v277, %v334
      %v351 = vsub.f32 %v278, %v335
      %v352 = vsub.f32 %v279, %v336
      %v353 = vsub.f32 %v280, %v337
      %v354 = vsub.f32 %v281, %v338
      %v355 = vmul.f32 %v339, %v339
      %v356 = vmul.f32 %v340, %v340
      %v357 = vmul.f32 %v341, %v341
      %v358 = vmul.f32 %v342, %v342
      %v359 = vmul.f32 %v343, %v343
      %v360 = vmul.f32 %v344, %v344
      %v361 = vmul.f32 %v345, %v345
      %v362 = vmul.f32 %v346, %v346
      %v363 = vmul.f32 %v347, %v347
      %v364 = vmul.f32 %v348, %v348
      %v365 = vmul.f32 %v349, %v349
      %v366 = vmul.f32 %v350, %v350
      %v367 = vmul.f32 %v351, %v351
      %v368 = vmul.f32 %v352, %v352
      %v369 = vmul.f32 %v353, %v353
      %v370 = vmul.f32 %v354, %v354
      %371 = vadd.xlane.f32.xlu0 %v355
      %v372 = vpop.xlane.xlu0 %371
      %373 = vadd.xlane.f32.xlu0 %v356
      %v374 = vpop.xlane.xlu0 %373
      %375 = vadd.xlane.f32.xlu0 %v357
      %v376 = vpop.xlane.xlu0 %375
      %377 = vadd.xlane.f32.xlu0 %v358
      %v378 = vpop.xlane.xlu0 %377
      %379 = vadd.xlane.f32.xlu0 %v359
      %v380 = vpop.xlane.xlu0 %379
      %381 = vadd.xlane.f32.xlu0 %v360
      %v382 = vpop.xlane.xlu0 %381
      %383 = vadd.xlane.f32.xlu0 %v361
      %v384 = vpop.xlane.xlu0 %383
      %385 = vadd.xlane.f32.xlu0 %v362
      %v386 = vpop.xlane.xlu0 %385
      %387 = vadd.xlane.f32.xlu0 %v363
      %v388 = vpop.xlane.xlu0 %387
      %389 = vadd.xlane.f32.xlu0 %v364
      %v390 = vpop.xlane.xlu0 %389
      %391 = vadd.xlane.f32.xlu0 %v365
      %v392 = vpop.xlane.xlu0 %391
      %393 = vadd.xlane.f32.xlu0 %v366
      %v394 = vpop.xlane.xlu0 %393
      %395 = vadd.xlane.f32.xlu0 %v367
      %v396 = vpop.xlane.xlu0 %395
      %397 = vadd.xlane.f32.xlu0 %v368
      %v398 = vpop.xlane.xlu0 %397
      %399 = vadd.xlane.f32.xlu0 %v369
      %v400 = vpop.xlane.xlu0 %399
      %401 = vadd.xlane.f32.xlu0 %v370
      %v402 = vpop.xlane.xlu0 %401
      %v403 = vmul.f32 %v372, %v322
      %v404 = vmul.f32 %v374, %v322
      %v405 = vmul.f32 %v376, %v322
      %v406 = vmul.f32 %v378, %v322
      %v407 = vmul.f32 %v380, %v322
      %v408 = vmul.f32 %v382, %v322
      %v409 = vmul.f32 %v384, %v322
      %v410 = vmul.f32 %v386, %v322
      %v411 = vmul.f32 %v388, %v322
      %v412 = vmul.f32 %v390, %v322
      %v413 = vmul.f32 %v392, %v322
      %v414 = vmul.f32 %v394, %v322
      %v415 = vmul.f32 %v396, %v322
      %v416 = vmul.f32 %v398, %v322
      %v417 = vmul.f32 %v400, %v322
      %v418 = vmul.f32 %v402, %v322
      %v419 = vadd.f32 %v403, 1e-05
      %v420 = vadd.f32 %v404, 1e-05
      %v421 = vadd.f32 %v405, 1e-05
      %v422 = vadd.f32 %v406, 1e-05
      %v423 = vadd.f32 %v407, 1e-05
      %v424 = vadd.f32 %v408, 1e-05
      %v425 = vadd.f32 %v409, 1e-05
      %v426 = vadd.f32 %v410, 1e-05
      %v427 = vadd.f32 %v411, 1e-05
      %v428 = vadd.f32 %v412, 1e-05
      %v429 = vadd.f32 %v413, 1e-05
      %v430 = vadd.f32 %v414, 1e-05
      %v431 = vadd.f32 %v415, 1e-05
      %v432 = vadd.f32 %v416, 1e-05
      %v433 = vadd.f32 %v417, 1e-05
      %v434 = vadd.f32 %v418, 1e-05
      %v435 = vrsqrt.pop %v419
      %v436 = vmul.f32 %v435, %v419
      %v437 = vmul.f32 %v436, %v435
      %v438 = vmul.f32 0.5, %v437
      %v439 = vsub.f32 1.5, %v438
      %v440 = vmul.f32 %v435, %v439
      %vm441 = vweird.f32 %v419
      %vm442 = vweird.f32 %v435
      %vm443 = vmor %vm441, %vm442
      %v444 = vsel %vm443, %v435, %v440
      %v445 = vrsqrt.pop %v420
      %v446 = vmul.f32 %v445, %v420
      %v447 = vmul.f32 %v446, %v445
      %v448 = vmul.f32 0.5, %v447
      %v449 = vsub.f32 1.5, %v448
      %v450 = vmul.f32 %v445, %v449
      %vm451 = vweird.f32 %v420
      %vm452 = vweird.f32 %v445
      %vm453 = vmor %vm451, %vm452
      %v454 = vsel %vm453, %v445, %v450
      %v455 = vrsqrt.pop %v421
      %v456 = vmul.f32 %v455, %v421
      %v457 = vmul.f32 %v456, %v455
      %v458 = vmul.f32 0.5, %v457
      %v459 = vsub.f32 1.5, %v458
      %v460 = vmul.f32 %v455, %v459
      %vm461 = vweird.f32 %v421
      %vm462 = vweird.f32 %v455
      %vm463 = vmor %vm461, %vm462
      %v464 = vsel %vm463, %v455, %v460
      %v465 = vrsqrt.pop %v422
      %v466 = vmul.f32 %v465, %v422
      %v467 = vmul.f32 %v466, %v465
      %v468 = vmul.f32 0.5, %v467
      %v469 = vsub.f32 1.5, %v468
      %v470 = vmul.f32 %v465, %v469
      %vm471 = vweird.f32 %v422
      %vm472 = vweird.f32 %v465
      %vm473 = vmor %vm471, %vm472
      %v474 = vsel %vm473, %v465, %v470
      %v475 = vrsqrt.pop %v423
      %v476 = vmul.f32 %v475, %v423
      %v477 = vmul.f32 %v476, %v475
      %v478 = vmul.f32 0.5, %v477
      %v479 = vsub.f32 1.5, %v478
      %v480 = vmul.f32 %v475, %v479
      %vm481 = vweird.f32 %v423
      %vm482 = vweird.f32 %v475
      %vm483 = vmor %vm481, %vm482
      %v484 = vsel %vm483, %v475, %v480
      %v485 = vrsqrt.pop %v424
      %v486 = vmul.f32 %v485, %v424
      %v487 = vmul.f32 %v486, %v485
      %v488 = vmul.f32 0.5, %v487
      %v489 = vsub.f32 1.5, %v488
      %v490 = vmul.f32 %v485, %v489
      %vm491 = vweird.f32 %v424
      %vm492 = vweird.f32 %v485
      %vm493 = vmor %vm491, %vm492
      %v494 = vsel %vm493, %v485, %v490
      %v495 = vrsqrt.pop %v425
      %v496 = vmul.f32 %v495, %v425
      %v497 = vmul.f32 %v496, %v495
      %v498 = vmul.f32 0.5, %v497
      %v499 = vsub.f32 1.5, %v498
      %v500 = vmul.f32 %v495, %v499
      %vm501 = vweird.f32 %v425
      %vm502 = vweird.f32 %v495
      %vm503 = vmor %vm501, %vm502
      %v504 = vsel %vm503, %v495, %v500
      %v505 = vrsqrt.pop %v426
      %v506 = vmul.f32 %v505, %v426
      %v507 = vmul.f32 %v506, %v505
      %v508 = vmul.f32 0.5, %v507
      %v509 = vsub.f32 1.5, %v508
      %v510 = vmul.f32 %v505, %v509
      %vm511 = vweird.f32 %v426
      %vm512 = vweird.f32 %v505
      %vm513 = vmor %vm511, %vm512
      %v514 = vsel %vm513, %v505, %v510
      %v515 = vrsqrt.pop %v427
      %v516 = vmul.f32 %v515, %v427
      %v517 = vmul.f32 %v516, %v515
      %v518 = vmul.f32 0.5, %v517
      %v519 = vsub.f32 1.5, %v518
      %v520 = vmul.f32 %v515, %v519
      %vm521 = vweird.f32 %v427
      %vm522 = vweird.f32 %v515
      %vm523 = vmor %vm521, %vm522
      %v524 = vsel %vm523, %v515, %v520
      %v525 = vrsqrt.pop %v428
      %v526 = vmul.f32 %v525, %v428
      %v527 = vmul.f32 %v526, %v525
      %v528 = vmul.f32 0.5, %v527
      %v529 = vsub.f32 1.5, %v528
      %v530 = vmul.f32 %v525, %v529
      %vm531 = vweird.f32 %v428
      %vm532 = vweird.f32 %v525
      %vm533 = vmor %vm531, %vm532
      %v534 = vsel %vm533, %v525, %v530
      %v535 = vrsqrt.pop %v429
      %v536 = vmul.f32 %v535, %v429
      %v537 = vmul.f32 %v536, %v535
      %v538 = vmul.f32 0.5, %v537
      %v539 = vsub.f32 1.5, %v538
      %v540 = vmul.f32 %v535, %v539
      %vm541 = vweird.f32 %v429
      %vm542 = vweird.f32 %v535
      %vm543 = vmor %vm541, %vm542
      %v544 = vsel %vm543, %v535, %v540
      %v545 = vrsqrt.pop %v430
      %v546 = vmul.f32 %v545, %v430
      %v547 = vmul.f32 %v546, %v545
      %v548 = vmul.f32 0.5, %v547
      %v549 = vsub.f32 1.5, %v548
      %v550 = vmul.f32 %v545, %v549
      %vm551 = vweird.f32 %v430
      %vm552 = vweird.f32 %v545
      %vm553 = vmor %vm551, %vm552
      %v554 = vsel %vm553, %v545, %v550
      %v555 = vrsqrt.pop %v431
      %v556 = vmul.f32 %v555, %v431
      %v557 = vmul.f32 %v556, %v555
      %v558 = vmul.f32 0.5, %v557
      %v559 = vsub.f32 1.5, %v558
      %v560 = vmul.f32 %v555, %v559
      %vm561 = vweird.f32 %v431
      %vm562 = vweird.f32 %v555
      %vm563 = vmor %vm561, %vm562
      %v564 = vsel %vm563, %v555, %v560
      %v565 = vrsqrt.pop %v432
      %v566 = vmul.f32 %v565, %v432
      %v567 = vmul.f32 %v566, %v565
      %v568 = vmul.f32 0.5, %v567
      %v569 = vsub.f32 1.5, %v568
      %v570 = vmul.f32 %v565, %v569
      %vm571 = vweird.f32 %v432
      %vm572 = vweird.f32 %v565
      %vm573 = vmor %vm571, %vm572
      %v574 = vsel %vm573, %v565, %v570
      %v575 = vrsqrt.pop %v433
      %v576 = vmul.f32 %v575, %v433
      %v577 = vmul.f32 %v576, %v575
      %v578 = vmul.f32 0.5, %v577
      %v579 = vsub.f32 1.5, %v578
      %v580 = vmul.f32 %v575, %v579
      %vm581 = vweird.f32 %v433
      %vm582 = vweird.f32 %v575
      %vm583 = vmor %vm581, %vm582
      %v584 = vsel %vm583, %v575, %v580
      %v585 = vrsqrt.pop %v434
      %v586 = vmul.f32 %v585, %v434
      %v587 = vmul.f32 %v586, %v585
      %v588 = vmul.f32 0.5, %v587
      %v589 = vsub.f32 1.5, %v588
      %v590 = vmul.f32 %v585, %v589
      %vm591 = vweird.f32 %v434
      %vm592 = vweird.f32 %v585
      %vm593 = vmor %vm591, %vm592
      %v594 = vsel %vm593, %v585, %v590
      %v595 = vmul.f32 %v339, %v444
      %v596 = vmul.f32 %v340, %v454
      %v597 = vmul.f32 %v341, %v464
      %v598 = vmul.f32 %v342, %v474
      %v599 = vmul.f32 %v343, %v484
      %v600 = vmul.f32 %v344, %v494
      %v601 = vmul.f32 %v345, %v504
      %v602 = vmul.f32 %v346, %v514
      %v603 = vmul.f32 %v347, %v524
      %v604 = vmul.f32 %v348, %v534
      %v605 = vmul.f32 %v349, %v544
      %v606 = vmul.f32 %v350, %v554
      %v607 = vmul.f32 %v351, %v564
      %v608 = vmul.f32 %v352, %v574
      %v609 = vmul.f32 %v353, %v584
      %v610 = vmul.f32 %v354, %v594
      %v612 = vperm.slane %v282, 0
      %v614 = vmul.f32 %v595, %v612
      %v615 = vmul.f32 %v596, %v612
      %v616 = vmul.f32 %v597, %v612
      %v617 = vmul.f32 %v598, %v612
      %v618 = vmul.f32 %v599, %v612
      %v619 = vmul.f32 %v600, %v612
      %v620 = vmul.f32 %v601, %v612
      %v621 = vmul.f32 %v602, %v612
      %v622 = vmul.f32 %v603, %v612
      %v623 = vmul.f32 %v604, %v612
      %v624 = vmul.f32 %v605, %v612
      %v625 = vmul.f32 %v606, %v612
      %v626 = vmul.f32 %v607, %v612
      %v627 = vmul.f32 %v608, %v612
      %v628 = vmul.f32 %v609, %v612
      %v629 = vmul.f32 %v610, %v612
      %v631 = vperm.slane %v283, 0
      %v633 = vadd.f32 %v614, %v631
      %v634 = vadd.f32 %v615, %v631
      %v635 = vadd.f32 %v616, %v631
      %v636 = vadd.f32 %v617, %v631
      %v637 = vadd.f32 %v618, %v631
      %v638 = vadd.f32 %v619, %v631
      %v639 = vadd.f32 %v620, %v631
      %v640 = vadd.f32 %v621, %v631
      %v641 = vadd.f32 %v622, %v631
      %v642 = vadd.f32 %v623, %v631
      %v643 = vadd.f32 %v624, %v631
      %v644 = vadd.f32 %v625, %v631
      %v645 = vadd.f32 %v626, %v631
      %v646 = vadd.f32 %v627, %v631
      %v647 = vadd.f32 %v628, %v631
      %v648 = vadd.f32 %v629, %v631
      %v649 = vpack.c.bf16 %v634, %v633
      %v650 = vpack.c.bf16 %v636, %v635
      %v651 = vpack.c.bf16 %v638, %v637
      %v652 = vpack.c.bf16 %v640, %v639
      %v653 = vpack.c.bf16 %v642, %v641
      %v654 = vpack.c.bf16 %v644, %v643
      %v655 = vpack.c.bf16 %v646, %v645
      %v656 = vpack.c.bf16 %v648, %v647
      %v657 = vld [vmem:[%s3] sm:$0xff]
      %v658 = vld [vmem:[%s3 + $0x8] sm:$0xf]
      %v659 = vld [vmem:[%s3 + $0xc] sm:$0xff]
      %v660 = vld [vmem:[%s3 + $0x14] sm:$0xf]
      %v661 = vld [vmem:[%s3 + $0x18] sm:$0xff]
      %v662 = vld [vmem:[%s3 + $0x20] sm:$0xf]
      %v663 = vld [vmem:[%s3 + $0x24] sm:$0xff]
      %v664 = vld [vmem:[%s3 + $0x2c] sm:$0xf]
      %v665 = vld [vmem:[%s3 + $0x30] sm:$0xff]
      %v666 = vld [vmem:[%s3 + $0x38] sm:$0xf]
      %v667 = vld [vmem:[%s3 + $0x3c] sm:$0xff]
      %v668 = vld [vmem:[%s3 + $0x44] sm:$0xf]
      %v669 = vld [vmem:[%s3 + $0x48] sm:$0xff]
      %v670 = vld [vmem:[%s3 + $0x50] sm:$0xf]
      %v671 = vld [vmem:[%s3 + $0x54] sm:$0xff]
      %v672 = vld [vmem:[%s3 + $0x5c] sm:$0xf]
      %v673 = vld [vmem:[%s3 + $0x60] sm:$0xff]
      %v674 = vld [vmem:[%s3 + $0x68] sm:$0xf]
      %v675 = vld [vmem:[%s3 + $0x6c] sm:$0xff]
      %v676 = vld [vmem:[%s3 + $0x74] sm:$0xf]
      %v677 = vld [vmem:[%s3 + $0x78] sm:$0xff]
      %v678 = vld [vmem:[%s3 + $0x80] sm:$0xf]
      %v679 = vld [vmem:[%s3 + $0x84] sm:$0xff]
      %v680 = vld [vmem:[%s3 + $0x8c] sm:$0xf]
      %v681 = vld [vmem:[%s3 + $0x90] sm:$0xff]
      %v682 = vld [vmem:[%s3 + $0x98] sm:$0xf]
      %v683 = vld [vmem:[%s3 + $0x9c] sm:$0xff]
      %v684 = vld [vmem:[%s3 + $0xa4] sm:$0xf]
      %v685 = vld [vmem:[%s3 + $0xa8] sm:$0xff]
      %v686 = vld [vmem:[%s3 + $0xb0] sm:$0xf]
      %v687 = vld [vmem:[%s3 + $0xb4] sm:$0xff]
      %v688 = vld [vmem:[%s3 + $0xbc] sm:$0xf]
      %v689 = vld [vmem:[%s4] sm:$0x7]
      %v691 = vperm.slane %v689, 0
      %v692 = vperm.slane %v689, 1
      %v693 = vperm.slane %v689, 2
      %v729 = vunpack.c.l.b16 %v657
      %v730 = vunpack.c.h.b16 %v657
      %v731 = vunpack.c.l.b16 %v658
      %v732 = vunpack.c.l.b16 %v659
      %v733 = vunpack.c.h.b16 %v659
      %v734 = vunpack.c.l.b16 %v660
      %v735 = vunpack.c.l.b16 %v661
      %v736 = vunpack.c.h.b16 %v661
      %v737 = vunpack.c.l.b16 %v662
      %v738 = vunpack.c.l.b16 %v663
      %v739 = vunpack.c.h.b16 %v663
      %v740 = vunpack.c.l.b16 %v664
      %v741 = vunpack.c.l.b16 %v665
      %v742 = vunpack.c.h.b16 %v665
      %v743 = vunpack.c.l.b16 %v666
      %v744 = vunpack.c.l.b16 %v667
      %v745 = vunpack.c.h.b16 %v667
      %v746 = vunpack.c.l.b16 %v668
      %v747 = vunpack.c.l.b16 %v669
      %v748 = vunpack.c.h.b16 %v669
      %v749 = vunpack.c.l.b16 %v670
      %v750 = vunpack.c.l.b16 %v671
      %v751 = vunpack.c.h.b16 %v671
      %v752 = vunpack.c.l.b16 %v672
      %v753 = vunpack.c.l.b16 %v673
      %v754 = vunpack.c.h.b16 %v673
      %v755 = vunpack.c.l.b16 %v674
      %v756 = vunpack.c.l.b16 %v675
      %v757 = vunpack.c.h.b16 %v675
      %v758 = vunpack.c.l.b16 %v676
      %v759 = vunpack.c.l.b16 %v677
      %v760 = vunpack.c.h.b16 %v677
      %v761 = vunpack.c.l.b16 %v678
      %v762 = vunpack.c.l.b16 %v679
      %v763 = vunpack.c.h.b16 %v679
      %v764 = vunpack.c.l.b16 %v680
      %v765 = vunpack.c.l.b16 %v681
      %v766 = vunpack.c.h.b16 %v681
      %v767 = vunpack.c.l.b16 %v682
      %v768 = vunpack.c.l.b16 %v683
      %v769 = vunpack.c.h.b16 %v683
      %v770 = vunpack.c.l.b16 %v684
      %v771 = vunpack.c.l.b16 %v685
      %v772 = vunpack.c.h.b16 %v685
      %v773 = vunpack.c.l.b16 %v686
      %v774 = vunpack.c.l.b16 %v687
      %v775 = vunpack.c.h.b16 %v687
      %v776 = vunpack.c.l.b16 %v688
      %v777 = vpack.c.b16 %v732, %v729
      %v778 = vpack.c.b16 %v733, %v730
      %v779 = vpack.c.b16 %v734, %v731
      %v780 = vpack.c.b16 %v738, %v735
      %v781 = vpack.c.b16 %v739, %v736
      %v782 = vpack.c.b16 %v740, %v737
      %v783 = vpack.c.b16 %v744, %v741
      %v784 = vpack.c.b16 %v745, %v742
      %v785 = vpack.c.b16 %v746, %v743
      %v786 = vpack.c.b16 %v750, %v747
      %v787 = vpack.c.b16 %v751, %v748
      %v788 = vpack.c.b16 %v752, %v749
      %v789 = vpack.c.b16 %v756, %v753
      %v790 = vpack.c.b16 %v757, %v754
      %v791 = vpack.c.b16 %v758, %v755
      %v792 = vpack.c.b16 %v762, %v759
      %v793 = vpack.c.b16 %v763, %v760
      %v794 = vpack.c.b16 %v764, %v761
      %v795 = vpack.c.b16 %v768, %v765
      %v796 = vpack.c.b16 %v769, %v766
      %v797 = vpack.c.b16 %v770, %v767
      %v798 = vpack.c.b16 %v774, %v771
      %v799 = vpack.c.b16 %v775, %v772
      %v800 = vpack.c.b16 %v776, %v773
      %825 = vmatpush.bf16.msra.mxu0 %v798
      %826 = vmatpush.bf16.msra.mxu0 %v795
      %827 = vmatpush.bf16.msra.mxu0 %v792
      %828 = vmatpush.bf16.msra.mxu0 %v789
      %829 = vmatpush.bf16.msra.mxu0 %v786
      %830 = vmatpush.bf16.msra.mxu0 %v783
      %831 = vmatpush.bf16.msra.mxu0 %v780
      %832 = vmatpush.bf16.msra.mxu0 %v777
      %833 = vmatmul.bf16.gmra.mxu0 %v649
      %v834 = vpop.f32.mrf.mxu0
      %v835 = vadd.f32 %v691, %v834
      %v836 = vpop.f32.mrf.mxu0
      %v837 = vadd.f32 %v691, %v836
      %838 = vmatmul.bf16.gmra.mxu0 %v650
      %v839 = vpop.f32.mrf.mxu0
      %v840 = vadd.f32 %v691, %v839
      %v841 = vpop.f32.mrf.mxu0
      %v842 = vadd.f32 %v691, %v841
      %843 = vmatmul.bf16.gmra.mxu0 %v651
      %v844 = vpop.f32.mrf.mxu0
      %v845 = vadd.f32 %v691, %v844
      %v846 = vpop.f32.mrf.mxu0
      %v847 = vadd.f32 %v691, %v846
      %848 = vmatmul.bf16.gmra.mxu0 %v652
      %v849 = vpop.f32.mrf.mxu0
      %v850 = vadd.f32 %v691, %v849
      %v851 = vpop.f32.mrf.mxu0
      %v852 = vadd.f32 %v691, %v851
      %853 = vmatmul.bf16.gmra.mxu0 %v653
      %v854 = vpop.f32.mrf.mxu0
      %v855 = vadd.f32 %v691, %v854
      %v856 = vpop.f32.mrf.mxu0
      %v857 = vadd.f32 %v691, %v856
      %858 = vmatmul.bf16.gmra.mxu0 %v654
      %v859 = vpop.f32.mrf.mxu0
      %v860 = vadd.f32 %v691, %v859
      %v861 = vpop.f32.mrf.mxu0
      %v862 = vadd.f32 %v691, %v861
      %863 = vmatmul.bf16.gmra.mxu0 %v655
      %v864 = vpop.f32.mrf.mxu0
      %v865 = vadd.f32 %v691, %v864
      %v866 = vpop.f32.mrf.mxu0
      %v867 = vadd.f32 %v691, %v866
      %868 = vmatmul.bf16.gmra.mxu0 %v656
      %v869 = vpop.f32.mrf.mxu0
      %v870 = vadd.f32 %v691, %v869
      %v871 = vpop.f32.mrf.mxu0
      %v872 = vadd.f32 %v691, %v871
      %873 = vdwg.mxu0
      %874 = vmatpush.bf16.msra.mxu0 %v799
      %875 = vmatpush.bf16.msra.mxu0 %v796
      %876 = vmatpush.bf16.msra.mxu0 %v793
      %877 = vmatpush.bf16.msra.mxu0 %v790
      %878 = vmatpush.bf16.msra.mxu0 %v787
      %879 = vmatpush.bf16.msra.mxu0 %v784
      %880 = vmatpush.bf16.msra.mxu0 %v781
      %881 = vmatpush.bf16.msra.mxu0 %v778
      %882 = vmatmul.bf16.gmra.mxu0 %v649
      %v883 = vpop.f32.mrf.mxu0
      %v884 = vadd.f32 %v692, %v883
      %v885 = vpop.f32.mrf.mxu0
      %v886 = vadd.f32 %v692, %v885
      %887 = vmatmul.bf16.gmra.mxu0 %v650
      %v888 = vpop.f32.mrf.mxu0
      %v889 = vadd.f32 %v692, %v888
      %v890 = vpop.f32.mrf.mxu0
      %v891 = vadd.f32 %v692, %v890
      %892 = vmatmul.bf16.gmra.mxu0 %v651
      %v893 = vpop.f32.mrf.mxu0
      %v894 = vadd.f32 %v692, %v893
      %v895 = vpop.f32.mrf.mxu0
      %v896 = vadd.f32 %v692, %v895
      %897 = vmatmul.bf16.gmra.mxu0 %v652
      %v898 = vpop.f32.mrf.mxu0
      %v899 = vadd.f32 %v692, %v898
      %v900 = vpop.f32.mrf.mxu0
      %v901 = vadd.f32 %v692, %v900
      %902 = vmatmul.bf16.gmra.mxu0 %v653
      %v903 = vpop.f32.mrf.mxu0
      %v904 = vadd.f32 %v692, %v903
      %v905 = vpop.f32.mrf.mxu0
      %v906 = vadd.f32 %v692, %v905
      %907 = vmatmul.bf16.gmra.mxu0 %v654
      %v908 = vpop.f32.mrf.mxu0
      %v909 = vadd.f32 %v692, %v908
      %v910 = vpop.f32.mrf.mxu0
      %v911 = vadd.f32 %v692, %v910
      %912 = vmatmul.bf16.gmra.mxu0 %v655
      %v913 = vpop.f32.mrf.mxu0
      %v914 = vadd.f32 %v692, %v913
      %v915 = vpop.f32.mrf.mxu0
      %v916 = vadd.f32 %v692, %v915
      %917 = vmatmul.bf16.gmra.mxu0 %v656
      %v918 = vpop.f32.mrf.mxu0
      %v919 = vadd.f32 %v692, %v918
      %v920 = vpop.f32.mrf.mxu0
      %v921 = vadd.f32 %v692, %v920
      %922 = vdwg.mxu0
      %923 = vmatpush.bf16.msra.mxu0 %v800
      %924 = vmatpush.bf16.msra.mxu0 %v797
      %925 = vmatpush.bf16.msra.mxu0 %v794
      %926 = vmatpush.bf16.msra.mxu0 %v791
      %927 = vmatpush.bf16.msra.mxu0 %v788
      %928 = vmatpush.bf16.msra.mxu0 %v785
      %929 = vmatpush.bf16.msra.mxu0 %v782
      %930 = vmatpush.bf16.msra.mxu0 %v779
      %931 = vmatmul.bf16.gmra.mxu0 %v649
      %v932 = vpop.f32.mrf.mxu0
      %v933 = vadd.f32 %v693, %v932
      %v934 = vpop.f32.mrf.mxu0
      %v935 = vadd.f32 %v693, %v934
      %936 = vmatmul.bf16.gmra.mxu0 %v650
      %v937 = vpop.f32.mrf.mxu0
      %v938 = vadd.f32 %v693, %v937
      %v939 = vpop.f32.mrf.mxu0
      %v940 = vadd.f32 %v693, %v939
      %941 = vmatmul.bf16.gmra.mxu0 %v651
      %v942 = vpop.f32.mrf.mxu0
      %v943 = vadd.f32 %v693, %v942
      %v944 = vpop.f32.mrf.mxu0
      %v945 = vadd.f32 %v693, %v944
      %946 = vmatmul.bf16.gmra.mxu0 %v652
      %v947 = vpop.f32.mrf.mxu0
      %v948 = vadd.f32 %v693, %v947
      %v949 = vpop.f32.mrf.mxu0
      %v950 = vadd.f32 %v693, %v949
      %951 = vmatmul.bf16.gmra.mxu0 %v653
      %v952 = vpop.f32.mrf.mxu0
      %v953 = vadd.f32 %v693, %v952
      %v954 = vpop.f32.mrf.mxu0
      %v955 = vadd.f32 %v693, %v954
      %956 = vmatmul.bf16.gmra.mxu0 %v654
      %v957 = vpop.f32.mrf.mxu0
      %v958 = vadd.f32 %v693, %v957
      %v959 = vpop.f32.mrf.mxu0
      %v960 = vadd.f32 %v693, %v959
      %961 = vmatmul.bf16.gmra.mxu0 %v655
      %v962 = vpop.f32.mrf.mxu0
      %v963 = vadd.f32 %v693, %v962
      %v964 = vpop.f32.mrf.mxu0
      %v965 = vadd.f32 %v693, %v964
      %966 = vmatmul.bf16.gmra.mxu0 %v656
      %v967 = vpop.f32.mrf.mxu0
      %v968 = vadd.f32 %v693, %v967
      %v969 = vpop.f32.mrf.mxu0
      %v970 = vadd.f32 %v693, %v969
      %971 = vdwg.mxu0
      %v972 = vpack.c.bf16 %v884, %v835
      %v973 = vpack.c.bf16 %v933, %v933
      %v974 = vpack.c.bf16 %v886, %v837
      %v975 = vpack.c.bf16 %v935, %v935
      %v976 = vpack.c.bf16 %v889, %v840
      %v977 = vpack.c.bf16 %v938, %v938
      %v978 = vpack.c.bf16 %v891, %v842
      %v979 = vpack.c.bf16 %v940, %v940
      %v980 = vpack.c.bf16 %v894, %v845
      %v981 = vpack.c.bf16 %v943, %v943
      %v982 = vpack.c.bf16 %v896, %v847
      %v983 = vpack.c.bf16 %v945, %v945
      %v984 = vpack.c.bf16 %v899, %v850
      %v985 = vpack.c.bf16 %v948, %v948
      %v986 = vpack.c.bf16 %v901, %v852
      %v987 = vpack.c.bf16 %v950, %v950
      %v988 = vpack.c.bf16 %v904, %v855
      %v989 = vpack.c.bf16 %v953, %v953
      %v990 = vpack.c.bf16 %v906, %v857
      %v991 = vpack.c.bf16 %v955, %v955
      %v992 = vpack.c.bf16 %v909, %v860
      %v993 = vpack.c.bf16 %v958, %v958
      %v994 = vpack.c.bf16 %v911, %v862
      %v995 = vpack.c.bf16 %v960, %v960
      %v996 = vpack.c.bf16 %v914, %v865
      %v997 = vpack.c.bf16 %v963, %v963
      %v998 = vpack.c.bf16 %v916, %v867
      %v999 = vpack.c.bf16 %v965, %v965
      %v1000 = vpack.c.bf16 %v919, %v870
      %v1001 = vpack.c.bf16 %v968, %v968
      %v1002 = vpack.c.bf16 %v921, %v872
      %v1003 = vpack.c.bf16 %v970, %v970
      %1004 = vst [vmem:[%s264] sm:$0xff] %v972
      %1005 = vst [vmem:[%s264 + $0x8] sm:$0xf] %v973
      %1006 = vst [vmem:[%s264 + $0xc] sm:$0xff] %v974
      %1007 = vst [vmem:[%s264 + $0x14] sm:$0xf] %v975
      %1008 = vst [vmem:[%s264 + $0x18] sm:$0xff] %v976
      %1009 = vst [vmem:[%s264 + $0x20] sm:$0xf] %v977
      %1010 = vst [vmem:[%s264 + $0x24] sm:$0xff] %v978
      %1011 = vst [vmem:[%s264 + $0x2c] sm:$0xf] %v979
      %1012 = vst [vmem:[%s264 + $0x30] sm:$0xff] %v980
      %1013 = vst [vmem:[%s264 + $0x38] sm:$0xf] %v981
      %1014 = vst [vmem:[%s264 + $0x3c] sm:$0xff] %v982
      %1015 = vst [vmem:[%s264 + $0x44] sm:$0xf] %v983
      %1016 = vst [vmem:[%s264 + $0x48] sm:$0xff] %v984
      %1017 = vst [vmem:[%s264 + $0x50] sm:$0xf] %v985
      %1018 = vst [vmem:[%s264 + $0x54] sm:$0xff] %v986
      %1019 = vst [vmem:[%s264 + $0x5c] sm:$0xf] %v987
      %1020 = vst [vmem:[%s264 + $0x60] sm:$0xff] %v988
      %1021 = vst [vmem:[%s264 + $0x68] sm:$0xf] %v989
      %1022 = vst [vmem:[%s264 + $0x6c] sm:$0xff] %v990
      %1023 = vst [vmem:[%s264 + $0x74] sm:$0xf] %v991
      %1024 = vst [vmem:[%s264 + $0x78] sm:$0xff] %v992
      %1025 = vst [vmem:[%s264 + $0x80] sm:$0xf] %v993
      %1026 = vst [vmem:[%s264 + $0x84] sm:$0xff] %v994
      %1027 = vst [vmem:[%s264 + $0x8c] sm:$0xf] %v995
      %1028 = vst [vmem:[%s264 + $0x90] sm:$0xff] %v996
      %1029 = vst [vmem:[%s264 + $0x98] sm:$0xf] %v997
      %1030 = vst [vmem:[%s264 + $0x9c] sm:$0xff] %v998
      %1031 = vst [vmem:[%s264 + $0xa4] sm:$0xf] %v999
      %1032 = vst [vmem:[%s264 + $0xa8] sm:$0xff] %v1000
      %1033 = vst [vmem:[%s264 + $0xb0] sm:$0xf] %v1001
      %1034 = vst [vmem:[%s264 + $0xb4] sm:$0xff] %v1002
      %1035 = vst [vmem:[%s264 + $0xbc] sm:$0xf] %v1003
      %s1036 = smul.u32 16, %s21
      %p1037 = scmp.lt.s32.totalorder %s20, 1
      %s1038 = scalar_select %p1037, %s20, 1
      %p1039 = scmp.lt.s32.totalorder %s1036, 15
      %s1040 = scalar_select %p1039, %s1036, 15
      %s1041 = smul.addr %s1040, 3
      %s1042 = smul.addr %s1038, 48
      %s1043 = sadd.s32 %s1041, %s1042
      %s1044 = smul.addr %s1043, 4
      %s1045 = scalar_lea.vmem %s5, %s1044
      // Predicated region
      $region41: #{transformer_forward.7} parent=39 // pred_check
        %p1046 = pneg %p160
      $region42: #{transformer_forward.7} parent=39 // pred_check_branch
        %1048 = sbr.rel (%p1046) target = $region44
      $region43: #{transformer_forward.7} parent=39 // pred_region
        %s1049 = smul.u32 16, %s21
      $region44: #{transformer_forward.7} parent=39 // pred_fallthru
        _
    $region40: #{transformer_forward.7} parent=5 // pred_fallthru
      _
    %p1050 = scmp.le.s32.totalorder 2, %s11
    // Predicated region
    $region45: #{transformer_forward.7} parent=5 // pred_check
      %p1051 = pneg %p1050
    $region46: #{transformer_forward.7} parent=5 // pred_check_branch
      %1053 = sbr.rel (%p1051) target = $region48
    $region47: #{transformer_forward.7} parent=5 // pred_region
      %s1054 = ssub.s32 %s11, 2
      // Predicated region
      $region49: #{transformer_forward.7} parent=47 // pred_check
        %p1055 = pneg %p166
      $region50: #{transformer_forward.7} parent=47 // pred_check_branch
        %1057 = sbr.rel (%p1055) target = $region52
      $region51: #{transformer_forward.7} parent=47 // pred_region
        %s1058 = smul.u32 16, %s23
        %p1059 = scmp.lt.s32.totalorder %s22, 1
        %s1060 = scalar_select %p1059, %s22, 1
        %p1061 = scmp.lt.s32.totalorder %s1058, 15
        %s1062 = scalar_select %p1061, %s1058, 15
        %s1063 = smul.addr %s1062, 3
        %s1064 = smul.addr %s1060, 48
        %s1065 = sadd.s32 %s1063, %s1064
        %s1066 = smul.addr %s1065, 4
        %s1067 = scalar_lea.vmem %s5, %s1066
      $region52: #{transformer_forward.7} parent=47 // pred_fallthru
        _
    $region48: #{transformer_forward.7} parent=5 // pred_fallthru
      _
  $region6: #{transformer_forward.7} parent=0 // loop_footer
    %s15 = sadd.s32 1, %s11
  $region7: #{transformer_forward.7} parent=0 // loop_footer_branch
    %10 = sbr.rel target = $region3
  $region8: #{transformer_forward.7} parent=0 // loop_exit
    _

// kernel: transformer_forward.13
$region0: #{transformer_forward.13}
  #allocation0 [shape = 'u32[]', space=smem, size = 0x4, offset = 0x4, fixed_abs, tag = 'smem constant byte address 0x4 - core index']
  #allocation1 [shape = 'u32[72,128]{1,0:T(1,128)}', space=vmem, size = 0x9000, scoped, tag = 'internal scratch']
  %s0 = inlined_call_operand.vmem [shape: f32[2,128,128], index: 0, kind: input, shape index: {}]
  %s1 = inlined_call_operand.vmem [shape: f32[1,128], index: 1, kind: input, shape index: {}]
  %s2 = inlined_call_operand.vmem [shape: f32[1,128], index: 2, kind: input, shape index: {}]
  %s3 = inlined_call_operand.vmem [shape: bf16[128,512], index: 3, kind: input, shape index: {}]
  %s4 = inlined_call_operand.vmem [shape: f32[1,512], index: 4, kind: input, shape index: {}]
  %s5 = inlined_call_operand.hbm [shape: f32[2,128,512], index: 5, kind: output, shape index: {}]
  %s6 = sld [smem:[#allocation0]]
  $region91: #{transformer_forward.13} parent=0
    _
  %s8 = ssub.s32 1, %s6
  %s9 = scalar_select 0, %s8, %s6
  $region1: #{transformer_forward.13} parent=0
    #allocation2 [shape = 'u8[131072]{0}', space=vmem, size = 0x20000, scoped, tag = 'input window, operand 3']
    #allocation3 [shape = 'u8[262144]{0}', space=vmem, size = 0x40000, scoped, tag = 'output window, operand 0']
    #allocation4 [shape = 's32[2]{0}', space=sflag, size = 0x8, scoped, tag = 'scoped memory for transformer_forward.13']
    %10 = vsyncpa [#allocation4], 0
    %s11 = scalar_lea.sflag [#allocation4], 1
    %12 = vsyncpa %s11, 0
    loop: start=0, step=1, limit=6
    $region2: #{transformer_forward.13} parent=1 // loop_pre_header
      _
    $region3: #{transformer_forward.13} parent=1 // loop_header
      %s14 = sphi 0, %s18
      %p15 = scmp.ge.s32.totalorder %s14, 6
      %s21 = sphi 0, %s40
      %s22 = sphi 0, %s36
      %s23 = sphi 0, %s32
      %s24 = sphi 0, %s21
      %s25 = sphi 0, %s22
      %s26 = sphi 0, %s23
      %s27 = sphi 0, %s24
      %s28 = sphi 0, %s25
      %s29 = sphi 0, %s26
      %s45 = sphi 0, %s47
      %s48 = sphi 0, %s45
      %s49 = sphi 0, %s48
      %s65 = sphi 0, %s49
      %s69 = sphi 0, %s69
      %s71 = sphi 0, %s69
      %s72 = sphi 0, %s71
      %s86 = sphi 0, %s72
      %s90 = sphi 0, %s90
      %s92 = sphi 0, %s90
      %s93 = sphi 0, %s92
      %s107 = sphi 0, %s93
      %s113 = sphi 0, %s115
      %s116 = sphi 0, %s113
      %s117 = sphi 0, %s116
      %s133 = sphi 0, %s117
      %s139 = sphi 0, %s141
      %s142 = sphi 0, %s139
      %s143 = sphi 0, %s142
      %s159 = sphi 0, %s143
      %s169 = sphi 0, %s171
      %s172 = sphi 0, %s169
      %s173 = sphi 0, %s172
      %s189 = sphi 0, %s173
    $region4: #{transformer_forward.13} parent=1 // loop_header_branch
      %17 = sbr.rel (%p15) target = $region8
    $region5: #{transformer_forward.13} parent=1 // loop_body
      %s19 = ssub.s32 %s14, 1
      %s20 = ssub.s32 %s14, 2
      %s30 = sadd.s32 1, %s23
      %p31 = scmp.ge.s32.totalorder %s30, 2
      %s32 = scalar_select %p31, 0, %s30
      %s33 = sadd.s32 1, %s22
      %s34 = scalar_select %p31, %s33, %s22
      %p35 = scmp.ge.s32.totalorder %s34, 1
      %s36 = scalar_select %p35, 0, %s34
      %s37 = sadd.s32 1, %s21
      %s38 = scalar_select %p35, %s37, %s21
      %p39 = scmp.ge.s32.totalorder %s38, 2
      %s40 = scalar_select %p39, 0, %s38
      %s41 = ssub.s32 %s21, %s40
      %s42 = ssub.s32 %s22, %s36
      %s43 = sor.u32 %s41, %s42
      %p44 = scmp.eq.s32.totalorder %s43, 0
      %s46 = sadd.s32 %s45, 1
      %s47 = scalar_select %p44, %s45, %s46
      %p50 = pneg %p44
      %p51 = scmp.eq.s32.totalorder %s14, 3
      %p52 = por %p50, %p51
      %p53 = scmp.ne.s32.totalorder %s45, %s48
      %p54 = scmp.eq.s32.totalorder %s14, 0
      %p55 = por %p53, %p54
      %p56 = scmp.ne.s32.totalorder %s45, %s48
      %p57 = scmp.eq.s32.totalorder %s19, 3
      %p58 = por %p56, %p57
      %p59 = scmp.ne.s32.totalorder %s48, %s49
      %p60 = scmp.eq.s32.totalorder %s19, 0
      %p61 = por %p59, %p60
      %p62 = scmp.ne.s32.totalorder %s48, %s49
      %p63 = scmp.eq.s32.totalorder %s20, 3
      %p64 = por %p62, %p63
      %p66 = scmp.ne.s32.totalorder %s49, %s65
      %p67 = scmp.eq.s32.totalorder %s20, 0
      %p68 = por %p66, %p67
      %s70 = sadd.s32 %s69, 1
      %p73 = scmp.eq.s32.totalorder %s14, 3
      %p74 = scmp.ne.s32.totalorder %s69, %s71
      %p75 = scmp.eq.s32.totalorder %s14, 0
      %p76 = por %p74, %p75
      %p77 = scmp.ne.s32.totalorder %s69, %s71
      %p78 = scmp.eq.s32.totalorder %s19, 3
      %p79 = por %p77, %p78
      %p80 = scmp.ne.s32.totalorder %s71, %s72
      %p81 = scmp.eq.s32.totalorder %s19, 0
      %p82 = por %p80, %p81
      %p83 = scmp.ne.s32.totalorder %s71, %s72
      %p84 = scmp.eq.s32.totalorder %s20, 3
      %p85 = por %p83, %p84
      %p87 = scmp.ne.s32.totalorder %s72, %s86
      %p88 = scmp.eq.s32.totalorder %s20, 0
      %p89 = por %p87, %p88
      %s91 = sadd.s32 %s90, 1
      %p94 = scmp.eq.s32.totalorder %s14, 3
      %p95 = scmp.ne.s32.totalorder %s90, %s92
      %p96 = scmp.eq.s32.totalorder %s14, 0
      %p97 = por %p95, %p96
      %p98 = scmp.ne.s32.totalorder %s90, %s92
      %p99 = scmp.eq.s32.totalorder %s19, 3
      %p100 = por %p98, %p99
      %p101 = scmp.ne.s32.totalorder %s92, %s93
      %p102 = scmp.eq.s32.totalorder %s19, 0
      %p103 = por %p101, %p102
      %p104 = scmp.ne.s32.totalorder %s92, %s93
      %p105 = scmp.eq.s32.totalorder %s20, 3
      %p106 = por %p104, %p105
      %p108 = scmp.ne.s32.totalorder %s93, %s107
      %p109 = scmp.eq.s32.totalorder %s20, 0
      %p110 = por %p108, %p109
      %s111 = ssub.s32 %s23, %s32
      %p112 = scmp.eq.s32.totalorder %s111, 0
      %s114 = sadd.s32 %s113, 1
      %s115 = scalar_select %p112, %s113, %s114
      %p118 = pneg %p112
      %p119 = scmp.eq.s32.totalorder %s14, 3
      %p120 = por %p118, %p119
      %p121 = scmp.ne.s32.totalorder %s113, %s116
      %p122 = scmp.eq.s32.totalorder %s14, 0
      %p123 = por %p121, %p122
      %p124 = scmp.ne.s32.totalorder %s113, %s116
      %p125 = scmp.eq.s32.totalorder %s19, 3
      %p126 = por %p124, %p125
      %p127 = scmp.ne.s32.totalorder %s116, %s117
      %p128 = scmp.eq.s32.totalorder %s19, 0
      %p129 = por %p127, %p128
      %p130 = scmp.ne.s32.totalorder %s116, %s117
      %p131 = scmp.eq.s32.totalorder %s20, 3
      %p132 = por %p130, %p131
      %p134 = scmp.ne.s32.totalorder %s117, %s133
      %p135 = scmp.eq.s32.totalorder %s20, 0
      %p136 = por %p134, %p135
      %s137 = ssub.s32 %s23, %s32
      %p138 = scmp.eq.s32.totalorder %s137, 0
      %s140 = sadd.s32 %s139, 1
      %s141 = scalar_select %p138, %s139, %s140
      %p144 = pneg %p138
      %p145 = scmp.eq.s32.totalorder %s14, 3
      %p146 = por %p144, %p145
      %p147 = scmp.ne.s32.totalorder %s139, %s142
      %p148 = scmp.eq.s32.totalorder %s14, 0
      %p149 = por %p147, %p148
      %p150 = scmp.ne.s32.totalorder %s139, %s142
      %p151 = scmp.eq.s32.totalorder %s19, 3
      %p152 = por %p150, %p151
      %p153 = scmp.ne.s32.totalorder %s142, %s143
      %p154 = scmp.eq.s32.totalorder %s19, 0
      %p155 = por %p153, %p154
      %p156 = scmp.ne.s32.totalorder %s142, %s143
      %p157 = scmp.eq.s32.totalorder %s20, 3
      %p158 = por %p156, %p157
      %p160 = scmp.ne.s32.totalorder %s143, %s159
      %p161 = scmp.eq.s32.totalorder %s20, 0
      %p162 = por %p160, %p161
      %s163 = ssub.s32 %s21, %s40
      %s164 = ssub.s32 %s22, %s36
      %s165 = sor.u32 %s163, %s164
      %s166 = ssub.s32 %s23, %s32
      %s167 = sor.u32 %s165, %s166
      %p168 = scmp.eq.s32.totalorder %s167, 0
      %s170 = sadd.s32 %s169, 1
      %s171 = scalar_select %p168, %s169, %s170
      %p174 = pneg %p168
      %p175 = scmp.eq.s32.totalorder %s14, 3
      %p176 = por %p174, %p175
      %p177 = scmp.ne.s32.totalorder %s169, %s172
      %p178 = scmp.eq.s32.totalorder %s14, 0
      %p179 = por %p177, %p178
      %p180 = scmp.ne.s32.totalorder %s169, %s172
      %p181 = scmp.eq.s32.totalorder %s19, 3
      %p182 = por %p180, %p181
      %p183 = scmp.ne.s32.totalorder %s172, %s173
      %p184 = scmp.eq.s32.totalorder %s19, 0
      %p185 = por %p183, %p184
      %p186 = scmp.ne.s32.totalorder %s172, %s173
      %p187 = scmp.eq.s32.totalorder %s20, 3
      %p188 = por %p186, %p187
      %p190 = scmp.ne.s32.totalorder %s173, %s189
      %p191 = scmp.eq.s32.totalorder %s20, 0
      %p192 = por %p190, %p191
      %p193 = scmp.le.s32.totalorder 1, %s14
      %p194 = scmp.lt.s32.totalorder %s14, 5
      %p195 = pnand %p193, %p194
      %p196 = pneg %p195
      // Predicated region
      $region9: #{transformer_forward.13} parent=5 // pred_check
        _
      $region10: #{transformer_forward.13} parent=5 // pred_check_branch
        %198 = sbr.rel (%p195) target = $region12
      $region11: #{transformer_forward.13} parent=5 // pred_region
        %s199 = ssub.s32 %s14, 1
        // Predicated region
        $region13: #{transformer_forward.13} parent=11 // pred_check
          %p200 = pneg %p82
        $region14: #{transformer_forward.13} parent=11 // pred_check_branch
          %202 = sbr.rel (%p200) target = $region16
        $region15: #{transformer_forward.13} parent=11 // pred_region
          _
        $region16: #{transformer_forward.13} parent=11 // pred_fallthru
          _
        // Predicated region
        $region17: #{transformer_forward.13} parent=11 // pred_check
          %p203 = pneg %p103
        $region18: #{transformer_forward.13} parent=11 // pred_check_branch
          %205 = sbr.rel (%p203) target = $region20
        $region19: #{transformer_forward.13} parent=11 // pred_region
          _
        $region20: #{transformer_forward.13} parent=11 // pred_fallthru
          _
      $region12: #{transformer_forward.13} parent=5 // pred_fallthru
        _
      %p206 = scmp.lt.s32.totalorder %s14, 4
      // Predicated region
      $region21: #{transformer_forward.13} parent=5 // pred_check
        %p207 = pneg %p206
      $region22: #{transformer_forward.13} parent=5 // pred_check_branch
        %209 = sbr.rel (%p207) target = $region24
      $region23: #{transformer_forward.13} parent=5 // pred_region
        // Predicated region
        $region25: #{transformer_forward.13} parent=23 // pred_check
          %p210 = pneg %p55
        $region26: #{transformer_forward.13} parent=23 // pred_check_branch
          %212 = sbr.rel (%p210) target = $region28
        $region27: #{transformer_forward.13} parent=23 // pred_region
          %s213 = smul.u32 16, %s22
          %p214 = scmp.lt.s32.totalorder %s21, 1
          %s215 = scalar_select %p214, %s21, 1
          %p216 = scmp.lt.s32.totalorder %s213, 15
          %s217 = scalar_select %p216, %s213, 15
          %s218 = smul.addr %s215, 16
          %s219 = sadd.s32 %s217, %s218
          %s220 = smul.addr %s219, 8
          %s221 = scalar_lea.vmem %s0, %s220
          %s222 = smul.u32 16, %s22
        $region28: #{transformer_forward.13} parent=23 // pred_fallthru
          _
        // Predicated region
        $region29: #{transformer_forward.13} parent=23 // pred_check
          %p223 = pneg %p123
        $region30: #{transformer_forward.13} parent=23 // pred_check_branch
          %225 = sbr.rel (%p223) target = $region32
        $region31: #{transformer_forward.13} parent=23 // pred_region
          %s226 = sand.u32 %s113, 1
          %s227 = sand.u32 %s113, 1
          %s228 = smul.addr %s227, 128
          %s229 = scalar_lea.vmem [#allocation2], %s228
          %s230 = smul.u32 2, %s23
          %s231 = smul.addr %s230, 4
          %s232 = scalar_lea.vmem %s3, %s231
          // Predicated region
          $region33: #{transformer_forward.13} parent=31 // pred_check
            _
          $region34: #{transformer_forward.13} parent=31 // pred_check_branch
            %234 = sbr.rel (0) target = $region36
          $region35: #{transformer_forward.13} parent=31 // pred_region
            // Predicated region
            $region37: #{transformer_forward.13} parent=35 // pred_check
              _
            $region38: #{transformer_forward.13} parent=35 // pred_check_branch
              %236 = sbr.rel (0) target = $region40
            $region39: #{transformer_forward.13} parent=35 // pred_region
              // Predicated region
              $region52: #{transformer_forward.13} parent=39 // pred_check
                _
              $region53: #{transformer_forward.13} parent=39 // pred_check_branch
                %282 = sbr.rel (0) target = $region55
              $region54: #{transformer_forward.13} parent=39 // pred_region
                loop: start=0, step=1, limit=1
                $region56: #{transformer_forward.13} parent=54 // loop_pre_header
                  _
                $region57: #{transformer_forward.13} parent=54 // loop_header
                  %s284 = sphi 0, %s288
                  %p285 = scmp.ge.s32.totalorder %s284, 1
                  %s289 = sphi %s232, %s232
                  %s290 = sphi %s229, %s229
                $region58: #{transformer_forward.13} parent=54 // loop_header_branch
                  %287 = sbr.rel (%p285) target = $region62
                $region59: #{transformer_forward.13} parent=54 // loop_body
                  %v291 = vld [vmem:[%s289] sm:$0xff]
                  %292 = vst [vmem:[%s290] sm:$0xff] %v291
                  %v293 = vld [vmem:[%s289 + $0x10] sm:$0xff]
                  %294 = vst [vmem:[%s290 + $0x8] sm:$0xff] %v293
                  %v295 = vld [vmem:[%s289 + $0x20] sm:$0xff]
                  %296 = vst [vmem:[%s290 + $0x10] sm:$0xff] %v295
                  %v297 = vld [vmem:[%s289 + $0x30] sm:$0xff]
                  %298 = vst [vmem:[%s290 + $0x18] sm:$0xff] %v297
                  %v299 = vld [vmem:[%s289 + $0x40] sm:$0xff]
                  %300 = vst [vmem:[%s290 + $0x20] sm:$0xff] %v299
                  %v301 = vld [vmem:[%s289 + $0x50] sm:$0xff]
                  %302 = vst [vmem:[%s290 + $0x28] sm:$0xff] %v301
                  %v303 = vld [vmem:[%s289 + $0x60] sm:$0xff]
                  %304 = vst [vmem:[%s290 + $0x30] sm:$0xff] %v303
                  %v305 = vld [vmem:[%s289 + $0x70] sm:$0xff]
                  %306 = vst [vmem:[%s290 + $0x38] sm:$0xff] %v305
                  %v307 = vld [vmem:[%s289 + $0x80] sm:$0xff]
                  %308 = vst [vmem:[%s290 + $0x40] sm:$0xff] %v307
                  %v309 = vld [vmem:[%s289 + $0x90] sm:$0xff]
                  %310 = vst [vmem:[%s290 + $0x48] sm:$0xff] %v309
                  %v311 = vld [vmem:[%s289 + $0xa0] sm:$0xff]
                  %312 = vst [vmem:[%s290 + $0x50] sm:$0xff] %v311
                  %v313 = vld [vmem:[%s289 + $0xb0] sm:$0xff]
                  %314 = vst [vmem:[%s290 + $0x58] sm:$0xff] %v313
                  %v315 = vld [vmem:[%s289 + $0xc0] sm:$0xff]
                  %316 = vst [vmem:[%s290 + $0x60] sm:$0xff] %v315
                  %v317 = vld [vmem:[%s289 + $0xd0] sm:$0xff]
                  %318 = vst [vmem:[%s290 + $0x68] sm:$0xff] %v317
                  %v319 = vld [vmem:[%s289 + $0xe0] sm:$0xff]
                  %320 = vst [vmem:[%s290 + $0x70] sm:$0xff] %v319
                  %v321 = vld [vmem:[%s289 + $0xf0] sm:$0xff]
                  %322 = vst [vmem:[%s290 + $0x78] sm:$0xff] %v321
                $region60: #{transformer_forward.13} parent=54 // loop_footer
                  %s288 = sadd.s32 1, %s284
                $region61: #{transformer_forward.13} parent=54 // loop_footer_branch
                  %283 = sbr.rel target = $region57
                $region62: #{transformer_forward.13} parent=54 // loop_exit
                  _
              $region55: #{transformer_forward.13} parent=39 // pred_fallthru
                _
              // Predicated region
              $region63: #{transformer_forward.13} parent=39 // pred_check
                _
              $region64: #{transformer_forward.13} parent=39 // pred_check_branch
                %324 = sbr.rel target = $region66
              $region65: #{transformer_forward.13} parent=39 // pred_region
                _
              $region66: #{transformer_forward.13} parent=39 // pred_fallthru
                _
            $region40: #{transformer_forward.13} parent=35 // pred_fallthru
              _
            // Predicated region
            $region41: #{transformer_forward.13} parent=35 // pred_check
              _
            $region42: #{transformer_forward.13} parent=35 // pred_check_branch
              %238 = sbr.rel target = $region44
            $region43: #{transformer_forward.13} parent=35 // pred_region
              %s240 = ssub.s32 256, 1
              loop: start=0, step=1, limit=1
              $region45: #{transformer_forward.13} parent=43 // loop_pre_header
                _
              $region46: #{transformer_forward.13} parent=43 // loop_header
                %s242 = sphi 0, %s246
                %p243 = scmp.ge.s32.totalorder %s242, 1
                %s247 = sphi %s232, %s232
                %s248 = sphi %s229, %s229
              $region47: #{transformer_forward.13} parent=43 // loop_header_branch
                %245 = sbr.rel (%p243) target = $region51
              $region48: #{transformer_forward.13} parent=43 // loop_body
                %v249 = vld [vmem:[%s247] sm:%s240]
                %250 = vst [vmem:[%s248] sm:%s240] %v249
                %v251 = vld [vmem:[%s247 + $0x10] sm:%s240]
                %252 = vst [vmem:[%s248 + $0x8] sm:%s240] %v251
                %v253 = vld [vmem:[%s247 + $0x20] sm:%s240]
                %254 = vst [vmem:[%s248 + $0x10] sm:%s240] %v253
                %v255 = vld [vmem:[%s247 + $0x30] sm:%s240]
                %256 = vst [vmem:[%s248 + $0x18] sm:%s240] %v255
                %v257 = vld [vmem:[%s247 + $0x40] sm:%s240]
                %258 = vst [vmem:[%s248 + $0x20] sm:%s240] %v257
                %v259 = vld [vmem:[%s247 + $0x50] sm:%s240]
                %260 = vst [vmem:[%s248 + $0x28] sm:%s240] %v259
                %v261 = vld [vmem:[%s247 + $0x60] sm:%s240]
                %262 = vst [vmem:[%s248 + $0x30] sm:%s240] %v261
                %v263 = vld [vmem:[%s247 + $0x70] sm:%s240]
                %264 = vst [vmem:[%s248 + $0x38] sm:%s240] %v263
                %v265 = vld [vmem:[%s247 + $0x80] sm:%s240]
                %266 = vst [vmem:[%s248 + $0x40] sm:%s240] %v265
                %v267 = vld [vmem:[%s247 + $0x90] sm:%s240]
                %268 = vst [vmem:[%s248 + $0x48] sm:%s240] %v267
                %v269 = vld [vmem:[%s247 + $0xa0] sm:%s240]
                %270 = vst [vmem:[%s248 + $0x50] sm:%s240] %v269
                %v271 = vld [vmem:[%s247 + $0xb0] sm:%s240]
                %272 = vst [vmem:[%s248 + $0x58] sm:%s240] %v271
                %v273 = vld [vmem:[%s247 + $0xc0] sm:%s240]
                %274 = vst [vmem:[%s248 + $0x60] sm:%s240] %v273
                %v275 = vld [vmem:[%s247 + $0xd0] sm:%s240]
                %276 = vst [vmem:[%s248 + $0x68] sm:%s240] %v275
                %v277 = vld [vmem:[%s247 + $0xe0] sm:%s240]
                %278 = vst [vmem:[%s248 + $0x70] sm:%s240] %v277
                %v279 = vld [vmem:[%s247 + $0xf0] sm:%s240]
                %280 = vst [vmem:[%s248 + $0x78] sm:%s240] %v279
              $region49: #{transformer_forward.13} parent=43 // loop_footer
                %s246 = sadd.s32 1, %s242
              $region50: #{transformer_forward.13} parent=43 // loop_footer_branch
                %241 = sbr.rel target = $region46
              $region51: #{transformer_forward.13} parent=43 // loop_exit
                _
            $region44: #{transformer_forward.13} parent=35 // pred_fallthru
              _
          $region36: #{transformer_forward.13} parent=31 // pred_fallthru
            _
          %325 = vnop
        $region32: #{transformer_forward.13} parent=23 // pred_fallthru
          _
        // Predicated region
        $region67: #{transformer_forward.13} parent=23 // pred_check
          %p326 = pneg %p149
        $region68: #{transformer_forward.13} parent=23 // pred_check_branch
          %328 = sbr.rel (%p326) target = $region70
        $region69: #{transformer_forward.13} parent=23 // pred_region
          %s329 = smul.u32 2, %s23
          %p330 = scmp.lt.s32.totalorder %s329, 3
          %s331 = scalar_select %p330, %s329, 3
          %s332 = scalar_lea.vmem %s4, %s331
          %s333 = smul.u32 2, %s23
        $region70: #{transformer_forward.13} parent=23 // pred_fallthru
          _
      $region24: #{transformer_forward.13} parent=5 // pred_fallthru
        _
      %p334 = scmp.le.s32.totalorder 1, %s14
      %p335 = scmp.lt.s32.totalorder %s14, 5
      %p336 = pnand %p334, %p335
      %p337 = pneg %p336
      // Predicated region
      $region71: #{transformer_forward.13} parent=5 // pred_check
        _
      $region72: #{transformer_forward.13} parent=5 // pred_check_branch
        %339 = sbr.rel (%p336) target = $region74
      $region73: #{transformer_forward.13} parent=5 // pred_region
        %s340 = ssub.s32 %s14, 1
        %s341 = sand.u32 %s116, 1
        %s342 = sand.u32 %s116, 1
        %s343 = smul.addr %s342, 128
        %s344 = scalar_lea.vmem [#allocation2], %s343
        // Predicated region
        $region75: #{transformer_forward.13} parent=73 // pred_check
          %p345 = pneg %p129
        $region76: #{transformer_forward.13} parent=73 // pred_check_branch
          %347 = sbr.rel (%p345) target = $region78
        $region77: #{transformer_forward.13} parent=73 // pred_region
          _
        $region78: #{transformer_forward.13} parent=73 // pred_fallthru
          _
        %s348 = smul.u32 16, %s25
        %p349 = scmp.lt.s32.totalorder %s24, 1
        %s350 = scalar_select %p349, %s24, 1
        %p351 = scmp.lt.s32.totalorder %s348, 15
        %s352 = scalar_select %p351, %s348, 15
        %s353 = smul.addr %s350, 16
        %s354 = sadd.s32 %s352, %s353
        %s355 = smul.addr %s354, 8
        %s356 = scalar_lea.vmem %s0, %s355
        %p357 = pneg %p61
        %p358 = pneg %p58
        %p359 = pneg %p82
        %p360 = pneg %p79
        %p361 = pneg %p103
        %p362 = pneg %p100
        %s363 = sand.u32 %s116, 1
        %s364 = sand.u32 %s116, 1
        %s365 = smul.addr %s364, 128
        %s366 = scalar_lea.vmem [#allocation2], %s365
        %p367 = pneg %p129
        %p368 = pneg %p126
        %s369 = smul.u32 2, %s26
        %p370 = scmp.lt.s32.totalorder %s369, 3
        %s371 = scalar_select %p370, %s369, 3
        %s372 = scalar_lea.vmem %s4, %s371
        %p373 = pneg %p155
        %p374 = pneg %p152
        %p375 = pneg %p185
        %p376 = pneg %p182
        %s377 = sand.u32 %s172, 1
        %s378 = scalar_lea.sflag [#allocation4], %s377
        %s379 = sand.u32 %s172, 1
        %s380 = smul.addr %s379, 256
        %s381 = scalar_lea.vmem [#allocation3], %s380
        %s382 = smul.u32 16, %s25
        %p383 = scmp.lt.s32.totalorder %s24, 1
        %s384 = scalar_select %p383, %s24, 1
        %p385 = scmp.lt.s32.totalorder %s382, 15
        %s386 = scalar_select %p385, %s382, 15
        %s387 = smul.addr %s384, 16
        %s388 = sadd.s32 %s386, %s387
        %s389 = smul.addr %s388, 8
        %s390 = scalar_lea.vmem %s0, %s389
        %s391 = smul.u32 16, %s25
        %s392 = smul.u32 2, %s26
        %s393 = smul.u32 2, %s26
        %p394 = scmp.lt.s32.totalorder %s393, 3
        %s395 = scalar_select %p394, %s393, 3
        %s396 = scalar_lea.vmem %s4, %s395
        %s397 = smul.u32 2, %s26
        %s398 = smul.u32 16, %s25
        %s399 = smul.u32 2, %s26
        %v400 = vld [vmem:[%s390] sm:$0xff]
        %v401 = vld [vmem:[%s390 + $0x8] sm:$0xff]
        %v402 = vld [vmem:[%s390 + $0x10] sm:$0xff]
        %v403 = vld [vmem:[%s390 + $0x18] sm:$0xff]
        %v404 = vld [vmem:[%s390 + $0x20] sm:$0xff]
        %v405 = vld [vmem:[%s390 + $0x28] sm:$0xff]
        %v406 = vld [vmem:[%s390 + $0x30] sm:$0xff]
        %v407 = vld [vmem:[%s390 + $0x38] sm:$0xff]
        %v408 = vld [vmem:[%s390 + $0x40] sm:$0xff]
        %v409 = vld [vmem:[%s390 + $0x48] sm:$0xff]
        %v410 = vld [vmem:[%s390 + $0x50] sm:$0xff]
        %v411 = vld [vmem:[%s390 + $0x58] sm:$0xff]
        %v412 = vld [vmem:[%s390 + $0x60] sm:$0xff]
        %v413 = vld [vmem:[%s390 + $0x68] sm:$0xff]
        %v414 = vld [vmem:[%s390 + $0x70] sm:$0xff]
        %v415 = vld [vmem:[%s390 + $0x78] sm:$0xff]
        %v416 = vld [vmem:[%s1] sm:$0x1]
        %v417 = vld [vmem:[%s2] sm:$0x1]
        %418 = vadd.xlane.f32.xlu0 %v400
        %v419 = vpop.xlane.xlu0 %418
        %420 = vadd.xlane.f32.xlu0 %v401
        %v421 = vpop.xlane.xlu0 %420
        %422 = vadd.xlane.f32.xlu0 %v402
        %v423 = vpop.xlane.xlu0 %422
        %424 = vadd.xlane.f32.xlu0 %v403
        %v425 = vpop.xlane.xlu0 %424
        %426 = vadd.xlane.f32.xlu0 %v404
        %v427 = vpop.xlane.xlu0 %426
        %428 = vadd.xlane.f32.xlu0 %v405
        %v429 = vpop.xlane.xlu0 %428
        %430 = vadd.xlane.f32.xlu0 %v406
        %v431 = vpop.xlane.xlu0 %430
        %432 = vadd.xlane.f32.xlu0 %v407
        %v433 = vpop.xlane.xlu0 %432
        %434 = vadd.xlane.f32.xlu0 %v408
        %v435 = vpop.xlane.xlu0 %434
        %436 = vadd.xlane.f32.xlu0 %v409
        %v437 = vpop.xlane.xlu0 %436
        %438 = vadd.xlane.f32.xlu0 %v410
        %v439 = vpop.xlane.xlu0 %438
        %440 = vadd.xlane.f32.xlu0 %v411
        %v441 = vpop.xlane.xlu0 %440
        %442 = vadd.xlane.f32.xlu0 %v412
        %v443 = vpop.xlane.xlu0 %442
        %444 = vadd.xlane.f32.xlu0 %v413
        %v445 = vpop.xlane.xlu0 %444
        %446 = vadd.xlane.f32.xlu0 %v414
        %v447 = vpop.xlane.xlu0 %446
        %448 = vadd.xlane.f32.xlu0 %v415
        %v449 = vpop.xlane.xlu0 %448
        %v450 = vrcp.pop 128.0
        %v451 = vmul.f32 128.0, %v450
        %v452 = vsub.f32 1.0, %v451
        %v453 = vmul.f32 %v450, %v452
        %v454 = vadd.f32 %v450, %v453
        %vm455 = vweird.f32 %v450
        %v456 = vsel %vm455, %v450, %v454
        %v457 = vmul.f32 %v419, %v456
        %v458 = vmul.f32 %v421, %v456
        %v459 = vmul.f32 %v423, %v456
        %v460 = vmul.f32 %v425, %v456
        %v461 = vmul.f32 %v427, %v456
        %v462 = vmul.f32 %v429, %v456
        %v463 = vmul.f32 %v431, %v456
        %v464 = vmul.f32 %v433, %v456
        %v465 = vmul.f32 %v435, %v456
        %v466 = vmul.f32 %v437, %v456
        %v467 = vmul.f32 %v439, %v456
        %v468 = vmul.f32 %v441, %v456
        %v469 = vmul.f32 %v443, %v456
        %v470 = vmul.f32 %v445, %v456
        %v471 = vmul.f32 %v447, %v456
        %v472 = vmul.f32 %v449, %v456
        %v473 = vsub.f32 %v400, %v457
        %v474 = vsub.f32 %v401, %v458
        %v475 = vsub.f32 %v402, %v459
        %v476 = vsub.f32 %v403, %v460
        %v477 = vsub.f32 %v404, %v461
        %v478 = vsub.f32 %v405, %v462
        %v479 = vsub.f32 %v406, %v463
        %v480 = vsub.f32 %v407, %v464
        %v481 = vsub.f32 %v408, %v465
        %v482 = vsub.f32 %v409, %v466
        %v483 = vsub.f32 %v410, %v467
        %v484 = vsub.f32 %v411, %v468
        %v485 = vsub.f32 %v412, %v469
        %v486 = vsub.f32 %v413, %v470
        %v487 = vsub.f32 %v414, %v471
        %v488 = vsub.f32 %v415, %v472
        %v489 = vmul.f32 %v473, %v473
        %v490 = vmul.f32 %v474, %v474
        %v491 = vmul.f32 %v475, %v475
        %v492 = vmul.f32 %v476, %v476
        %v493 = vmul.f32 %v477, %v477
        %v494 = vmul.f32 %v478, %v478
        %v495 = vmul.f32 %v479, %v479
        %v496 = vmul.f32 %v480, %v480
        %v497 = vmul.f32 %v481, %v481
        %v498 = vmul.f32 %v482, %v482
        %v499 = vmul.f32 %v483, %v483
        %v500 = vmul.f32 %v484, %v484
        %v501 = vmul.f32 %v485, %v485
        %v502 = vmul.f32 %v486, %v486
        %v503 = vmul.f32 %v487, %v487
        %v504 = vmul.f32 %v488, %v488
        %505 = vadd.xlane.f32.xlu0 %v489
        %v506 = vpop.xlane.xlu0 %505
        %507 = vadd.xlane.f32.xlu0 %v490
        %v508 = vpop.xlane.xlu0 %507
        %509 = vadd.xlane.f32.xlu0 %v491
        %v510 = vpop.xlane.xlu0 %509
        %511 = vadd.xlane.f32.xlu0 %v492
        %v512 = vpop.xlane.xlu0 %511
        %513 = vadd.xlane.f32.xlu0 %v493
        %v514 = vpop.xlane.xlu0 %513
        %515 = vadd.xlane.f32.xlu0 %v494
        %v516 = vpop.xlane.xlu0 %515
        %517 = vadd.xlane.f32.xlu0 %v495
        %v518 = vpop.xlane.xlu0 %517
        %519 = vadd.xlane.f32.xlu0 %v496
        %v520 = vpop.xlane.xlu0 %519
        %521 = vadd.xlane.f32.xlu0 %v497
        %v522 = vpop.xlane.xlu0 %521
        %523 = vadd.xlane.f32.xlu0 %v498
        %v524 = vpop.xlane.xlu0 %523
        %525 = vadd.xlane.f32.xlu0 %v499
        %v526 = vpop.xlane.xlu0 %525
        %527 = vadd.xlane.f32.xlu0 %v500
        %v528 = vpop.xlane.xlu0 %527
        %529 = vadd.xlane.f32.xlu0 %v501
        %v530 = vpop.xlane.xlu0 %529
        %531 = vadd.xlane.f32.xlu0 %v502
        %v532 = vpop.xlane.xlu0 %531
        %533 = vadd.xlane.f32.xlu0 %v503
        %v534 = vpop.xlane.xlu0 %533
        %535 = vadd.xlane.f32.xlu0 %v504
        %v536 = vpop.xlane.xlu0 %535
        %v537 = vmul.f32 %v506, %v456
        %v538 = vmul.f32 %v508, %v456
        %v539 = vmul.f32 %v510, %v456
        %v540 = vmul.f32 %v512, %v456
        %v541 = vmul.f32 %v514, %v456
        %v542 = vmul.f32 %v516, %v456
        %v543 = vmul.f32 %v518, %v456
        %v544 = vmul.f32 %v520, %v456
        %v545 = vmul.f32 %v522, %v456
        %v546 = vmul.f32 %v524, %v456
        %v547 = vmul.f32 %v526, %v456
        %v548 = vmul.f32 %v528, %v456
        %v549 = vmul.f32 %v530, %v456
        %v550 = vmul.f32 %v532, %v456
        %v551 = vmul.f32 %v534, %v456
        %v552 = vmul.f32 %v536, %v456
        %v553 = vadd.f32 %v537, 1e-05
        %v554 = vadd.f32 %v538, 1e-05
        %v555 = vadd.f32 %v539, 1e-05
        %v556 = vadd.f32 %v540, 1e-05
        %v557 = vadd.f32 %v541, 1e-05
        %v558 = vadd.f32 %v542, 1e-05
        %v559 = vadd.f32 %v543, 1e-05
        %v560 = vadd.f32 %v544, 1e-05
        %v561 = vadd.f32 %v545, 1e-05
        %v562 = vadd.f32 %v546, 1e-05
        %v563 = vadd.f32 %v547, 1e-05
        %v564 = vadd.f32 %v548, 1e-05
        %v565 = vadd.f32 %v549, 1e-05
        %v566 = vadd.f32 %v550, 1e-05
        %v567 = vadd.f32 %v551, 1e-05
        %v568 = vadd.f32 %v552, 1e-05
        %v569 = vrsqrt.pop %v553
        %v570 = vmul.f32 %v569, %v553
        %v571 = vmul.f32 %v570, %v569
        %v572 = vmul.f32 0.5, %v571
        %v573 = vsub.f32 1.5, %v572
        %v574 = vmul.f32 %v569, %v573
        %vm575 = vweird.f32 %v553
        %vm576 = vweird.f32 %v569
        %vm577 = vmor %vm575, %vm576
        %v578 = vsel %vm577, %v569, %v574
        %v579 = vrsqrt.pop %v554
        %v580 = vmul.f32 %v579, %v554
        %v581 = vmul.f32 %v580, %v579
        %v582 = vmul.f32 0.5, %v581
        %v583 = vsub.f32 1.5, %v582
        %v584 = vmul.f32 %v579, %v583
        %vm585 = vweird.f32 %v554
        %vm586 = vweird.f32 %v579
        %vm587 = vmor %vm585, %vm586
        %v588 = vsel %vm587, %v579, %v584
        %v589 = vrsqrt.pop %v555
        %v590 = vmul.f32 %v589, %v555
        %v591 = vmul.f32 %v590, %v589
        %v592 = vmul.f32 0.5, %v591
        %v593 = vsub.f32 1.5, %v592
        %v594 = vmul.f32 %v589, %v593
        %vm595 = vweird.f32 %v555
        %vm596 = vweird.f32 %v589
        %vm597 = vmor %vm595, %vm596
        %v598 = vsel %vm597, %v589, %v594
        %v599 = vrsqrt.pop %v556
        %v600 = vmul.f32 %v599, %v556
        %v601 = vmul.f32 %v600, %v599
        %v602 = vmul.f32 0.5, %v601
        %v603 = vsub.f32 1.5, %v602
        %v604 = vmul.f32 %v599, %v603
        %vm605 = vweird.f32 %v556
        %vm606 = vweird.f32 %v599
        %vm607 = vmor %vm605, %vm606
        %v608 = vsel %vm607, %v599, %v604
        %v609 = vrsqrt.pop %v557
        %v610 = vmul.f32 %v609, %v557
        %v611 = vmul.f32 %v610, %v609
        %v612 = vmul.f32 0.5, %v611
        %v613 = vsub.f32 1.5, %v612
        %v614 = vmul.f32 %v609, %v613
        %vm615 = vweird.f32 %v557
        %vm616 = vweird.f32 %v609
        %vm617 = vmor %vm615, %vm616
        %v618 = vsel %vm617, %v609, %v614
        %v619 = vrsqrt.pop %v558
        %v620 = vmul.f32 %v619, %v558
        %v621 = vmul.f32 %v620, %v619
        %v622 = vmul.f32 0.5, %v621
        %v623 = vsub.f32 1.5, %v622
        %v624 = vmul.f32 %v619, %v623
        %vm625 = vweird.f32 %v558
        %vm626 = vweird.f32 %v619
        %vm627 = vmor %vm625, %vm626
        %v628 = vsel %vm627, %v619, %v624
        %v629 = vrsqrt.pop %v559
        %v630 = vmul.f32 %v629, %v559
        %v631 = vmul.f32 %v630, %v629
        %v632 = vmul.f32 0.5, %v631
        %v633 = vsub.f32 1.5, %v632
        %v634 = vmul.f32 %v629, %v633
        %vm635 = vweird.f32 %v559
        %vm636 = vweird.f32 %v629
        %vm637 = vmor %vm635, %vm636
        %v638 = vsel %vm637, %v629, %v634
        %v639 = vrsqrt.pop %v560
        %v640 = vmul.f32 %v639, %v560
        %v641 = vmul.f32 %v640, %v639
        %v642 = vmul.f32 0.5, %v641
        %v643 = vsub.f32 1.5, %v642
        %v644 = vmul.f32 %v639, %v643
        %vm645 = vweird.f32 %v560
        %vm646 = vweird.f32 %v639
        %vm647 = vmor %vm645, %vm646
        %v648 = vsel %vm647, %v639, %v644
        %v649 = vrsqrt.pop %v561
        %v650 = vmul.f32 %v649, %v561
        %v651 = vmul.f32 %v650, %v649
        %v652 = vmul.f32 0.5, %v651
        %v653 = vsub.f32 1.5, %v652
        %v654 = vmul.f32 %v649, %v653
        %vm655 = vweird.f32 %v561
        %vm656 = vweird.f32 %v649
        %vm657 = vmor %vm655, %vm656
        %v658 = vsel %vm657, %v649, %v654
        %v659 = vrsqrt.pop %v562
        %v660 = vmul.f32 %v659, %v562
        %v661 = vmul.f32 %v660, %v659
        %v662 = vmul.f32 0.5, %v661
        %v663 = vsub.f32 1.5, %v662
        %v664 = vmul.f32 %v659, %v663
        %vm665 = vweird.f32 %v562
        %vm666 = vweird.f32 %v659
        %vm667 = vmor %vm665, %vm666
        %v668 = vsel %vm667, %v659, %v664
        %v669 = vrsqrt.pop %v563
        %v670 = vmul.f32 %v669, %v563
        %v671 = vmul.f32 %v670, %v669
        %v672 = vmul.f32 0.5, %v671
        %v673 = vsub.f32 1.5, %v672
        %v674 = vmul.f32 %v669, %v673
        %vm675 = vweird.f32 %v563
        %vm676 = vweird.f32 %v669
        %vm677 = vmor %vm675, %vm676
        %v678 = vsel %vm677, %v669, %v674
        %v679 = vrsqrt.pop %v564
        %v680 = vmul.f32 %v679, %v564
        %v681 = vmul.f32 %v680, %v679
        %v682 = vmul.f32 0.5, %v681
        %v683 = vsub.f32 1.5, %v682
        %v684 = vmul.f32 %v679, %v683
        %vm685 = vweird.f32 %v564
        %vm686 = vweird.f32 %v679
        %vm687 = vmor %vm685, %vm686
        %v688 = vsel %vm687, %v679, %v684
        %v689 = vrsqrt.pop %v565
        %v690 = vmul.f32 %v689, %v565
        %v691 = vmul.f32 %v690, %v689
        %v692 = vmul.f32 0.5, %v691
        %v693 = vsub.f32 1.5, %v692
        %v694 = vmul.f32 %v689, %v693
        %vm695 = vweird.f32 %v565
        %vm696 = vweird.f32 %v689
        %vm697 = vmor %vm695, %vm696
        %v698 = vsel %vm697, %v689, %v694
        %v699 = vrsqrt.pop %v566
        %v700 = vmul.f32 %v699, %v566
        %v701 = vmul.f32 %v700, %v699
        %v702 = vmul.f32 0.5, %v701
        %v703 = vsub.f32 1.5, %v702
        %v704 = vmul.f32 %v699, %v703
        %vm705 = vweird.f32 %v566
        %vm706 = vweird.f32 %v699
        %vm707 = vmor %vm705, %vm706
        %v708 = vsel %vm707, %v699, %v704
        %v709 = vrsqrt.pop %v567
        %v710 = vmul.f32 %v709, %v567
        %v711 = vmul.f32 %v710, %v709
        %v712 = vmul.f32 0.5, %v711
        %v713 = vsub.f32 1.5, %v712
        %v714 = vmul.f32 %v709, %v713
        %vm715 = vweird.f32 %v567
        %vm716 = vweird.f32 %v709
        %vm717 = vmor %vm715, %vm716
        %v718 = vsel %vm717, %v709, %v714
        %v719 = vrsqrt.pop %v568
        %v720 = vmul.f32 %v719, %v568
        %v721 = vmul.f32 %v720, %v719
        %v722 = vmul.f32 0.5, %v721
        %v723 = vsub.f32 1.5, %v722
        %v724 = vmul.f32 %v719, %v723
        %vm725 = vweird.f32 %v568
        %vm726 = vweird.f32 %v719
        %vm727 = vmor %vm725, %vm726
        %v728 = vsel %vm727, %v719, %v724
        %v729 = vmul.f32 %v473, %v578
        %v730 = vmul.f32 %v474, %v588
        %v731 = vmul.f32 %v475, %v598
        %v732 = vmul.f32 %v476, %v608
        %v733 = vmul.f32 %v477, %v618
        %v734 = vmul.f32 %v478, %v628
        %v735 = vmul.f32 %v479, %v638
        %v736 = vmul.f32 %v480, %v648
        %v737 = vmul.f32 %v481, %v658
        %v738 = vmul.f32 %v482, %v668
        %v739 = vmul.f32 %v483, %v678
        %v740 = vmul.f32 %v484, %v688
        %v741 = vmul.f32 %v485, %v698
        %v742 = vmul.f32 %v486, %v708
        %v743 = vmul.f32 %v487, %v718
        %v744 = vmul.f32 %v488, %v728
        %v746 = vperm.slane %v416, 0
        %v748 = vmul.f32 %v729, %v746
        %v749 = vmul.f32 %v730, %v746
        %v750 = vmul.f32 %v731, %v746
        %v751 = vmul.f32 %v732, %v746
        %v752 = vmul.f32 %v733, %v746
        %v753 = vmul.f32 %v734, %v746
        %v754 = vmul.f32 %v735, %v746
        %v755 = vmul.f32 %v736, %v746
        %v756 = vmul.f32 %v737, %v746
        %v757 = vmul.f32 %v738, %v746
        %v758 = vmul.f32 %v739, %v746
        %v759 = vmul.f32 %v740, %v746
        %v760 = vmul.f32 %v741, %v746
        %v761 = vmul.f32 %v742, %v746
        %v762 = vmul.f32 %v743, %v746
        %v763 = vmul.f32 %v744, %v746
        %v765 = vperm.slane %v417, 0
        %v767 = vadd.f32 %v748, %v765
        %v768 = vadd.f32 %v749, %v765
        %v769 = vadd.f32 %v750, %v765
        %v770 = vadd.f32 %v751, %v765
        %v771 = vadd.f32 %v752, %v765
        %v772 = vadd.f32 %v753, %v765
        %v773 = vadd.f32 %v754, %v765
        %v774 = vadd.f32 %v755, %v765
        %v775 = vadd.f32 %v756, %v765
        %v776 = vadd.f32 %v757, %v765
        %v777 = vadd.f32 %v758, %v765
        %v778 = vadd.f32 %v759, %v765
        %v779 = vadd.f32 %v760, %v765
        %v780 = vadd.f32 %v761, %v765
        %v781 = vadd.f32 %v762, %v765
        %v782 = vadd.f32 %v763, %v765
        %v783 = vpack.c.bf16 %v768, %v767
        %v784 = vpack.c.bf16 %v770, %v769
        %v785 = vpack.c.bf16 %v772, %v771
        %v786 = vpack.c.bf16 %v774, %v773
        %v787 = vpack.c.bf16 %v776, %v775
        %v788 = vpack.c.bf16 %v778, %v777
        %v789 = vpack.c.bf16 %v780, %v779
        %v790 = vpack.c.bf16 %v782, %v781
        %v791 = vld [vmem:[%s344] sm:$0xff]
        %v792 = vld [vmem:[%s344 + $0x8] sm:$0xff]
        %v793 = vld [vmem:[%s344 + $0x10] sm:$0xff]
        %v794 = vld [vmem:[%s344 + $0x18] sm:$0xff]
        %v795 = vld [vmem:[%s344 + $0x20] sm:$0xff]
        %v796 = vld [vmem:[%s344 + $0x28] sm:$0xff]
        %v797 = vld [vmem:[%s344 + $0x30] sm:$0xff]
        %v798 = vld [vmem:[%s344 + $0x38] sm:$0xff]
        %v799 = vld [vmem:[%s344 + $0x40] sm:$0xff]
        %v800 = vld [vmem:[%s344 + $0x48] sm:$0xff]
        %v801 = vld [vmem:[%s344 + $0x50] sm:$0xff]
        %v802 = vld [vmem:[%s344 + $0x58] sm:$0xff]
        %v803 = vld [vmem:[%s344 + $0x60] sm:$0xff]
        %v804 = vld [vmem:[%s344 + $0x68] sm:$0xff]
        %v805 = vld [vmem:[%s344 + $0x70] sm:$0xff]
        %v806 = vld [vmem:[%s344 + $0x78] sm:$0xff]
        %v807 = vld [vmem:[%s396] sm:$0x3]
        %v809 = vperm.slane %v807, 0
        %v810 = vperm.slane %v807, 1
        %v829 = vunpack.c.l.b16 %v791
        %v830 = vunpack.c.h.b16 %v791
        %v831 = vunpack.c.l.b16 %v792
        %v832 = vunpack.c.h.b16 %v792
        %v833 = vunpack.c.l.b16 %v793
        %v834 = vunpack.c.h.b16 %v793
        %v835 = vunpack.c.l.b16 %v794
        %v836 = vunpack.c.h.b16 %v794
        %v837 = vunpack.c.l.b16 %v795
        %v838 = vunpack.c.h.b16 %v795
        %v839 = vunpack.c.l.b16 %v796
        %v840 = vunpack.c.h.b16 %v796
        %v841 = vunpack.c.l.b16 %v797
        %v842 = vunpack.c.h.b16 %v797
        %v843 = vunpack.c.l.b16 %v798
        %v844 = vunpack.c.h.b16 %v798
        %v845 = vunpack.c.l.b16 %v799
        %v846 = vunpack.c.h.b16 %v799
        %v847 = vunpack.c.l.b16 %v800
        %v848 = vunpack.c.h.b16 %v800
        %v849 = vunpack.c.l.b16 %v801
        %v850 = vunpack.c.h.b16 %v801
        %v851 = vunpack.c.l.b16 %v802
        %v852 = vunpack.c.h.b16 %v802
        %v853 = vunpack.c.l.b16 %v803
        %v854 = vunpack.c.h.b16 %v803
        %v855 = vunpack.c.l.b16 %v804
        %v856 = vunpack.c.h.b16 %v804
        %v857 = vunpack.c.l.b16 %v805
        %v858 = vunpack.c.h.b16 %v805
        %v859 = vunpack.c.l.b16 %v806
        %v860 = vunpack.c.h.b16 %v806
        %v861 = vpack.c.b16 %v831, %v829
        %v862 = vpack.c.b16 %v832, %v830
        %v863 = vpack.c.b16 %v835, %v833
        %v864 = vpack.c.b16 %v836, %v834
        %v865 = vpack.c.b16 %v839, %v837
        %v866 = vpack.c.b16 %v840, %v838
        %v867 = vpack.c.b16 %v843, %v841
        %v868 = vpack.c.b16 %v844, %v842
        %v869 = vpack.c.b16 %v847, %v845
        %v870 = vpack.c.b16 %v848, %v846
        %v871 = vpack.c.b16 %v851, %v849
        %v872 = vpack.c.b16 %v852, %v850
        %v873 = vpack.c.b16 %v855, %v853
        %v874 = vpack.c.b16 %v856, %v854
        %v875 = vpack.c.b16 %v859, %v857
        %v876 = vpack.c.b16 %v860, %v858
        %893 = vmatpush.bf16.msra.mxu0 %v875
        %894 = vmatpush.bf16.msra.mxu0 %v873
        %895 = vmatpush.bf16.msra.mxu0 %v871
        %896 = vmatpush.bf16.msra.mxu0 %v869
        %897 = vmatpush.bf16.msra.mxu0 %v867
        %898 = vmatpush.bf16.msra.mxu0 %v865
        %899 = vmatpush.bf16.msra.mxu0 %v863
        %900 = vmatpush.bf16.msra.mxu0 %v861
        %901 = vmatmul.bf16.gmra.mxu0 %v783
        %v902 = vpop.f32.mrf.mxu0
        %v903 = vadd.f32 %v809, %v902
        %v904 = vpop.f32.mrf.mxu0
        %v905 = vadd.f32 %v809, %v904
        %906 = vmatmul.bf16.gmra.mxu0 %v784
        %v907 = vpop.f32.mrf.mxu0
        %v908 = vadd.f32 %v809, %v907
        %v909 = vpop.f32.mrf.mxu0
        %v910 = vadd.f32 %v809, %v909
        %911 = vmatmul.bf16.gmra.mxu0 %v785
        %v912 = vpop.f32.mrf.mxu0
        %v913 = vadd.f32 %v809, %v912
        %v914 = vpop.f32.mrf.mxu0
        %v915 = vadd.f32 %v809, %v914
        %916 = vmatmul.bf16.gmra.mxu0 %v786
        %v917 = vpop.f32.mrf.mxu0
        %v918 = vadd.f32 %v809, %v917
        %v919 = vpop.f32.mrf.mxu0
        %v920 = vadd.f32 %v809, %v919
        %921 = vmatmul.bf16.gmra.mxu0 %v787
        %v922 = vpop.f32.mrf.mxu0
        %v923 = vadd.f32 %v809, %v922
        %v924 = vpop.f32.mrf.mxu0
        %v925 = vadd.f32 %v809, %v924
        %926 = vmatmul.bf16.gmra.mxu0 %v788
        %v927 = vpop.f32.mrf.mxu0
        %v928 = vadd.f32 %v809, %v927
        %v929 = vpop.f32.mrf.mxu0
        %v930 = vadd.f32 %v809, %v929
        %931 = vmatmul.bf16.gmra.mxu0 %v789
        %v932 = vpop.f32.mrf.mxu0
        %v933 = vadd.f32 %v809, %v932
        %v934 = vpop.f32.mrf.mxu0
        %v935 = vadd.f32 %v809, %v934
        %936 = vmatmul.bf16.gmra.mxu0 %v790
        %v937 = vpop.f32.mrf.mxu0
        %v938 = vadd.f32 %v809, %v937
        %v939 = vpop.f32.mrf.mxu0
        %v940 = vadd.f32 %v809, %v939
        %941 = vdwg.mxu0
        %942 = vmatpush.bf16.msra.mxu0 %v876
        %943 = vmatpush.bf16.msra.mxu0 %v874
        %944 = vmatpush.bf16.msra.mxu0 %v872
        %945 = vmatpush.bf16.msra.mxu0 %v870
        %946 = vmatpush.bf16.msra.mxu0 %v868
        %947 = vmatpush.bf16.msra.mxu0 %v866
        %948 = vmatpush.bf16.msra.mxu0 %v864
        %949 = vmatpush.bf16.msra.mxu0 %v862
        %950 = vmatmul.bf16.gmra.mxu0 %v783
        %v951 = vpop.f32.mrf.mxu0
        %v952 = vadd.f32 %v810, %v951
        %v953 = vpop.f32.mrf.mxu0
        %v954 = vadd.f32 %v810, %v953
        %955 = vmatmul.bf16.gmra.mxu0 %v784
        %v956 = vpop.f32.mrf.mxu0
        %v957 = vadd.f32 %v810, %v956
        %v958 = vpop.f32.mrf.mxu0
        %v959 = vadd.f32 %v810, %v958
        %960 = vmatmul.bf16.gmra.mxu0 %v785
        %v961 = vpop.f32.mrf.mxu0
        %v962 = vadd.f32 %v810, %v961
        %v963 = vpop.f32.mrf.mxu0
        %v964 = vadd.f32 %v810, %v963
        %965 = vmatmul.bf16.gmra.mxu0 %v786
        %v966 = vpop.f32.mrf.mxu0
        %v967 = vadd.f32 %v810, %v966
        %v968 = vpop.f32.mrf.mxu0
        %v969 = vadd.f32 %v810, %v968
        %970 = vmatmul.bf16.gmra.mxu0 %v787
        %v971 = vpop.f32.mrf.mxu0
        %v972 = vadd.f32 %v810, %v971
        %v973 = vpop.f32.mrf.mxu0
        %v974 = vadd.f32 %v810, %v973
        %975 = vmatmul.bf16.gmra.mxu0 %v788
        %v976 = vpop.f32.mrf.mxu0
        %v977 = vadd.f32 %v810, %v976
        %v978 = vpop.f32.mrf.mxu0
        %v979 = vadd.f32 %v810, %v978
        %980 = vmatmul.bf16.gmra.mxu0 %v789
        %v981 = vpop.f32.mrf.mxu0
        %v982 = vadd.f32 %v810, %v981
        %v983 = vpop.f32.mrf.mxu0
        %v984 = vadd.f32 %v810, %v983
        %985 = vmatmul.bf16.gmra.mxu0 %v790
        %v986 = vpop.f32.mrf.mxu0
        %v987 = vadd.f32 %v810, %v986
        %v988 = vpop.f32.mrf.mxu0
        %v989 = vadd.f32 %v810, %v988
        %990 = vdwg.mxu0
        %991 = vst [vmem:[%s381] sm:$0xff] %v903
        %992 = vst [vmem:[%s381 + $0x8] sm:$0xff] %v952
        %993 = vst [vmem:[%s381 + $0x10] sm:$0xff] %v905
        %994 = vst [vmem:[%s381 + $0x18] sm:$0xff] %v954
        %995 = vst [vmem:[%s381 + $0x20] sm:$0xff] %v908
        %996 = vst [vmem:[%s381 + $0x28] sm:$0xff] %v957
        %997 = vst [vmem:[%s381 + $0x30] sm:$0xff] %v910
        %998 = vst [vmem:[%s381 + $0x38] sm:$0xff] %v959
        %999 = vst [vmem:[%s381 + $0x40] sm:$0xff] %v913
        %1000 = vst [vmem:[%s381 + $0x48] sm:$0xff] %v962
        %1001 = vst [vmem:[%s381 + $0x50] sm:$0xff] %v915
        %1002 = vst [vmem:[%s381 + $0x58] sm:$0xff] %v964
        %1003 = vst [vmem:[%s381 + $0x60] sm:$0xff] %v918
        %1004 = vst [vmem:[%s381 + $0x68] sm:$0xff] %v967
        %1005 = vst [vmem:[%s381 + $0x70] sm:$0xff] %v920
        %1006 = vst [vmem:[%s381 + $0x78] sm:$0xff] %v969
        %1007 = vst [vmem:[%s381 + $0x80] sm:$0xff] %v923
        %1008 = vst [vmem:[%s381 + $0x88] sm:$0xff] %v972
        %1009 = vst [vmem:[%s381 + $0x90] sm:$0xff] %v925
        %1010 = vst [vmem:[%s381 + $0x98] sm:$0xff] %v974
        %1011 = vst [vmem:[%s381 + $0xa0] sm:$0xff] %v928
        %1012 = vst [vmem:[%s381 + $0xa8] sm:$0xff] %v977
        %1013 = vst [vmem:[%s381 + $0xb0] sm:$0xff] %v930
        %1014 = vst [vmem:[%s381 + $0xb8] sm:$0xff] %v979
        %1015 = vst [vmem:[%s381 + $0xc0] sm:$0xff] %v933
        %1016 = vst [vmem:[%s381 + $0xc8] sm:$0xff] %v982
        %1017 = vst [vmem:[%s381 + $0xd0] sm:$0xff] %v935
        %1018 = vst [vmem:[%s381 + $0xd8] sm:$0xff] %v984
        %1019 = vst [vmem:[%s381 + $0xe0] sm:$0xff] %v938
        %1020 = vst [vmem:[%s381 + $0xe8] sm:$0xff] %v987
        %1021 = vst [vmem:[%s381 + $0xf0] sm:$0xff] %v940
        %1022 = vst [vmem:[%s381 + $0xf8] sm:$0xff] %v989
        %s1023 = sand.u32 %s172, 1
        %s1024 = scalar_lea.sflag [#allocation4], %s1023
        %s1025 = sand.u32 %s172, 1
        %s1026 = smul.addr %s1025, 256
        %s1027 = scalar_lea.vmem [#allocation3], %s1026
        // Predicated region
        $region79: #{transformer_forward.13} parent=73 // pred_check
          %p1028 = pneg %p182
        $region80: #{transformer_forward.13} parent=73 // pred_check_branch
          %1030 = sbr.rel (%p1028) target = $region82
        $region81: #{transformer_forward.13} parent=73 // pred_region
          %s1031 = smul.u32 16, %s25
          %s1032 = smul.u32 2, %s26
          %1034 = vsyncadd %s1024, 0
          %s1035 = smul.addr %s1031, 4
          %s1036 = sadd.s32 %s1032, %s1035
          %s1037 = smul.addr %s24, 64
          %s1038 = sadd.s32 %s1036, %s1037
          %s1039 = smul.addr %s1038, 8
          %s1040 = scalar_lea.hbm %s5, %s1039
          %s1041 = sshll.u32 %s1027, 4
          %s1042 = int_to_ptr.vmem [resolvable:$true] %s1041
          %s1043 = sshll.u32 %s1040, 4
          %s1044 = int_to_ptr.hbm [resolvable:$true] %s1043
          %1049 = dma.vmem_to_hbm [thread:$0]  %s1042, 4096, %s1044, %s1024, 256, 512, 16
        $region82: #{transformer_forward.13} parent=73 // pred_fallthru
          _
      $region74: #{transformer_forward.13} parent=5 // pred_fallthru
        _
      %p1050 = scmp.le.s32.totalorder 2, %s14
      // Predicated region
      $region83: #{transformer_forward.13} parent=5 // pred_check
        %p1051 = pneg %p1050
      $region84: #{transformer_forward.13} parent=5 // pred_check_branch
        %1053 = sbr.rel (%p1051) target = $region86
      $region85: #{transformer_forward.13} parent=5 // pred_region
        %s1054 = ssub.s32 %s14, 2
        // Predicated region
        $region87: #{transformer_forward.13} parent=85 // pred_check
          %p1055 = pneg %p188
        $region88: #{transformer_forward.13} parent=85 // pred_check_branch
          %1057 = sbr.rel (%p1055) target = $region90
        $region89: #{transformer_forward.13} parent=85 // pred_region
          %s1058 = sand.u32 %s173, 1
          %s1059 = scalar_lea.sflag [#allocation4], %s1058
          %s1060 = sand.u32 %s173, 1
          %s1061 = smul.addr %s1060, 256
          %s1062 = scalar_lea.vmem [#allocation3], %s1061
          %1064 = dma.done %s1059, 4096
        $region90: #{transformer_forward.13} parent=85 // pred_fallthru
          _
      $region86: #{transformer_forward.13} parent=5 // pred_fallthru
        _
    $region6: #{transformer_forward.13} parent=1 // loop_footer
      %s18 = sadd.s32 1, %s14
    $region7: #{transformer_forward.13} parent=1 // loop_footer_branch
      %13 = sbr.rel target = $region3
    $region8: #{transformer_forward.13} parent=1 // loop_exit
      _
    %1065 = vsyncpa [#allocation4], 1
    %s1066 = scalar_lea.sflag [#allocation4], 1
    %1067 = vsyncpa %s1066, 1

// kernel: transformer_forward.9
$region0: #{transformer_forward.9}
  #allocation0 [shape = 'u32[]', space=smem, size = 0x4, offset = 0x4, fixed_abs, tag = 'smem constant byte address 0x4 - core index']
  #allocation1 [shape = 'u32[72,128]{1,0:T(1,128)}', space=vmem, size = 0x9000, scoped, tag = 'internal scratch']
  %s0 = inlined_call_operand.vmem [shape: f32[2,128,128], index: 0, kind: input, shape index: {}]
  %s1 = inlined_call_operand.vmem [shape: bf16[2,128,128], index: 1, kind: input, shape index: {}]
  %s2 = inlined_call_operand.vmem [shape: bf16[128,128], index: 2, kind: input, shape index: {}]
  %s3 = inlined_call_operand.vmem [shape: f32[1,128], index: 3, kind: input, shape index: {}]
  %s4 = inlined_call_operand.vmem [shape: f32[1,128], index: 4, kind: input, shape index: {}]
  %s5 = inlined_call_operand.vmem [shape: f32[1,128], index: 5, kind: input, shape index: {}]
  %s6 = inlined_call_operand.vmem [shape: bf16[128,512], index: 6, kind: input, shape index: {}]
  %s7 = inlined_call_operand.vmem [shape: f32[1,512], index: 7, kind: input, shape index: {}]
  %s8 = inlined_call_operand.vmem [shape: bf16[512,128], index: 8, kind: input, shape index: {}]
  %s9 = inlined_call_operand.vmem [shape: f32[1,128], index: 9, kind: input, shape index: {}]
  %s10 = inlined_call_operand.vmem [shape: f32[2,128,128], index: 10, kind: output, shape index: {}]
  %s11 = sld [smem:[#allocation0]]
  $region73: #{transformer_forward.9} parent=0
    _
  %s13 = ssub.s32 1, %s11
  %s14 = scalar_select 0, %s13, %s11
  loop: start=0, step=1, limit=4
  $region2: #{transformer_forward.9} parent=0 // loop_pre_header
    _
  $region3: #{transformer_forward.9} parent=0 // loop_header
    %s16 = sphi 0, %s20
    %p17 = scmp.ge.s32.totalorder %s16, 4
    %s23 = sphi 0, %s35
    %s24 = sphi 0, %s31
    %s25 = sphi 0, %s23
    %s26 = sphi 0, %s24
    %s27 = sphi 0, %s25
    %s28 = sphi 0, %s26
    %s40 = sphi 0, %s42
    %s43 = sphi 0, %s40
    %s44 = sphi 0, %s43
    %s60 = sphi 0, %s44
    %s68 = sphi 0, %s70
    %s71 = sphi 0, %s68
    %s72 = sphi 0, %s71
    %s88 = sphi 0, %s72
    %s92 = sphi 0, %s92
    %s94 = sphi 0, %s92
    %s95 = sphi 0, %s94
    %s109 = sphi 0, %s95
    %s113 = sphi 0, %s113
    %s115 = sphi 0, %s113
    %s116 = sphi 0, %s115
    %s130 = sphi 0, %s116
    %s134 = sphi 0, %s134
    %s136 = sphi 0, %s134
    %s137 = sphi 0, %s136
    %s151 = sphi 0, %s137
    %s155 = sphi 0, %s155
    %s157 = sphi 0, %s155
    %s158 = sphi 0, %s157
    %s172 = sphi 0, %s158
    %s176 = sphi 0, %s176
    %s178 = sphi 0, %s176
    %s179 = sphi 0, %s178
    %s193 = sphi 0, %s179
    %s197 = sphi 0, %s197
    %s199 = sphi 0, %s197
    %s200 = sphi 0, %s199
    %s214 = sphi 0, %s200
    %s218 = sphi 0, %s218
    %s220 = sphi 0, %s218
    %s221 = sphi 0, %s220
    %s235 = sphi 0, %s221
    %s239 = sphi 0, %s239
    %s241 = sphi 0, %s239
    %s242 = sphi 0, %s241
    %s256 = sphi 0, %s242
    %s264 = sphi 0, %s266
    %s267 = sphi 0, %s264
    %s268 = sphi 0, %s267
    %s284 = sphi 0, %s268
  $region4: #{transformer_forward.9} parent=0 // loop_header_branch
    %19 = sbr.rel (%p17) target = $region8
  $region5: #{transformer_forward.9} parent=0 // loop_body
    %s21 = ssub.s32 %s16, 1
    %s22 = ssub.s32 %s16, 2
    %s29 = sadd.s32 1, %s24
    %p30 = scmp.ge.s32.totalorder %s29, 1
    %s31 = scalar_select %p30, 0, %s29
    %s32 = sadd.s32 1, %s23
    %s33 = scalar_select %p30, %s32, %s23
    %p34 = scmp.ge.s32.totalorder %s33, 2
    %s35 = scalar_select %p34, 0, %s33
    %s36 = ssub.s32 %s23, %s35
    %s37 = ssub.s32 %s24, %s31
    %s38 = sor.u32 %s36, %s37
    %p39 = scmp.eq.s32.totalorder %s38, 0
    %s41 = sadd.s32 %s40, 1
    %s42 = scalar_select %p39, %s40, %s41
    %p45 = pneg %p39
    %p46 = scmp.eq.s32.totalorder %s16, 1
    %p47 = por %p45, %p46
    %p48 = scmp.ne.s32.totalorder %s40, %s43
    %p49 = scmp.eq.s32.totalorder %s16, 0
    %p50 = por %p48, %p49
    %p51 = scmp.ne.s32.totalorder %s40, %s43
    %p52 = scmp.eq.s32.totalorder %s21, 1
    %p53 = por %p51, %p52
    %p54 = scmp.ne.s32.totalorder %s43, %s44
    %p55 = scmp.eq.s32.totalorder %s21, 0
    %p56 = por %p54, %p55
    %p57 = scmp.ne.s32.totalorder %s43, %s44
    %p58 = scmp.eq.s32.totalorder %s22, 1
    %p59 = por %p57, %p58
    %p61 = scmp.ne.s32.totalorder %s44, %s60
    %p62 = scmp.eq.s32.totalorder %s22, 0
    %p63 = por %p61, %p62
    %s64 = ssub.s32 %s23, %s35
    %s65 = ssub.s32 %s24, %s31
    %s66 = sor.u32 %s64, %s65
    %p67 = scmp.eq.s32.totalorder %s66, 0
    %s69 = sadd.s32 %s68, 1
    %s70 = scalar_select %p67, %s68, %s69
    %p73 = pneg %p67
    %p74 = scmp.eq.s32.totalorder %s16, 1
    %p75 = por %p73, %p74
    %p76 = scmp.ne.s32.totalorder %s68, %s71
    %p77 = scmp.eq.s32.totalorder %s16, 0
    %p78 = por %p76, %p77
    %p79 = scmp.ne.s32.totalorder %s68, %s71
    %p80 = scmp.eq.s32.totalorder %s21, 1
    %p81 = por %p79, %p80
    %p82 = scmp.ne.s32.totalorder %s71, %s72
    %p83 = scmp.eq.s32.totalorder %s21, 0
    %p84 = por %p82, %p83
    %p85 = scmp.ne.s32.totalorder %s71, %s72
    %p86 = scmp.eq.s32.totalorder %s22, 1
    %p87 = por %p85, %p86
    %p89 = scmp.ne.s32.totalorder %s72, %s88
    %p90 = scmp.eq.s32.totalorder %s22, 0
    %p91 = por %p89, %p90
    %s93 = sadd.s32 %s92, 1
    %p96 = scmp.eq.s32.totalorder %s16, 1
    %p97 = scmp.ne.s32.totalorder %s92, %s94
    %p98 = scmp.eq.s32.totalorder %s16, 0
    %p99 = por %p97, %p98
    %p100 = scmp.ne.s32.totalorder %s92, %s94
    %p101 = scmp.eq.s32.totalorder %s21, 1
    %p102 = por %p100, %p101
    %p103 = scmp.ne.s32.totalorder %s94, %s95
    %p104 = scmp.eq.s32.totalorder %s21, 0
    %p105 = por %p103, %p104
    %p106 = scmp.ne.s32.totalorder %s94, %s95
    %p107 = scmp.eq.s32.totalorder %s22, 1
    %p108 = por %p106, %p107
    %p110 = scmp.ne.s32.totalorder %s95, %s109
    %p111 = scmp.eq.s32.totalorder %s22, 0
    %p112 = por %p110, %p111
    %s114 = sadd.s32 %s113, 1
    %p117 = scmp.eq.s32.totalorder %s16, 1
    %p118 = scmp.ne.s32.totalorder %s113, %s115
    %p119 = scmp.eq.s32.totalorder %s16, 0
    %p120 = por %p118, %p119
    %p121 = scmp.ne.s32.totalorder %s113, %s115
    %p122 = scmp.eq.s32.totalorder %s21, 1
    %p123 = por %p121, %p122
    %p124 = scmp.ne.s32.totalorder %s115, %s116
    %p125 = scmp.eq.s32.totalorder %s21, 0
    %p126 = por %p124, %p125
    %p127 = scmp.ne.s32.totalorder %s115, %s116
    %p128 = scmp.eq.s32.totalorder %s22, 1
    %p129 = por %p127, %p128
    %p131 = scmp.ne.s32.totalorder %s116, %s130
    %p132 = scmp.eq.s32.totalorder %s22, 0
    %p133 = por %p131, %p132
    %s135 = sadd.s32 %s134, 1
    %p138 = scmp.eq.s32.totalorder %s16, 1
    %p139 = scmp.ne.s32.totalorder %s134, %s136
    %p140 = scmp.eq.s32.totalorder %s16, 0
    %p141 = por %p139, %p140
    %p142 = scmp.ne.s32.totalorder %s134, %s136
    %p143 = scmp.eq.s32.totalorder %s21, 1
    %p144 = por %p142, %p143
    %p145 = scmp.ne.s32.totalorder %s136, %s137
    %p146 = scmp.eq.s32.totalorder %s21, 0
    %p147 = por %p145, %p146
    %p148 = scmp.ne.s32.totalorder %s136, %s137
    %p149 = scmp.eq.s32.totalorder %s22, 1
    %p150 = por %p148, %p149
    %p152 = scmp.ne.s32.totalorder %s137, %s151
    %p153 = scmp.eq.s32.totalorder %s22, 0
    %p154 = por %p152, %p153
    %s156 = sadd.s32 %s155, 1
    %p159 = scmp.eq.s32.totalorder %s16, 1
    %p160 = scmp.ne.s32.totalorder %s155, %s157
    %p161 = scmp.eq.s32.totalorder %s16, 0
    %p162 = por %p160, %p161
    %p163 = scmp.ne.s32.totalorder %s155, %s157
    %p164 = scmp.eq.s32.totalorder %s21, 1
    %p165 = por %p163, %p164
    %p166 = scmp.ne.s32.totalorder %s157, %s158
    %p167 = scmp.eq.s32.totalorder %s21, 0
    %p168 = por %p166, %p167
    %p169 = scmp.ne.s32.totalorder %s157, %s158
    %p170 = scmp.eq.s32.totalorder %s22, 1
    %p171 = por %p169, %p170
    %p173 = scmp.ne.s32.totalorder %s158, %s172
    %p174 = scmp.eq.s32.totalorder %s22, 0
    %p175 = por %p173, %p174
    %s177 = sadd.s32 %s176, 1
    %p180 = scmp.eq.s32.totalorder %s16, 1
    %p181 = scmp.ne.s32.totalorder %s176, %s178
    %p182 = scmp.eq.s32.totalorder %s16, 0
    %p183 = por %p181, %p182
    %p184 = scmp.ne.s32.totalorder %s176, %s178
    %p185 = scmp.eq.s32.totalorder %s21, 1
    %p186 = por %p184, %p185
    %p187 = scmp.ne.s32.totalorder %s178, %s179
    %p188 = scmp.eq.s32.totalorder %s21, 0
    %p189 = por %p187, %p188
    %p190 = scmp.ne.s32.totalorder %s178, %s179
    %p191 = scmp.eq.s32.totalorder %s22, 1
    %p192 = por %p190, %p191
    %p194 = scmp.ne.s32.totalorder %s179, %s193
    %p195 = scmp.eq.s32.totalorder %s22, 0
    %p196 = por %p194, %p195
    %s198 = sadd.s32 %s197, 1
    %p201 = scmp.eq.s32.totalorder %s16, 1
    %p202 = scmp.ne.s32.totalorder %s197, %s199
    %p203 = scmp.eq.s32.totalorder %s16, 0
    %p204 = por %p202, %p203
    %p205 = scmp.ne.s32.totalorder %s197, %s199
    %p206 = scmp.eq.s32.totalorder %s21, 1
    %p207 = por %p205, %p206
    %p208 = scmp.ne.s32.totalorder %s199, %s200
    %p209 = scmp.eq.s32.totalorder %s21, 0
    %p210 = por %p208, %p209
    %p211 = scmp.ne.s32.totalorder %s199, %s200
    %p212 = scmp.eq.s32.totalorder %s22, 1
    %p213 = por %p211, %p212
    %p215 = scmp.ne.s32.totalorder %s200, %s214
    %p216 = scmp.eq.s32.totalorder %s22, 0
    %p217 = por %p215, %p216
    %s219 = sadd.s32 %s218, 1
    %p222 = scmp.eq.s32.totalorder %s16, 1
    %p223 = scmp.ne.s32.totalorder %s218, %s220
    %p224 = scmp.eq.s32.totalorder %s16, 0
    %p225 = por %p223, %p224
    %p226 = scmp.ne.s32.totalorder %s218, %s220
    %p227 = scmp.eq.s32.totalorder %s21, 1
    %p228 = por %p226, %p227
    %p229 = scmp.ne.s32.totalorder %s220, %s221
    %p230 = scmp.eq.s32.totalorder %s21, 0
    %p231 = por %p229, %p230
    %p232 = scmp.ne.s32.totalorder %s220, %s221
    %p233 = scmp.eq.s32.totalorder %s22, 1
    %p234 = por %p232, %p233
    %p236 = scmp.ne.s32.totalorder %s221, %s235
    %p237 = scmp.eq.s32.totalorder %s22, 0
    %p238 = por %p236, %p237
    %s240 = sadd.s32 %s239, 1
    %p243 = scmp.eq.s32.totalorder %s16, 1
    %p244 = scmp.ne.s32.totalorder %s239, %s241
    %p245 = scmp.eq.s32.totalorder %s16, 0
    %p246 = por %p244, %p245
    %p247 = scmp.ne.s32.totalorder %s239, %s241
    %p248 = scmp.eq.s32.totalorder %s21, 1
    %p249 = por %p247, %p248
    %p250 = scmp.ne.s32.totalorder %s241, %s242
    %p251 = scmp.eq.s32.totalorder %s21, 0
    %p252 = por %p250, %p251
    %p253 = scmp.ne.s32.totalorder %s241, %s242
    %p254 = scmp.eq.s32.totalorder %s22, 1
    %p255 = por %p253, %p254
    %p257 = scmp.ne.s32.totalorder %s242, %s256
    %p258 = scmp.eq.s32.totalorder %s22, 0
    %p259 = por %p257, %p258
    %s260 = ssub.s32 %s23, %s35
    %s261 = ssub.s32 %s24, %s31
    %s262 = sor.u32 %s260, %s261
    %p263 = scmp.eq.s32.totalorder %s262, 0
    %s265 = sadd.s32 %s264, 1
    %s266 = scalar_select %p263, %s264, %s265
    %p269 = pneg %p263
    %p270 = scmp.eq.s32.totalorder %s16, 1
    %p271 = por %p269, %p270
    %p272 = scmp.ne.s32.totalorder %s264, %s267
    %p273 = scmp.eq.s32.totalorder %s16, 0
    %p274 = por %p272, %p273
    %p275 = scmp.ne.s32.totalorder %s264, %s267
    %p276 = scmp.eq.s32.totalorder %s21, 1
    %p277 = por %p275, %p276
    %p278 = scmp.ne.s32.totalorder %s267, %s268
    %p279 = scmp.eq.s32.totalorder %s21, 0
    %p280 = por %p278, %p279
    %p281 = scmp.ne.s32.totalorder %s267, %s268
    %p282 = scmp.eq.s32.totalorder %s22, 1
    %p283 = por %p281, %p282
    %p285 = scmp.ne.s32.totalorder %s268, %s284
    %p286 = scmp.eq.s32.totalorder %s22, 0
    %p287 = por %p285, %p286
    %p288 = scmp.le.s32.totalorder 1, %s16
    %p289 = scmp.lt.s32.totalorder %s16, 3
    %p290 = pnand %p288, %p289
    %p291 = pneg %p290
    // Predicated region
    $region9: #{transformer_forward.9} parent=5 // pred_check
      _
    $region10: #{transformer_forward.9} parent=5 // pred_check_branch
      %293 = sbr.rel (%p290) target = $region12
    $region11: #{transformer_forward.9} parent=5 // pred_region
      %s294 = ssub.s32 %s16, 1
      // Predicated region
      $region13: #{transformer_forward.9} parent=11 // pred_check
        %p295 = pneg %p105
      $region14: #{transformer_forward.9} parent=11 // pred_check_branch
        %297 = sbr.rel (%p295) target = $region16
      $region15: #{transformer_forward.9} parent=11 // pred_region
        _
      $region16: #{transformer_forward.9} parent=11 // pred_fallthru
        _
      // Predicated region
      $region17: #{transformer_forward.9} parent=11 // pred_check
        %p298 = pneg %p126
      $region18: #{transformer_forward.9} parent=11 // pred_check_branch
        %300 = sbr.rel (%p298) target = $region20
      $region19: #{transformer_forward.9} parent=11 // pred_region
        _
      $region20: #{transformer_forward.9} parent=11 // pred_fallthru
        _
      // Predicated region
      $region21: #{transformer_forward.9} parent=11 // pred_check
        %p301 = pneg %p147
      $region22: #{transformer_forward.9} parent=11 // pred_check_branch
        %303 = sbr.rel (%p301) target = $region24
      $region23: #{transformer_forward.9} parent=11 // pred_region
        _
      $region24: #{transformer_forward.9} parent=11 // pred_fallthru
        _
      // Predicated region
      $region25: #{transformer_forward.9} parent=11 // pred_check
        %p304 = pneg %p168
      $region26: #{transformer_forward.9} parent=11 // pred_check_branch
        %306 = sbr.rel (%p304) target = $region28
      $region27: #{transformer_forward.9} parent=11 // pred_region
        _
      $region28: #{transformer_forward.9} parent=11 // pred_fallthru
        _
      // Predicated region
      $region29: #{transformer_forward.9} parent=11 // pred_check
        %p307 = pneg %p189
      $region30: #{transformer_forward.9} parent=11 // pred_check_branch
        %309 = sbr.rel (%p307) target = $region32
      $region31: #{transformer_forward.9} parent=11 // pred_region
        _
      $region32: #{transformer_forward.9} parent=11 // pred_fallthru
        _
      // Predicated region
      $region33: #{transformer_forward.9} parent=11 // pred_check
        %p310 = pneg %p210
      $region34: #{transformer_forward.9} parent=11 // pred_check_branch
        %312 = sbr.rel (%p310) target = $region36
      $region35: #{transformer_forward.9} parent=11 // pred_region
        _
      $region36: #{transformer_forward.9} parent=11 // pred_fallthru
        _
      // Predicated region
      $region37: #{transformer_forward.9} parent=11 // pred_check
        %p313 = pneg %p231
      $region38: #{transformer_forward.9} parent=11 // pred_check_branch
        %315 = sbr.rel (%p313) target = $region40
      $region39: #{transformer_forward.9} parent=11 // pred_region
        _
      $region40: #{transformer_forward.9} parent=11 // pred_fallthru
        _
      // Predicated region
      $region41: #{transformer_forward.9} parent=11 // pred_check
        %p316 = pneg %p252
      $region42: #{transformer_forward.9} parent=11 // pred_check_branch
        %318 = sbr.rel (%p316) target = $region44
      $region43: #{transformer_forward.9} parent=11 // pred_region
        _
      $region44: #{transformer_forward.9} parent=11 // pred_fallthru
        _
    $region12: #{transformer_forward.9} parent=5 // pred_fallthru
      _
    %p319 = scmp.lt.s32.totalorder %s16, 2
    // Predicated region
    $region45: #{transformer_forward.9} parent=5 // pred_check
      %p320 = pneg %p319
    $region46: #{transformer_forward.9} parent=5 // pred_check_branch
      %322 = sbr.rel (%p320) target = $region48
    $region47: #{transformer_forward.9} parent=5 // pred_region
      // Predicated region
      $region49: #{transformer_forward.9} parent=47 // pred_check
        %p323 = pneg %p50
      $region50: #{transformer_forward.9} parent=47 // pred_check_branch
        %325 = sbr.rel (%p323) target = $region52
      $region51: #{transformer_forward.9} parent=47 // pred_region
        %s326 = smul.u32 16, %s24
        %p327 = scmp.lt.s32.totalorder %s23, 1
        %s328 = scalar_select %p327, %s23, 1
        %p329 = scmp.lt.s32.totalorder %s326, 15
        %s330 = scalar_select %p329, %s326, 15
        %s331 = smul.addr %s328, 16
        %s332 = sadd.s32 %s330, %s331
        %s333 = smul.addr %s332, 8
        %s334 = scalar_lea.vmem %s0, %s333
        %s335 = smul.u32 16, %s24
      $region52: #{transformer_forward.9} parent=47 // pred_fallthru
        _
      // Predicated region
      $region53: #{transformer_forward.9} parent=47 // pred_check
        %p336 = pneg %p78
      $region54: #{transformer_forward.9} parent=47 // pred_check_branch
        %338 = sbr.rel (%p336) target = $region56
      $region55: #{transformer_forward.9} parent=47 // pred_region
        %s339 = smul.u32 16, %s24
        %p340 = scmp.lt.s32.totalorder %s23, 1
        %s341 = scalar_select %p340, %s23, 1
        %p342 = scmp.lt.s32.totalorder %s339, 15
        %s343 = scalar_select %p342, %s339, 15
        %s344 = smul.addr %s341, 16
        %s345 = sadd.s32 %s343, %s344
        %s346 = smul.addr %s345, 4
        %s347 = scalar_lea.vmem %s1, %s346
        %s348 = smul.u32 16, %s24
      $region56: #{transformer_forward.9} parent=47 // pred_fallthru
        _
    $region48: #{transformer_forward.9} parent=5 // pred_fallthru
      _
    %p349 = scmp.le.s32.totalorder 1, %s16
    %p350 = scmp.lt.s32.totalorder %s16, 3
    %p351 = pnand %p349, %p350
    %p352 = pneg %p351
    // Predicated region
    $region57: #{transformer_forward.9} parent=5 // pred_check
      _
    $region58: #{transformer_forward.9} parent=5 // pred_check_branch
      %354 = sbr.rel (%p351) target = $region60
    $region59: #{transformer_forward.9} parent=5 // pred_region
      %s355 = ssub.s32 %s16, 1
      %s356 = smul.u32 16, %s26
      %p357 = scmp.lt.s32.totalorder %s25, 1
      %s358 = scalar_select %p357, %s25, 1
      %p359 = scmp.lt.s32.totalorder %s356, 15
      %s360 = scalar_select %p359, %s356, 15
      %s361 = smul.addr %s358, 16
      %s362 = sadd.s32 %s360, %s361
      %s363 = smul.addr %s362, 8
      %s364 = scalar_lea.vmem %s0, %s363
      %p365 = pneg %p56
      %p366 = pneg %p53
      %s367 = smul.u32 16, %s26
      %p368 = scmp.lt.s32.totalorder %s25, 1
      %s369 = scalar_select %p368, %s25, 1
      %p370 = scmp.lt.s32.totalorder %s367, 15
      %s371 = scalar_select %p370, %s367, 15
      %s372 = smul.addr %s369, 16
      %s373 = sadd.s32 %s371, %s372
      %s374 = smul.addr %s373, 4
      %s375 = scalar_lea.vmem %s1, %s374
      %p376 = pneg %p84
      %p377 = pneg %p81
      %p378 = pneg %p105
      %p379 = pneg %p102
      %p380 = pneg %p126
      %p381 = pneg %p123
      %p382 = pneg %p147
      %p383 = pneg %p144
      %p384 = pneg %p168
      %p385 = pneg %p165
      %p386 = pneg %p189
      %p387 = pneg %p186
      %p388 = pneg %p210
      %p389 = pneg %p207
      %p390 = pneg %p231
      %p391 = pneg %p228
      %p392 = pneg %p252
      %p393 = pneg %p249
      %p394 = pneg %p280
      %p395 = pneg %p277
      %s396 = smul.u32 16, %s26
      %p397 = scmp.lt.s32.totalorder %s25, 1
      %s398 = scalar_select %p397, %s25, 1
      %p399 = scmp.lt.s32.totalorder %s396, 15
      %s400 = scalar_select %p399, %s396, 15
      %s401 = smul.addr %s398, 16
      %s402 = sadd.s32 %s400, %s401
      %s403 = smul.addr %s402, 8
      %s404 = scalar_lea.vmem %s10, %s403
      %s405 = smul.u32 16, %s26
      %p406 = scmp.lt.s32.totalorder %s25, 1
      %s407 = scalar_select %p406, %s25, 1
      %p408 = scmp.lt.s32.totalorder %s405, 15
      %s409 = scalar_select %p408, %s405, 15
      %s410 = smul.addr %s407, 16
      %s411 = sadd.s32 %s409, %s410
      %s412 = smul.addr %s411, 8
      %s413 = scalar_lea.vmem %s0, %s412
      %s414 = smul.u32 16, %s26
      %s415 = smul.u32 16, %s26
      %p416 = scmp.lt.s32.totalorder %s25, 1
      %s417 = scalar_select %p416, %s25, 1
      %p418 = scmp.lt.s32.totalorder %s415, 15
      %s419 = scalar_select %p418, %s415, 15
      %s420 = smul.addr %s417, 16
      %s421 = sadd.s32 %s419, %s420
      %s422 = smul.addr %s421, 4
      %s423 = scalar_lea.vmem %s1, %s422
      %s424 = smul.u32 16, %s26
      %s425 = smul.u32 16, %s26
      %p426 = scmp.lt.s32.totalorder %s25, 1
      %s427 = scalar_select %p426, %s25, 1
      %p428 = scmp.lt.s32.totalorder %s425, 15
      %s429 = scalar_select %p428, %s425, 15
      %s430 = smul.addr %s427, 16
      %s431 = sadd.s32 %s429, %s430
      %s432 = smul.addr %s431, 8
      %s433 = scalar_lea.vmem %s10, %s432
      %s434 = smul.u32 16, %s26
      %v435 = vld [vmem:[%s413] sm:$0xff]
      %v436 = vld [vmem:[%s413 + $0x8] sm:$0xff]
      %v437 = vld [vmem:[%s413 + $0x10] sm:$0xff]
      %v438 = vld [vmem:[%s413 + $0x18] sm:$0xff]
      %v439 = vld [vmem:[%s413 + $0x20] sm:$0xff]
      %v440 = vld [vmem:[%s413 + $0x28] sm:$0xff]
      %v441 = vld [vmem:[%s413 + $0x30] sm:$0xff]
      %v442 = vld [vmem:[%s413 + $0x38] sm:$0xff]
      %v443 = vld [vmem:[%s413 + $0x40] sm:$0xff]
      %v444 = vld [vmem:[%s413 + $0x48] sm:$0xff]
      %v445 = vld [vmem:[%s413 + $0x50] sm:$0xff]
      %v446 = vld [vmem:[%s413 + $0x58] sm:$0xff]
      %v447 = vld [vmem:[%s413 + $0x60] sm:$0xff]
      %v448 = vld [vmem:[%s413 + $0x68] sm:$0xff]
      %v449 = vld [vmem:[%s413 + $0x70] sm:$0xff]
      %v450 = vld [vmem:[%s413 + $0x78] sm:$0xff]
      %v451 = vld [vmem:[%s423] sm:$0xf]
      %v452 = vld [vmem:[%s423 + $0x4] sm:$0xf]
      %v453 = vld [vmem:[%s423 + $0x8] sm:$0xf]
      %v454 = vld [vmem:[%s423 + $0xc] sm:$0xf]
      %v455 = vld [vmem:[%s423 + $0x10] sm:$0xf]
      %v456 = vld [vmem:[%s423 + $0x14] sm:$0xf]
      %v457 = vld [vmem:[%s423 + $0x18] sm:$0xf]
      %v458 = vld [vmem:[%s423 + $0x1c] sm:$0xf]
      %v459 = vld [vmem:[%s423 + $0x20] sm:$0xf]
      %v460 = vld [vmem:[%s423 + $0x24] sm:$0xf]
      %v461 = vld [vmem:[%s423 + $0x28] sm:$0xf]
      %v462 = vld [vmem:[%s423 + $0x2c] sm:$0xf]
      %v463 = vld [vmem:[%s423 + $0x30] sm:$0xf]
      %v464 = vld [vmem:[%s423 + $0x34] sm:$0xf]
      %v465 = vld [vmem:[%s423 + $0x38] sm:$0xf]
      %v466 = vld [vmem:[%s423 + $0x3c] sm:$0xf]
      %v467 = vld [vmem:[%s2] sm:$0xf]
      %v468 = vld [vmem:[%s2 + $0x4] sm:$0xf]
      %v469 = vld [vmem:[%s2 + $0x8] sm:$0xf]
      %v470 = vld [vmem:[%s2 + $0xc] sm:$0xf]
      %v471 = vld [vmem:[%s2 + $0x10] sm:$0xf]
      %v472 = vld [vmem:[%s2 + $0x14] sm:$0xf]
      %v473 = vld [vmem:[%s2 + $0x18] sm:$0xf]
      %v474 = vld [vmem:[%s2 + $0x1c] sm:$0xf]
      %v475 = vld [vmem:[%s2 + $0x20] sm:$0xf]
      %v476 = vld [vmem:[%s2 + $0x24] sm:$0xf]
      %v477 = vld [vmem:[%s2 + $0x28] sm:$0xf]
      %v478 = vld [vmem:[%s2 + $0x2c] sm:$0xf]
      %v479 = vld [vmem:[%s2 + $0x30] sm:$0xf]
      %v480 = vld [vmem:[%s2 + $0x34] sm:$0xf]
      %v481 = vld [vmem:[%s2 + $0x38] sm:$0xf]
      %v482 = vld [vmem:[%s2 + $0x3c] sm:$0xf]
      %v483 = vld [vmem:[%s3] sm:$0x1]
      %v485 = vperm.slane %v483, 0
      %v503 = vunpack.c.l.b16 %v451
      %v504 = vunpack.c.l.b16 %v452
      %v505 = vunpack.c.l.b16 %v453
      %v506 = vunpack.c.l.b16 %v454
      %v507 = vunpack.c.l.b16 %v455
      %v508 = vunpack.c.l.b16 %v456
      %v509 = vunpack.c.l.b16 %v457
      %v510 = vunpack.c.l.b16 %v458
      %v511 = vunpack.c.l.b16 %v459
      %v512 = vunpack.c.l.b16 %v460
      %v513 = vunpack.c.l.b16 %v461
      %v514 = vunpack.c.l.b16 %v462
      %v515 = vunpack.c.l.b16 %v463
      %v516 = vunpack.c.l.b16 %v464
      %v517 = vunpack.c.l.b16 %v465
      %v518 = vunpack.c.l.b16 %v466
      %v519 = vpack.c.b16 %v504, %v503
      %v520 = vpack.c.b16 %v506, %v505
      %v521 = vpack.c.b16 %v508, %v507
      %v522 = vpack.c.b16 %v510, %v509
      %v523 = vpack.c.b16 %v512, %v511
      %v524 = vpack.c.b16 %v514, %v513
      %v525 = vpack.c.b16 %v516, %v515
      %v526 = vpack.c.b16 %v518, %v517
      %v551 = vunpack.c.l.b16 %v467
      %v552 = vunpack.c.l.b16 %v468
      %v553 = vunpack.c.l.b16 %v469
      %v554 = vunpack.c.l.b16 %v470
      %v555 = vunpack.c.l.b16 %v471
      %v556 = vunpack.c.l.b16 %v472
      %v557 = vunpack.c.l.b16 %v473
      %v558 = vunpack.c.l.b16 %v474
      %v559 = vunpack.c.l.b16 %v475
      %v560 = vunpack.c.l.b16 %v476
      %v561 = vunpack.c.l.b16 %v477
      %v562 = vunpack.c.l.b16 %v478
      %v563 = vunpack.c.l.b16 %v479
      %v564 = vunpack.c.l.b16 %v480
      %v565 = vunpack.c.l.b16 %v481
      %v566 = vunpack.c.l.b16 %v482
      %v567 = vpack.c.b16 %v552, %v551
      %v568 = vpack.c.b16 %v554, %v553
      %v569 = vpack.c.b16 %v556, %v555
      %v570 = vpack.c.b16 %v558, %v557
      %v571 = vpack.c.b16 %v560, %v559
      %v572 = vpack.c.b16 %v562, %v561
      %v573 = vpack.c.b16 %v564, %v563
      %v574 = vpack.c.b16 %v566, %v565
      %583 = vmatpush.bf16.msra.mxu0 %v574
      %584 = vmatpush.bf16.msra.mxu0 %v573
      %585 = vmatpush.bf16.msra.mxu0 %v572
      %586 = vmatpush.bf16.msra.mxu0 %v571
      %587 = vmatpush.bf16.msra.mxu0 %v570
      %588 = vmatpush.bf16.msra.mxu0 %v569
      %589 = vmatpush.bf16.msra.mxu0 %v568
      %590 = vmatpush.bf16.msra.mxu0 %v567
      %591 = vmatmul.bf16.gmra.mxu0 %v519
      %v592 = vpop.f32.mrf.mxu0
      %v593 = vadd.f32 %v485, %v592
      %v594 = vpop.f32.mrf.mxu0
      %v595 = vadd.f32 %v485, %v594
      %596 = vmatmul.bf16.gmra.mxu0 %v520
      %v597 = vpop.f32.mrf.mxu0
      %v598 = vadd.f32 %v485, %v597
      %v599 = vpop.f32.mrf.mxu0
      %v600 = vadd.f32 %v485, %v599
      %601 = vmatmul.bf16.gmra.mxu0 %v521
      %v602 = vpop.f32.mrf.mxu0
      %v603 = vadd.f32 %v485, %v602
      %v604 = vpop.f32.mrf.mxu0
      %v605 = vadd.f32 %v485, %v604
      %606 = vmatmul.bf16.gmra.mxu0 %v522
      %v607 = vpop.f32.mrf.mxu0
      %v608 = vadd.f32 %v485, %v607
      %v609 = vpop.f32.mrf.mxu0
      %v610 = vadd.f32 %v485, %v609
      %611 = vmatmul.bf16.gmra.mxu0 %v523
      %v612 = vpop.f32.mrf.mxu0
      %v613 = vadd.f32 %v485, %v612
      %v614 = vpop.f32.mrf.mxu0
      %v615 = vadd.f32 %v485, %v614
      %616 = vmatmul.bf16.gmra.mxu0 %v524
      %v617 = vpop.f32.mrf.mxu0
      %v618 = vadd.f32 %v485, %v617
      %v619 = vpop.f32.mrf.mxu0
      %v620 = vadd.f32 %v485, %v619
      %621 = vmatmul.bf16.gmra.mxu0 %v525
      %v622 = vpop.f32.mrf.mxu0
      %v623 = vadd.f32 %v485, %v622
      %v624 = vpop.f32.mrf.mxu0
      %v625 = vadd.f32 %v485, %v624
      %626 = vmatmul.bf16.gmra.mxu0 %v526
      %v627 = vpop.f32.mrf.mxu0
      %v628 = vadd.f32 %v485, %v627
      %v629 = vpop.f32.mrf.mxu0
      %v630 = vadd.f32 %v485, %v629
      %631 = vdwg.mxu0
      %v632 = vadd.f32 %v435, %v593
      %v633 = vadd.f32 %v436, %v595
      %v634 = vadd.f32 %v437, %v598
      %v635 = vadd.f32 %v438, %v600
      %v636 = vadd.f32 %v439, %v603
      %v637 = vadd.f32 %v440, %v605
      %v638 = vadd.f32 %v441, %v608
      %v639 = vadd.f32 %v442, %v610
      %v640 = vadd.f32 %v443, %v613
      %v641 = vadd.f32 %v444, %v615
      %v642 = vadd.f32 %v445, %v618
      %v643 = vadd.f32 %v446, %v620
      %v644 = vadd.f32 %v447, %v623
      %v645 = vadd.f32 %v448, %v625
      %v646 = vadd.f32 %v449, %v628
      %v647 = vadd.f32 %v450, %v630
      %v648 = vld [vmem:[%s4] sm:$0x1]
      %v649 = vld [vmem:[%s5] sm:$0x1]
      %650 = vadd.xlane.f32.xlu0 %v632
      %v651 = vpop.xlane.xlu0 %650
      %652 = vadd.xlane.f32.xlu0 %v633
      %v653 = vpop.xlane.xlu0 %652
      %654 = vadd.xlane.f32.xlu0 %v634
      %v655 = vpop.xlane.xlu0 %654
      %656 = vadd.xlane.f32.xlu0 %v635
      %v657 = vpop.xlane.xlu0 %656
      %658 = vadd.xlane.f32.xlu0 %v636
      %v659 = vpop.xlane.xlu0 %658
      %660 = vadd.xlane.f32.xlu0 %v637
      %v661 = vpop.xlane.xlu0 %660
      %662 = vadd.xlane.f32.xlu0 %v638
      %v663 = vpop.xlane.xlu0 %662
      %664 = vadd.xlane.f32.xlu0 %v639
      %v665 = vpop.xlane.xlu0 %664
      %666 = vadd.xlane.f32.xlu0 %v640
      %v667 = vpop.xlane.xlu0 %666
      %668 = vadd.xlane.f32.xlu0 %v641
      %v669 = vpop.xlane.xlu0 %668
      %670 = vadd.xlane.f32.xlu0 %v642
      %v671 = vpop.xlane.xlu0 %670
      %672 = vadd.xlane.f32.xlu0 %v643
      %v673 = vpop.xlane.xlu0 %672
      %674 = vadd.xlane.f32.xlu0 %v644
      %v675 = vpop.xlane.xlu0 %674
      %676 = vadd.xlane.f32.xlu0 %v645
      %v677 = vpop.xlane.xlu0 %676
      %678 = vadd.xlane.f32.xlu0 %v646
      %v679 = vpop.xlane.xlu0 %678
      %680 = vadd.xlane.f32.xlu0 %v647
      %v681 = vpop.xlane.xlu0 %680
      %v682 = vrcp.pop 128.0
      %v683 = vmul.f32 128.0, %v682
      %v684 = vsub.f32 1.0, %v683
      %v685 = vmul.f32 %v682, %v684
      %v686 = vadd.f32 %v682, %v685
      %vm687 = vweird.f32 %v682
      %v688 = vsel %vm687, %v682, %v686
      %v689 = vmul.f32 %v651, %v688
      %v690 = vmul.f32 %v653, %v688
      %v691 = vmul.f32 %v655, %v688
      %v692 = vmul.f32 %v657, %v688
      %v693 = vmul.f32 %v659, %v688
      %v694 = vmul.f32 %v661, %v688
      %v695 = vmul.f32 %v663, %v688
      %v696 = vmul.f32 %v665, %v688
      %v697 = vmul.f32 %v667, %v688
      %v698 = vmul.f32 %v669, %v688
      %v699 = vmul.f32 %v671, %v688
      %v700 = vmul.f32 %v673, %v688
      %v701 = vmul.f32 %v675, %v688
      %v702 = vmul.f32 %v677, %v688
      %v703 = vmul.f32 %v679, %v688
      %v704 = vmul.f32 %v681, %v688
      %v705 = vsub.f32 %v632, %v689
      %v706 = vsub.f32 %v633, %v690
      %v707 = vsub.f32 %v634, %v691
      %v708 = vsub.f32 %v635, %v692
      %v709 = vsub.f32 %v636, %v693
      %v710 = vsub.f32 %v637, %v694
      %v711 = vsub.f32 %v638, %v695
      %v712 = vsub.f32 %v639, %v696
      %v713 = vsub.f32 %v640, %v697
      %v714 = vsub.f32 %v641, %v698
      %v715 = vsub.f32 %v642, %v699
      %v716 = vsub.f32 %v643, %v700
      %v717 = vsub.f32 %v644, %v701
      %v718 = vsub.f32 %v645, %v702
      %v719 = vsub.f32 %v646, %v703
      %v720 = vsub.f32 %v647, %v704
      %v721 = vmul.f32 %v705, %v705
      %v722 = vmul.f32 %v706, %v706
      %v723 = vmul.f32 %v707, %v707
      %v724 = vmul.f32 %v708, %v708
      %v725 = vmul.f32 %v709, %v709
      %v726 = vmul.f32 %v710, %v710
      %v727 = vmul.f32 %v711, %v711
      %v728 = vmul.f32 %v712, %v712
      %v729 = vmul.f32 %v713, %v713
      %v730 = vmul.f32 %v714, %v714
      %v731 = vmul.f32 %v715, %v715
      %v732 = vmul.f32 %v716, %v716
      %v733 = vmul.f32 %v717, %v717
      %v734 = vmul.f32 %v718, %v718
      %v735 = vmul.f32 %v719, %v719
      %v736 = vmul.f32 %v720, %v720
      %737 = vadd.xlane.f32.xlu0 %v721
      %v738 = vpop.xlane.xlu0 %737
      %739 = vadd.xlane.f32.xlu0 %v722
      %v740 = vpop.xlane.xlu0 %739
      %741 = vadd.xlane.f32.xlu0 %v723
      %v742 = vpop.xlane.xlu0 %741
      %743 = vadd.xlane.f32.xlu0 %v724
      %v744 = vpop.xlane.xlu0 %743
      %745 = vadd.xlane.f32.xlu0 %v725
      %v746 = vpop.xlane.xlu0 %745
      %747 = vadd.xlane.f32.xlu0 %v726
      %v748 = vpop.xlane.xlu0 %747
      %749 = vadd.xlane.f32.xlu0 %v727
      %v750 = vpop.xlane.xlu0 %749
      %751 = vadd.xlane.f32.xlu0 %v728
      %v752 = vpop.xlane.xlu0 %751
      %753 = vadd.xlane.f32.xlu0 %v729
      %v754 = vpop.xlane.xlu0 %753
      %755 = vadd.xlane.f32.xlu0 %v730
      %v756 = vpop.xlane.xlu0 %755
      %757 = vadd.xlane.f32.xlu0 %v731
      %v758 = vpop.xlane.xlu0 %757
      %759 = vadd.xlane.f32.xlu0 %v732
      %v760 = vpop.xlane.xlu0 %759
      %761 = vadd.xlane.f32.xlu0 %v733
      %v762 = vpop.xlane.xlu0 %761
      %763 = vadd.xlane.f32.xlu0 %v734
      %v764 = vpop.xlane.xlu0 %763
      %765 = vadd.xlane.f32.xlu0 %v735
      %v766 = vpop.xlane.xlu0 %765
      %767 = vadd.xlane.f32.xlu0 %v736
      %v768 = vpop.xlane.xlu0 %767
      %v769 = vmul.f32 %v738, %v688
      %v770 = vmul.f32 %v740, %v688
      %v771 = vmul.f32 %v742, %v688
      %v772 = vmul.f32 %v744, %v688
      %v773 = vmul.f32 %v746, %v688
      %v774 = vmul.f32 %v748, %v688
      %v775 = vmul.f32 %v750, %v688
      %v776 = vmul.f32 %v752, %v688
      %v777 = vmul.f32 %v754, %v688
      %v778 = vmul.f32 %v756, %v688
      %v779 = vmul.f32 %v758, %v688
      %v780 = vmul.f32 %v760, %v688
      %v781 = vmul.f32 %v762, %v688
      %v782 = vmul.f32 %v764, %v688
      %v783 = vmul.f32 %v766, %v688
      %v784 = vmul.f32 %v768, %v688
      %v785 = vadd.f32 %v769, 1e-05
      %v786 = vadd.f32 %v770, 1e-05
      %v787 = vadd.f32 %v771, 1e-05
      %v788 = vadd.f32 %v772, 1e-05
      %v789 = vadd.f32 %v773, 1e-05
      %v790 = vadd.f32 %v774, 1e-05
      %v791 = vadd.f32 %v775, 1e-05
      %v792 = vadd.f32 %v776, 1e-05
      %v793 = vadd.f32 %v777, 1e-05
      %v794 = vadd.f32 %v778, 1e-05
      %v795 = vadd.f32 %v779, 1e-05
      %v796 = vadd.f32 %v780, 1e-05
      %v797 = vadd.f32 %v781, 1e-05
      %v798 = vadd.f32 %v782, 1e-05
      %v799 = vadd.f32 %v783, 1e-05
      %v800 = vadd.f32 %v784, 1e-05
      %v801 = vrsqrt.pop %v785
      %v802 = vmul.f32 %v801, %v785
      %v803 = vmul.f32 %v802, %v801
      %v804 = vmul.f32 0.5, %v803
      %v805 = vsub.f32 1.5, %v804
      %v806 = vmul.f32 %v801, %v805
      %vm807 = vweird.f32 %v785
      %vm808 = vweird.f32 %v801
      %vm809 = vmor %vm807, %vm808
      %v810 = vsel %vm809, %v801, %v806
      %v811 = vrsqrt.pop %v786
      %v812 = vmul.f32 %v811, %v786
      %v813 = vmul.f32 %v812, %v811
      %v814 = vmul.f32 0.5, %v813
      %v815 = vsub.f32 1.5, %v814
      %v816 = vmul.f32 %v811, %v815
      %vm817 = vweird.f32 %v786
      %vm818 = vweird.f32 %v811
      %vm819 = vmor %vm817, %vm818
      %v820 = vsel %vm819, %v811, %v816
      %v821 = vrsqrt.pop %v787
      %v822 = vmul.f32 %v821, %v787
      %v823 = vmul.f32 %v822, %v821
      %v824 = vmul.f32 0.5, %v823
      %v825 = vsub.f32 1.5, %v824
      %v826 = vmul.f32 %v821, %v825
      %vm827 = vweird.f32 %v787
      %vm828 = vweird.f32 %v821
      %vm829 = vmor %vm827, %vm828
      %v830 = vsel %vm829, %v821, %v826
      %v831 = vrsqrt.pop %v788
      %v832 = vmul.f32 %v831, %v788
      %v833 = vmul.f32 %v832, %v831
      %v834 = vmul.f32 0.5, %v833
      %v835 = vsub.f32 1.5, %v834
      %v836 = vmul.f32 %v831, %v835
      %vm837 = vweird.f32 %v788
      %vm838 = vweird.f32 %v831
      %vm839 = vmor %vm837, %vm838
      %v840 = vsel %vm839, %v831, %v836
      %v841 = vrsqrt.pop %v789
      %v842 = vmul.f32 %v841, %v789
      %v843 = vmul.f32 %v842, %v841
      %v844 = vmul.f32 0.5, %v843
      %v845 = vsub.f32 1.5, %v844
      %v846 = vmul.f32 %v841, %v845
      %vm847 = vweird.f32 %v789
      %vm848 = vweird.f32 %v841
      %vm849 = vmor %vm847, %vm848
      %v850 = vsel %vm849, %v841, %v846
      %v851 = vrsqrt.pop %v790
      %v852 = vmul.f32 %v851, %v790
      %v853 = vmul.f32 %v852, %v851
      %v854 = vmul.f32 0.5, %v853
      %v855 = vsub.f32 1.5, %v854
      %v856 = vmul.f32 %v851, %v855
      %vm857 = vweird.f32 %v790
      %vm858 = vweird.f32 %v851
      %vm859 = vmor %vm857, %vm858
      %v860 = vsel %vm859, %v851, %v856
      %v861 = vrsqrt.pop %v791
      %v862 = vmul.f32 %v861, %v791
      %v863 = vmul.f32 %v862, %v861
      %v864 = vmul.f32 0.5, %v863
      %v865 = vsub.f32 1.5, %v864
      %v866 = vmul.f32 %v861, %v865
      %vm867 = vweird.f32 %v791
      %vm868 = vweird.f32 %v861
      %vm869 = vmor %vm867, %vm868
      %v870 = vsel %vm869, %v861, %v866
      %v871 = vrsqrt.pop %v792
      %v872 = vmul.f32 %v871, %v792
      %v873 = vmul.f32 %v872, %v871
      %v874 = vmul.f32 0.5, %v873
      %v875 = vsub.f32 1.5, %v874
      %v876 = vmul.f32 %v871, %v875
      %vm877 = vweird.f32 %v792
      %vm878 = vweird.f32 %v871
      %vm879 = vmor %vm877, %vm878
      %v880 = vsel %vm879, %v871, %v876
      %v881 = vrsqrt.pop %v793
      %v882 = vmul.f32 %v881, %v793
      %v883 = vmul.f32 %v882, %v881
      %v884 = vmul.f32 0.5, %v883
      %v885 = vsub.f32 1.5, %v884
      %v886 = vmul.f32 %v881, %v885
      %vm887 = vweird.f32 %v793
      %vm888 = vweird.f32 %v881
      %vm889 = vmor %vm887, %vm888
      %v890 = vsel %vm889, %v881, %v886
      %v891 = vrsqrt.pop %v794
      %v892 = vmul.f32 %v891, %v794
      %v893 = vmul.f32 %v892, %v891
      %v894 = vmul.f32 0.5, %v893
      %v895 = vsub.f32 1.5, %v894
      %v896 = vmul.f32 %v891, %v895
      %vm897 = vweird.f32 %v794
      %vm898 = vweird.f32 %v891
      %vm899 = vmor %vm897, %vm898
      %v900 = vsel %vm899, %v891, %v896
      %v901 = vrsqrt.pop %v795
      %v902 = vmul.f32 %v901, %v795
      %v903 = vmul.f32 %v902, %v901
      %v904 = vmul.f32 0.5, %v903
      %v905 = vsub.f32 1.5, %v904
      %v906 = vmul.f32 %v901, %v905
      %vm907 = vweird.f32 %v795
      %vm908 = vweird.f32 %v901
      %vm909 = vmor %vm907, %vm908
      %v910 = vsel %vm909, %v901, %v906
      %v911 = vrsqrt.pop %v796
      %v912 = vmul.f32 %v911, %v796
      %v913 = vmul.f32 %v912, %v911
      %v914 = vmul.f32 0.5, %v913
      %v915 = vsub.f32 1.5, %v914
      %v916 = vmul.f32 %v911, %v915
      %vm917 = vweird.f32 %v796
      %vm918 = vweird.f32 %v911
      %vm919 = vmor %vm917, %vm918
      %v920 = vsel %vm919, %v911, %v916
      %v921 = vrsqrt.pop %v797
      %v922 = vmul.f32 %v921, %v797
      %v923 = vmul.f32 %v922, %v921
      %v924 = vmul.f32 0.5, %v923
      %v925 = vsub.f32 1.5, %v924
      %v926 = vmul.f32 %v921, %v925
      %vm927 = vweird.f32 %v797
      %vm928 = vweird.f32 %v921
      %vm929 = vmor %vm927, %vm928
      %v930 = vsel %vm929, %v921, %v926
      %v931 = vrsqrt.pop %v798
      %v932 = vmul.f32 %v931, %v798
      %v933 = vmul.f32 %v932, %v931
      %v934 = vmul.f32 0.5, %v933
      %v935 = vsub.f32 1.5, %v934
      %v936 = vmul.f32 %v931, %v935
      %vm937 = vweird.f32 %v798
      %vm938 = vweird.f32 %v931
      %vm939 = vmor %vm937, %vm938
      %v940 = vsel %vm939, %v931, %v936
      %v941 = vrsqrt.pop %v799
      %v942 = vmul.f32 %v941, %v799
      %v943 = vmul.f32 %v942, %v941
      %v944 = vmul.f32 0.5, %v943
      %v945 = vsub.f32 1.5, %v944
      %v946 = vmul.f32 %v941, %v945
      %vm947 = vweird.f32 %v799
      %vm948 = vweird.f32 %v941
      %vm949 = vmor %vm947, %vm948
      %v950 = vsel %vm949, %v941, %v946
      %v951 = vrsqrt.pop %v800
      %v952 = vmul.f32 %v951, %v800
      %v953 = vmul.f32 %v952, %v951
      %v954 = vmul.f32 0.5, %v953
      %v955 = vsub.f32 1.5, %v954
      %v956 = vmul.f32 %v951, %v955
      %vm957 = vweird.f32 %v800
      %vm958 = vweird.f32 %v951
      %vm959 = vmor %vm957, %vm958
      %v960 = vsel %vm959, %v951, %v956
      %v961 = vmul.f32 %v705, %v810
      %v962 = vmul.f32 %v706, %v820
      %v963 = vmul.f32 %v707, %v830
      %v964 = vmul.f32 %v708, %v840
      %v965 = vmul.f32 %v709, %v850
      %v966 = vmul.f32 %v710, %v860
      %v967 = vmul.f32 %v711, %v870
      %v968 = vmul.f32 %v712, %v880
      %v969 = vmul.f32 %v713, %v890
      %v970 = vmul.f32 %v714, %v900
      %v971 = vmul.f32 %v715, %v910
      %v972 = vmul.f32 %v716, %v920
      %v973 = vmul.f32 %v717, %v930
      %v974 = vmul.f32 %v718, %v940
      %v975 = vmul.f32 %v719, %v950
      %v976 = vmul.f32 %v720, %v960
      %v978 = vperm.slane %v648, 0
      %v980 = vmul.f32 %v961, %v978
      %v981 = vmul.f32 %v962, %v978
      %v982 = vmul.f32 %v963, %v978
      %v983 = vmul.f32 %v964, %v978
      %v984 = vmul.f32 %v965, %v978
      %v985 = vmul.f32 %v966, %v978
      %v986 = vmul.f32 %v967, %v978
      %v987 = vmul.f32 %v968, %v978
      %v988 = vmul.f32 %v969, %v978
      %v989 = vmul.f32 %v970, %v978
      %v990 = vmul.f32 %v971, %v978
      %v991 = vmul.f32 %v972, %v978
      %v992 = vmul.f32 %v973, %v978
      %v993 = vmul.f32 %v974, %v978
      %v994 = vmul.f32 %v975, %v978
      %v995 = vmul.f32 %v976, %v978
      %v997 = vperm.slane %v649, 0
      %v999 = vadd.f32 %v980, %v997
      %v1000 = vadd.f32 %v981, %v997
      %v1001 = vadd.f32 %v982, %v997
      %v1002 = vadd.f32 %v983, %v997
      %v1003 = vadd.f32 %v984, %v997
      %v1004 = vadd.f32 %v985, %v997
      %v1005 = vadd.f32 %v986, %v997
      %v1006 = vadd.f32 %v987, %v997
      %v1007 = vadd.f32 %v988, %v997
      %v1008 = vadd.f32 %v989, %v997
      %v1009 = vadd.f32 %v990, %v997
      %v1010 = vadd.f32 %v991, %v997
      %v1011 = vadd.f32 %v992, %v997
      %v1012 = vadd.f32 %v993, %v997
      %v1013 = vadd.f32 %v994, %v997
      %v1014 = vadd.f32 %v995, %v997
      %v1015 = vpack.c.bf16 %v1000, %v999
      %v1016 = vpack.c.bf16 %v1002, %v1001
      %v1017 = vpack.c.bf16 %v1004, %v1003
      %v1018 = vpack.c.bf16 %v1006, %v1005
      %v1019 = vpack.c.bf16 %v1008, %v1007
      %v1020 = vpack.c.bf16 %v1010, %v1009
      %v1021 = vpack.c.bf16 %v1012, %v1011
      %v1022 = vpack.c.bf16 %v1014, %v1013
      %v1023 = vld [vmem:[%s6] sm:$0xff]
      %v1024 = vld [vmem:[%s6 + $0x8] sm:$0xff]
      %v1025 = vld [vmem:[%s6 + $0x10] sm:$0xff]
      %v1026 = vld [vmem:[%s6 + $0x18] sm:$0xff]
      %v1027 = vld [vmem:[%s6 + $0x20] sm:$0xff]
      %v1028 = vld [vmem:[%s6 + $0x28] sm:$0xff]
      %v1029 = vld [vmem:[%s6 + $0x30] sm:$0xff]
      %v1030 = vld [vmem:[%s6 + $0x38] sm:$0xff]
      %v1031 = vld [vmem:[%s6 + $0x40] sm:$0xff]
      %v1032 = vld [vmem:[%s6 + $0x48] sm:$0xff]
      %v1033 = vld [vmem:[%s6 + $0x50] sm:$0xff]
      %v1034 = vld [vmem:[%s6 + $0x58] sm:$0xff]
      %v1035 = vld [vmem:[%s6 + $0x60] sm:$0xff]
      %v1036 = vld [vmem:[%s6 + $0x68] sm:$0xff]
      %v1037 = vld [vmem:[%s6 + $0x70] sm:$0xff]
      %v1038 = vld [vmem:[%s6 + $0x78] sm:$0xff]
      %v1039 = vld [vmem:[%s6 + $0x80] sm:$0xff]
      %v1040 = vld [vmem:[%s6 + $0x88] sm:$0xff]
      %v1041 = vld [vmem:[%s6 + $0x90] sm:$0xff]
      %v1042 = vld [vmem:[%s6 + $0x98] sm:$0xff]
      %v1043 = vld [vmem:[%s6 + $0xa0] sm:$0xff]
      %v1044 = vld [vmem:[%s6 + $0xa8] sm:$0xff]
      %v1045 = vld [vmem:[%s6 + $0xb0] sm:$0xff]
      %v1046 = vld [vmem:[%s6 + $0xb8] sm:$0xff]
      %v1047 = vld [vmem:[%s6 + $0xc0] sm:$0xff]
      %v1048 = vld [vmem:[%s6 + $0xc8] sm:$0xff]
      %v1049 = vld [vmem:[%s6 + $0xd0] sm:$0xff]
      %v1050 = vld [vmem:[%s6 + $0xd8] sm:$0xff]
      %v1051 = vld [vmem:[%s6 + $0xe0] sm:$0xff]
      %v1052 = vld [vmem:[%s6 + $0xe8] sm:$0xff]
      %v1053 = vld [vmem:[%s6 + $0xf0] sm:$0xff]
      %v1054 = vld [vmem:[%s6 + $0xf8] sm:$0xff]
      %v1055 = vld [vmem:[%s7] sm:$0xf]
      %v1057 = vperm.slane %v1055, 0
      %v1058 = vperm.slane %v1055, 1
      %v1059 = vperm.slane %v1055, 2
      %v1060 = vperm.slane %v1055, 3
      %v1097 = vunpack.c.l.b16 %v1023
      %v1098 = vunpack.c.h.b16 %v1023
      %v1099 = vunpack.c.l.b16 %v1024
      %v1100 = vunpack.c.h.b16 %v1024
      %v1101 = vunpack.c.l.b16 %v1025
      %v1102 = vunpack.c.h.b16 %v1025
      %v1103 = vunpack.c.l.b16 %v1026
      %v1104 = vunpack.c.h.b16 %v1026
      %v1105 = vunpack.c.l.b16 %v1027
      %v1106 = vunpack.c.h.b16 %v1027
      %v1107 = vunpack.c.l.b16 %v1028
      %v1108 = vunpack.c.h.b16 %v1028
      %v1109 = vunpack.c.l.b16 %v1029
      %v1110 = vunpack.c.h.b16 %v1029
      %v1111 = vunpack.c.l.b16 %v1030
      %v1112 = vunpack.c.h.b16 %v1030
      %v1113 = vunpack.c.l.b16 %v1031
      %v1114 = vunpack.c.h.b16 %v1031
      %v1115 = vunpack.c.l.b16 %v1032
      %v1116 = vunpack.c.h.b16 %v1032
      %v1117 = vunpack.c.l.b16 %v1033
      %v1118 = vunpack.c.h.b16 %v1033
      %v1119 = vunpack.c.l.b16 %v1034
      %v1120 = vunpack.c.h.b16 %v1034
      %v1121 = vunpack.c.l.b16 %v1035
      %v1122 = vunpack.c.h.b16 %v1035
      %v1123 = vunpack.c.l.b16 %v1036
      %v1124 = vunpack.c.h.b16 %v1036
      %v1125 = vunpack.c.l.b16 %v1037
      %v1126 = vunpack.c.h.b16 %v1037
      %v1127 = vunpack.c.l.b16 %v1038
      %v1128 = vunpack.c.h.b16 %v1038
      %v1129 = vunpack.c.l.b16 %v1039
      %v1130 = vunpack.c.h.b16 %v1039
      %v1131 = vunpack.c.l.b16 %v1040
      %v1132 = vunpack.c.h.b16 %v1040
      %v1133 = vunpack.c.l.b16 %v1041
      %v1134 = vunpack.c.h.b16 %v1041
      %v1135 = vunpack.c.l.b16 %v1042
      %v1136 = vunpack.c.h.b16 %v1042
      %v1137 = vunpack.c.l.b16 %v1043
      %v1138 = vunpack.c.h.b16 %v1043
      %v1139 = vunpack.c.l.b16 %v1044
      %v1140 = vunpack.c.h.b16 %v1044
      %v1141 = vunpack.c.l.b16 %v1045
      %v1142 = vunpack.c.h.b16 %v1045
      %v1143 = vunpack.c.l.b16 %v1046
      %v1144 = vunpack.c.h.b16 %v1046
      %v1145 = vunpack.c.l.b16 %v1047
      %v1146 = vunpack.c.h.b16 %v1047
      %v1147 = vunpack.c.l.b16 %v1048
      %v1148 = vunpack.c.h.b16 %v1048
      %v1149 = vunpack.c.l.b16 %v1049
      %v1150 = vunpack.c.h.b16 %v1049
      %v1151 = vunpack.c.l.b16 %v1050
      %v1152 = vunpack.c.h.b16 %v1050
      %v1153 = vunpack.c.l.b16 %v1051
      %v1154 = vunpack.c.h.b16 %v1051
      %v1155 = vunpack.c.l.b16 %v1052
      %v1156 = vunpack.c.h.b16 %v1052
      %v1157 = vunpack.c.l.b16 %v1053
      %v1158 = vunpack.c.h.b16 %v1053
      %v1159 = vunpack.c.l.b16 %v1054
      %v1160 = vunpack.c.h.b16 %v1054
      %v1161 = vpack.c.b16 %v1101, %v1097
      %v1162 = vpack.c.b16 %v1102, %v1098
      %v1163 = vpack.c.b16 %v1103, %v1099
      %v1164 = vpack.c.b16 %v1104, %v1100
      %v1165 = vpack.c.b16 %v1109, %v1105
      %v1166 = vpack.c.b16 %v1110, %v1106
      %v1167 = vpack.c.b16 %v1111, %v1107
      %v1168 = vpack.c.b16 %v1112, %v1108
      %v1169 = vpack.c.b16 %v1117, %v1113
      %v1170 = vpack.c.b16 %v1118, %v1114
      %v1171 = vpack.c.b16 %v1119, %v1115
      %v1172 = vpack.c.b16 %v1120, %v1116
      %v1173 = vpack.c.b16 %v1125, %v1121
      %v1174 = vpack.c.b16 %v1126, %v1122
      %v1175 = vpack.c.b16 %v1127, %v1123
      %v1176 = vpack.c.b16 %v1128, %v1124
      %v1177 = vpack.c.b16 %v1133, %v1129
      %v1178 = vpack.c.b16 %v1134, %v1130
      %v1179 = vpack.c.b16 %v1135, %v1131
      %v1180 = vpack.c.b16 %v1136, %v1132
      %v1181 = vpack.c.b16 %v1141, %v1137
      %v1182 = vpack.c.b16 %v1142, %v1138
      %v1183 = vpack.c.b16 %v1143, %v1139
      %v1184 = vpack.c.b16 %v1144, %v1140
      %v1185 = vpack.c.b16 %v1149, %v1145
      %v1186 = vpack.c.b16 %v1150, %v1146
      %v1187 = vpack.c.b16 %v1151, %v1147
      %v1188 = vpack.c.b16 %v1152, %v1148
      %v1189 = vpack.c.b16 %v1157, %v1153
      %v1190 = vpack.c.b16 %v1158, %v1154
      %v1191 = vpack.c.b16 %v1159, %v1155
      %v1192 = vpack.c.b16 %v1160, %v1156
      %1225 = vmatpush.bf16.msra.mxu0 %v1189
      %1226 = vmatpush.bf16.msra.mxu0 %v1185
      %1227 = vmatpush.bf16.msra.mxu0 %v1181
      %1228 = vmatpush.bf16.msra.mxu0 %v1177
      %1229 = vmatpush.bf16.msra.mxu0 %v1173
      %1230 = vmatpush.bf16.msra.mxu0 %v1169
      %1231 = vmatpush.bf16.msra.mxu0 %v1165
      %1232 = vmatpush.bf16.msra.mxu0 %v1161
      %1233 = vmatmul.bf16.gmra.mxu0 %v1015
      %v1234 = vpop.f32.mrf.mxu0
      %v1235 = vadd.f32 %v1057, %v1234
      %v1236 = vpop.f32.mrf.mxu0
      %v1237 = vadd.f32 %v1057, %v1236
      %1238 = vmatmul.bf16.gmra.mxu0 %v1016
      %v1239 = vpop.f32.mrf.mxu0
      %v1240 = vadd.f32 %v1057, %v1239
      %v1241 = vpop.f32.mrf.mxu0
      %v1242 = vadd.f32 %v1057, %v1241
      %1243 = vmatmul.bf16.gmra.mxu0 %v1017
      %v1244 = vpop.f32.mrf.mxu0
      %v1245 = vadd.f32 %v1057, %v1244
      %v1246 = vpop.f32.mrf.mxu0
      %v1247 = vadd.f32 %v1057, %v1246
      %1248 = vmatmul.bf16.gmra.mxu0 %v1018
      %v1249 = vpop.f32.mrf.mxu0
      %v1250 = vadd.f32 %v1057, %v1249
      %v1251 = vpop.f32.mrf.mxu0
      %v1252 = vadd.f32 %v1057, %v1251
      %1253 = vmatmul.bf16.gmra.mxu0 %v1019
      %v1254 = vpop.f32.mrf.mxu0
      %v1255 = vadd.f32 %v1057, %v1254
      %v1256 = vpop.f32.mrf.mxu0
      %v1257 = vadd.f32 %v1057, %v1256
      %1258 = vmatmul.bf16.gmra.mxu0 %v1020
      %v1259 = vpop.f32.mrf.mxu0
      %v1260 = vadd.f32 %v1057, %v1259
      %v1261 = vpop.f32.mrf.mxu0
      %v1262 = vadd.f32 %v1057, %v1261
      %1263 = vmatmul.bf16.gmra.mxu0 %v1021
      %v1264 = vpop.f32.mrf.mxu0
      %v1265 = vadd.f32 %v1057, %v1264
      %v1266 = vpop.f32.mrf.mxu0
      %v1267 = vadd.f32 %v1057, %v1266
      %1268 = vmatmul.bf16.gmra.mxu0 %v1022
      %v1269 = vpop.f32.mrf.mxu0
      %v1270 = vadd.f32 %v1057, %v1269
      %v1271 = vpop.f32.mrf.mxu0
      %v1272 = vadd.f32 %v1057, %v1271
      %1273 = vdwg.mxu0
      %1274 = vmatpush.bf16.msra.mxu0 %v1190
      %1275 = vmatpush.bf16.msra.mxu0 %v1186
      %1276 = vmatpush.bf16.msra.mxu0 %v1182
      %1277 = vmatpush.bf16.msra.mxu0 %v1178
      %1278 = vmatpush.bf16.msra.mxu0 %v1174
      %1279 = vmatpush.bf16.msra.mxu0 %v1170
      %1280 = vmatpush.bf16.msra.mxu0 %v1166
      %1281 = vmatpush.bf16.msra.mxu0 %v1162
      %1282 = vmatmul.bf16.gmra.mxu0 %v1015
      %v1283 = vpop.f32.mrf.mxu0
      %v1284 = vadd.f32 %v1058, %v1283
      %v1285 = vpop.f32.mrf.mxu0
      %v1286 = vadd.f32 %v1058, %v1285
      %1287 = vmatmul.bf16.gmra.mxu0 %v1016
      %v1288 = vpop.f32.mrf.mxu0
      %v1289 = vadd.f32 %v1058, %v1288
      %v1290 = vpop.f32.mrf.mxu0
      %v1291 = vadd.f32 %v1058, %v1290
      %1292 = vmatmul.bf16.gmra.mxu0 %v1017
      %v1293 = vpop.f32.mrf.mxu0
      %v1294 = vadd.f32 %v1058, %v1293
      %v1295 = vpop.f32.mrf.mxu0
      %v1296 = vadd.f32 %v1058, %v1295
      %1297 = vmatmul.bf16.gmra.mxu0 %v1018
      %v1298 = vpop.f32.mrf.mxu0
      %v1299 = vadd.f32 %v1058, %v1298
      %v1300 = vpop.f32.mrf.mxu0
      %v1301 = vadd.f32 %v1058, %v1300
      %1302 = vmatmul.bf16.gmra.mxu0 %v1019
      %v1303 = vpop.f32.mrf.mxu0
      %v1304 = vadd.f32 %v1058, %v1303
      %v1305 = vpop.f32.mrf.mxu0
      %v1306 = vadd.f32 %v1058, %v1305
      %1307 = vmatmul.bf16.gmra.mxu0 %v1020
      %v1308 = vpop.f32.mrf.mxu0
      %v1309 = vadd.f32 %v1058, %v1308
      %v1310 = vpop.f32.mrf.mxu0
      %v1311 = vadd.f32 %v1058, %v1310
      %1312 = vmatmul.bf16.gmra.mxu0 %v1021
      %v1313 = vpop.f32.mrf.mxu0
      %v1314 = vadd.f32 %v1058, %v1313
      %v1315 = vpop.f32.mrf.mxu0
      %v1316 = vadd.f32 %v1058, %v1315
      %1317 = vmatmul.bf16.gmra.mxu0 %v1022
      %v1318 = vpop.f32.mrf.mxu0
      %v1319 = vadd.f32 %v1058, %v1318
      %v1320 = vpop.f32.mrf.mxu0
      %v1321 = vadd.f32 %v1058, %v1320
      %1322 = vdwg.mxu0
      %1323 = vmatpush.bf16.msra.mxu0 %v1191
      %1324 = vmatpush.bf16.msra.mxu0 %v1187
      %1325 = vmatpush.bf16.msra.mxu0 %v1183
      %1326 = vmatpush.bf16.msra.mxu0 %v1179
      %1327 = vmatpush.bf16.msra.mxu0 %v1175
      %1328 = vmatpush.bf16.msra.mxu0 %v1171
      %1329 = vmatpush.bf16.msra.mxu0 %v1167
      %1330 = vmatpush.bf16.msra.mxu0 %v1163
      %1331 = vmatmul.bf16.gmra.mxu0 %v1015
      %v1332 = vpop.f32.mrf.mxu0
      %v1333 = vadd.f32 %v1059, %v1332
      %v1334 = vpop.f32.mrf.mxu0
      %v1335 = vadd.f32 %v1059, %v1334
      %1336 = vmatmul.bf16.gmra.mxu0 %v1016
      %v1337 = vpop.f32.mrf.mxu0
      %v1338 = vadd.f32 %v1059, %v1337
      %v1339 = vpop.f32.mrf.mxu0
      %v1340 = vadd.f32 %v1059, %v1339
      %1341 = vmatmul.bf16.gmra.mxu0 %v1017
      %v1342 = vpop.f32.mrf.mxu0
      %v1343 = vadd.f32 %v1059, %v1342
      %v1344 = vpop.f32.mrf.mxu0
      %v1345 = vadd.f32 %v1059, %v1344
      %1346 = vmatmul.bf16.gmra.mxu0 %v1018
      %v1347 = vpop.f32.mrf.mxu0
      %v1348 = vadd.f32 %v1059, %v1347
      %v1349 = vpop.f32.mrf.mxu0
      %v1350 = vadd.f32 %v1059, %v1349
      %1351 = vmatmul.bf16.gmra.mxu0 %v1019
      %v1352 = vpop.f32.mrf.mxu0
      %v1353 = vadd.f32 %v1059, %v1352
      %v1354 = vpop.f32.mrf.mxu0
      %v1355 = vadd.f32 %v1059, %v1354
      %1356 = vmatmul.bf16.gmra.mxu0 %v1020
      %v1357 = vpop.f32.mrf.mxu0
      %v1358 = vadd.f32 %v1059, %v1357
      %v1359 = vpop.f32.mrf.mxu0
      %v1360 = vadd.f32 %v1059, %v1359
      %1361 = vmatmul.bf16.gmra.mxu0 %v1021
      %v1362 = vpop.f32.mrf.mxu0
      %v1363 = vadd.f32 %v1059, %v1362
      %v1364 = vpop.f32.mrf.mxu0
      %v1365 = vadd.f32 %v1059, %v1364
      %1366 = vmatmul.bf16.gmra.mxu0 %v1022
      %v1367 = vpop.f32.mrf.mxu0
      %v1368 = vadd.f32 %v1059, %v1367
      %v1369 = vpop.f32.mrf.mxu0
      %v1370 = vadd.f32 %v1059, %v1369
      %1371 = vdwg.mxu0
      %1372 = vmatpush.bf16.msra.mxu0 %v1192
      %1373 = vmatpush.bf16.msra.mxu0 %v1188
      %1374 = vmatpush.bf16.msra.mxu0 %v1184
      %1375 = vmatpush.bf16.msra.mxu0 %v1180
      %1376 = vmatpush.bf16.msra.mxu0 %v1176
      %1377 = vmatpush.bf16.msra.mxu0 %v1172
      %1378 = vmatpush.bf16.msra.mxu0 %v1168
      %1379 = vmatpush.bf16.msra.mxu0 %v1164
      %1380 = vmatmul.bf16.gmra.mxu0 %v1015
      %v1381 = vpop.f32.mrf.mxu0
      %v1382 = vadd.f32 %v1060, %v1381
      %v1383 = vpop.f32.mrf.mxu0
      %v1384 = vadd.f32 %v1060, %v1383
      %1385 = vmatmul.bf16.gmra.mxu0 %v1016
      %v1386 = vpop.f32.mrf.mxu0
      %v1387 = vadd.f32 %v1060, %v1386
      %v1388 = vpop.f32.mrf.mxu0
      %v1389 = vadd.f32 %v1060, %v1388
      %1390 = vmatmul.bf16.gmra.mxu0 %v1017
      %v1391 = vpop.f32.mrf.mxu0
      %v1392 = vadd.f32 %v1060, %v1391
      %v1393 = vpop.f32.mrf.mxu0
      %v1394 = vadd.f32 %v1060, %v1393
      %1395 = vmatmul.bf16.gmra.mxu0 %v1018
      %v1396 = vpop.f32.mrf.mxu0
      %v1397 = vadd.f32 %v1060, %v1396
      %v1398 = vpop.f32.mrf.mxu0
      %v1399 = vadd.f32 %v1060, %v1398
      %1400 = vmatmul.bf16.gmra.mxu0 %v1019
      %v1401 = vpop.f32.mrf.mxu0
      %v1402 = vadd.f32 %v1060, %v1401
      %v1403 = vpop.f32.mrf.mxu0
      %v1404 = vadd.f32 %v1060, %v1403
      %1405 = vmatmul.bf16.gmra.mxu0 %v1020
      %v1406 = vpop.f32.mrf.mxu0
      %v1407 = vadd.f32 %v1060, %v1406
      %v1408 = vpop.f32.mrf.mxu0
      %v1409 = vadd.f32 %v1060, %v1408
      %1410 = vmatmul.bf16.gmra.mxu0 %v1021
      %v1411 = vpop.f32.mrf.mxu0
      %v1412 = vadd.f32 %v1060, %v1411
      %v1413 = vpop.f32.mrf.mxu0
      %v1414 = vadd.f32 %v1060, %v1413
      %1415 = vmatmul.bf16.gmra.mxu0 %v1022
      %v1416 = vpop.f32.mrf.mxu0
      %v1417 = vadd.f32 %v1060, %v1416
      %v1418 = vpop.f32.mrf.mxu0
      %v1419 = vadd.f32 %v1060, %v1418
      %1420 = vdwg.mxu0
      %v1421 = vmul.f32 %v1235, %v1235
      %v1422 = vmul.f32 %v1284, %v1284
      %v1423 = vmul.f32 %v1333, %v1333
      %v1424 = vmul.f32 %v1382, %v1382
      %v1425 = vmul.f32 %v1237, %v1237
      %v1426 = vmul.f32 %v1286, %v1286
      %v1427 = vmul.f32 %v1335, %v1335
      %v1428 = vmul.f32 %v1384, %v1384
      %v1429 = vmul.f32 %v1240, %v1240
      %v1430 = vmul.f32 %v1289, %v1289
      %v1431 = vmul.f32 %v1338, %v1338
      %v1432 = vmul.f32 %v1387, %v1387
      %v1433 = vmul.f32 %v1242, %v1242
      %v1434 = vmul.f32 %v1291, %v1291
      %v1435 = vmul.f32 %v1340, %v1340
      %v1436 = vmul.f32 %v1389, %v1389
      %v1437 = vmul.f32 %v1245, %v1245
      %v1438 = vmul.f32 %v1294, %v1294
      %v1439 = vmul.f32 %v1343, %v1343
      %v1440 = vmul.f32 %v1392, %v1392
      %v1441 = vmul.f32 %v1247, %v1247
      %v1442 = vmul.f32 %v1296, %v1296
      %v1443 = vmul.f32 %v1345, %v1345
      %v1444 = vmul.f32 %v1394, %v1394
      %v1445 = vmul.f32 %v1250, %v1250
      %v1446 = vmul.f32 %v1299, %v1299
      %v1447 = vmul.f32 %v1348, %v1348
      %v1448 = vmul.f32 %v1397, %v1397
      %v1449 = vmul.f32 %v1252, %v1252
      %v1450 = vmul.f32 %v1301, %v1301
      %v1451 = vmul.f32 %v1350, %v1350
      %v1452 = vmul.f32 %v1399, %v1399
      %v1453 = vmul.f32 %v1255, %v1255
      %v1454 = vmul.f32 %v1304, %v1304
      %v1455 = vmul.f32 %v1353, %v1353
      %v1456 = vmul.f32 %v1402, %v1402
      %v1457 = vmul.f32 %v1257, %v1257
      %v1458 = vmul.f32 %v1306, %v1306
      %v1459 = vmul.f32 %v1355, %v1355
      %v1460 = vmul.f32 %v1404, %v1404
      %v1461 = vmul.f32 %v1260, %v1260
      %v1462 = vmul.f32 %v1309, %v1309
      %v1463 = vmul.f32 %v1358, %v1358
      %v1464 = vmul.f32 %v1407, %v1407
      %v1465 = vmul.f32 %v1262, %v1262
      %v1466 = vmul.f32 %v1311, %v1311
      %v1467 = vmul.f32 %v1360, %v1360
      %v1468 = vmul.f32 %v1409, %v1409
      %v1469 = vmul.f32 %v1265, %v1265
      %v1470 = vmul.f32 %v1314, %v1314
      %v1471 = vmul.f32 %v1363, %v1363
      %v1472 = vmul.f32 %v1412, %v1412
      %v1473 = vmul.f32 %v1267, %v1267
      %v1474 = vmul.f32 %v1316, %v1316
      %v1475 = vmul.f32 %v1365, %v1365
      %v1476 = vmul.f32 %v1414, %v1414
      %v1477 = vmul.f32 %v1270, %v1270
      %v1478 = vmul.f32 %v1319, %v1319
      %v1479 = vmul.f32 %v1368, %v1368
      %v1480 = vmul.f32 %v1417, %v1417
      %v1481 = vmul.f32 %v1272, %v1272
      %v1482 = vmul.f32 %v1321, %v1321
      %v1483 = vmul.f32 %v1370, %v1370
      %v1484 = vmul.f32 %v1419, %v1419
      %v1485 = vmul.f32 %v1235, %v1421
      %v1486 = vmul.f32 %v1284, %v1422
      %v1487 = vmul.f32 %v1333, %v1423
      %v1488 = vmul.f32 %v1382, %v1424
      %v1489 = vmul.f32 %v1237, %v1425
      %v1490 = vmul.f32 %v1286, %v1426
      %v1491 = vmul.f32 %v1335, %v1427
      %v1492 = vmul.f32 %v1384, %v1428
      %v1493 = vmul.f32 %v1240, %v1429
      %v1494 = vmul.f32 %v1289, %v1430
      %v1495 = vmul.f32 %v1338, %v1431
      %v1496 = vmul.f32 %v1387, %v1432
      %v1497 = vmul.f32 %v1242, %v1433
      %v1498 = vmul.f32 %v1291, %v1434
      %v1499 = vmul.f32 %v1340, %v1435
      %v1500 = vmul.f32 %v1389, %v1436
      %v1501 = vmul.f32 %v1245, %v1437
      %v1502 = vmul.f32 %v1294, %v1438
      %v1503 = vmul.f32 %v1343, %v1439
      %v1504 = vmul.f32 %v1392, %v1440
      %v1505 = vmul.f32 %v1247, %v1441
      %v1506 = vmul.f32 %v1296, %v1442
      %v1507 = vmul.f32 %v1345, %v1443
      %v1508 = vmul.f32 %v1394, %v1444
      %v1509 = vmul.f32 %v1250, %v1445
      %v1510 = vmul.f32 %v1299, %v1446
      %v1511 = vmul.f32 %v1348, %v1447
      %v1512 = vmul.f32 %v1397, %v1448
      %v1513 = vmul.f32 %v1252, %v1449
      %v1514 = vmul.f32 %v1301, %v1450
      %v1515 = vmul.f32 %v1350, %v1451
      %v1516 = vmul.f32 %v1399, %v1452
      %v1517 = vmul.f32 %v1255, %v1453
      %v1518 = vmul.f32 %v1304, %v1454
      %v1519 = vmul.f32 %v1353, %v1455
      %v1520 = vmul.f32 %v1402, %v1456
      %v1521 = vmul.f32 %v1257, %v1457
      %v1522 = vmul.f32 %v1306, %v1458
      %v1523 = vmul.f32 %v1355, %v1459
      %v1524 = vmul.f32 %v1404, %v1460
      %v1525 = vmul.f32 %v1260, %v1461
      %v1526 = vmul.f32 %v1309, %v1462
      %v1527 = vmul.f32 %v1358, %v1463
      %v1528 = vmul.f32 %v1407, %v1464
      %v1529 = vmul.f32 %v1262, %v1465
      %v1530 = vmul.f32 %v1311, %v1466
      %v1531 = vmul.f32 %v1360, %v1467
      %v1532 = vmul.f32 %v1409, %v1468
      %v1533 = vmul.f32 %v1265, %v1469
      %v1534 = vmul.f32 %v1314, %v1470
      %v1535 = vmul.f32 %v1363, %v1471
      %v1536 = vmul.f32 %v1412, %v1472
      %v1537 = vmul.f32 %v1267, %v1473
      %v1538 = vmul.f32 %v1316, %v1474
      %v1539 = vmul.f32 %v1365, %v1475
      %v1540 = vmul.f32 %v1414, %v1476
      %v1541 = vmul.f32 %v1270, %v1477
      %v1542 = vmul.f32 %v1319, %v1478
      %v1543 = vmul.f32 %v1368, %v1479
      %v1544 = vmul.f32 %v1417, %v1480
      %v1545 = vmul.f32 %v1272, %v1481
      %v1546 = vmul.f32 %v1321, %v1482
      %v1547 = vmul.f32 %v1370, %v1483
      %v1548 = vmul.f32 %v1419, %v1484
      %v1549 = vmul.f32 %v1485, 0.044715
      %v1550 = vmul.f32 %v1486, 0.044715
      %v1551 = vmul.f32 %v1487, 0.044715
      %v1552 = vmul.f32 %v1488, 0.044715
      %v1553 = vmul.f32 %v1489, 0.044715
      %v1554 = vmul.f32 %v1490, 0.044715
      %v1555 = vmul.f32 %v1491, 0.044715
      %v1556 = vmul.f32 %v1492, 0.044715
      %v1557 = vmul.f32 %v1493, 0.044715
      %v1558 = vmul.f32 %v1494, 0.044715
      %v1559 = vmul.f32 %v1495, 0.044715
      %v1560 = vmul.f32 %v1496, 0.044715
      %v1561 = vmul.f32 %v1497, 0.044715
      %v1562 = vmul.f32 %v1498, 0.044715
      %v1563 = vmul.f32 %v1499, 0.044715
      %v1564 = vmul.f32 %v1500, 0.044715
      %v1565 = vmul.f32 %v1501, 0.044715
      %v1566 = vmul.f32 %v1502, 0.044715
      %v1567 = vmul.f32 %v1503, 0.044715
      %v1568 = vmul.f32 %v1504, 0.044715
      %v1569 = vmul.f32 %v1505, 0.044715
      %v1570 = vmul.f32 %v1506, 0.044715
      %v1571 = vmul.f32 %v1507, 0.044715
      %v1572 = vmul.f32 %v1508, 0.044715
      %v1573 = vmul.f32 %v1509, 0.044715
      %v1574 = vmul.f32 %v1510, 0.044715
      %v1575 = vmul.f32 %v1511, 0.044715
      %v1576 = vmul.f32 %v1512, 0.044715
      %v1577 = vmul.f32 %v1513, 0.044715
      %v1578 = vmul.f32 %v1514, 0.044715
      %v1579 = vmul.f32 %v1515, 0.044715
      %v1580 = vmul.f32 %v1516, 0.044715
      %v1581 = vmul.f32 %v1517, 0.044715
      %v1582 = vmul.f32 %v1518, 0.044715
      %v1583 = vmul.f32 %v1519, 0.044715
      %v1584 = vmul.f32 %v1520, 0.044715
      %v1585 = vmul.f32 %v1521, 0.044715
      %v1586 = vmul.f32 %v1522, 0.044715
      %v1587 = vmul.f32 %v1523, 0.044715
      %v1588 = vmul.f32 %v1524, 0.044715
      %v1589 = vmul.f32 %v1525, 0.044715
      %v1590 = vmul.f32 %v1526, 0.044715
      %v1591 = vmul.f32 %v1527, 0.044715
      %v1592 = vmul.f32 %v1528, 0.044715
      %v1593 = vmul.f32 %v1529, 0.044715
      %v1594 = vmul.f32 %v1530, 0.044715
      %v1595 = vmul.f32 %v1531, 0.044715
      %v1596 = vmul.f32 %v1532, 0.044715
      %v1597 = vmul.f32 %v1533, 0.044715
      %v1598 = vmul.f32 %v1534, 0.044715
      %v1599 = vmul.f32 %v1535, 0.044715
      %v1600 = vmul.f32 %v1536, 0.044715
      %v1601 = vmul.f32 %v1537, 0.044715
      %v1602 = vmul.f32 %v1538, 0.044715
      %v1603 = vmul.f32 %v1539, 0.044715
      %v1604 = vmul.f32 %v1540, 0.044715
      %v1605 = vmul.f32 %v1541, 0.044715
      %v1606 = vmul.f32 %v1542, 0.044715
      %v1607 = vmul.f32 %v1543, 0.044715
      %v1608 = vmul.f32 %v1544, 0.044715
      %v1609 = vmul.f32 %v1545, 0.044715
      %v1610 = vmul.f32 %v1546, 0.044715
      %v1611 = vmul.f32 %v1547, 0.044715
      %v1612 = vmul.f32 %v1548, 0.044715
      %v1613 = vadd.f32 %v1235, %v1549
      %v1614 = vadd.f32 %v1284, %v1550
      %v1615 = vadd.f32 %v1333, %v1551
      %v1616 = vadd.f32 %v1382, %v1552
      %v1617 = vadd.f32 %v1237, %v1553
      %v1618 = vadd.f32 %v1286, %v1554
      %v1619 = vadd.f32 %v1335, %v1555
      %v1620 = vadd.f32 %v1384, %v1556
      %v1621 = vadd.f32 %v1240, %v1557
      %v1622 = vadd.f32 %v1289, %v1558
      %v1623 = vadd.f32 %v1338, %v1559
      %v1624 = vadd.f32 %v1387, %v1560
      %v1625 = vadd.f32 %v1242, %v1561
      %v1626 = vadd.f32 %v1291, %v1562
      %v1627 = vadd.f32 %v1340, %v1563
      %v1628 = vadd.f32 %v1389, %v1564
      %v1629 = vadd.f32 %v1245, %v1565
      %v1630 = vadd.f32 %v1294, %v1566
      %v1631 = vadd.f32 %v1343, %v1567
      %v1632 = vadd.f32 %v1392, %v1568
      %v1633 = vadd.f32 %v1247, %v1569
      %v1634 = vadd.f32 %v1296, %v1570
      %v1635 = vadd.f32 %v1345, %v1571
      %v1636 = vadd.f32 %v1394, %v1572
      %v1637 = vadd.f32 %v1250, %v1573
      %v1638 = vadd.f32 %v1299, %v1574
      %v1639 = vadd.f32 %v1348, %v1575
      %v1640 = vadd.f32 %v1397, %v1576
      %v1641 = vadd.f32 %v1252, %v1577
      %v1642 = vadd.f32 %v1301, %v1578
      %v1643 = vadd.f32 %v1350, %v1579
      %v1644 = vadd.f32 %v1399, %v1580
      %v1645 = vadd.f32 %v1255, %v1581
      %v1646 = vadd.f32 %v1304, %v1582
      %v1647 = vadd.f32 %v1353, %v1583
      %v1648 = vadd.f32 %v1402, %v1584
      %v1649 = vadd.f32 %v1257, %v1585
      %v1650 = vadd.f32 %v1306, %v1586
      %v1651 = vadd.f32 %v1355, %v1587
      %v1652 = vadd.f32 %v1404, %v1588
      %v1653 = vadd.f32 %v1260, %v1589
      %v1654 = vadd.f32 %v1309, %v1590
      %v1655 = vadd.f32 %v1358, %v1591
      %v1656 = vadd.f32 %v1407, %v1592
      %v1657 = vadd.f32 %v1262, %v1593
      %v1658 = vadd.f32 %v1311, %v1594
      %v1659 = vadd.f32 %v1360, %v1595
      %v1660 = vadd.f32 %v1409, %v1596
      %v1661 = vadd.f32 %v1265, %v1597
      %v1662 = vadd.f32 %v1314, %v1598
      %v1663 = vadd.f32 %v1363, %v1599
      %v1664 = vadd.f32 %v1412, %v1600
      %v1665 = vadd.f32 %v1267, %v1601
      %v1666 = vadd.f32 %v1316, %v1602
      %v1667 = vadd.f32 %v1365, %v1603
      %v1668 = vadd.f32 %v1414, %v1604
      %v1669 = vadd.f32 %v1270, %v1605
      %v1670 = vadd.f32 %v1319, %v1606
      %v1671 = vadd.f32 %v1368, %v1607
      %v1672 = vadd.f32 %v1417, %v1608
      %v1673 = vadd.f32 %v1272, %v1609
      %v1674 = vadd.f32 %v1321, %v1610
      %v1675 = vadd.f32 %v1370, %v1611
      %v1676 = vadd.f32 %v1419, %v1612
      %v1677 = vmul.f32 %v1613, 0.7978846
      %v1678 = vmul.f32 %v1614, 0.7978846
      %v1679 = vmul.f32 %v1615, 0.7978846
      %v1680 = vmul.f32 %v1616, 0.7978846
      %v1681 = vmul.f32 %v1617, 0.7978846
      %v1682 = vmul.f32 %v1618, 0.7978846
      %v1683 = vmul.f32 %v1619, 0.7978846
      %v1684 = vmul.f32 %v1620, 0.7978846
      %v1685 = vmul.f32 %v1621, 0.7978846
      %v1686 = vmul.f32 %v1622, 0.7978846
      %v1687 = vmul.f32 %v1623, 0.7978846
      %v1688 = vmul.f32 %v1624, 0.7978846
      %v1689 = vmul.f32 %v1625, 0.7978846
      %v1690 = vmul.f32 %v1626, 0.7978846
      %v1691 = vmul.f32 %v1627, 0.7978846
      %v1692 = vmul.f32 %v1628, 0.7978846
      %v1693 = vmul.f32 %v1629, 0.7978846
      %v1694 = vmul.f32 %v1630, 0.7978846
      %v1695 = vmul.f32 %v1631, 0.7978846
      %v1696 = vmul.f32 %v1632, 0.7978846
      %v1697 = vmul.f32 %v1633, 0.7978846
      %v1698 = vmul.f32 %v1634, 0.7978846
      %v1699 = vmul.f32 %v1635, 0.7978846
      %v1700 = vmul.f32 %v1636, 0.7978846
      %v1701 = vmul.f32 %v1637, 0.7978846
      %v1702 = vmul.f32 %v1638, 0.7978846
      %v1703 = vmul.f32 %v1639, 0.7978846
      %v1704 = vmul.f32 %v1640, 0.7978846
      %v1705 = vmul.f32 %v1641, 0.7978846
      %v1706 = vmul.f32 %v1642, 0.7978846
      %v1707 = vmul.f32 %v1643, 0.7978846
      %v1708 = vmul.f32 %v1644, 0.7978846
      %v1709 = vmul.f32 %v1645, 0.7978846
      %v1710 = vmul.f32 %v1646, 0.7978846
      %v1711 = vmul.f32 %v1647, 0.7978846
      %v1712 = vmul.f32 %v1648, 0.7978846
      %v1713 = vmul.f32 %v1649, 0.7978846
      %v1714 = vmul.f32 %v1650, 0.7978846
      %v1715 = vmul.f32 %v1651, 0.7978846
      %v1716 = vmul.f32 %v1652, 0.7978846
      %v1717 = vmul.f32 %v1653, 0.7978846
      %v1718 = vmul.f32 %v1654, 0.7978846
      %v1719 = vmul.f32 %v1655, 0.7978846
      %v1720 = vmul.f32 %v1656, 0.7978846
      %v1721 = vmul.f32 %v1657, 0.7978846
      %v1722 = vmul.f32 %v1658, 0.7978846
      %v1723 = vmul.f32 %v1659, 0.7978846
      %v1724 = vmul.f32 %v1660, 0.7978846
      %v1725 = vmul.f32 %v1661, 0.7978846
      %v1726 = vmul.f32 %v1662, 0.7978846
      %v1727 = vmul.f32 %v1663, 0.7978846
      %v1728 = vmul.f32 %v1664, 0.7978846
      %v1729 = vmul.f32 %v1665, 0.7978846
      %v1730 = vmul.f32 %v1666, 0.7978846
      %v1731 = vmul.f32 %v1667, 0.7978846
      %v1732 = vmul.f32 %v1668, 0.7978846
      %v1733 = vmul.f32 %v1669, 0.7978846
      %v1734 = vmul.f32 %v1670, 0.7978846
      %v1735 = vmul.f32 %v1671, 0.7978846
      %v1736 = vmul.f32 %v1672, 0.7978846
      %v1737 = vmul.f32 %v1673, 0.7978846
      %v1738 = vmul.f32 %v1674, 0.7978846
      %v1739 = vmul.f32 %v1675, 0.7978846
      %v1740 = vmul.f32 %v1676, 0.7978846
      %v1741 = vtanh.pop %v1677
      %v1742 = vtanh.pop %v1678
      %v1743 = vtanh.pop %v1679
      %v1744 = vtanh.pop %v1680
      %v1745 = vtanh.pop %v1681
      %v1746 = vtanh.pop %v1682
      %v1747 = vtanh.pop %v1683
      %v1748 = vtanh.pop %v1684
      %v1749 = vtanh.pop %v1685
      %v1750 = vtanh.pop %v1686
      %v1751 = vtanh.pop %v1687
      %v1752 = vtanh.pop %v1688
      %v1753 = vtanh.pop %v1689
      %v1754 = vtanh.pop %v1690
      %v1755 = vtanh.pop %v1691
      %v1756 = vtanh.pop %v1692
      %v1757 = vtanh.pop %v1693
      %v1758 = vtanh.pop %v1694
      %v1759 = vtanh.pop %v1695
      %v1760 = vtanh.pop %v1696
      %v1761 = vtanh.pop %v1697
      %v1762 = vtanh.pop %v1698
      %v1763 = vtanh.pop %v1699
      %v1764 = vtanh.pop %v1700
      %v1765 = vtanh.pop %v1701
      %v1766 = vtanh.pop %v1702
      %v1767 = vtanh.pop %v1703
      %v1768 = vtanh.pop %v1704
      %v1769 = vtanh.pop %v1705
      %v1770 = vtanh.pop %v1706
      %v1771 = vtanh.pop %v1707
      %v1772 = vtanh.pop %v1708
      %v1773 = vtanh.pop %v1709
      %v1774 = vtanh.pop %v1710
      %v1775 = vtanh.pop %v1711
      %v1776 = vtanh.pop %v1712
      %v1777 = vtanh.pop %v1713
      %v1778 = vtanh.pop %v1714
      %v1779 = vtanh.pop %v1715
      %v1780 = vtanh.pop %v1716
      %v1781 = vtanh.pop %v1717
      %v1782 = vtanh.pop %v1718
      %v1783 = vtanh.pop %v1719
      %v1784 = vtanh.pop %v1720
      %v1785 = vtanh.pop %v1721
      %v1786 = vtanh.pop %v1722
      %v1787 = vtanh.pop %v1723
      %v1788 = vtanh.pop %v1724
      %v1789 = vtanh.pop %v1725
      %v1790 = vtanh.pop %v1726
      %v1791 = vtanh.pop %v1727
      %v1792 = vtanh.pop %v1728
      %v1793 = vtanh.pop %v1729
      %v1794 = vtanh.pop %v1730
      %v1795 = vtanh.pop %v1731
      %v1796 = vtanh.pop %v1732
      %v1797 = vtanh.pop %v1733
      %v1798 = vtanh.pop %v1734
      %v1799 = vtanh.pop %v1735
      %v1800 = vtanh.pop %v1736
      %v1801 = vtanh.pop %v1737
      %v1802 = vtanh.pop %v1738
      %v1803 = vtanh.pop %v1739
      %v1804 = vtanh.pop %v1740
      %v1805 = vadd.f32 %v1741, 1.0
      %v1806 = vadd.f32 %v1742, 1.0
      %v1807 = vadd.f32 %v1743, 1.0
      %v1808 = vadd.f32 %v1744, 1.0
      %v1809 = vadd.f32 %v1745, 1.0
      %v1810 = vadd.f32 %v1746, 1.0
      %v1811 = vadd.f32 %v1747, 1.0
      %v1812 = vadd.f32 %v1748, 1.0
      %v1813 = vadd.f32 %v1749, 1.0
      %v1814 = vadd.f32 %v1750, 1.0
      %v1815 = vadd.f32 %v1751, 1.0
      %v1816 = vadd.f32 %v1752, 1.0
      %v1817 = vadd.f32 %v1753, 1.0
      %v1818 = vadd.f32 %v1754, 1.0
      %v1819 = vadd.f32 %v1755, 1.0
      %v1820 = vadd.f32 %v1756, 1.0
      %v1821 = vadd.f32 %v1757, 1.0
      %v1822 = vadd.f32 %v1758, 1.0
      %v1823 = vadd.f32 %v1759, 1.0
      %v1824 = vadd.f32 %v1760, 1.0
      %v1825 = vadd.f32 %v1761, 1.0
      %v1826 = vadd.f32 %v1762, 1.0
      %v1827 = vadd.f32 %v1763, 1.0
      %v1828 = vadd.f32 %v1764, 1.0
      %v1829 = vadd.f32 %v1765, 1.0
      %v1830 = vadd.f32 %v1766, 1.0
      %v1831 = vadd.f32 %v1767, 1.0
      %v1832 = vadd.f32 %v1768, 1.0
      %v1833 = vadd.f32 %v1769, 1.0
      %v1834 = vadd.f32 %v1770, 1.0
      %v1835 = vadd.f32 %v1771, 1.0
      %v1836 = vadd.f32 %v1772, 1.0
      %v1837 = vadd.f32 %v1773, 1.0
      %v1838 = vadd.f32 %v1774, 1.0
      %v1839 = vadd.f32 %v1775, 1.0
      %v1840 = vadd.f32 %v1776, 1.0
      %v1841 = vadd.f32 %v1777, 1.0
      %v1842 = vadd.f32 %v1778, 1.0
      %v1843 = vadd.f32 %v1779, 1.0
      %v1844 = vadd.f32 %v1780, 1.0
      %v1845 = vadd.f32 %v1781, 1.0
      %v1846 = vadd.f32 %v1782, 1.0
      %v1847 = vadd.f32 %v1783, 1.0
      %v1848 = vadd.f32 %v1784, 1.0
      %v1849 = vadd.f32 %v1785, 1.0
      %v1850 = vadd.f32 %v1786, 1.0
      %v1851 = vadd.f32 %v1787, 1.0
      %v1852 = vadd.f32 %v1788, 1.0
      %v1853 = vadd.f32 %v1789, 1.0
      %v1854 = vadd.f32 %v1790, 1.0
      %v1855 = vadd.f32 %v1791, 1.0
      %v1856 = vadd.f32 %v1792, 1.0
      %v1857 = vadd.f32 %v1793, 1.0
      %v1858 = vadd.f32 %v1794, 1.0
      %v1859 = vadd.f32 %v1795, 1.0
      %v1860 = vadd.f32 %v1796, 1.0
      %v1861 = vadd.f32 %v1797, 1.0
      %v1862 = vadd.f32 %v1798, 1.0
      %v1863 = vadd.f32 %v1799, 1.0
      %v1864 = vadd.f32 %v1800, 1.0
      %v1865 = vadd.f32 %v1801, 1.0
      %v1866 = vadd.f32 %v1802, 1.0
      %v1867 = vadd.f32 %v1803, 1.0
      %v1868 = vadd.f32 %v1804, 1.0
      %v1869 = vmul.f32 %v1805, 0.5
      %v1870 = vmul.f32 %v1806, 0.5
      %v1871 = vmul.f32 %v1807, 0.5
      %v1872 = vmul.f32 %v1808, 0.5
      %v1873 = vmul.f32 %v1809, 0.5
      %v1874 = vmul.f32 %v1810, 0.5
      %v1875 = vmul.f32 %v1811, 0.5
      %v1876 = vmul.f32 %v1812, 0.5
      %v1877 = vmul.f32 %v1813, 0.5
      %v1878 = vmul.f32 %v1814, 0.5
      %v1879 = vmul.f32 %v1815, 0.5
      %v1880 = vmul.f32 %v1816, 0.5
      %v1881 = vmul.f32 %v1817, 0.5
      %v1882 = vmul.f32 %v1818, 0.5
      %v1883 = vmul.f32 %v1819, 0.5
      %v1884 = vmul.f32 %v1820, 0.5
      %v1885 = vmul.f32 %v1821, 0.5
      %v1886 = vmul.f32 %v1822, 0.5
      %v1887 = vmul.f32 %v1823, 0.5
      %v1888 = vmul.f32 %v1824, 0.5
      %v1889 = vmul.f32 %v1825, 0.5
      %v1890 = vmul.f32 %v1826, 0.5
      %v1891 = vmul.f32 %v1827, 0.5
      %v1892 = vmul.f32 %v1828, 0.5
      %v1893 = vmul.f32 %v1829, 0.5
      %v1894 = vmul.f32 %v1830, 0.5
      %v1895 = vmul.f32 %v1831, 0.5
      %v1896 = vmul.f32 %v1832, 0.5
      %v1897 = vmul.f32 %v1833, 0.5
      %v1898 = vmul.f32 %v1834, 0.5
      %v1899 = vmul.f32 %v1835, 0.5
      %v1900 = vmul.f32 %v1836, 0.5
      %v1901 = vmul.f32 %v1837, 0.5
      %v1902 = vmul.f32 %v1838, 0.5
      %v1903 = vmul.f32 %v1839, 0.5
      %v1904 = vmul.f32 %v1840, 0.5
      %v1905 = vmul.f32 %v1841, 0.5
      %v1906 = vmul.f32 %v1842, 0.5
      %v1907 = vmul.f32 %v1843, 0.5
      %v1908 = vmul.f32 %v1844, 0.5
      %v1909 = vmul.f32 %v1845, 0.5
      %v1910 = vmul.f32 %v1846, 0.5
      %v1911 = vmul.f32 %v1847, 0.5
      %v1912 = vmul.f32 %v1848, 0.5
      %v1913 = vmul.f32 %v1849, 0.5
      %v1914 = vmul.f32 %v1850, 0.5
      %v1915 = vmul.f32 %v1851, 0.5
      %v1916 = vmul.f32 %v1852, 0.5
      %v1917 = vmul.f32 %v1853, 0.5
      %v1918 = vmul.f32 %v1854, 0.5
      %v1919 = vmul.f32 %v1855, 0.5
      %v1920 = vmul.f32 %v1856, 0.5
      %v1921 = vmul.f32 %v1857, 0.5
      %v1922 = vmul.f32 %v1858, 0.5
      %v1923 = vmul.f32 %v1859, 0.5
      %v1924 = vmul.f32 %v1860, 0.5
      %v1925 = vmul.f32 %v1861, 0.5
      %v1926 = vmul.f32 %v1862, 0.5
      %v1927 = vmul.f32 %v1863, 0.5
      %v1928 = vmul.f32 %v1864, 0.5
      %v1929 = vmul.f32 %v1865, 0.5
      %v1930 = vmul.f32 %v1866, 0.5
      %v1931 = vmul.f32 %v1867, 0.5
      %v1932 = vmul.f32 %v1868, 0.5
      %v1933 = vmul.f32 %v1235, %v1869
      %v1934 = vmul.f32 %v1284, %v1870
      %v1935 = vmul.f32 %v1333, %v1871
      %v1936 = vmul.f32 %v1382, %v1872
      %v1937 = vmul.f32 %v1237, %v1873
      %v1938 = vmul.f32 %v1286, %v1874
      %v1939 = vmul.f32 %v1335, %v1875
      %v1940 = vmul.f32 %v1384, %v1876
      %v1941 = vmul.f32 %v1240, %v1877
      %v1942 = vmul.f32 %v1289, %v1878
      %v1943 = vmul.f32 %v1338, %v1879
      %v1944 = vmul.f32 %v1387, %v1880
      %v1945 = vmul.f32 %v1242, %v1881
      %v1946 = vmul.f32 %v1291, %v1882
      %v1947 = vmul.f32 %v1340, %v1883
      %v1948 = vmul.f32 %v1389, %v1884
      %v1949 = vmul.f32 %v1245, %v1885
      %v1950 = vmul.f32 %v1294, %v1886
      %v1951 = vmul.f32 %v1343, %v1887
      %v1952 = vmul.f32 %v1392, %v1888
      %v1953 = vmul.f32 %v1247, %v1889
      %v1954 = vmul.f32 %v1296, %v1890
      %v1955 = vmul.f32 %v1345, %v1891
      %v1956 = vmul.f32 %v1394, %v1892
      %v1957 = vmul.f32 %v1250, %v1893
      %v1958 = vmul.f32 %v1299, %v1894
      %v1959 = vmul.f32 %v1348, %v1895
      %v1960 = vmul.f32 %v1397, %v1896
      %v1961 = vmul.f32 %v1252, %v1897
      %v1962 = vmul.f32 %v1301, %v1898
      %v1963 = vmul.f32 %v1350, %v1899
      %v1964 = vmul.f32 %v1399, %v1900
      %v1965 = vmul.f32 %v1255, %v1901
      %v1966 = vmul.f32 %v1304, %v1902
      %v1967 = vmul.f32 %v1353, %v1903
      %v1968 = vmul.f32 %v1402, %v1904
      %v1969 = vmul.f32 %v1257, %v1905
      %v1970 = vmul.f32 %v1306, %v1906
      %v1971 = vmul.f32 %v1355, %v1907
      %v1972 = vmul.f32 %v1404, %v1908
      %v1973 = vmul.f32 %v1260, %v1909
      %v1974 = vmul.f32 %v1309, %v1910
      %v1975 = vmul.f32 %v1358, %v1911
      %v1976 = vmul.f32 %v1407, %v1912
      %v1977 = vmul.f32 %v1262, %v1913
      %v1978 = vmul.f32 %v1311, %v1914
      %v1979 = vmul.f32 %v1360, %v1915
      %v1980 = vmul.f32 %v1409, %v1916
      %v1981 = vmul.f32 %v1265, %v1917
      %v1982 = vmul.f32 %v1314, %v1918
      %v1983 = vmul.f32 %v1363, %v1919
      %v1984 = vmul.f32 %v1412, %v1920
      %v1985 = vmul.f32 %v1267, %v1921
      %v1986 = vmul.f32 %v1316, %v1922
      %v1987 = vmul.f32 %v1365, %v1923
      %v1988 = vmul.f32 %v1414, %v1924
      %v1989 = vmul.f32 %v1270, %v1925
      %v1990 = vmul.f32 %v1319, %v1926
      %v1991 = vmul.f32 %v1368, %v1927
      %v1992 = vmul.f32 %v1417, %v1928
      %v1993 = vmul.f32 %v1272, %v1929
      %v1994 = vmul.f32 %v1321, %v1930
      %v1995 = vmul.f32 %v1370, %v1931
      %v1996 = vmul.f32 %v1419, %v1932
      %v1997 = vpack.c.bf16 %v1937, %v1933
      %v1998 = vpack.c.bf16 %v1938, %v1934
      %v1999 = vpack.c.bf16 %v1939, %v1935
      %v2000 = vpack.c.bf16 %v1940, %v1936
      %v2001 = vpack.c.bf16 %v1945, %v1941
      %v2002 = vpack.c.bf16 %v1946, %v1942
      %v2003 = vpack.c.bf16 %v1947, %v1943
      %v2004 = vpack.c.bf16 %v1948, %v1944
      %v2005 = vpack.c.bf16 %v1953, %v1949
      %v2006 = vpack.c.bf16 %v1954, %v1950
      %v2007 = vpack.c.bf16 %v1955, %v1951
      %v2008 = vpack.c.bf16 %v1956, %v1952
      %v2009 = vpack.c.bf16 %v1961, %v1957
      %v2010 = vpack.c.bf16 %v1962, %v1958
      %v2011 = vpack.c.bf16 %v1963, %v1959
      %v2012 = vpack.c.bf16 %v1964, %v1960
      %v2013 = vpack.c.bf16 %v1969, %v1965
      %v2014 = vpack.c.bf16 %v1970, %v1966
      %v2015 = vpack.c.bf16 %v1971, %v1967
      %v2016 = vpack.c.bf16 %v1972, %v1968
      %v2017 = vpack.c.bf16 %v1977, %v1973
      %v2018 = vpack.c.bf16 %v1978, %v1974
      %v2019 = vpack.c.bf16 %v1979, %v1975
      %v2020 = vpack.c.bf16 %v1980, %v1976
      %v2021 = vpack.c.bf16 %v1985, %v1981
      %v2022 = vpack.c.bf16 %v1986, %v1982
      %v2023 = vpack.c.bf16 %v1987, %v1983
      %v2024 = vpack.c.bf16 %v1988, %v1984
      %v2025 = vpack.c.bf16 %v1993, %v1989
      %v2026 = vpack.c.bf16 %v1994, %v1990
      %v2027 = vpack.c.bf16 %v1995, %v1991
      %v2028 = vpack.c.bf16 %v1996, %v1992
      %v2029 = vld [vmem:[%s8] sm:$0xf]
      %v2030 = vld [vmem:[%s8 + $0x4] sm:$0xf]
      %v2031 = vld [vmem:[%s8 + $0x8] sm:$0xf]
      %v2032 = vld [vmem:[%s8 + $0xc] sm:$0xf]
      %v2033 = vld [vmem:[%s8 + $0x10] sm:$0xf]
      %v2034 = vld [vmem:[%s8 + $0x14] sm:$0xf]
      %v2035 = vld [vmem:[%s8 + $0x18] sm:$0xf]
      %v2036 = vld [vmem:[%s8 + $0x1c] sm:$0xf]
      %v2037 = vld [vmem:[%s8 + $0x20] sm:$0xf]
      %v2038 = vld [vmem:[%s8 + $0x24] sm:$0xf]
      %v2039 = vld [vmem:[%s8 + $0x28] sm:$0xf]
      %v2040 = vld [vmem:[%s8 + $0x2c] sm:$0xf]
      %v2041 = vld [vmem:[%s8 + $0x30] sm:$0xf]
      %v2042 = vld [vmem:[%s8 + $0x34] sm:$0xf]
      %v2043 = vld [vmem:[%s8 + $0x38] sm:$0xf]
      %v2044 = vld [vmem:[%s8 + $0x3c] sm:$0xf]
      %v2045 = vld [vmem:[%s8 + $0x40] sm:$0xf]
      %v2046 = vld [vmem:[%s8 + $0x44] sm:$0xf]
      %v2047 = vld [vmem:[%s8 + $0x48] sm:$0xf]
      %v2048 = vld [vmem:[%s8 + $0x4c] sm:$0xf]
      %v2049 = vld [vmem:[%s8 + $0x50] sm:$0xf]
      %v2050 = vld [vmem:[%s8 + $0x54] sm:$0xf]
      %v2051 = vld [vmem:[%s8 + $0x58] sm:$0xf]
      %v2052 = vld [vmem:[%s8 + $0x5c] sm:$0xf]
      %v2053 = vld [vmem:[%s8 + $0x60] sm:$0xf]
      %v2054 = vld [vmem:[%s8 + $0x64] sm:$0xf]
      %v2055 = vld [vmem:[%s8 + $0x68] sm:$0xf]
      %v2056 = vld [vmem:[%s8 + $0x6c] sm:$0xf]
      %v2057 = vld [vmem:[%s8 + $0x70] sm:$0xf]
      %v2058 = vld [vmem:[%s8 + $0x74] sm:$0xf]
      %v2059 = vld [vmem:[%s8 + $0x78] sm:$0xf]
      %v2060 = vld [vmem:[%s8 + $0x7c] sm:$0xf]
      %v2061 = vld [vmem:[%s8 + $0x80] sm:$0xf]
      %v2062 = vld [vmem:[%s8 + $0x84] sm:$0xf]
      %v2063 = vld [vmem:[%s8 + $0x88] sm:$0xf]
      %v2064 = vld [vmem:[%s8 + $0x8c] sm:$0xf]
      %v2065 = vld [vmem:[%s8 + $0x90] sm:$0xf]
      %v2066 = vld [vmem:[%s8 + $0x94] sm:$0xf]
      %v2067 = vld [vmem:[%s8 + $0x98] sm:$0xf]
      %v2068 = vld [vmem:[%s8 + $0x9c] sm:$0xf]
      %v2069 = vld [vmem:[%s8 + $0xa0] sm:$0xf]
      %v2070 = vld [vmem:[%s8 + $0xa4] sm:$0xf]
      %v2071 = vld [vmem:[%s8 + $0xa8] sm:$0xf]
      %v2072 = vld [vmem:[%s8 + $0xac] sm:$0xf]
      %v2073 = vld [vmem:[%s8 + $0xb0] sm:$0xf]
      %v2074 = vld [vmem:[%s8 + $0xb4] sm:$0xf]
      %v2075 = vld [vmem:[%s8 + $0xb8] sm:$0xf]
      %v2076 = vld [vmem:[%s8 + $0xbc] sm:$0xf]
      %v2077 = vld [vmem:[%s8 + $0xc0] sm:$0xf]
      %v2078 = vld [vmem:[%s8 + $0xc4] sm:$0xf]
      %v2079 = vld [vmem:[%s8 + $0xc8] sm:$0xf]
      %v2080 = vld [vmem:[%s8 + $0xcc] sm:$0xf]
      %v2081 = vld [vmem:[%s8 + $0xd0] sm:$0xf]
      %v2082 = vld [vmem:[%s8 + $0xd4] sm:$0xf]
      %v2083 = vld [vmem:[%s8 + $0xd8] sm:$0xf]
      %v2084 = vld [vmem:[%s8 + $0xdc] sm:$0xf]
      %v2085 = vld [vmem:[%s8 + $0xe0] sm:$0xf]
      %v2086 = vld [vmem:[%s8 + $0xe4] sm:$0xf]
      %v2087 = vld [vmem:[%s8 + $0xe8] sm:$0xf]
      %v2088 = vld [vmem:[%s8 + $0xec] sm:$0xf]
      %v2089 = vld [vmem:[%s8 + $0xf0] sm:$0xf]
      %v2090 = vld [vmem:[%s8 + $0xf4] sm:$0xf]
      %v2091 = vld [vmem:[%s8 + $0xf8] sm:$0xf]
      %v2092 = vld [vmem:[%s8 + $0xfc] sm:$0xf]
      %v2093 = vld [vmem:[%s9] sm:$0x1]
      %v2095 = vperm.slane %v2093, 0
      %v2161 = vunpack.c.l.b16 %v2029
      %v2162 = vunpack.c.l.b16 %v2030
      %v2163 = vunpack.c.l.b16 %v2031
      %v2164 = vunpack.c.l.b16 %v2032
      %v2165 = vunpack.c.l.b16 %v2033
      %v2166 = vunpack.c.l.b16 %v2034
      %v2167 = vunpack.c.l.b16 %v2035
      %v2168 = vunpack.c.l.b16 %v2036
      %v2169 = vunpack.c.l.b16 %v2037
      %v2170 = vunpack.c.l.b16 %v2038
      %v2171 = vunpack.c.l.b16 %v2039
      %v2172 = vunpack.c.l.b16 %v2040
      %v2173 = vunpack.c.l.b16 %v2041
      %v2174 = vunpack.c.l.b16 %v2042
      %v2175 = vunpack.c.l.b16 %v2043
      %v2176 = vunpack.c.l.b16 %v2044
      %v2177 = vunpack.c.l.b16 %v2045
      %v2178 = vunpack.c.l.b16 %v2046
      %v2179 = vunpack.c.l.b16 %v2047
      %v2180 = vunpack.c.l.b16 %v2048
      %v2181 = vunpack.c.l.b16 %v2049
      %v2182 = vunpack.c.l.b16 %v2050
      %v2183 = vunpack.c.l.b16 %v2051
      %v2184 = vunpack.c.l.b16 %v2052
      %v2185 = vunpack.c.l.b16 %v2053
      %v2186 = vunpack.c.l.b16 %v2054
      %v2187 = vunpack.c.l.b16 %v2055
      %v2188 = vunpack.c.l.b16 %v2056
      %v2189 = vunpack.c.l.b16 %v2057
      %v2190 = vunpack.c.l.b16 %v2058
      %v2191 = vunpack.c.l.b16 %v2059
      %v2192 = vunpack.c.l.b16 %v2060
      %v2193 = vunpack.c.l.b16 %v2061
      %v2194 = vunpack.c.l.b16 %v2062
      %v2195 = vunpack.c.l.b16 %v2063
      %v2196 = vunpack.c.l.b16 %v2064
      %v2197 = vunpack.c.l.b16 %v2065
      %v2198 = vunpack.c.l.b16 %v2066
      %v2199 = vunpack.c.l.b16 %v2067
      %v2200 = vunpack.c.l.b16 %v2068
      %v2201 = vunpack.c.l.b16 %v2069
      %v2202 = vunpack.c.l.b16 %v2070
      %v2203 = vunpack.c.l.b16 %v2071
      %v2204 = vunpack.c.l.b16 %v2072
      %v2205 = vunpack.c.l.b16 %v2073
      %v2206 = vunpack.c.l.b16 %v2074
      %v2207 = vunpack.c.l.b16 %v2075
      %v2208 = vunpack.c.l.b16 %v2076
      %v2209 = vunpack.c.l.b16 %v2077
      %v2210 = vunpack.c.l.b16 %v2078
      %v2211 = vunpack.c.l.b16 %v2079
      %v2212 = vunpack.c.l.b16 %v2080
      %v2213 = vunpack.c.l.b16 %v2081
      %v2214 = vunpack.c.l.b16 %v2082
      %v2215 = vunpack.c.l.b16 %v2083
      %v2216 = vunpack.c.l.b16 %v2084
      %v2217 = vunpack.c.l.b16 %v2085
      %v2218 = vunpack.c.l.b16 %v2086
      %v2219 = vunpack.c.l.b16 %v2087
      %v2220 = vunpack.c.l.b16 %v2088
      %v2221 = vunpack.c.l.b16 %v2089
      %v2222 = vunpack.c.l.b16 %v2090
      %v2223 = vunpack.c.l.b16 %v2091
      %v2224 = vunpack.c.l.b16 %v2092
      %v2225 = vpack.c.b16 %v2162, %v2161
      %v2226 = vpack.c.b16 %v2164, %v2163
      %v2227 = vpack.c.b16 %v2166, %v2165
      %v2228 = vpack.c.b16 %v2168, %v2167
      %v2229 = vpack.c.b16 %v2170, %v2169
      %v2230 = vpack.c.b16 %v2172, %v2171
      %v2231 = vpack.c.b16 %v2174, %v2173
      %v2232 = vpack.c.b16 %v2176, %v2175
      %v2233 = vpack.c.b16 %v2178, %v2177
      %v2234 = vpack.c.b16 %v2180, %v2179
      %v2235 = vpack.c.b16 %v2182, %v2181
      %v2236 = vpack.c.b16 %v2184, %v2183
      %v2237 = vpack.c.b16 %v2186, %v2185
      %v2238 = vpack.c.b16 %v2188, %v2187
      %v2239 = vpack.c.b16 %v2190, %v2189
      %v2240 = vpack.c.b16 %v2192, %v2191
      %v2241 = vpack.c.b16 %v2194, %v2193
      %v2242 = vpack.c.b16 %v2196, %v2195
      %v2243 = vpack.c.b16 %v2198, %v2197
      %v2244 = vpack.c.b16 %v2200, %v2199
      %v2245 = vpack.c.b16 %v2202, %v2201
      %v2246 = vpack.c.b16 %v2204, %v2203
      %v2247 = vpack.c.b16 %v2206, %v2205
      %v2248 = vpack.c.b16 %v2208, %v2207
      %v2249 = vpack.c.b16 %v2210, %v2209
      %v2250 = vpack.c.b16 %v2212, %v2211
      %v2251 = vpack.c.b16 %v2214, %v2213
      %v2252 = vpack.c.b16 %v2216, %v2215
      %v2253 = vpack.c.b16 %v2218, %v2217
      %v2254 = vpack.c.b16 %v2220, %v2219
      %v2255 = vpack.c.b16 %v2222, %v2221
      %v2256 = vpack.c.b16 %v2224, %v2223
      %2289 = vmatpush.bf16.msra.mxu0 %v2232
      %2290 = vmatpush.bf16.msra.mxu0 %v2231
      %2291 = vmatpush.bf16.msra.mxu0 %v2230
      %2292 = vmatpush.bf16.msra.mxu0 %v2229
      %2293 = vmatpush.bf16.msra.mxu0 %v2228
      %2294 = vmatpush.bf16.msra.mxu0 %v2227
      %2295 = vmatpush.bf16.msra.mxu0 %v2226
      %2296 = vmatpush.bf16.msra.mxu0 %v2225
      %2297 = vmatmul.bf16.gmra.mxu0 %v1997
      %v2298 = vpop.f32.mrf.mxu0
      %v2299 = vadd.f32 %v2095, %v2298
      %v2300 = vpop.f32.mrf.mxu0
      %v2301 = vadd.f32 %v2095, %v2300
      %2302 = vmatmul.bf16.gmra.mxu0 %v2001
      %v2303 = vpop.f32.mrf.mxu0
      %v2304 = vadd.f32 %v2095, %v2303
      %v2305 = vpop.f32.mrf.mxu0
      %v2306 = vadd.f32 %v2095, %v2305
      %2307 = vmatmul.bf16.gmra.mxu0 %v2005
      %v2308 = vpop.f32.mrf.mxu0
      %v2309 = vadd.f32 %v2095, %v2308
      %v2310 = vpop.f32.mrf.mxu0
      %v2311 = vadd.f32 %v2095, %v2310
      %2312 = vmatmul.bf16.gmra.mxu0 %v2009
      %v2313 = vpop.f32.mrf.mxu0
      %v2314 = vadd.f32 %v2095, %v2313
      %v2315 = vpop.f32.mrf.mxu0
      %v2316 = vadd.f32 %v2095, %v2315
      %2317 = vmatmul.bf16.gmra.mxu0 %v2013
      %v2318 = vpop.f32.mrf.mxu0
      %v2319 = vadd.f32 %v2095, %v2318
      %v2320 = vpop.f32.mrf.mxu0
      %v2321 = vadd.f32 %v2095, %v2320
      %2322 = vmatmul.bf16.gmra.mxu0 %v2017
      %v2323 = vpop.f32.mrf.mxu0
      %v2324 = vadd.f32 %v2095, %v2323
      %v2325 = vpop.f32.mrf.mxu0
      %v2326 = vadd.f32 %v2095, %v2325
      %2327 = vmatmul.bf16.gmra.mxu0 %v2021
      %v2328 = vpop.f32.mrf.mxu0
      %v2329 = vadd.f32 %v2095, %v2328
      %v2330 = vpop.f32.mrf.mxu0
      %v2331 = vadd.f32 %v2095, %v2330
      %2332 = vmatmul.bf16.gmra.mxu0 %v2025
      %v2333 = vpop.f32.mrf.mxu0
      %v2334 = vadd.f32 %v2095, %v2333
      %v2335 = vpop.f32.mrf.mxu0
      %v2336 = vadd.f32 %v2095, %v2335
      %2337 = vdwg.mxu0
      %2338 = vmatpush.bf16.msra.mxu0 %v2240
      %2339 = vmatpush.bf16.msra.mxu0 %v2239
      %2340 = vmatpush.bf16.msra.mxu0 %v2238
      %2341 = vmatpush.bf16.msra.mxu0 %v2237
      %2342 = vmatpush.bf16.msra.mxu0 %v2236
      %2343 = vmatpush.bf16.msra.mxu0 %v2235
      %2344 = vmatpush.bf16.msra.mxu0 %v2234
      %2345 = vmatpush.bf16.msra.mxu0 %v2233
      %2346 = vmatmul.bf16.gmra.mxu0 %v1998
      %v2347 = vpop.f32.mrf.mxu0
      %v2348 = vadd.f32 %v2299, %v2347
      %v2349 = vpop.f32.mrf.mxu0
      %v2350 = vadd.f32 %v2301, %v2349
      %2351 = vmatmul.bf16.gmra.mxu0 %v2002
      %v2352 = vpop.f32.mrf.mxu0
      %v2353 = vadd.f32 %v2304, %v2352
      %v2354 = vpop.f32.mrf.mxu0
      %v2355 = vadd.f32 %v2306, %v2354
      %2356 = vmatmul.bf16.gmra.mxu0 %v2006
      %v2357 = vpop.f32.mrf.mxu0
      %v2358 = vadd.f32 %v2309, %v2357
      %v2359 = vpop.f32.mrf.mxu0
      %v2360 = vadd.f32 %v2311, %v2359
      %2361 = vmatmul.bf16.gmra.mxu0 %v2010
      %v2362 = vpop.f32.mrf.mxu0
      %v2363 = vadd.f32 %v2314, %v2362
      %v2364 = vpop.f32.mrf.mxu0
      %v2365 = vadd.f32 %v2316, %v2364
      %2366 = vmatmul.bf16.gmra.mxu0 %v2014
      %v2367 = vpop.f32.mrf.mxu0
      %v2368 = vadd.f32 %v2319, %v2367
      %v2369 = vpop.f32.mrf.mxu0
      %v2370 = vadd.f32 %v2321, %v2369
      %2371 = vmatmul.bf16.gmra.mxu0 %v2018
      %v2372 = vpop.f32.mrf.mxu0
      %v2373 = vadd.f32 %v2324, %v2372
      %v2374 = vpop.f32.mrf.mxu0
      %v2375 = vadd.f32 %v2326, %v2374
      %2376 = vmatmul.bf16.gmra.mxu0 %v2022
      %v2377 = vpop.f32.mrf.mxu0
      %v2378 = vadd.f32 %v2329, %v2377
      %v2379 = vpop.f32.mrf.mxu0
      %v2380 = vadd.f32 %v2331, %v2379
      %2381 = vmatmul.bf16.gmra.mxu0 %v2026
      %v2382 = vpop.f32.mrf.mxu0
      %v2383 = vadd.f32 %v2334, %v2382
      %v2384 = vpop.f32.mrf.mxu0
      %v2385 = vadd.f32 %v2336, %v2384
      %2386 = vdwg.mxu0
      %2387 = vmatpush.bf16.msra.mxu0 %v2248
      %2388 = vmatpush.bf16.msra.mxu0 %v2247
      %2389 = vmatpush.bf16.msra.mxu0 %v2246
      %2390 = vmatpush.bf16.msra.mxu0 %v2245
      %2391 = vmatpush.bf16.msra.mxu0 %v2244
      %2392 = vmatpush.bf16.msra.mxu0 %v2243
      %2393 = vmatpush.bf16.msra.mxu0 %v2242
      %2394 = vmatpush.bf16.msra.mxu0 %v2241
      %2395 = vmatmul.bf16.gmra.mxu0 %v1999
      %v2396 = vpop.f32.mrf.mxu0
      %v2397 = vadd.f32 %v2348, %v2396
      %v2398 = vpop.f32.mrf.mxu0
      %v2399 = vadd.f32 %v2350, %v2398
      %2400 = vmatmul.bf16.gmra.mxu0 %v2003
      %v2401 = vpop.f32.mrf.mxu0
      %v2402 = vadd.f32 %v2353, %v2401
      %v2403 = vpop.f32.mrf.mxu0
      %v2404 = vadd.f32 %v2355, %v2403
      %2405 = vmatmul.bf16.gmra.mxu0 %v2007
      %v2406 = vpop.f32.mrf.mxu0
      %v2407 = vadd.f32 %v2358, %v2406
      %v2408 = vpop.f32.mrf.mxu0
      %v2409 = vadd.f32 %v2360, %v2408
      %2410 = vmatmul.bf16.gmra.mxu0 %v2011
      %v2411 = vpop.f32.mrf.mxu0
      %v2412 = vadd.f32 %v2363, %v2411
      %v2413 = vpop.f32.mrf.mxu0
      %v2414 = vadd.f32 %v2365, %v2413
      %2415 = vmatmul.bf16.gmra.mxu0 %v2015
      %v2416 = vpop.f32.mrf.mxu0
      %v2417 = vadd.f32 %v2368, %v2416
      %v2418 = vpop.f32.mrf.mxu0
      %v2419 = vadd.f32 %v2370, %v2418
      %2420 = vmatmul.bf16.gmra.mxu0 %v2019
      %v2421 = vpop.f32.mrf.mxu0
      %v2422 = vadd.f32 %v2373, %v2421
      %v2423 = vpop.f32.mrf.mxu0
      %v2424 = vadd.f32 %v2375, %v2423
      %2425 = vmatmul.bf16.gmra.mxu0 %v2023
      %v2426 = vpop.f32.mrf.mxu0
      %v2427 = vadd.f32 %v2378, %v2426
      %v2428 = vpop.f32.mrf.mxu0
      %v2429 = vadd.f32 %v2380, %v2428
      %2430 = vmatmul.bf16.gmra.mxu0 %v2027
      %v2431 = vpop.f32.mrf.mxu0
      %v2432 = vadd.f32 %v2383, %v2431
      %v2433 = vpop.f32.mrf.mxu0
      %v2434 = vadd.f32 %v2385, %v2433
      %2435 = vdwg.mxu0
      %2436 = vmatpush.bf16.msra.mxu0 %v2256
      %2437 = vmatpush.bf16.msra.mxu0 %v2255
      %2438 = vmatpush.bf16.msra.mxu0 %v2254
      %2439 = vmatpush.bf16.msra.mxu0 %v2253
      %2440 = vmatpush.bf16.msra.mxu0 %v2252
      %2441 = vmatpush.bf16.msra.mxu0 %v2251
      %2442 = vmatpush.bf16.msra.mxu0 %v2250
      %2443 = vmatpush.bf16.msra.mxu0 %v2249
      %2444 = vmatmul.bf16.gmra.mxu0 %v2000
      %v2445 = vpop.f32.mrf.mxu0
      %v2446 = vadd.f32 %v2397, %v2445
      %v2447 = vpop.f32.mrf.mxu0
      %v2448 = vadd.f32 %v2399, %v2447
      %2449 = vmatmul.bf16.gmra.mxu0 %v2004
      %v2450 = vpop.f32.mrf.mxu0
      %v2451 = vadd.f32 %v2402, %v2450
      %v2452 = vpop.f32.mrf.mxu0
      %v2453 = vadd.f32 %v2404, %v2452
      %2454 = vmatmul.bf16.gmra.mxu0 %v2008
      %v2455 = vpop.f32.mrf.mxu0
      %v2456 = vadd.f32 %v2407, %v2455
      %v2457 = vpop.f32.mrf.mxu0
      %v2458 = vadd.f32 %v2409, %v2457
      %2459 = vmatmul.bf16.gmra.mxu0 %v2012
      %v2460 = vpop.f32.mrf.mxu0
      %v2461 = vadd.f32 %v2412, %v2460
      %v2462 = vpop.f32.mrf.mxu0
      %v2463 = vadd.f32 %v2414, %v2462
      %2464 = vmatmul.bf16.gmra.mxu0 %v2016
      %v2465 = vpop.f32.mrf.mxu0
      %v2466 = vadd.f32 %v2417, %v2465
      %v2467 = vpop.f32.mrf.mxu0
      %v2468 = vadd.f32 %v2419, %v2467
      %2469 = vmatmul.bf16.gmra.mxu0 %v2020
      %v2470 = vpop.f32.mrf.mxu0
      %v2471 = vadd.f32 %v2422, %v2470
      %v2472 = vpop.f32.mrf.mxu0
      %v2473 = vadd.f32 %v2424, %v2472
      %2474 = vmatmul.bf16.gmra.mxu0 %v2024
      %v2475 = vpop.f32.mrf.mxu0
      %v2476 = vadd.f32 %v2427, %v2475
      %v2477 = vpop.f32.mrf.mxu0
      %v2478 = vadd.f32 %v2429, %v2477
      %2479 = vmatmul.bf16.gmra.mxu0 %v2028
      %v2480 = vpop.f32.mrf.mxu0
      %v2481 = vadd.f32 %v2432, %v2480
      %v2482 = vpop.f32.mrf.mxu0
      %v2483 = vadd.f32 %v2434, %v2482
      %2484 = vdwg.mxu0
      %v2485 = vadd.f32 %v632, %v2446
      %v2486 = vadd.f32 %v633, %v2448
      %v2487 = vadd.f32 %v634, %v2451
      %v2488 = vadd.f32 %v635, %v2453
      %v2489 = vadd.f32 %v636, %v2456
      %v2490 = vadd.f32 %v637, %v2458
      %v2491 = vadd.f32 %v638, %v2461
      %v2492 = vadd.f32 %v639, %v2463
      %v2493 = vadd.f32 %v640, %v2466
      %v2494 = vadd.f32 %v641, %v2468
      %v2495 = vadd.f32 %v642, %v2471
      %v2496 = vadd.f32 %v643, %v2473
      %v2497 = vadd.f32 %v644, %v2476
      %v2498 = vadd.f32 %v645, %v2478
      %v2499 = vadd.f32 %v646, %v2481
      %v2500 = vadd.f32 %v647, %v2483
      %2501 = vst [vmem:[%s433] sm:$0xff] %v2485
      %2502 = vst [vmem:[%s433 + $0x8] sm:$0xff] %v2486
      %2503 = vst [vmem:[%s433 + $0x10] sm:$0xff] %v2487
      %2504 = vst [vmem:[%s433 + $0x18] sm:$0xff] %v2488
      %2505 = vst [vmem:[%s433 + $0x20] sm:$0xff] %v2489
      %2506 = vst [vmem:[%s433 + $0x28] sm:$0xff] %v2490
      %2507 = vst [vmem:[%s433 + $0x30] sm:$0xff] %v2491
      %2508 = vst [vmem:[%s433 + $0x38] sm:$0xff] %v2492
      %2509 = vst [vmem:[%s433 + $0x40] sm:$0xff] %v2493
      %2510 = vst [vmem:[%s433 + $0x48] sm:$0xff] %v2494
      %2511 = vst [vmem:[%s433 + $0x50] sm:$0xff] %v2495
      %2512 = vst [vmem:[%s433 + $0x58] sm:$0xff] %v2496
      %2513 = vst [vmem:[%s433 + $0x60] sm:$0xff] %v2497
      %2514 = vst [vmem:[%s433 + $0x68] sm:$0xff] %v2498
      %2515 = vst [vmem:[%s433 + $0x70] sm:$0xff] %v2499
      %2516 = vst [vmem:[%s433 + $0x78] sm:$0xff] %v2500
      %s2517 = smul.u32 16, %s26
      %p2518 = scmp.lt.s32.totalorder %s25, 1
      %s2519 = scalar_select %p2518, %s25, 1
      %p2520 = scmp.lt.s32.totalorder %s2517, 15
      %s2521 = scalar_select %p2520, %s2517, 15
      %s2522 = smul.addr %s2519, 16
      %s2523 = sadd.s32 %s2521, %s2522
      %s2524 = smul.addr %s2523, 8
      %s2525 = scalar_lea.vmem %s10, %s2524
      // Predicated region
      $region61: #{transformer_forward.9} parent=59 // pred_check
        %p2526 = pneg %p277
      $region62: #{transformer_forward.9} parent=59 // pred_check_branch
        %2528 = sbr.rel (%p2526) target = $region64
      $region63: #{transformer_forward.9} parent=59 // pred_region
        %s2529 = smul.u32 16, %s26
      $region64: #{transformer_forward.9} parent=59 // pred_fallthru
        _
    $region60: #{transformer_forward.9} parent=5 // pred_fallthru
      _
    %p2530 = scmp.le.s32.totalorder 2, %s16
    // Predicated region
    $region65: #{transformer_forward.9} parent=5 // pred_check
      %p2531 = pneg %p2530
    $region66: #{transformer_forward.9} parent=5 // pred_check_branch
      %2533 = sbr.rel (%p2531) target = $region68
    $region67: #{transformer_forward.9} parent=5 // pred_region
      %s2534 = ssub.s32 %s16, 2
      // Predicated region
      $region69: #{transformer_forward.9} parent=67 // pred_check
        %p2535 = pneg %p283
      $region70: #{transformer_forward.9} parent=67 // pred_check_branch
        %2537 = sbr.rel (%p2535) target = $region72
      $region71: #{transformer_forward.9} parent=67 // pred_region
        %s2538 = smul.u32 16, %s28
        %p2539 = scmp.lt.s32.totalorder %s27, 1
        %s2540 = scalar_select %p2539, %s27, 1
        %p2541 = scmp.lt.s32.totalorder %s2538, 15
        %s2542 = scalar_select %p2541, %s2538, 15
        %s2543 = smul.addr %s2540, 16
        %s2544 = sadd.s32 %s2542, %s2543
        %s2545 = smul.addr %s2544, 8
        %s2546 = scalar_lea.vmem %s10, %s2545
      $region72: #{transformer_forward.9} parent=67 // pred_fallthru
        _
    $region68: #{transformer_forward.9} parent=5 // pred_fallthru
      _
  $region6: #{transformer_forward.9} parent=0 // loop_footer
    %s20 = sadd.s32 1, %s16
  $region7: #{transformer_forward.9} parent=0 // loop_footer_branch
    %15 = sbr.rel target = $region3
  $region8: #{transformer_forward.9} parent=0 // loop_exit
    _

// kernel: transformer_forward.8
$region0: #{transformer_forward.8}
  #allocation0 [shape = 'u32[]', space=smem, size = 0x4, offset = 0x4, fixed_abs, tag = 'smem constant byte address 0x4 - core index']
  #allocation1 [shape = 'u32[72,128]{1,0:T(1,128)}', space=vmem, size = 0x9000, scoped, tag = 'internal scratch']
  #allocation2 [shape = 'f32[4,128,1]{2,1,0:T(8,128)}', space=vmem, size = 0x40000, scoped, tag = 'scratch operand']
  #allocation3 [shape = 'f32[4,128,1]{2,1,0:T(8,128)}', space=vmem, size = 0x40000, scoped, tag = 'scratch operand']
  #allocation4 [shape = 'f32[4,128,32]{2,1,0:T(8,128)}', space=vmem, size = 0x40000, scoped, tag = 'scratch operand']
  %s0 = inlined_call_operand.vmem [shape: bf16[2,4,128,32], index: 0, kind: input, shape index: {}]
  %s1 = inlined_call_operand.vmem [shape: bf16[2,4,128,32], index: 1, kind: input, shape index: {}]
  %s2 = inlined_call_operand.vmem [shape: bf16[2,4,128,32], index: 2, kind: input, shape index: {}]
  %s3 = inlined_call_operand.vmem [shape: bf16[2,4,128,32], index: 3, kind: output, shape index: {}]
  %s4 = sld [smem:[#allocation0]]
  $region57: #{transformer_forward.8} parent=0
    _
  %s6 = ssub.s32 1, %s4
  %s7 = scalar_select 0, %s6, %s4
  loop: start=0, step=1, limit=4
  $region2: #{transformer_forward.8} parent=0 // loop_pre_header
    _
  $region3: #{transformer_forward.8} parent=0 // loop_header
    %s9 = sphi 0, %s13
    %p10 = scmp.ge.s32.totalorder %s9, 4
    %s16 = sphi 0, %s35
    %s17 = sphi 0, %s31
    %s18 = sphi 0, %s27
    %s19 = sphi 0, %s16
    %s20 = sphi 0, %s17
    %s21 = sphi 0, %s18
    %s22 = sphi 0, %s19
    %s23 = sphi 0, %s20
    %s24 = sphi 0, %s21
    %s40 = sphi 0, %s42
    %s43 = sphi 0, %s40
    %s44 = sphi 0, %s43
    %s60 = sphi 0, %s44
    %s68 = sphi 0, %s70
    %s71 = sphi 0, %s68
    %s72 = sphi 0, %s71
    %s88 = sphi 0, %s72
    %s96 = sphi 0, %s98
    %s99 = sphi 0, %s96
    %s100 = sphi 0, %s99
    %s116 = sphi 0, %s100
    %s124 = sphi 0, %s126
    %s127 = sphi 0, %s124
    %s128 = sphi 0, %s127
    %s144 = sphi 0, %s128
  $region4: #{transformer_forward.8} parent=0 // loop_header_branch
    %12 = sbr.rel (%p10) target = $region8
  $region5: #{transformer_forward.8} parent=0 // loop_body
    %s14 = ssub.s32 %s9, 1
    %s15 = ssub.s32 %s9, 2
    %s25 = sadd.s32 1, %s18
    %p26 = scmp.ge.s32.totalorder %s25, 1
    %s27 = scalar_select %p26, 0, %s25
    %s28 = sadd.s32 1, %s17
    %s29 = scalar_select %p26, %s28, %s17
    %p30 = scmp.ge.s32.totalorder %s29, 1
    %s31 = scalar_select %p30, 0, %s29
    %s32 = sadd.s32 1, %s16
    %s33 = scalar_select %p30, %s32, %s16
    %p34 = scmp.ge.s32.totalorder %s33, 2
    %s35 = scalar_select %p34, 0, %s33
    %s36 = ssub.s32 %s16, %s35
    %s37 = ssub.s32 %s17, %s31
    %s38 = sor.u32 %s36, %s37
    %p39 = scmp.eq.s32.totalorder %s38, 0
    %s41 = sadd.s32 %s40, 1
    %s42 = scalar_select %p39, %s40, %s41
    %p45 = pneg %p39
    %p46 = scmp.eq.s32.totalorder %s9, 1
    %p47 = por %p45, %p46
    %p48 = scmp.ne.s32.totalorder %s40, %s43
    %p49 = scmp.eq.s32.totalorder %s9, 0
    %p50 = por %p48, %p49
    %p51 = scmp.ne.s32.totalorder %s40, %s43
    %p52 = scmp.eq.s32.totalorder %s14, 1
    %p53 = por %p51, %p52
    %p54 = scmp.ne.s32.totalorder %s43, %s44
    %p55 = scmp.eq.s32.totalorder %s14, 0
    %p56 = por %p54, %p55
    %p57 = scmp.ne.s32.totalorder %s43, %s44
    %p58 = scmp.eq.s32.totalorder %s15, 1
    %p59 = por %p57, %p58
    %p61 = scmp.ne.s32.totalorder %s44, %s60
    %p62 = scmp.eq.s32.totalorder %s15, 0
    %p63 = por %p61, %p62
    %s64 = ssub.s32 %s16, %s35
    %s65 = ssub.s32 %s18, %s27
    %s66 = sor.u32 %s64, %s65
    %p67 = scmp.eq.s32.totalorder %s66, 0
    %s69 = sadd.s32 %s68, 1
    %s70 = scalar_select %p67, %s68, %s69
    %p73 = pneg %p67
    %p74 = scmp.eq.s32.totalorder %s9, 1
    %p75 = por %p73, %p74
    %p76 = scmp.ne.s32.totalorder %s68, %s71
    %p77 = scmp.eq.s32.totalorder %s9, 0
    %p78 = por %p76, %p77
    %p79 = scmp.ne.s32.totalorder %s68, %s71
    %p80 = scmp.eq.s32.totalorder %s14, 1
    %p81 = por %p79, %p80
    %p82 = scmp.ne.s32.totalorder %s71, %s72
    %p83 = scmp.eq.s32.totalorder %s14, 0
    %p84 = por %p82, %p83
    %p85 = scmp.ne.s32.totalorder %s71, %s72
    %p86 = scmp.eq.s32.totalorder %s15, 1
    %p87 = por %p85, %p86
    %p89 = scmp.ne.s32.totalorder %s72, %s88
    %p90 = scmp.eq.s32.totalorder %s15, 0
    %p91 = por %p89, %p90
    %s92 = ssub.s32 %s16, %s35
    %s93 = ssub.s32 %s18, %s27
    %s94 = sor.u32 %s92, %s93
    %p95 = scmp.eq.s32.totalorder %s94, 0
    %s97 = sadd.s32 %s96, 1
    %s98 = scalar_select %p95, %s96, %s97
    %p101 = pneg %p95
    %p102 = scmp.eq.s32.totalorder %s9, 1
    %p103 = por %p101, %p102
    %p104 = scmp.ne.s32.totalorder %s96, %s99
    %p105 = scmp.eq.s32.totalorder %s9, 0
    %p106 = por %p104, %p105
    %p107 = scmp.ne.s32.totalorder %s96, %s99
    %p108 = scmp.eq.s32.totalorder %s14, 1
    %p109 = por %p107, %p108
    %p110 = scmp.ne.s32.totalorder %s99, %s100
    %p111 = scmp.eq.s32.totalorder %s14, 0
    %p112 = por %p110, %p111
    %p113 = scmp.ne.s32.totalorder %s99, %s100
    %p114 = scmp.eq.s32.totalorder %s15, 1
    %p115 = por %p113, %p114
    %p117 = scmp.ne.s32.totalorder %s100, %s116
    %p118 = scmp.eq.s32.totalorder %s15, 0
    %p119 = por %p117, %p118
    %s120 = ssub.s32 %s16, %s35
    %s121 = ssub.s32 %s17, %s31
    %s122 = sor.u32 %s120, %s121
    %p123 = scmp.eq.s32.totalorder %s122, 0
    %s125 = sadd.s32 %s124, 1
    %s126 = scalar_select %p123, %s124, %s125
    %p129 = pneg %p123
    %p130 = scmp.eq.s32.totalorder %s9, 1
    %p131 = por %p129, %p130
    %p132 = scmp.ne.s32.totalorder %s124, %s127
    %p133 = scmp.eq.s32.totalorder %s9, 0
    %p134 = por %p132, %p133
    %p135 = scmp.ne.s32.totalorder %s124, %s127
    %p136 = scmp.eq.s32.totalorder %s14, 1
    %p137 = por %p135, %p136
    %p138 = scmp.ne.s32.totalorder %s127, %s128
    %p139 = scmp.eq.s32.totalorder %s14, 0
    %p140 = por %p138, %p139
    %p141 = scmp.ne.s32.totalorder %s127, %s128
    %p142 = scmp.eq.s32.totalorder %s15, 1
    %p143 = por %p141, %p142
    %p145 = scmp.ne.s32.totalorder %s128, %s144
    %p146 = scmp.eq.s32.totalorder %s15, 0
    %p147 = por %p145, %p146
    %p148 = scmp.le.s32.totalorder 1, %s9
    %p149 = scmp.lt.s32.totalorder %s9, 3
    %p150 = pnand %p148, %p149
    %p151 = pneg %p150
    // Predicated region
    $region9: #{transformer_forward.8} parent=5 // pred_check
      _
    $region10: #{transformer_forward.8} parent=5 // pred_check_branch
      %153 = sbr.rel (%p150) target = $region12
    $region11: #{transformer_forward.8} parent=5 // pred_region
      %s154 = ssub.s32 %s9, 1
    $region12: #{transformer_forward.8} parent=5 // pred_fallthru
      _
    %p155 = scmp.lt.s32.totalorder %s9, 2
    // Predicated region
    $region13: #{transformer_forward.8} parent=5 // pred_check
      %p156 = pneg %p155
    $region14: #{transformer_forward.8} parent=5 // pred_check_branch
      %158 = sbr.rel (%p156) target = $region16
    $region15: #{transformer_forward.8} parent=5 // pred_region
      // Predicated region
      $region17: #{transformer_forward.8} parent=15 // pred_check
        %p159 = pneg %p50
      $region18: #{transformer_forward.8} parent=15 // pred_check_branch
        %161 = sbr.rel (%p159) target = $region20
      $region19: #{transformer_forward.8} parent=15 // pred_region
        %s162 = smul.u32 16, %s17
        %p163 = scmp.lt.s32.totalorder %s16, 1
        %s164 = scalar_select %p163, %s16, 1
        %p165 = scmp.lt.s32.totalorder %s162, 15
        %s166 = scalar_select %p165, %s162, 15
        %s167 = smul.addr %s164, 64
        %s168 = sadd.s32 %s166, %s167
        %s169 = smul.addr %s168, 4
        %s170 = scalar_lea.vmem %s0, %s169
        %s171 = smul.u32 16, %s17
      $region20: #{transformer_forward.8} parent=15 // pred_fallthru
        _
      // Predicated region
      $region21: #{transformer_forward.8} parent=15 // pred_check
        %p172 = pneg %p78
      $region22: #{transformer_forward.8} parent=15 // pred_check_branch
        %174 = sbr.rel (%p172) target = $region24
      $region23: #{transformer_forward.8} parent=15 // pred_region
        %s175 = smul.u32 16, %s18
        %p176 = scmp.lt.s32.totalorder %s16, 1
        %s177 = scalar_select %p176, %s16, 1
        %p178 = scmp.lt.s32.totalorder %s175, 15
        %s179 = scalar_select %p178, %s175, 15
        %s180 = smul.addr %s177, 64
        %s181 = sadd.s32 %s179, %s180
        %s182 = smul.addr %s181, 4
        %s183 = scalar_lea.vmem %s1, %s182
        %s184 = smul.u32 16, %s18
      $region24: #{transformer_forward.8} parent=15 // pred_fallthru
        _
      // Predicated region
      $region25: #{transformer_forward.8} parent=15 // pred_check
        %p185 = pneg %p106
      $region26: #{transformer_forward.8} parent=15 // pred_check_branch
        %187 = sbr.rel (%p185) target = $region28
      $region27: #{transformer_forward.8} parent=15 // pred_region
        %s188 = smul.u32 16, %s18
        %p189 = scmp.lt.s32.totalorder %s16, 1
        %s190 = scalar_select %p189, %s16, 1
        %p191 = scmp.lt.s32.totalorder %s188, 15
        %s192 = scalar_select %p191, %s188, 15
        %s193 = smul.addr %s190, 64
        %s194 = sadd.s32 %s192, %s193
        %s195 = smul.addr %s194, 4
        %s196 = scalar_lea.vmem %s2, %s195
        %s197 = smul.u32 16, %s18
      $region28: #{transformer_forward.8} parent=15 // pred_fallthru
        _
    $region16: #{transformer_forward.8} parent=5 // pred_fallthru
      _
    %p198 = scmp.le.s32.totalorder 1, %s9
    %p199 = scmp.lt.s32.totalorder %s9, 3
    %p200 = pnand %p198, %p199
    %p201 = pneg %p200
    // Predicated region
    $region29: #{transformer_forward.8} parent=5 // pred_check
      _
    $region30: #{transformer_forward.8} parent=5 // pred_check_branch
      %203 = sbr.rel (%p200) target = $region32
    $region31: #{transformer_forward.8} parent=5 // pred_region
      %s204 = ssub.s32 %s9, 1
      %s205 = smul.u32 16, %s20
      %p206 = scmp.lt.s32.totalorder %s19, 1
      %s207 = scalar_select %p206, %s19, 1
      %p208 = scmp.lt.s32.totalorder %s205, 15
      %s209 = scalar_select %p208, %s205, 15
      %s210 = smul.addr %s207, 64
      %s211 = sadd.s32 %s209, %s210
      %s212 = smul.addr %s211, 4
      %s213 = scalar_lea.vmem %s0, %s212
      %p214 = pneg %p56
      %p215 = pneg %p53
      %s216 = smul.u32 16, %s21
      %p217 = scmp.lt.s32.totalorder %s19, 1
      %s218 = scalar_select %p217, %s19, 1
      %p219 = scmp.lt.s32.totalorder %s216, 15
      %s220 = scalar_select %p219, %s216, 15
      %s221 = smul.addr %s218, 64
      %s222 = sadd.s32 %s220, %s221
      %s223 = smul.addr %s222, 4
      %s224 = scalar_lea.vmem %s1, %s223
      %p225 = pneg %p84
      %p226 = pneg %p81
      %s227 = smul.u32 16, %s21
      %p228 = scmp.lt.s32.totalorder %s19, 1
      %s229 = scalar_select %p228, %s19, 1
      %p230 = scmp.lt.s32.totalorder %s227, 15
      %s231 = scalar_select %p230, %s227, 15
      %s232 = smul.addr %s229, 64
      %s233 = sadd.s32 %s231, %s232
      %s234 = smul.addr %s233, 4
      %s235 = scalar_lea.vmem %s2, %s234
      %p236 = pneg %p112
      %p237 = pneg %p109
      %p238 = pneg %p140
      %p239 = pneg %p137
      %s240 = smul.u32 16, %s20
      %p241 = scmp.lt.s32.totalorder %s19, 1
      %s242 = scalar_select %p241, %s19, 1
      %p243 = scmp.lt.s32.totalorder %s240, 15
      %s244 = scalar_select %p243, %s240, 15
      %s245 = smul.addr %s242, 64
      %s246 = sadd.s32 %s244, %s245
      %s247 = smul.addr %s246, 4
      %s248 = scalar_lea.vmem %s3, %s247
      %s249 = smul.u32 16, %s20
      %p250 = scmp.lt.s32.totalorder %s19, 1
      %s251 = scalar_select %p250, %s19, 1
      %p252 = scmp.lt.s32.totalorder %s249, 15
      %s253 = scalar_select %p252, %s249, 15
      %s254 = smul.addr %s251, 64
      %s255 = sadd.s32 %s253, %s254
      %s256 = smul.addr %s255, 4
      %s257 = scalar_lea.vmem %s0, %s256
      %s258 = smul.u32 16, %s20
      %s259 = smul.u32 16, %s21
      %p260 = scmp.lt.s32.totalorder %s19, 1
      %s261 = scalar_select %p260, %s19, 1
      %p262 = scmp.lt.s32.totalorder %s259, 15
      %s263 = scalar_select %p262, %s259, 15
      %s264 = smul.addr %s261, 64
      %s265 = sadd.s32 %s263, %s264
      %s266 = smul.addr %s265, 4
      %s267 = scalar_lea.vmem %s1, %s266
      %s268 = smul.u32 16, %s21
      %s269 = smul.u32 16, %s21
      %p270 = scmp.lt.s32.totalorder %s19, 1
      %s271 = scalar_select %p270, %s19, 1
      %p272 = scmp.lt.s32.totalorder %s269, 15
      %s273 = scalar_select %p272, %s269, 15
      %s274 = smul.addr %s271, 64
      %s275 = sadd.s32 %s273, %s274
      %s276 = smul.addr %s275, 4
      %s277 = scalar_lea.vmem %s2, %s276
      %s278 = smul.u32 16, %s21
      %s279 = smul.u32 16, %s20
      %p280 = scmp.lt.s32.totalorder %s19, 1
      %s281 = scalar_select %p280, %s19, 1
      %p282 = scmp.lt.s32.totalorder %s279, 15
      %s283 = scalar_select %p282, %s279, 15
      %s284 = smul.addr %s281, 64
      %s285 = sadd.s32 %s283, %s284
      %s286 = smul.addr %s285, 4
      %s287 = scalar_lea.vmem %s3, %s286
      %s288 = smul.u32 16, %s20
      %p289 = scmp.eq.s32.totalorder %s21, 0
      // Predicated region
      $region33: #{transformer_forward.8} parent=31 // pred_check
        %p290 = pneg %p289
      $region34: #{transformer_forward.8} parent=31 // pred_check_branch
        %292 = sbr.rel (%p290) target = $region36
      $region35: #{transformer_forward.8} parent=31 // pred_region
        %vm293 = vcmask 7168
        %294 = vst.msk [vmem:[#allocation2] sm:$0xff] %vm293, -inf
        %295 = vst.msk [vmem:[#allocation2 + $0x8] sm:$0xff] %vm293, -inf
        %296 = vst.msk [vmem:[#allocation2 + $0x10] sm:$0xff] %vm293, -inf
        %297 = vst.msk [vmem:[#allocation2 + $0x18] sm:$0xff] %vm293, -inf
        %298 = vst.msk [vmem:[#allocation2 + $0x20] sm:$0xff] %vm293, -inf
        %299 = vst.msk [vmem:[#allocation2 + $0x28] sm:$0xff] %vm293, -inf
        %300 = vst.msk [vmem:[#allocation2 + $0x30] sm:$0xff] %vm293, -inf
        %301 = vst.msk [vmem:[#allocation2 + $0x38] sm:$0xff] %vm293, -inf
        %302 = vst.msk [vmem:[#allocation2 + $0x40] sm:$0xff] %vm293, -inf
        %303 = vst.msk [vmem:[#allocation2 + $0x48] sm:$0xff] %vm293, -inf
        %304 = vst.msk [vmem:[#allocation2 + $0x50] sm:$0xff] %vm293, -inf
        %305 = vst.msk [vmem:[#allocation2 + $0x58] sm:$0xff] %vm293, -inf
        %306 = vst.msk [vmem:[#allocation2 + $0x60] sm:$0xff] %vm293, -inf
        %307 = vst.msk [vmem:[#allocation2 + $0x68] sm:$0xff] %vm293, -inf
        %308 = vst.msk [vmem:[#allocation2 + $0x70] sm:$0xff] %vm293, -inf
        %309 = vst.msk [vmem:[#allocation2 + $0x78] sm:$0xff] %vm293, -inf
        %310 = vst.msk [vmem:[#allocation2 + $0x80] sm:$0xff] %vm293, -inf
        %311 = vst.msk [vmem:[#allocation2 + $0x88] sm:$0xff] %vm293, -inf
        %312 = vst.msk [vmem:[#allocation2 + $0x90] sm:$0xff] %vm293, -inf
        %313 = vst.msk [vmem:[#allocation2 + $0x98] sm:$0xff] %vm293, -inf
        %314 = vst.msk [vmem:[#allocation2 + $0xa0] sm:$0xff] %vm293, -inf
        %315 = vst.msk [vmem:[#allocation2 + $0xa8] sm:$0xff] %vm293, -inf
        %316 = vst.msk [vmem:[#allocation2 + $0xb0] sm:$0xff] %vm293, -inf
        %317 = vst.msk [vmem:[#allocation2 + $0xb8] sm:$0xff] %vm293, -inf
        %318 = vst.msk [vmem:[#allocation2 + $0xc0] sm:$0xff] %vm293, -inf
        %319 = vst.msk [vmem:[#allocation2 + $0xc8] sm:$0xff] %vm293, -inf
        %320 = vst.msk [vmem:[#allocation2 + $0xd0] sm:$0xff] %vm293, -inf
        %321 = vst.msk [vmem:[#allocation2 + $0xd8] sm:$0xff] %vm293, -inf
        %322 = vst.msk [vmem:[#allocation2 + $0xe0] sm:$0xff] %vm293, -inf
        %323 = vst.msk [vmem:[#allocation2 + $0xe8] sm:$0xff] %vm293, -inf
        %324 = vst.msk [vmem:[#allocation2 + $0xf0] sm:$0xff] %vm293, -inf
        %325 = vst.msk [vmem:[#allocation2 + $0xf8] sm:$0xff] %vm293, -inf
        %326 = vst.msk [vmem:[#allocation2 + $0x100] sm:$0xff] %vm293, -inf
        %327 = vst.msk [vmem:[#allocation2 + $0x108] sm:$0xff] %vm293, -inf
        %328 = vst.msk [vmem:[#allocation2 + $0x110] sm:$0xff] %vm293, -inf
        %329 = vst.msk [vmem:[#allocation2 + $0x118] sm:$0xff] %vm293, -inf
        %330 = vst.msk [vmem:[#allocation2 + $0x120] sm:$0xff] %vm293, -inf
        %331 = vst.msk [vmem:[#allocation2 + $0x128] sm:$0xff] %vm293, -inf
        %332 = vst.msk [vmem:[#allocation2 + $0x130] sm:$0xff] %vm293, -inf
        %333 = vst.msk [vmem:[#allocation2 + $0x138] sm:$0xff] %vm293, -inf
        %334 = vst.msk [vmem:[#allocation2 + $0x140] sm:$0xff] %vm293, -inf
        %335 = vst.msk [vmem:[#allocation2 + $0x148] sm:$0xff] %vm293, -inf
        %336 = vst.msk [vmem:[#allocation2 + $0x150] sm:$0xff] %vm293, -inf
        %337 = vst.msk [vmem:[#allocation2 + $0x158] sm:$0xff] %vm293, -inf
        %338 = vst.msk [vmem:[#allocation2 + $0x160] sm:$0xff] %vm293, -inf
        %339 = vst.msk [vmem:[#allocation2 + $0x168] sm:$0xff] %vm293, -inf
        %340 = vst.msk [vmem:[#allocation2 + $0x170] sm:$0xff] %vm293, -inf
        %341 = vst.msk [vmem:[#allocation2 + $0x178] sm:$0xff] %vm293, -inf
        %342 = vst.msk [vmem:[#allocation2 + $0x180] sm:$0xff] %vm293, -inf
        %343 = vst.msk [vmem:[#allocation2 + $0x188] sm:$0xff] %vm293, -inf
        %344 = vst.msk [vmem:[#allocation2 + $0x190] sm:$0xff] %vm293, -inf
        %345 = vst.msk [vmem:[#allocation2 + $0x198] sm:$0xff] %vm293, -inf
        %346 = vst.msk [vmem:[#allocation2 + $0x1a0] sm:$0xff] %vm293, -inf
        %347 = vst.msk [vmem:[#allocation2 + $0x1a8] sm:$0xff] %vm293, -inf
        %348 = vst.msk [vmem:[#allocation2 + $0x1b0] sm:$0xff] %vm293, -inf
        %349 = vst.msk [vmem:[#allocation2 + $0x1b8] sm:$0xff] %vm293, -inf
        %350 = vst.msk [vmem:[#allocation2 + $0x1c0] sm:$0xff] %vm293, -inf
        %351 = vst.msk [vmem:[#allocation2 + $0x1c8] sm:$0xff] %vm293, -inf
        %352 = vst.msk [vmem:[#allocation2 + $0x1d0] sm:$0xff] %vm293, -inf
        %353 = vst.msk [vmem:[#allocation2 + $0x1d8] sm:$0xff] %vm293, -inf
        %354 = vst.msk [vmem:[#allocation2 + $0x1e0] sm:$0xff] %vm293, -inf
        %355 = vst.msk [vmem:[#allocation2 + $0x1e8] sm:$0xff] %vm293, -inf
        %356 = vst.msk [vmem:[#allocation2 + $0x1f0] sm:$0xff] %vm293, -inf
        %357 = vst.msk [vmem:[#allocation2 + $0x1f8] sm:$0xff] %vm293, -inf
        %358 = vst.msk [vmem:[#allocation3] sm:$0xff] %vm293, 0.0
        %359 = vst.msk [vmem:[#allocation3 + $0x8] sm:$0xff] %vm293, 0.0
        %360 = vst.msk [vmem:[#allocation3 + $0x10] sm:$0xff] %vm293, 0.0
        %361 = vst.msk [vmem:[#allocation3 + $0x18] sm:$0xff] %vm293, 0.0
        %362 = vst.msk [vmem:[#allocation3 + $0x20] sm:$0xff] %vm293, 0.0
        %363 = vst.msk [vmem:[#allocation3 + $0x28] sm:$0xff] %vm293, 0.0
        %364 = vst.msk [vmem:[#allocation3 + $0x30] sm:$0xff] %vm293, 0.0
        %365 = vst.msk [vmem:[#allocation3 + $0x38] sm:$0xff] %vm293, 0.0
        %366 = vst.msk [vmem:[#allocation3 + $0x40] sm:$0xff] %vm293, 0.0
        %367 = vst.msk [vmem:[#allocation3 + $0x48] sm:$0xff] %vm293, 0.0
        %368 = vst.msk [vmem:[#allocation3 + $0x50] sm:$0xff] %vm293, 0.0
        %369 = vst.msk [vmem:[#allocation3 + $0x58] sm:$0xff] %vm293, 0.0
        %370 = vst.msk [vmem:[#allocation3 + $0x60] sm:$0xff] %vm293, 0.0
        %371 = vst.msk [vmem:[#allocation3 + $0x68] sm:$0xff] %vm293, 0.0
        %372 = vst.msk [vmem:[#allocation3 + $0x70] sm:$0xff] %vm293, 0.0
        %373 = vst.msk [vmem:[#allocation3 + $0x78] sm:$0xff] %vm293, 0.0
        %374 = vst.msk [vmem:[#allocation3 + $0x80] sm:$0xff] %vm293, 0.0
        %375 = vst.msk [vmem:[#allocation3 + $0x88] sm:$0xff] %vm293, 0.0
        %376 = vst.msk [vmem:[#allocation3 + $0x90] sm:$0xff] %vm293, 0.0
        %377 = vst.msk [vmem:[#allocation3 + $0x98] sm:$0xff] %vm293, 0.0
        %378 = vst.msk [vmem:[#allocation3 + $0xa0] sm:$0xff] %vm293, 0.0
        %379 = vst.msk [vmem:[#allocation3 + $0xa8] sm:$0xff] %vm293, 0.0
        %380 = vst.msk [vmem:[#allocation3 + $0xb0] sm:$0xff] %vm293, 0.0
        %381 = vst.msk [vmem:[#allocation3 + $0xb8] sm:$0xff] %vm293, 0.0
        %382 = vst.msk [vmem:[#allocation3 + $0xc0] sm:$0xff] %vm293, 0.0
        %383 = vst.msk [vmem:[#allocation3 + $0xc8] sm:$0xff] %vm293, 0.0
        %384 = vst.msk [vmem:[#allocation3 + $0xd0] sm:$0xff] %vm293, 0.0
        %385 = vst.msk [vmem:[#allocation3 + $0xd8] sm:$0xff] %vm293, 0.0
        %386 = vst.msk [vmem:[#allocation3 + $0xe0] sm:$0xff] %vm293, 0.0
        %387 = vst.msk [vmem:[#allocation3 + $0xe8] sm:$0xff] %vm293, 0.0
        %388 = vst.msk [vmem:[#allocation3 + $0xf0] sm:$0xff] %vm293, 0.0
        %389 = vst.msk [vmem:[#allocation3 + $0xf8] sm:$0xff] %vm293, 0.0
        %390 = vst.msk [vmem:[#allocation3 + $0x100] sm:$0xff] %vm293, 0.0
        %391 = vst.msk [vmem:[#allocation3 + $0x108] sm:$0xff] %vm293, 0.0
        %392 = vst.msk [vmem:[#allocation3 + $0x110] sm:$0xff] %vm293, 0.0
        %393 = vst.msk [vmem:[#allocation3 + $0x118] sm:$0xff] %vm293, 0.0
        %394 = vst.msk [vmem:[#allocation3 + $0x120] sm:$0xff] %vm293, 0.0
        %395 = vst.msk [vmem:[#allocation3 + $0x128] sm:$0xff] %vm293, 0.0
        %396 = vst.msk [vmem:[#allocation3 + $0x130] sm:$0xff] %vm293, 0.0
        %397 = vst.msk [vmem:[#allocation3 + $0x138] sm:$0xff] %vm293, 0.0
        %398 = vst.msk [vmem:[#allocation3 + $0x140] sm:$0xff] %vm293, 0.0
        %399 = vst.msk [vmem:[#allocation3 + $0x148] sm:$0xff] %vm293, 0.0
        %400 = vst.msk [vmem:[#allocation3 + $0x150] sm:$0xff] %vm293, 0.0
        %401 = vst.msk [vmem:[#allocation3 + $0x158] sm:$0xff] %vm293, 0.0
        %402 = vst.msk [vmem:[#allocation3 + $0x160] sm:$0xff] %vm293, 0.0
        %403 = vst.msk [vmem:[#allocation3 + $0x168] sm:$0xff] %vm293, 0.0
        %404 = vst.msk [vmem:[#allocation3 + $0x170] sm:$0xff] %vm293, 0.0
        %405 = vst.msk [vmem:[#allocation3 + $0x178] sm:$0xff] %vm293, 0.0
        %406 = vst.msk [vmem:[#allocation3 + $0x180] sm:$0xff] %vm293, 0.0
        %407 = vst.msk [vmem:[#allocation3 + $0x188] sm:$0xff] %vm293, 0.0
        %408 = vst.msk [vmem:[#allocation3 + $0x190] sm:$0xff] %vm293, 0.0
        %409 = vst.msk [vmem:[#allocation3 + $0x198] sm:$0xff] %vm293, 0.0
        %410 = vst.msk [vmem:[#allocation3 + $0x1a0] sm:$0xff] %vm293, 0.0
        %411 = vst.msk [vmem:[#allocation3 + $0x1a8] sm:$0xff] %vm293, 0.0
        %412 = vst.msk [vmem:[#allocation3 + $0x1b0] sm:$0xff] %vm293, 0.0
        %413 = vst.msk [vmem:[#allocation3 + $0x1b8] sm:$0xff] %vm293, 0.0
        %414 = vst.msk [vmem:[#allocation3 + $0x1c0] sm:$0xff] %vm293, 0.0
        %415 = vst.msk [vmem:[#allocation3 + $0x1c8] sm:$0xff] %vm293, 0.0
        %416 = vst.msk [vmem:[#allocation3 + $0x1d0] sm:$0xff] %vm293, 0.0
        %417 = vst.msk [vmem:[#allocation3 + $0x1d8] sm:$0xff] %vm293, 0.0
        %418 = vst.msk [vmem:[#allocation3 + $0x1e0] sm:$0xff] %vm293, 0.0
        %419 = vst.msk [vmem:[#allocation3 + $0x1e8] sm:$0xff] %vm293, 0.0
        %420 = vst.msk [vmem:[#allocation3 + $0x1f0] sm:$0xff] %vm293, 0.0
        %421 = vst.msk [vmem:[#allocation3 + $0x1f8] sm:$0xff] %vm293, 0.0
        %vm422 = vcmask 261120
        %423 = vst.msk [vmem:[#allocation4] sm:$0xff] %vm422, 0.0
        %424 = vst.msk [vmem:[#allocation4 + $0x8] sm:$0xff] %vm422, 0.0
        %425 = vst.msk [vmem:[#allocation4 + $0x10] sm:$0xff] %vm422, 0.0
        %426 = vst.msk [vmem:[#allocation4 + $0x18] sm:$0xff] %vm422, 0.0
        %427 = vst.msk [vmem:[#allocation4 + $0x20] sm:$0xff] %vm422, 0.0
        %428 = vst.msk [vmem:[#allocation4 + $0x28] sm:$0xff] %vm422, 0.0
        %429 = vst.msk [vmem:[#allocation4 + $0x30] sm:$0xff] %vm422, 0.0
        %430 = vst.msk [vmem:[#allocation4 + $0x38] sm:$0xff] %vm422, 0.0
        %431 = vst.msk [vmem:[#allocation4 + $0x40] sm:$0xff] %vm422, 0.0
        %432 = vst.msk [vmem:[#allocation4 + $0x48] sm:$0xff] %vm422, 0.0
        %433 = vst.msk [vmem:[#allocation4 + $0x50] sm:$0xff] %vm422, 0.0
        %434 = vst.msk [vmem:[#allocation4 + $0x58] sm:$0xff] %vm422, 0.0
        %435 = vst.msk [vmem:[#allocation4 + $0x60] sm:$0xff] %vm422, 0.0
        %436 = vst.msk [vmem:[#allocation4 + $0x68] sm:$0xff] %vm422, 0.0
        %437 = vst.msk [vmem:[#allocation4 + $0x70] sm:$0xff] %vm422, 0.0
        %438 = vst.msk [vmem:[#allocation4 + $0x78] sm:$0xff] %vm422, 0.0
        %439 = vst.msk [vmem:[#allocation4 + $0x80] sm:$0xff] %vm422, 0.0
        %440 = vst.msk [vmem:[#allocation4 + $0x88] sm:$0xff] %vm422, 0.0
        %441 = vst.msk [vmem:[#allocation4 + $0x90] sm:$0xff] %vm422, 0.0
        %442 = vst.msk [vmem:[#allocation4 + $0x98] sm:$0xff] %vm422, 0.0
        %443 = vst.msk [vmem:[#allocation4 + $0xa0] sm:$0xff] %vm422, 0.0
        %444 = vst.msk [vmem:[#allocation4 + $0xa8] sm:$0xff] %vm422, 0.0
        %445 = vst.msk [vmem:[#allocation4 + $0xb0] sm:$0xff] %vm422, 0.0
        %446 = vst.msk [vmem:[#allocation4 + $0xb8] sm:$0xff] %vm422, 0.0
        %447 = vst.msk [vmem:[#allocation4 + $0xc0] sm:$0xff] %vm422, 0.0
        %448 = vst.msk [vmem:[#allocation4 + $0xc8] sm:$0xff] %vm422, 0.0
        %449 = vst.msk [vmem:[#allocation4 + $0xd0] sm:$0xff] %vm422, 0.0
        %450 = vst.msk [vmem:[#allocation4 + $0xd8] sm:$0xff] %vm422, 0.0
        %451 = vst.msk [vmem:[#allocation4 + $0xe0] sm:$0xff] %vm422, 0.0
        %452 = vst.msk [vmem:[#allocation4 + $0xe8] sm:$0xff] %vm422, 0.0
        %453 = vst.msk [vmem:[#allocation4 + $0xf0] sm:$0xff] %vm422, 0.0
        %454 = vst.msk [vmem:[#allocation4 + $0xf8] sm:$0xff] %vm422, 0.0
        %455 = vst.msk [vmem:[#allocation4 + $0x100] sm:$0xff] %vm422, 0.0
        %456 = vst.msk [vmem:[#allocation4 + $0x108] sm:$0xff] %vm422, 0.0
        %457 = vst.msk [vmem:[#allocation4 + $0x110] sm:$0xff] %vm422, 0.0
        %458 = vst.msk [vmem:[#allocation4 + $0x118] sm:$0xff] %vm422, 0.0
        %459 = vst.msk [vmem:[#allocation4 + $0x120] sm:$0xff] %vm422, 0.0
        %460 = vst.msk [vmem:[#allocation4 + $0x128] sm:$0xff] %vm422, 0.0
        %461 = vst.msk [vmem:[#allocation4 + $0x130] sm:$0xff] %vm422, 0.0
        %462 = vst.msk [vmem:[#allocation4 + $0x138] sm:$0xff] %vm422, 0.0
        %463 = vst.msk [vmem:[#allocation4 + $0x140] sm:$0xff] %vm422, 0.0
        %464 = vst.msk [vmem:[#allocation4 + $0x148] sm:$0xff] %vm422, 0.0
        %465 = vst.msk [vmem:[#allocation4 + $0x150] sm:$0xff] %vm422, 0.0
        %466 = vst.msk [vmem:[#allocation4 + $0x158] sm:$0xff] %vm422, 0.0
        %467 = vst.msk [vmem:[#allocation4 + $0x160] sm:$0xff] %vm422, 0.0
        %468 = vst.msk [vmem:[#allocation4 + $0x168] sm:$0xff] %vm422, 0.0
        %469 = vst.msk [vmem:[#allocation4 + $0x170] sm:$0xff] %vm422, 0.0
        %470 = vst.msk [vmem:[#allocation4 + $0x178] sm:$0xff] %vm422, 0.0
        %471 = vst.msk [vmem:[#allocation4 + $0x180] sm:$0xff] %vm422, 0.0
        %472 = vst.msk [vmem:[#allocation4 + $0x188] sm:$0xff] %vm422, 0.0
        %473 = vst.msk [vmem:[#allocation4 + $0x190] sm:$0xff] %vm422, 0.0
        %474 = vst.msk [vmem:[#allocation4 + $0x198] sm:$0xff] %vm422, 0.0
        %475 = vst.msk [vmem:[#allocation4 + $0x1a0] sm:$0xff] %vm422, 0.0
        %476 = vst.msk [vmem:[#allocation4 + $0x1a8] sm:$0xff] %vm422, 0.0
        %477 = vst.msk [vmem:[#allocation4 + $0x1b0] sm:$0xff] %vm422, 0.0
        %478 = vst.msk [vmem:[#allocation4 + $0x1b8] sm:$0xff] %vm422, 0.0
        %479 = vst.msk [vmem:[#allocation4 + $0x1c0] sm:$0xff] %vm422, 0.0
        %480 = vst.msk [vmem:[#allocation4 + $0x1c8] sm:$0xff] %vm422, 0.0
        %481 = vst.msk [vmem:[#allocation4 + $0x1d0] sm:$0xff] %vm422, 0.0
        %482 = vst.msk [vmem:[#allocation4 + $0x1d8] sm:$0xff] %vm422, 0.0
        %483 = vst.msk [vmem:[#allocation4 + $0x1e0] sm:$0xff] %vm422, 0.0
        %484 = vst.msk [vmem:[#allocation4 + $0x1e8] sm:$0xff] %vm422, 0.0
        %485 = vst.msk [vmem:[#allocation4 + $0x1f0] sm:$0xff] %vm422, 0.0
        %486 = vst.msk [vmem:[#allocation4 + $0x1f8] sm:$0xff] %vm422, 0.0
      $region36: #{transformer_forward.8} parent=31 // pred_fallthru
        _
      %s487 = smul.u32 %s20, 128
      %s488 = smul.u32 %s21, 128
      %s489 = sadd.s32 %s487, 128
      %p490 = scmp.lt.s32.totalorder %s488, %s489
      // Predicated region
      $region37: #{transformer_forward.8} parent=31 // pred_check
        %p491 = pneg %p490
      $region38: #{transformer_forward.8} parent=31 // pred_check_branch
        %493 = sbr.rel (%p491) target = $region40
      $region39: #{transformer_forward.8} parent=31 // pred_region
        %v494 = vld [vmem:[%s257] sm:$0xf]
        %v495 = vld [vmem:[%s257 + $0x4] sm:$0xf]
        %v496 = vld [vmem:[%s257 + $0x8] sm:$0xf]
        %v497 = vld [vmem:[%s257 + $0xc] sm:$0xf]
        %v498 = vld [vmem:[%s257 + $0x10] sm:$0xf]
        %v499 = vld [vmem:[%s257 + $0x14] sm:$0xf]
        %v500 = vld [vmem:[%s257 + $0x18] sm:$0xf]
        %v501 = vld [vmem:[%s257 + $0x1c] sm:$0xf]
        %v502 = vld [vmem:[%s257 + $0x20] sm:$0xf]
        %v503 = vld [vmem:[%s257 + $0x24] sm:$0xf]
        %v504 = vld [vmem:[%s257 + $0x28] sm:$0xf]
        %v505 = vld [vmem:[%s257 + $0x2c] sm:$0xf]
        %v506 = vld [vmem:[%s257 + $0x30] sm:$0xf]
        %v507 = vld [vmem:[%s257 + $0x34] sm:$0xf]
        %v508 = vld [vmem:[%s257 + $0x38] sm:$0xf]
        %v509 = vld [vmem:[%s257 + $0x3c] sm:$0xf]
        %v510 = vld [vmem:[%s257 + $0x40] sm:$0xf]
        %v511 = vld [vmem:[%s257 + $0x44] sm:$0xf]
        %v512 = vld [vmem:[%s257 + $0x48] sm:$0xf]
        %v513 = vld [vmem:[%s257 + $0x4c] sm:$0xf]
        %v514 = vld [vmem:[%s257 + $0x50] sm:$0xf]
        %v515 = vld [vmem:[%s257 + $0x54] sm:$0xf]
        %v516 = vld [vmem:[%s257 + $0x58] sm:$0xf]
        %v517 = vld [vmem:[%s257 + $0x5c] sm:$0xf]
        %v518 = vld [vmem:[%s257 + $0x60] sm:$0xf]
        %v519 = vld [vmem:[%s257 + $0x64] sm:$0xf]
        %v520 = vld [vmem:[%s257 + $0x68] sm:$0xf]
        %v521 = vld [vmem:[%s257 + $0x6c] sm:$0xf]
        %v522 = vld [vmem:[%s257 + $0x70] sm:$0xf]
        %v523 = vld [vmem:[%s257 + $0x74] sm:$0xf]
        %v524 = vld [vmem:[%s257 + $0x78] sm:$0xf]
        %v525 = vld [vmem:[%s257 + $0x7c] sm:$0xf]
        %v526 = vld [vmem:[%s257 + $0x80] sm:$0xf]
        %v527 = vld [vmem:[%s257 + $0x84] sm:$0xf]
        %v528 = vld [vmem:[%s257 + $0x88] sm:$0xf]
        %v529 = vld [vmem:[%s257 + $0x8c] sm:$0xf]
        %v530 = vld [vmem:[%s257 + $0x90] sm:$0xf]
        %v531 = vld [vmem:[%s257 + $0x94] sm:$0xf]
        %v532 = vld [vmem:[%s257 + $0x98] sm:$0xf]
        %v533 = vld [vmem:[%s257 + $0x9c] sm:$0xf]
        %v534 = vld [vmem:[%s257 + $0xa0] sm:$0xf]
        %v535 = vld [vmem:[%s257 + $0xa4] sm:$0xf]
        %v536 = vld [vmem:[%s257 + $0xa8] sm:$0xf]
        %v537 = vld [vmem:[%s257 + $0xac] sm:$0xf]
        %v538 = vld [vmem:[%s257 + $0xb0] sm:$0xf]
        %v539 = vld [vmem:[%s257 + $0xb4] sm:$0xf]
        %v540 = vld [vmem:[%s257 + $0xb8] sm:$0xf]
        %v541 = vld [vmem:[%s257 + $0xbc] sm:$0xf]
        %v542 = vld [vmem:[%s257 + $0xc0] sm:$0xf]
        %v543 = vld [vmem:[%s257 + $0xc4] sm:$0xf]
        %v544 = vld [vmem:[%s257 + $0xc8] sm:$0xf]
        %v545 = vld [vmem:[%s257 + $0xcc] sm:$0xf]
        %v546 = vld [vmem:[%s257 + $0xd0] sm:$0xf]
        %v547 = vld [vmem:[%s257 + $0xd4] sm:$0xf]
        %v548 = vld [vmem:[%s257 + $0xd8] sm:$0xf]
        %v549 = vld [vmem:[%s257 + $0xdc] sm:$0xf]
        %v550 = vld [vmem:[%s257 + $0xe0] sm:$0xf]
        %v551 = vld [vmem:[%s257 + $0xe4] sm:$0xf]
        %v552 = vld [vmem:[%s257 + $0xe8] sm:$0xf]
        %v553 = vld [vmem:[%s257 + $0xec] sm:$0xf]
        %v554 = vld [vmem:[%s257 + $0xf0] sm:$0xf]
        %v555 = vld [vmem:[%s257 + $0xf4] sm:$0xf]
        %v556 = vld [vmem:[%s257 + $0xf8] sm:$0xf]
        %v557 = vld [vmem:[%s257 + $0xfc] sm:$0xf]
        %v558 = vunpack.c.l.bf16 %v494
        %v559 = vunpack.c.l.bf16 %v495
        %v560 = vunpack.c.l.bf16 %v496
        %v561 = vunpack.c.l.bf16 %v497
        %v562 = vunpack.c.l.bf16 %v498
        %v563 = vunpack.c.l.bf16 %v499
        %v564 = vunpack.c.l.bf16 %v500
        %v565 = vunpack.c.l.bf16 %v501
        %v566 = vunpack.c.l.bf16 %v502
        %v567 = vunpack.c.l.bf16 %v503
        %v568 = vunpack.c.l.bf16 %v504
        %v569 = vunpack.c.l.bf16 %v505
        %v570 = vunpack.c.l.bf16 %v506
        %v571 = vunpack.c.l.bf16 %v507
        %v572 = vunpack.c.l.bf16 %v508
        %v573 = vunpack.c.l.bf16 %v509
        %v574 = vunpack.c.l.bf16 %v510
        %v575 = vunpack.c.l.bf16 %v511
        %v576 = vunpack.c.l.bf16 %v512
        %v577 = vunpack.c.l.bf16 %v513
        %v578 = vunpack.c.l.bf16 %v514
        %v579 = vunpack.c.l.bf16 %v515
        %v580 = vunpack.c.l.bf16 %v516
        %v581 = vunpack.c.l.bf16 %v517
        %v582 = vunpack.c.l.bf16 %v518
        %v583 = vunpack.c.l.bf16 %v519
        %v584 = vunpack.c.l.bf16 %v520
        %v585 = vunpack.c.l.bf16 %v521
        %v586 = vunpack.c.l.bf16 %v522
        %v587 = vunpack.c.l.bf16 %v523
        %v588 = vunpack.c.l.bf16 %v524
        %v589 = vunpack.c.l.bf16 %v525
        %v590 = vunpack.c.l.bf16 %v526
        %v591 = vunpack.c.l.bf16 %v527
        %v592 = vunpack.c.l.bf16 %v528
        %v593 = vunpack.c.l.bf16 %v529
        %v594 = vunpack.c.l.bf16 %v530
        %v595 = vunpack.c.l.bf16 %v531
        %v596 = vunpack.c.l.bf16 %v532
        %v597 = vunpack.c.l.bf16 %v533
        %v598 = vunpack.c.l.bf16 %v534
        %v599 = vunpack.c.l.bf16 %v535
        %v600 = vunpack.c.l.bf16 %v536
        %v601 = vunpack.c.l.bf16 %v537
        %v602 = vunpack.c.l.bf16 %v538
        %v603 = vunpack.c.l.bf16 %v539
        %v604 = vunpack.c.l.bf16 %v540
        %v605 = vunpack.c.l.bf16 %v541
        %v606 = vunpack.c.l.bf16 %v542
        %v607 = vunpack.c.l.bf16 %v543
        %v608 = vunpack.c.l.bf16 %v544
        %v609 = vunpack.c.l.bf16 %v545
        %v610 = vunpack.c.l.bf16 %v546
        %v611 = vunpack.c.l.bf16 %v547
        %v612 = vunpack.c.l.bf16 %v548
        %v613 = vunpack.c.l.bf16 %v549
        %v614 = vunpack.c.l.bf16 %v550
        %v615 = vunpack.c.l.bf16 %v551
        %v616 = vunpack.c.l.bf16 %v552
        %v617 = vunpack.c.l.bf16 %v553
        %v618 = vunpack.c.l.bf16 %v554
        %v619 = vunpack.c.l.bf16 %v555
        %v620 = vunpack.c.l.bf16 %v556
        %v621 = vunpack.c.l.bf16 %v557
        %v622 = vmul.f32 %v558, 0.17675781
        %v623 = vmul.f32 %v559, 0.17675781
        %v624 = vmul.f32 %v560, 0.17675781
        %v625 = vmul.f32 %v561, 0.17675781
        %v626 = vmul.f32 %v562, 0.17675781
        %v627 = vmul.f32 %v563, 0.17675781
        %v628 = vmul.f32 %v564, 0.17675781
        %v629 = vmul.f32 %v565, 0.17675781
        %v630 = vmul.f32 %v566, 0.17675781
        %v631 = vmul.f32 %v567, 0.17675781
        %v632 = vmul.f32 %v568, 0.17675781
        %v633 = vmul.f32 %v569, 0.17675781
        %v634 = vmul.f32 %v570, 0.17675781
        %v635 = vmul.f32 %v571, 0.17675781
        %v636 = vmul.f32 %v572, 0.17675781
        %v637 = vmul.f32 %v573, 0.17675781
        %v638 = vmul.f32 %v574, 0.17675781
        %v639 = vmul.f32 %v575, 0.17675781
        %v640 = vmul.f32 %v576, 0.17675781
        %v641 = vmul.f32 %v577, 0.17675781
        %v642 = vmul.f32 %v578, 0.17675781
        %v643 = vmul.f32 %v579, 0.17675781
        %v644 = vmul.f32 %v580, 0.17675781
        %v645 = vmul.f32 %v581, 0.17675781
        %v646 = vmul.f32 %v582, 0.17675781
        %v647 = vmul.f32 %v583, 0.17675781
        %v648 = vmul.f32 %v584, 0.17675781
        %v649 = vmul.f32 %v585, 0.17675781
        %v650 = vmul.f32 %v586, 0.17675781
        %v651 = vmul.f32 %v587, 0.17675781
        %v652 = vmul.f32 %v588, 0.17675781
        %v653 = vmul.f32 %v589, 0.17675781
        %v654 = vmul.f32 %v590, 0.17675781
        %v655 = vmul.f32 %v591, 0.17675781
        %v656 = vmul.f32 %v592, 0.17675781
        %v657 = vmul.f32 %v593, 0.17675781
        %v658 = vmul.f32 %v594, 0.17675781
        %v659 = vmul.f32 %v595, 0.17675781
        %v660 = vmul.f32 %v596, 0.17675781
        %v661 = vmul.f32 %v597, 0.17675781
        %v662 = vmul.f32 %v598, 0.17675781
        %v663 = vmul.f32 %v599, 0.17675781
        %v664 = vmul.f32 %v600, 0.17675781
        %v665 = vmul.f32 %v601, 0.17675781
        %v666 = vmul.f32 %v602, 0.17675781
        %v667 = vmul.f32 %v603, 0.17675781
        %v668 = vmul.f32 %v604, 0.17675781
        %v669 = vmul.f32 %v605, 0.17675781
        %v670 = vmul.f32 %v606, 0.17675781
        %v671 = vmul.f32 %v607, 0.17675781
        %v672 = vmul.f32 %v608, 0.17675781
        %v673 = vmul.f32 %v609, 0.17675781
        %v674 = vmul.f32 %v610, 0.17675781
        %v675 = vmul.f32 %v611, 0.17675781
        %v676 = vmul.f32 %v612, 0.17675781
        %v677 = vmul.f32 %v613, 0.17675781
        %v678 = vmul.f32 %v614, 0.17675781
        %v679 = vmul.f32 %v615, 0.17675781
        %v680 = vmul.f32 %v616, 0.17675781
        %v681 = vmul.f32 %v617, 0.17675781
        %v682 = vmul.f32 %v618, 0.17675781
        %v683 = vmul.f32 %v619, 0.17675781
        %v684 = vmul.f32 %v620, 0.17675781
        %v685 = vmul.f32 %v621, 0.17675781
        %v686 = vpack.c.bf16 %v622, %v622
        %v687 = vpack.c.bf16 %v623, %v623
        %v688 = vpack.c.bf16 %v624, %v624
        %v689 = vpack.c.bf16 %v625, %v625
        %v690 = vpack.c.bf16 %v626, %v626
        %v691 = vpack.c.bf16 %v627, %v627
        %v692 = vpack.c.bf16 %v628, %v628
        %v693 = vpack.c.bf16 %v629, %v629
        %v694 = vpack.c.bf16 %v630, %v630
        %v695 = vpack.c.bf16 %v631, %v631
        %v696 = vpack.c.bf16 %v632, %v632
        %v697 = vpack.c.bf16 %v633, %v633
        %v698 = vpack.c.bf16 %v634, %v634
        %v699 = vpack.c.bf16 %v635, %v635
        %v700 = vpack.c.bf16 %v636, %v636
        %v701 = vpack.c.bf16 %v637, %v637
        %v702 = vpack.c.bf16 %v638, %v638
        %v703 = vpack.c.bf16 %v639, %v639
        %v704 = vpack.c.bf16 %v640, %v640
        %v705 = vpack.c.bf16 %v641, %v641
        %v706 = vpack.c.bf16 %v642, %v642
        %v707 = vpack.c.bf16 %v643, %v643
        %v708 = vpack.c.bf16 %v644, %v644
        %v709 = vpack.c.bf16 %v645, %v645
        %v710 = vpack.c.bf16 %v646, %v646
        %v711 = vpack.c.bf16 %v647, %v647
        %v712 = vpack.c.bf16 %v648, %v648
        %v713 = vpack.c.bf16 %v649, %v649
        %v714 = vpack.c.bf16 %v650, %v650
        %v715 = vpack.c.bf16 %v651, %v651
        %v716 = vpack.c.bf16 %v652, %v652
        %v717 = vpack.c.bf16 %v653, %v653
        %v718 = vpack.c.bf16 %v654, %v654
        %v719 = vpack.c.bf16 %v655, %v655
        %v720 = vpack.c.bf16 %v656, %v656
        %v721 = vpack.c.bf16 %v657, %v657
        %v722 = vpack.c.bf16 %v658, %v658
        %v723 = vpack.c.bf16 %v659, %v659
        %v724 = vpack.c.bf16 %v660, %v660
        %v725 = vpack.c.bf16 %v661, %v661
        %v726 = vpack.c.bf16 %v662, %v662
        %v727 = vpack.c.bf16 %v663, %v663
        %v728 = vpack.c.bf16 %v664, %v664
        %v729 = vpack.c.bf16 %v665, %v665
        %v730 = vpack.c.bf16 %v666, %v666
        %v731 = vpack.c.bf16 %v667, %v667
        %v732 = vpack.c.bf16 %v668, %v668
        %v733 = vpack.c.bf16 %v669, %v669
        %v734 = vpack.c.bf16 %v670, %v670
        %v735 = vpack.c.bf16 %v671, %v671
        %v736 = vpack.c.bf16 %v672, %v672
        %v737 = vpack.c.bf16 %v673, %v673
        %v738 = vpack.c.bf16 %v674, %v674
        %v739 = vpack.c.bf16 %v675, %v675
        %v740 = vpack.c.bf16 %v676, %v676
        %v741 = vpack.c.bf16 %v677, %v677
        %v742 = vpack.c.bf16 %v678, %v678
        %v743 = vpack.c.bf16 %v679, %v679
        %v744 = vpack.c.bf16 %v680, %v680
        %v745 = vpack.c.bf16 %v681, %v681
        %v746 = vpack.c.bf16 %v682, %v682
        %v747 = vpack.c.bf16 %v683, %v683
        %v748 = vpack.c.bf16 %v684, %v684
        %v749 = vpack.c.bf16 %v685, %v685
        %v750 = vld [vmem:[%s267] sm:$0xf]
        %v751 = vld [vmem:[%s267 + $0x4] sm:$0xf]
        %v752 = vld [vmem:[%s267 + $0x8] sm:$0xf]
        %v753 = vld [vmem:[%s267 + $0xc] sm:$0xf]
        %v754 = vld [vmem:[%s267 + $0x10] sm:$0xf]
        %v755 = vld [vmem:[%s267 + $0x14] sm:$0xf]
        %v756 = vld [vmem:[%s267 + $0x18] sm:$0xf]
        %v757 = vld [vmem:[%s267 + $0x1c] sm:$0xf]
        %v758 = vld [vmem:[%s267 + $0x20] sm:$0xf]
        %v759 = vld [vmem:[%s267 + $0x24] sm:$0xf]
        %v760 = vld [vmem:[%s267 + $0x28] sm:$0xf]
        %v761 = vld [vmem:[%s267 + $0x2c] sm:$0xf]
        %v762 = vld [vmem:[%s267 + $0x30] sm:$0xf]
        %v763 = vld [vmem:[%s267 + $0x34] sm:$0xf]
        %v764 = vld [vmem:[%s267 + $0x38] sm:$0xf]
        %v765 = vld [vmem:[%s267 + $0x3c] sm:$0xf]
        %v766 = vld [vmem:[%s267 + $0x40] sm:$0xf]
        %v767 = vld [vmem:[%s267 + $0x44] sm:$0xf]
        %v768 = vld [vmem:[%s267 + $0x48] sm:$0xf]
        %v769 = vld [vmem:[%s267 + $0x4c] sm:$0xf]
        %v770 = vld [vmem:[%s267 + $0x50] sm:$0xf]
        %v771 = vld [vmem:[%s267 + $0x54] sm:$0xf]
        %v772 = vld [vmem:[%s267 + $0x58] sm:$0xf]
        %v773 = vld [vmem:[%s267 + $0x5c] sm:$0xf]
        %v774 = vld [vmem:[%s267 + $0x60] sm:$0xf]
        %v775 = vld [vmem:[%s267 + $0x64] sm:$0xf]
        %v776 = vld [vmem:[%s267 + $0x68] sm:$0xf]
        %v777 = vld [vmem:[%s267 + $0x6c] sm:$0xf]
        %v778 = vld [vmem:[%s267 + $0x70] sm:$0xf]
        %v779 = vld [vmem:[%s267 + $0x74] sm:$0xf]
        %v780 = vld [vmem:[%s267 + $0x78] sm:$0xf]
        %v781 = vld [vmem:[%s267 + $0x7c] sm:$0xf]
        %v782 = vld [vmem:[%s267 + $0x80] sm:$0xf]
        %v783 = vld [vmem:[%s267 + $0x84] sm:$0xf]
        %v784 = vld [vmem:[%s267 + $0x88] sm:$0xf]
        %v785 = vld [vmem:[%s267 + $0x8c] sm:$0xf]
        %v786 = vld [vmem:[%s267 + $0x90] sm:$0xf]
        %v787 = vld [vmem:[%s267 + $0x94] sm:$0xf]
        %v788 = vld [vmem:[%s267 + $0x98] sm:$0xf]
        %v789 = vld [vmem:[%s267 + $0x9c] sm:$0xf]
        %v790 = vld [vmem:[%s267 + $0xa0] sm:$0xf]
        %v791 = vld [vmem:[%s267 + $0xa4] sm:$0xf]
        %v792 = vld [vmem:[%s267 + $0xa8] sm:$0xf]
        %v793 = vld [vmem:[%s267 + $0xac] sm:$0xf]
        %v794 = vld [vmem:[%s267 + $0xb0] sm:$0xf]
        %v795 = vld [vmem:[%s267 + $0xb4] sm:$0xf]
        %v796 = vld [vmem:[%s267 + $0xb8] sm:$0xf]
        %v797 = vld [vmem:[%s267 + $0xbc] sm:$0xf]
        %v798 = vld [vmem:[%s267 + $0xc0] sm:$0xf]
        %v799 = vld [vmem:[%s267 + $0xc4] sm:$0xf]
        %v800 = vld [vmem:[%s267 + $0xc8] sm:$0xf]
        %v801 = vld [vmem:[%s267 + $0xcc] sm:$0xf]
        %v802 = vld [vmem:[%s267 + $0xd0] sm:$0xf]
        %v803 = vld [vmem:[%s267 + $0xd4] sm:$0xf]
        %v804 = vld [vmem:[%s267 + $0xd8] sm:$0xf]
        %v805 = vld [vmem:[%s267 + $0xdc] sm:$0xf]
        %v806 = vld [vmem:[%s267 + $0xe0] sm:$0xf]
        %v807 = vld [vmem:[%s267 + $0xe4] sm:$0xf]
        %v808 = vld [vmem:[%s267 + $0xe8] sm:$0xf]
        %v809 = vld [vmem:[%s267 + $0xec] sm:$0xf]
        %v810 = vld [vmem:[%s267 + $0xf0] sm:$0xf]
        %v811 = vld [vmem:[%s267 + $0xf4] sm:$0xf]
        %v812 = vld [vmem:[%s267 + $0xf8] sm:$0xf]
        %v813 = vld [vmem:[%s267 + $0xfc] sm:$0xf]
        %v814 = vld [vmem:[%s277] sm:$0xf]
        %v815 = vld [vmem:[%s277 + $0x4] sm:$0xf]
        %v816 = vld [vmem:[%s277 + $0x8] sm:$0xf]
        %v817 = vld [vmem:[%s277 + $0xc] sm:$0xf]
        %v818 = vld [vmem:[%s277 + $0x10] sm:$0xf]
        %v819 = vld [vmem:[%s277 + $0x14] sm:$0xf]
        %v820 = vld [vmem:[%s277 + $0x18] sm:$0xf]
        %v821 = vld [vmem:[%s277 + $0x1c] sm:$0xf]
        %v822 = vld [vmem:[%s277 + $0x20] sm:$0xf]
        %v823 = vld [vmem:[%s277 + $0x24] sm:$0xf]
        %v824 = vld [vmem:[%s277 + $0x28] sm:$0xf]
        %v825 = vld [vmem:[%s277 + $0x2c] sm:$0xf]
        %v826 = vld [vmem:[%s277 + $0x30] sm:$0xf]
        %v827 = vld [vmem:[%s277 + $0x34] sm:$0xf]
        %v828 = vld [vmem:[%s277 + $0x38] sm:$0xf]
        %v829 = vld [vmem:[%s277 + $0x3c] sm:$0xf]
        %v830 = vld [vmem:[%s277 + $0x40] sm:$0xf]
        %v831 = vld [vmem:[%s277 + $0x44] sm:$0xf]
        %v832 = vld [vmem:[%s277 + $0x48] sm:$0xf]
        %v833 = vld [vmem:[%s277 + $0x4c] sm:$0xf]
        %v834 = vld [vmem:[%s277 + $0x50] sm:$0xf]
        %v835 = vld [vmem:[%s277 + $0x54] sm:$0xf]
        %v836 = vld [vmem:[%s277 + $0x58] sm:$0xf]
        %v837 = vld [vmem:[%s277 + $0x5c] sm:$0xf]
        %v838 = vld [vmem:[%s277 + $0x60] sm:$0xf]
        %v839 = vld [vmem:[%s277 + $0x64] sm:$0xf]
        %v840 = vld [vmem:[%s277 + $0x68] sm:$0xf]
        %v841 = vld [vmem:[%s277 + $0x6c] sm:$0xf]
        %v842 = vld [vmem:[%s277 + $0x70] sm:$0xf]
        %v843 = vld [vmem:[%s277 + $0x74] sm:$0xf]
        %v844 = vld [vmem:[%s277 + $0x78] sm:$0xf]
        %v845 = vld [vmem:[%s277 + $0x7c] sm:$0xf]
        %v846 = vld [vmem:[%s277 + $0x80] sm:$0xf]
        %v847 = vld [vmem:[%s277 + $0x84] sm:$0xf]
        %v848 = vld [vmem:[%s277 + $0x88] sm:$0xf]
        %v849 = vld [vmem:[%s277 + $0x8c] sm:$0xf]
        %v850 = vld [vmem:[%s277 + $0x90] sm:$0xf]
        %v851 = vld [vmem:[%s277 + $0x94] sm:$0xf]
        %v852 = vld [vmem:[%s277 + $0x98] sm:$0xf]
        %v853 = vld [vmem:[%s277 + $0x9c] sm:$0xf]
        %v854 = vld [vmem:[%s277 + $0xa0] sm:$0xf]
        %v855 = vld [vmem:[%s277 + $0xa4] sm:$0xf]
        %v856 = vld [vmem:[%s277 + $0xa8] sm:$0xf]
        %v857 = vld [vmem:[%s277 + $0xac] sm:$0xf]
        %v858 = vld [vmem:[%s277 + $0xb0] sm:$0xf]
        %v859 = vld [vmem:[%s277 + $0xb4] sm:$0xf]
        %v860 = vld [vmem:[%s277 + $0xb8] sm:$0xf]
        %v861 = vld [vmem:[%s277 + $0xbc] sm:$0xf]
        %v862 = vld [vmem:[%s277 + $0xc0] sm:$0xf]
        %v863 = vld [vmem:[%s277 + $0xc4] sm:$0xf]
        %v864 = vld [vmem:[%s277 + $0xc8] sm:$0xf]
        %v865 = vld [vmem:[%s277 + $0xcc] sm:$0xf]
        %v866 = vld [vmem:[%s277 + $0xd0] sm:$0xf]
        %v867 = vld [vmem:[%s277 + $0xd4] sm:$0xf]
        %v868 = vld [vmem:[%s277 + $0xd8] sm:$0xf]
        %v869 = vld [vmem:[%s277 + $0xdc] sm:$0xf]
        %v870 = vld [vmem:[%s277 + $0xe0] sm:$0xf]
        %v871 = vld [vmem:[%s277 + $0xe4] sm:$0xf]
        %v872 = vld [vmem:[%s277 + $0xe8] sm:$0xf]
        %v873 = vld [vmem:[%s277 + $0xec] sm:$0xf]
        %v874 = vld [vmem:[%s277 + $0xf0] sm:$0xf]
        %v875 = vld [vmem:[%s277 + $0xf4] sm:$0xf]
        %v876 = vld [vmem:[%s277 + $0xf8] sm:$0xf]
        %v877 = vld [vmem:[%s277 + $0xfc] sm:$0xf]
        %v894 = vunpack.c.l.b16 %v686
        %v895 = vunpack.c.l.b16 %v687
        %v896 = vunpack.c.l.b16 %v688
        %v897 = vunpack.c.l.b16 %v689
        %v898 = vunpack.c.l.b16 %v690
        %v899 = vunpack.c.l.b16 %v691
        %v900 = vunpack.c.l.b16 %v692
        %v901 = vunpack.c.l.b16 %v693
        %v902 = vunpack.c.l.b16 %v694
        %v903 = vunpack.c.l.b16 %v695
        %v904 = vunpack.c.l.b16 %v696
        %v905 = vunpack.c.l.b16 %v697
        %v906 = vunpack.c.l.b16 %v698
        %v907 = vunpack.c.l.b16 %v699
        %v908 = vunpack.c.l.b16 %v700
        %v909 = vunpack.c.l.b16 %v701
        %v910 = vpack.c.b16 %v895, %v894
        %v911 = vpack.c.b16 %v897, %v896
        %v912 = vpack.c.b16 %v899, %v898
        %v913 = vpack.c.b16 %v901, %v900
        %v914 = vpack.c.b16 %v903, %v902
        %v915 = vpack.c.b16 %v905, %v904
        %v916 = vpack.c.b16 %v907, %v906
        %v917 = vpack.c.b16 %v909, %v908
        %v934 = vunpack.c.l.b16 %v750
        %v935 = vunpack.c.l.b16 %v751
        %v936 = vunpack.c.l.b16 %v752
        %v937 = vunpack.c.l.b16 %v753
        %v938 = vunpack.c.l.b16 %v754
        %v939 = vunpack.c.l.b16 %v755
        %v940 = vunpack.c.l.b16 %v756
        %v941 = vunpack.c.l.b16 %v757
        %v942 = vunpack.c.l.b16 %v758
        %v943 = vunpack.c.l.b16 %v759
        %v944 = vunpack.c.l.b16 %v760
        %v945 = vunpack.c.l.b16 %v761
        %v946 = vunpack.c.l.b16 %v762
        %v947 = vunpack.c.l.b16 %v763
        %v948 = vunpack.c.l.b16 %v764
        %v949 = vunpack.c.l.b16 %v765
        %v950 = vpack.c.b16 %v935, %v934
        %v951 = vpack.c.b16 %v937, %v936
        %v952 = vpack.c.b16 %v939, %v938
        %v953 = vpack.c.b16 %v941, %v940
        %v954 = vpack.c.b16 %v943, %v942
        %v955 = vpack.c.b16 %v945, %v944
        %v956 = vpack.c.b16 %v947, %v946
        %v957 = vpack.c.b16 %v949, %v948
        %vm958 = vcmask 261120
        %v960 = vsel %vm958, %v910, 0
        %v963 = vsel %vm958, %v911, 0
        %v966 = vsel %vm958, %v912, 0
        %v969 = vsel %vm958, %v913, 0
        %v972 = vsel %vm958, %v914, 0
        %v975 = vsel %vm958, %v915, 0
        %v978 = vsel %vm958, %v916, 0
        %v981 = vsel %vm958, %v917, 0
        %v984 = vsel %vm958, %v950, 0
        %v987 = vsel %vm958, %v951, 0
        %v990 = vsel %vm958, %v952, 0
        %v993 = vsel %vm958, %v953, 0
        %v996 = vsel %vm958, %v954, 0
        %v999 = vsel %vm958, %v955, 0
        %v1002 = vsel %vm958, %v956, 0
        %v1005 = vsel %vm958, %v957, 0
        %1007 = vmatpush.bf16.xpose.msra.mxu0 %v1005
        %1008 = vmatpush.bf16.xpose.msra.mxu0 %v1002
        %1009 = vmatpush.bf16.xpose.msra.mxu0 %v999
        %1010 = vmatpush.bf16.xpose.msra.mxu0 %v996
        %1011 = vmatpush.bf16.xpose.msra.mxu0 %v993
        %1012 = vmatpush.bf16.xpose.msra.mxu0 %v990
        %1013 = vmatpush.bf16.xpose.msra.mxu0 %v987
        %1014 = vmatpush.bf16.xpose.msra.mxu0 %v984
        %1015 = vmatmul.bf16.gmra.mxu0 %v960
        %v1016 = vpop.f32.mrf.mxu0
        %v1017 = vadd.f32 0.0, %v1016
        %v1018 = vpop.f32.mrf.mxu0
        %v1019 = vadd.f32 0.0, %v1018
        %1020 = vmatmul.bf16.gmra.mxu0 %v963
        %v1021 = vpop.f32.mrf.mxu0
        %v1022 = vadd.f32 0.0, %v1021
        %v1023 = vpop.f32.mrf.mxu0
        %v1024 = vadd.f32 0.0, %v1023
        %1025 = vmatmul.bf16.gmra.mxu0 %v966
        %v1026 = vpop.f32.mrf.mxu0
        %v1027 = vadd.f32 0.0, %v1026
        %v1028 = vpop.f32.mrf.mxu0
        %v1029 = vadd.f32 0.0, %v1028
        %1030 = vmatmul.bf16.gmra.mxu0 %v969
        %v1031 = vpop.f32.mrf.mxu0
        %v1032 = vadd.f32 0.0, %v1031
        %v1033 = vpop.f32.mrf.mxu0
        %v1034 = vadd.f32 0.0, %v1033
        %1035 = vmatmul.bf16.gmra.mxu0 %v972
        %v1036 = vpop.f32.mrf.mxu0
        %v1037 = vadd.f32 0.0, %v1036
        %v1038 = vpop.f32.mrf.mxu0
        %v1039 = vadd.f32 0.0, %v1038
        %1040 = vmatmul.bf16.gmra.mxu0 %v975
        %v1041 = vpop.f32.mrf.mxu0
        %v1042 = vadd.f32 0.0, %v1041
        %v1043 = vpop.f32.mrf.mxu0
        %v1044 = vadd.f32 0.0, %v1043
        %1045 = vmatmul.bf16.gmra.mxu0 %v978
        %v1046 = vpop.f32.mrf.mxu0
        %v1047 = vadd.f32 0.0, %v1046
        %v1048 = vpop.f32.mrf.mxu0
        %v1049 = vadd.f32 0.0, %v1048
        %1050 = vmatmul.bf16.gmra.mxu0 %v981
        %v1051 = vpop.f32.mrf.mxu0
        %v1052 = vadd.f32 0.0, %v1051
        %v1053 = vpop.f32.mrf.mxu0
        %v1054 = vadd.f32 0.0, %v1053
        %1055 = vdwg.mxu0
        %v1072 = vunpack.c.l.b16 %v702
        %v1073 = vunpack.c.l.b16 %v703
        %v1074 = vunpack.c.l.b16 %v704
        %v1075 = vunpack.c.l.b16 %v705
        %v1076 = vunpack.c.l.b16 %v706
        %v1077 = vunpack.c.l.b16 %v707
        %v1078 = vunpack.c.l.b16 %v708
        %v1079 = vunpack.c.l.b16 %v709
        %v1080 = vunpack.c.l.b16 %v710
        %v1081 = vunpack.c.l.b16 %v711
        %v1082 = vunpack.c.l.b16 %v712
        %v1083 = vunpack.c.l.b16 %v713
        %v1084 = vunpack.c.l.b16 %v714
        %v1085 = vunpack.c.l.b16 %v715
        %v1086 = vunpack.c.l.b16 %v716
        %v1087 = vunpack.c.l.b16 %v717
        %v1088 = vpack.c.b16 %v1073, %v1072
        %v1089 = vpack.c.b16 %v1075, %v1074
        %v1090 = vpack.c.b16 %v1077, %v1076
        %v1091 = vpack.c.b16 %v1079, %v1078
        %v1092 = vpack.c.b16 %v1081, %v1080
        %v1093 = vpack.c.b16 %v1083, %v1082
        %v1094 = vpack.c.b16 %v1085, %v1084
        %v1095 = vpack.c.b16 %v1087, %v1086
        %v1112 = vunpack.c.l.b16 %v766
        %v1113 = vunpack.c.l.b16 %v767
        %v1114 = vunpack.c.l.b16 %v768
        %v1115 = vunpack.c.l.b16 %v769
        %v1116 = vunpack.c.l.b16 %v770
        %v1117 = vunpack.c.l.b16 %v771
        %v1118 = vunpack.c.l.b16 %v772
        %v1119 = vunpack.c.l.b16 %v773
        %v1120 = vunpack.c.l.b16 %v774
        %v1121 = vunpack.c.l.b16 %v775
        %v1122 = vunpack.c.l.b16 %v776
        %v1123 = vunpack.c.l.b16 %v777
        %v1124 = vunpack.c.l.b16 %v778
        %v1125 = vunpack.c.l.b16 %v779
        %v1126 = vunpack.c.l.b16 %v780
        %v1127 = vunpack.c.l.b16 %v781
        %v1128 = vpack.c.b16 %v1113, %v1112
        %v1129 = vpack.c.b16 %v1115, %v1114
        %v1130 = vpack.c.b16 %v1117, %v1116
        %v1131 = vpack.c.b16 %v1119, %v1118
        %v1132 = vpack.c.b16 %v1121, %v1120
        %v1133 = vpack.c.b16 %v1123, %v1122
        %v1134 = vpack.c.b16 %v1125, %v1124
        %v1135 = vpack.c.b16 %v1127, %v1126
        %v1137 = vsel %vm958, %v1088, 0
        %v1140 = vsel %vm958, %v1089, 0
        %v1143 = vsel %vm958, %v1090, 0
        %v1146 = vsel %vm958, %v1091, 0
        %v1149 = vsel %vm958, %v1092, 0
        %v1152 = vsel %vm958, %v1093, 0
        %v1155 = vsel %vm958, %v1094, 0
        %v1158 = vsel %vm958, %v1095, 0
        %v1161 = vsel %vm958, %v1128, 0
        %v1164 = vsel %vm958, %v1129, 0
        %v1167 = vsel %vm958, %v1130, 0
        %v1170 = vsel %vm958, %v1131, 0
        %v1173 = vsel %vm958, %v1132, 0
        %v1176 = vsel %vm958, %v1133, 0
        %v1179 = vsel %vm958, %v1134, 0
        %v1182 = vsel %vm958, %v1135, 0
        %1184 = vmatpush.bf16.xpose.msra.mxu0 %v1182
        %1185 = vmatpush.bf16.xpose.msra.mxu0 %v1179
        %1186 = vmatpush.bf16.xpose.msra.mxu0 %v1176
        %1187 = vmatpush.bf16.xpose.msra.mxu0 %v1173
        %1188 = vmatpush.bf16.xpose.msra.mxu0 %v1170
        %1189 = vmatpush.bf16.xpose.msra.mxu0 %v1167
        %1190 = vmatpush.bf16.xpose.msra.mxu0 %v1164
        %1191 = vmatpush.bf16.xpose.msra.mxu0 %v1161
        %1192 = vmatmul.bf16.gmra.mxu0 %v1137
        %v1193 = vpop.f32.mrf.mxu0
        %v1194 = vadd.f32 0.0, %v1193
        %v1195 = vpop.f32.mrf.mxu0
        %v1196 = vadd.f32 0.0, %v1195
        %1197 = vmatmul.bf16.gmra.mxu0 %v1140
        %v1198 = vpop.f32.mrf.mxu0
        %v1199 = vadd.f32 0.0, %v1198
        %v1200 = vpop.f32.mrf.mxu0
        %v1201 = vadd.f32 0.0, %v1200
        %1202 = vmatmul.bf16.gmra.mxu0 %v1143
        %v1203 = vpop.f32.mrf.mxu0
        %v1204 = vadd.f32 0.0, %v1203
        %v1205 = vpop.f32.mrf.mxu0
        %v1206 = vadd.f32 0.0, %v1205
        %1207 = vmatmul.bf16.gmra.mxu0 %v1146
        %v1208 = vpop.f32.mrf.mxu0
        %v1209 = vadd.f32 0.0, %v1208
        %v1210 = vpop.f32.mrf.mxu0
        %v1211 = vadd.f32 0.0, %v1210
        %1212 = vmatmul.bf16.gmra.mxu0 %v1149
        %v1213 = vpop.f32.mrf.mxu0
        %v1214 = vadd.f32 0.0, %v1213
        %v1215 = vpop.f32.mrf.mxu0
        %v1216 = vadd.f32 0.0, %v1215
        %1217 = vmatmul.bf16.gmra.mxu0 %v1152
        %v1218 = vpop.f32.mrf.mxu0
        %v1219 = vadd.f32 0.0, %v1218
        %v1220 = vpop.f32.mrf.mxu0
        %v1221 = vadd.f32 0.0, %v1220
        %1222 = vmatmul.bf16.gmra.mxu0 %v1155
        %v1223 = vpop.f32.mrf.mxu0
        %v1224 = vadd.f32 0.0, %v1223
        %v1225 = vpop.f32.mrf.mxu0
        %v1226 = vadd.f32 0.0, %v1225
        %1227 = vmatmul.bf16.gmra.mxu0 %v1158
        %v1228 = vpop.f32.mrf.mxu0
        %v1229 = vadd.f32 0.0, %v1228
        %v1230 = vpop.f32.mrf.mxu0
        %v1231 = vadd.f32 0.0, %v1230
        %1232 = vdwg.mxu0
        %v1249 = vunpack.c.l.b16 %v718
        %v1250 = vunpack.c.l.b16 %v719
        %v1251 = vunpack.c.l.b16 %v720
        %v1252 = vunpack.c.l.b16 %v721
        %v1253 = vunpack.c.l.b16 %v722
        %v1254 = vunpack.c.l.b16 %v723
        %v1255 = vunpack.c.l.b16 %v724
        %v1256 = vunpack.c.l.b16 %v725
        %v1257 = vunpack.c.l.b16 %v726
        %v1258 = vunpack.c.l.b16 %v727
        %v1259 = vunpack.c.l.b16 %v728
        %v1260 = vunpack.c.l.b16 %v729
        %v1261 = vunpack.c.l.b16 %v730
        %v1262 = vunpack.c.l.b16 %v731
        %v1263 = vunpack.c.l.b16 %v732
        %v1264 = vunpack.c.l.b16 %v733
        %v1265 = vpack.c.b16 %v1250, %v1249
        %v1266 = vpack.c.b16 %v1252, %v1251
        %v1267 = vpack.c.b16 %v1254, %v1253
        %v1268 = vpack.c.b16 %v1256, %v1255
        %v1269 = vpack.c.b16 %v1258, %v1257
        %v1270 = vpack.c.b16 %v1260, %v1259
        %v1271 = vpack.c.b16 %v1262, %v1261
        %v1272 = vpack.c.b16 %v1264, %v1263
        %v1289 = vunpack.c.l.b16 %v782
        %v1290 = vunpack.c.l.b16 %v783
        %v1291 = vunpack.c.l.b16 %v784
        %v1292 = vunpack.c.l.b16 %v785
        %v1293 = vunpack.c.l.b16 %v786
        %v1294 = vunpack.c.l.b16 %v787
        %v1295 = vunpack.c.l.b16 %v788
        %v1296 = vunpack.c.l.b16 %v789
        %v1297 = vunpack.c.l.b16 %v790
        %v1298 = vunpack.c.l.b16 %v791
        %v1299 = vunpack.c.l.b16 %v792
        %v1300 = vunpack.c.l.b16 %v793
        %v1301 = vunpack.c.l.b16 %v794
        %v1302 = vunpack.c.l.b16 %v795
        %v1303 = vunpack.c.l.b16 %v796
        %v1304 = vunpack.c.l.b16 %v797
        %v1305 = vpack.c.b16 %v1290, %v1289
        %v1306 = vpack.c.b16 %v1292, %v1291
        %v1307 = vpack.c.b16 %v1294, %v1293
        %v1308 = vpack.c.b16 %v1296, %v1295
        %v1309 = vpack.c.b16 %v1298, %v1297
        %v1310 = vpack.c.b16 %v1300, %v1299
        %v1311 = vpack.c.b16 %v1302, %v1301
        %v1312 = vpack.c.b16 %v1304, %v1303
        %v1314 = vsel %vm958, %v1265, 0
        %v1317 = vsel %vm958, %v1266, 0
        %v1320 = vsel %vm958, %v1267, 0
        %v1323 = vsel %vm958, %v1268, 0
        %v1326 = vsel %vm958, %v1269, 0
        %v1329 = vsel %vm958, %v1270, 0
        %v1332 = vsel %vm958, %v1271, 0
        %v1335 = vsel %vm958, %v1272, 0
        %v1338 = vsel %vm958, %v1305, 0
        %v1341 = vsel %vm958, %v1306, 0
        %v1344 = vsel %vm958, %v1307, 0
        %v1347 = vsel %vm958, %v1308, 0
        %v1350 = vsel %vm958, %v1309, 0
        %v1353 = vsel %vm958, %v1310, 0
        %v1356 = vsel %vm958, %v1311, 0
        %v1359 = vsel %vm958, %v1312, 0
        %1361 = vmatpush.bf16.xpose.msra.mxu0 %v1359
        %1362 = vmatpush.bf16.xpose.msra.mxu0 %v1356
        %1363 = vmatpush.bf16.xpose.msra.mxu0 %v1353
        %1364 = vmatpush.bf16.xpose.msra.mxu0 %v1350
        %1365 = vmatpush.bf16.xpose.msra.mxu0 %v1347
        %1366 = vmatpush.bf16.xpose.msra.mxu0 %v1344
        %1367 = vmatpush.bf16.xpose.msra.mxu0 %v1341
        %1368 = vmatpush.bf16.xpose.msra.mxu0 %v1338
        %1369 = vmatmul.bf16.gmra.mxu0 %v1314
        %v1370 = vpop.f32.mrf.mxu0
        %v1371 = vadd.f32 0.0, %v1370
        %v1372 = vpop.f32.mrf.mxu0
        %v1373 = vadd.f32 0.0, %v1372
        %1374 = vmatmul.bf16.gmra.mxu0 %v1317
        %v1375 = vpop.f32.mrf.mxu0
        %v1376 = vadd.f32 0.0, %v1375
        %v1377 = vpop.f32.mrf.mxu0
        %v1378 = vadd.f32 0.0, %v1377
        %1379 = vmatmul.bf16.gmra.mxu0 %v1320
        %v1380 = vpop.f32.mrf.mxu0
        %v1381 = vadd.f32 0.0, %v1380
        %v1382 = vpop.f32.mrf.mxu0
        %v1383 = vadd.f32 0.0, %v1382
        %1384 = vmatmul.bf16.gmra.mxu0 %v1323
        %v1385 = vpop.f32.mrf.mxu0
        %v1386 = vadd.f32 0.0, %v1385
        %v1387 = vpop.f32.mrf.mxu0
        %v1388 = vadd.f32 0.0, %v1387
        %1389 = vmatmul.bf16.gmra.mxu0 %v1326
        %v1390 = vpop.f32.mrf.mxu0
        %v1391 = vadd.f32 0.0, %v1390
        %v1392 = vpop.f32.mrf.mxu0
        %v1393 = vadd.f32 0.0, %v1392
        %1394 = vmatmul.bf16.gmra.mxu0 %v1329
        %v1395 = vpop.f32.mrf.mxu0
        %v1396 = vadd.f32 0.0, %v1395
        %v1397 = vpop.f32.mrf.mxu0
        %v1398 = vadd.f32 0.0, %v1397
        %1399 = vmatmul.bf16.gmra.mxu0 %v1332
        %v1400 = vpop.f32.mrf.mxu0
        %v1401 = vadd.f32 0.0, %v1400
        %v1402 = vpop.f32.mrf.mxu0
        %v1403 = vadd.f32 0.0, %v1402
        %1404 = vmatmul.bf16.gmra.mxu0 %v1335
        %v1405 = vpop.f32.mrf.mxu0
        %v1406 = vadd.f32 0.0, %v1405
        %v1407 = vpop.f32.mrf.mxu0
        %v1408 = vadd.f32 0.0, %v1407
        %1409 = vdwg.mxu0
        %v1426 = vunpack.c.l.b16 %v734
        %v1427 = vunpack.c.l.b16 %v735
        %v1428 = vunpack.c.l.b16 %v736
        %v1429 = vunpack.c.l.b16 %v737
        %v1430 = vunpack.c.l.b16 %v738
        %v1431 = vunpack.c.l.b16 %v739
        %v1432 = vunpack.c.l.b16 %v740
        %v1433 = vunpack.c.l.b16 %v741
        %v1434 = vunpack.c.l.b16 %v742
        %v1435 = vunpack.c.l.b16 %v743
        %v1436 = vunpack.c.l.b16 %v744
        %v1437 = vunpack.c.l.b16 %v745
        %v1438 = vunpack.c.l.b16 %v746
        %v1439 = vunpack.c.l.b16 %v747
        %v1440 = vunpack.c.l.b16 %v748
        %v1441 = vunpack.c.l.b16 %v749
        %v1442 = vpack.c.b16 %v1427, %v1426
        %v1443 = vpack.c.b16 %v1429, %v1428
        %v1444 = vpack.c.b16 %v1431, %v1430
        %v1445 = vpack.c.b16 %v1433, %v1432
        %v1446 = vpack.c.b16 %v1435, %v1434
        %v1447 = vpack.c.b16 %v1437, %v1436
        %v1448 = vpack.c.b16 %v1439, %v1438
        %v1449 = vpack.c.b16 %v1441, %v1440
        %v1466 = vunpack.c.l.b16 %v798
        %v1467 = vunpack.c.l.b16 %v799
        %v1468 = vunpack.c.l.b16 %v800
        %v1469 = vunpack.c.l.b16 %v801
        %v1470 = vunpack.c.l.b16 %v802
        %v1471 = vunpack.c.l.b16 %v803
        %v1472 = vunpack.c.l.b16 %v804
        %v1473 = vunpack.c.l.b16 %v805
        %v1474 = vunpack.c.l.b16 %v806
        %v1475 = vunpack.c.l.b16 %v807
        %v1476 = vunpack.c.l.b16 %v808
        %v1477 = vunpack.c.l.b16 %v809
        %v1478 = vunpack.c.l.b16 %v810
        %v1479 = vunpack.c.l.b16 %v811
        %v1480 = vunpack.c.l.b16 %v812
        %v1481 = vunpack.c.l.b16 %v813
        %v1482 = vpack.c.b16 %v1467, %v1466
        %v1483 = vpack.c.b16 %v1469, %v1468
        %v1484 = vpack.c.b16 %v1471, %v1470
        %v1485 = vpack.c.b16 %v1473, %v1472
        %v1486 = vpack.c.b16 %v1475, %v1474
        %v1487 = vpack.c.b16 %v1477, %v1476
        %v1488 = vpack.c.b16 %v1479, %v1478
        %v1489 = vpack.c.b16 %v1481, %v1480
        %v1491 = vsel %vm958, %v1442, 0
        %v1494 = vsel %vm958, %v1443, 0
        %v1497 = vsel %vm958, %v1444, 0
        %v1500 = vsel %vm958, %v1445, 0
        %v1503 = vsel %vm958, %v1446, 0
        %v1506 = vsel %vm958, %v1447, 0
        %v1509 = vsel %vm958, %v1448, 0
        %v1512 = vsel %vm958, %v1449, 0
        %v1515 = vsel %vm958, %v1482, 0
        %v1518 = vsel %vm958, %v1483, 0
        %v1521 = vsel %vm958, %v1484, 0
        %v1524 = vsel %vm958, %v1485, 0
        %v1527 = vsel %vm958, %v1486, 0
        %v1530 = vsel %vm958, %v1487, 0
        %v1533 = vsel %vm958, %v1488, 0
        %v1536 = vsel %vm958, %v1489, 0
        %1538 = vmatpush.bf16.xpose.msra.mxu0 %v1536
        %1539 = vmatpush.bf16.xpose.msra.mxu0 %v1533
        %1540 = vmatpush.bf16.xpose.msra.mxu0 %v1530
        %1541 = vmatpush.bf16.xpose.msra.mxu0 %v1527
        %1542 = vmatpush.bf16.xpose.msra.mxu0 %v1524
        %1543 = vmatpush.bf16.xpose.msra.mxu0 %v1521
        %1544 = vmatpush.bf16.xpose.msra.mxu0 %v1518
        %1545 = vmatpush.bf16.xpose.msra.mxu0 %v1515
        %1546 = vmatmul.bf16.gmra.mxu0 %v1491
        %v1547 = vpop.f32.mrf.mxu0
        %v1548 = vadd.f32 0.0, %v1547
        %v1549 = vpop.f32.mrf.mxu0
        %v1550 = vadd.f32 0.0, %v1549
        %1551 = vmatmul.bf16.gmra.mxu0 %v1494
        %v1552 = vpop.f32.mrf.mxu0
        %v1553 = vadd.f32 0.0, %v1552
        %v1554 = vpop.f32.mrf.mxu0
        %v1555 = vadd.f32 0.0, %v1554
        %1556 = vmatmul.bf16.gmra.mxu0 %v1497
        %v1557 = vpop.f32.mrf.mxu0
        %v1558 = vadd.f32 0.0, %v1557
        %v1559 = vpop.f32.mrf.mxu0
        %v1560 = vadd.f32 0.0, %v1559
        %1561 = vmatmul.bf16.gmra.mxu0 %v1500
        %v1562 = vpop.f32.mrf.mxu0
        %v1563 = vadd.f32 0.0, %v1562
        %v1564 = vpop.f32.mrf.mxu0
        %v1565 = vadd.f32 0.0, %v1564
        %1566 = vmatmul.bf16.gmra.mxu0 %v1503
        %v1567 = vpop.f32.mrf.mxu0
        %v1568 = vadd.f32 0.0, %v1567
        %v1569 = vpop.f32.mrf.mxu0
        %v1570 = vadd.f32 0.0, %v1569
        %1571 = vmatmul.bf16.gmra.mxu0 %v1506
        %v1572 = vpop.f32.mrf.mxu0
        %v1573 = vadd.f32 0.0, %v1572
        %v1574 = vpop.f32.mrf.mxu0
        %v1575 = vadd.f32 0.0, %v1574
        %1576 = vmatmul.bf16.gmra.mxu0 %v1509
        %v1577 = vpop.f32.mrf.mxu0
        %v1578 = vadd.f32 0.0, %v1577
        %v1579 = vpop.f32.mrf.mxu0
        %v1580 = vadd.f32 0.0, %v1579
        %1581 = vmatmul.bf16.gmra.mxu0 %v1512
        %v1582 = vpop.f32.mrf.mxu0
        %v1583 = vadd.f32 0.0, %v1582
        %v1584 = vpop.f32.mrf.mxu0
        %v1585 = vadd.f32 0.0, %v1584
        %1586 = vdwg.mxu0
        %v1587 = vlaneseq
        %v1588 = vshrl.u32 %v1587, 7
        %v1589 = vadd.s32 %v1588, 8
        %v1590 = vadd.s32 %v1588, 16
        %v1591 = vadd.s32 %v1588, 24
        %v1592 = vadd.s32 %v1588, 32
        %v1593 = vadd.s32 %v1588, 40
        %v1594 = vadd.s32 %v1588, 48
        %v1595 = vadd.s32 %v1588, 56
        %v1596 = vadd.s32 %v1588, 64
        %v1597 = vadd.s32 %v1588, 72
        %v1598 = vadd.s32 %v1588, 80
        %v1599 = vadd.s32 %v1588, 88
        %v1600 = vadd.s32 %v1588, 96
        %v1601 = vadd.s32 %v1588, 104
        %v1602 = vadd.s32 %v1588, 112
        %v1603 = vadd.s32 %v1588, 120
        %v1604 = vstv %s487
        %v1605 = vadd.s32 %v1604, %v1588
        %v1606 = vadd.s32 %v1604, %v1589
        %v1607 = vadd.s32 %v1604, %v1590
        %v1608 = vadd.s32 %v1604, %v1591
        %v1609 = vadd.s32 %v1604, %v1592
        %v1610 = vadd.s32 %v1604, %v1593
        %v1611 = vadd.s32 %v1604, %v1594
        %v1612 = vadd.s32 %v1604, %v1595
        %v1613 = vadd.s32 %v1604, %v1596
        %v1614 = vadd.s32 %v1604, %v1597
        %v1615 = vadd.s32 %v1604, %v1598
        %v1616 = vadd.s32 %v1604, %v1599
        %v1617 = vadd.s32 %v1604, %v1600
        %v1618 = vadd.s32 %v1604, %v1601
        %v1619 = vadd.s32 %v1604, %v1602
        %v1620 = vadd.s32 %v1604, %v1603
        %v1621 = vlaneseq
        %v1622 = vand.u32 %v1621, 127
        %v1623 = vstv %s488
        %v1624 = vadd.s32 %v1623, %v1622
        %vm1625 = vcmp.le.s32.totalorder %v1624, %v1605
        %vm1626 = vcmp.le.s32.totalorder %v1624, %v1606
        %vm1627 = vcmp.le.s32.totalorder %v1624, %v1607
        %vm1628 = vcmp.le.s32.totalorder %v1624, %v1608
        %vm1629 = vcmp.le.s32.totalorder %v1624, %v1609
        %vm1630 = vcmp.le.s32.totalorder %v1624, %v1610
        %vm1631 = vcmp.le.s32.totalorder %v1624, %v1611
        %vm1632 = vcmp.le.s32.totalorder %v1624, %v1612
        %vm1633 = vcmp.le.s32.totalorder %v1624, %v1613
        %vm1634 = vcmp.le.s32.totalorder %v1624, %v1614
        %vm1635 = vcmp.le.s32.totalorder %v1624, %v1615
        %vm1636 = vcmp.le.s32.totalorder %v1624, %v1616
        %vm1637 = vcmp.le.s32.totalorder %v1624, %v1617
        %vm1638 = vcmp.le.s32.totalorder %v1624, %v1618
        %vm1639 = vcmp.le.s32.totalorder %v1624, %v1619
        %vm1640 = vcmp.le.s32.totalorder %v1624, %v1620
        %v1641 = vsel %vm1625, 1, 0
        %v1642 = vsel %vm1626, 1, 0
        %v1643 = vsel %vm1627, 1, 0
        %v1644 = vsel %vm1628, 1, 0
        %v1645 = vsel %vm1629, 1, 0
        %v1646 = vsel %vm1630, 1, 0
        %v1647 = vsel %vm1631, 1, 0
        %v1648 = vsel %vm1632, 1, 0
        %v1649 = vsel %vm1633, 1, 0
        %v1650 = vsel %vm1634, 1, 0
        %v1651 = vsel %vm1635, 1, 0
        %v1652 = vsel %vm1636, 1, 0
        %v1653 = vsel %vm1637, 1, 0
        %v1654 = vsel %vm1638, 1, 0
        %v1655 = vsel %vm1639, 1, 0
        %v1656 = vsel %vm1640, 1, 0
        %vm1657 = vcmp.eq.s32.totalorder %v1641, 1
        %vm1658 = vcmp.eq.s32.totalorder %v1642, 1
        %vm1659 = vcmp.eq.s32.totalorder %v1643, 1
        %vm1660 = vcmp.eq.s32.totalorder %v1644, 1
        %vm1661 = vcmp.eq.s32.totalorder %v1645, 1
        %vm1662 = vcmp.eq.s32.totalorder %v1646, 1
        %vm1663 = vcmp.eq.s32.totalorder %v1647, 1
        %vm1664 = vcmp.eq.s32.totalorder %v1648, 1
        %vm1665 = vcmp.eq.s32.totalorder %v1649, 1
        %vm1666 = vcmp.eq.s32.totalorder %v1650, 1
        %vm1667 = vcmp.eq.s32.totalorder %v1651, 1
        %vm1668 = vcmp.eq.s32.totalorder %v1652, 1
        %vm1669 = vcmp.eq.s32.totalorder %v1653, 1
        %vm1670 = vcmp.eq.s32.totalorder %v1654, 1
        %vm1671 = vcmp.eq.s32.totalorder %v1655, 1
        %vm1672 = vcmp.eq.s32.totalorder %v1656, 1
        %v1673 = vsel %vm1657, %v1017, -1e+30
        %v1674 = vsel %vm1658, %v1019, -1e+30
        %v1675 = vsel %vm1659, %v1022, -1e+30
        %v1676 = vsel %vm1660, %v1024, -1e+30
        %v1677 = vsel %vm1661, %v1027, -1e+30
        %v1678 = vsel %vm1662, %v1029, -1e+30
        %v1679 = vsel %vm1663, %v1032, -1e+30
        %v1680 = vsel %vm1664, %v1034, -1e+30
        %v1681 = vsel %vm1665, %v1037, -1e+30
        %v1682 = vsel %vm1666, %v1039, -1e+30
        %v1683 = vsel %vm1667, %v1042, -1e+30
        %v1684 = vsel %vm1668, %v1044, -1e+30
        %v1685 = vsel %vm1669, %v1047, -1e+30
        %v1686 = vsel %vm1670, %v1049, -1e+30
        %v1687 = vsel %vm1671, %v1052, -1e+30
        %v1688 = vsel %vm1672, %v1054, -1e+30
        %v1689 = vsel %vm1657, %v1194, -1e+30
        %v1690 = vsel %vm1658, %v1196, -1e+30
        %v1691 = vsel %vm1659, %v1199, -1e+30
        %v1692 = vsel %vm1660, %v1201, -1e+30
        %v1693 = vsel %vm1661, %v1204, -1e+30
        %v1694 = vsel %vm1662, %v1206, -1e+30
        %v1695 = vsel %vm1663, %v1209, -1e+30
        %v1696 = vsel %vm1664, %v1211, -1e+30
        %v1697 = vsel %vm1665, %v1214, -1e+30
        %v1698 = vsel %vm1666, %v1216, -1e+30
        %v1699 = vsel %vm1667, %v1219, -1e+30
        %v1700 = vsel %vm1668, %v1221, -1e+30
        %v1701 = vsel %vm1669, %v1224, -1e+30
        %v1702 = vsel %vm1670, %v1226, -1e+30
        %v1703 = vsel %vm1671, %v1229, -1e+30
        %v1704 = vsel %vm1672, %v1231, -1e+30
        %v1705 = vsel %vm1657, %v1371, -1e+30
        %v1706 = vsel %vm1658, %v1373, -1e+30
        %v1707 = vsel %vm1659, %v1376, -1e+30
        %v1708 = vsel %vm1660, %v1378, -1e+30
        %v1709 = vsel %vm1661, %v1381, -1e+30
        %v1710 = vsel %vm1662, %v1383, -1e+30
        %v1711 = vsel %vm1663, %v1386, -1e+30
        %v1712 = vsel %vm1664, %v1388, -1e+30
        %v1713 = vsel %vm1665, %v1391, -1e+30
        %v1714 = vsel %vm1666, %v1393, -1e+30
        %v1715 = vsel %vm1667, %v1396, -1e+30
        %v1716 = vsel %vm1668, %v1398, -1e+30
        %v1717 = vsel %vm1669, %v1401, -1e+30
        %v1718 = vsel %vm1670, %v1403, -1e+30
        %v1719 = vsel %vm1671, %v1406, -1e+30
        %v1720 = vsel %vm1672, %v1408, -1e+30
        %v1721 = vsel %vm1657, %v1548, -1e+30
        %v1722 = vsel %vm1658, %v1550, -1e+30
        %v1723 = vsel %vm1659, %v1553, -1e+30
        %v1724 = vsel %vm1660, %v1555, -1e+30
        %v1725 = vsel %vm1661, %v1558, -1e+30
        %v1726 = vsel %vm1662, %v1560, -1e+30
        %v1727 = vsel %vm1663, %v1563, -1e+30
        %v1728 = vsel %vm1664, %v1565, -1e+30
        %v1729 = vsel %vm1665, %v1568, -1e+30
        %v1730 = vsel %vm1666, %v1570, -1e+30
        %v1731 = vsel %vm1667, %v1573, -1e+30
        %v1732 = vsel %vm1668, %v1575, -1e+30
        %v1733 = vsel %vm1669, %v1578, -1e+30
        %v1734 = vsel %vm1670, %v1580, -1e+30
        %v1735 = vsel %vm1671, %v1583, -1e+30
        %v1736 = vsel %vm1672, %v1585, -1e+30
        %v1737 = vld [vmem:[#allocation2] sm:$0xff]
        %v1738 = vld [vmem:[#allocation2 + $0x8] sm:$0xff]
        %v1739 = vld [vmem:[#allocation2 + $0x10] sm:$0xff]
        %v1740 = vld [vmem:[#allocation2 + $0x18] sm:$0xff]
        %v1741 = vld [vmem:[#allocation2 + $0x20] sm:$0xff]
        %v1742 = vld [vmem:[#allocation2 + $0x28] sm:$0xff]
        %v1743 = vld [vmem:[#allocation2 + $0x30] sm:$0xff]
        %v1744 = vld [vmem:[#allocation2 + $0x38] sm:$0xff]
        %v1745 = vld [vmem:[#allocation2 + $0x40] sm:$0xff]
        %v1746 = vld [vmem:[#allocation2 + $0x48] sm:$0xff]
        %v1747 = vld [vmem:[#allocation2 + $0x50] sm:$0xff]
        %v1748 = vld [vmem:[#allocation2 + $0x58] sm:$0xff]
        %v1749 = vld [vmem:[#allocation2 + $0x60] sm:$0xff]
        %v1750 = vld [vmem:[#allocation2 + $0x68] sm:$0xff]
        %v1751 = vld [vmem:[#allocation2 + $0x70] sm:$0xff]
        %v1752 = vld [vmem:[#allocation2 + $0x78] sm:$0xff]
        %v1753 = vld [vmem:[#allocation2 + $0x80] sm:$0xff]
        %v1754 = vld [vmem:[#allocation2 + $0x88] sm:$0xff]
        %v1755 = vld [vmem:[#allocation2 + $0x90] sm:$0xff]
        %v1756 = vld [vmem:[#allocation2 + $0x98] sm:$0xff]
        %v1757 = vld [vmem:[#allocation2 + $0xa0] sm:$0xff]
        %v1758 = vld [vmem:[#allocation2 + $0xa8] sm:$0xff]
        %v1759 = vld [vmem:[#allocation2 + $0xb0] sm:$0xff]
        %v1760 = vld [vmem:[#allocation2 + $0xb8] sm:$0xff]
        %v1761 = vld [vmem:[#allocation2 + $0xc0] sm:$0xff]
        %v1762 = vld [vmem:[#allocation2 + $0xc8] sm:$0xff]
        %v1763 = vld [vmem:[#allocation2 + $0xd0] sm:$0xff]
        %v1764 = vld [vmem:[#allocation2 + $0xd8] sm:$0xff]
        %v1765 = vld [vmem:[#allocation2 + $0xe0] sm:$0xff]
        %v1766 = vld [vmem:[#allocation2 + $0xe8] sm:$0xff]
        %v1767 = vld [vmem:[#allocation2 + $0xf0] sm:$0xff]
        %v1768 = vld [vmem:[#allocation2 + $0xf8] sm:$0xff]
        %v1769 = vld [vmem:[#allocation2 + $0x100] sm:$0xff]
        %v1770 = vld [vmem:[#allocation2 + $0x108] sm:$0xff]
        %v1771 = vld [vmem:[#allocation2 + $0x110] sm:$0xff]
        %v1772 = vld [vmem:[#allocation2 + $0x118] sm:$0xff]
        %v1773 = vld [vmem:[#allocation2 + $0x120] sm:$0xff]
        %v1774 = vld [vmem:[#allocation2 + $0x128] sm:$0xff]
        %v1775 = vld [vmem:[#allocation2 + $0x130] sm:$0xff]
        %v1776 = vld [vmem:[#allocation2 + $0x138] sm:$0xff]
        %v1777 = vld [vmem:[#allocation2 + $0x140] sm:$0xff]
        %v1778 = vld [vmem:[#allocation2 + $0x148] sm:$0xff]
        %v1779 = vld [vmem:[#allocation2 + $0x150] sm:$0xff]
        %v1780 = vld [vmem:[#allocation2 + $0x158] sm:$0xff]
        %v1781 = vld [vmem:[#allocation2 + $0x160] sm:$0xff]
        %v1782 = vld [vmem:[#allocation2 + $0x168] sm:$0xff]
        %v1783 = vld [vmem:[#allocation2 + $0x170] sm:$0xff]
        %v1784 = vld [vmem:[#allocation2 + $0x178] sm:$0xff]
        %v1785 = vld [vmem:[#allocation2 + $0x180] sm:$0xff]
        %v1786 = vld [vmem:[#allocation2 + $0x188] sm:$0xff]
        %v1787 = vld [vmem:[#allocation2 + $0x190] sm:$0xff]
        %v1788 = vld [vmem:[#allocation2 + $0x198] sm:$0xff]
        %v1789 = vld [vmem:[#allocation2 + $0x1a0] sm:$0xff]
        %v1790 = vld [vmem:[#allocation2 + $0x1a8] sm:$0xff]
        %v1791 = vld [vmem:[#allocation2 + $0x1b0] sm:$0xff]
        %v1792 = vld [vmem:[#allocation2 + $0x1b8] sm:$0xff]
        %v1793 = vld [vmem:[#allocation2 + $0x1c0] sm:$0xff]
        %v1794 = vld [vmem:[#allocation2 + $0x1c8] sm:$0xff]
        %v1795 = vld [vmem:[#allocation2 + $0x1d0] sm:$0xff]
        %v1796 = vld [vmem:[#allocation2 + $0x1d8] sm:$0xff]
        %v1797 = vld [vmem:[#allocation2 + $0x1e0] sm:$0xff]
        %v1798 = vld [vmem:[#allocation2 + $0x1e8] sm:$0xff]
        %v1799 = vld [vmem:[#allocation2 + $0x1f0] sm:$0xff]
        %v1800 = vld [vmem:[#allocation2 + $0x1f8] sm:$0xff]
        %1801 = vmax.xlane.f32.xlu0 %v1673
        %v1802 = vpop.xlane.xlu0 %1801
        %1803 = vmax.xlane.f32.xlu0 %v1674
        %v1804 = vpop.xlane.xlu0 %1803
        %1805 = vmax.xlane.f32.xlu0 %v1675
        %v1806 = vpop.xlane.xlu0 %1805
        %1807 = vmax.xlane.f32.xlu0 %v1676
        %v1808 = vpop.xlane.xlu0 %1807
        %1809 = vmax.xlane.f32.xlu0 %v1677
        %v1810 = vpop.xlane.xlu0 %1809
        %1811 = vmax.xlane.f32.xlu0 %v1678
        %v1812 = vpop.xlane.xlu0 %1811
        %1813 = vmax.xlane.f32.xlu0 %v1679
        %v1814 = vpop.xlane.xlu0 %1813
        %1815 = vmax.xlane.f32.xlu0 %v1680
        %v1816 = vpop.xlane.xlu0 %1815
        %1817 = vmax.xlane.f32.xlu0 %v1681
        %v1818 = vpop.xlane.xlu0 %1817
        %1819 = vmax.xlane.f32.xlu0 %v1682
        %v1820 = vpop.xlane.xlu0 %1819
        %1821 = vmax.xlane.f32.xlu0 %v1683
        %v1822 = vpop.xlane.xlu0 %1821
        %1823 = vmax.xlane.f32.xlu0 %v1684
        %v1824 = vpop.xlane.xlu0 %1823
        %1825 = vmax.xlane.f32.xlu0 %v1685
        %v1826 = vpop.xlane.xlu0 %1825
        %1827 = vmax.xlane.f32.xlu0 %v1686
        %v1828 = vpop.xlane.xlu0 %1827
        %1829 = vmax.xlane.f32.xlu0 %v1687
        %v1830 = vpop.xlane.xlu0 %1829
        %1831 = vmax.xlane.f32.xlu0 %v1688
        %v1832 = vpop.xlane.xlu0 %1831
        %1833 = vmax.xlane.f32.xlu0 %v1689
        %v1834 = vpop.xlane.xlu0 %1833
        %1835 = vmax.xlane.f32.xlu0 %v1690
        %v1836 = vpop.xlane.xlu0 %1835
        %1837 = vmax.xlane.f32.xlu0 %v1691
        %v1838 = vpop.xlane.xlu0 %1837
        %1839 = vmax.xlane.f32.xlu0 %v1692
        %v1840 = vpop.xlane.xlu0 %1839
        %1841 = vmax.xlane.f32.xlu0 %v1693
        %v1842 = vpop.xlane.xlu0 %1841
        %1843 = vmax.xlane.f32.xlu0 %v1694
        %v1844 = vpop.xlane.xlu0 %1843
        %1845 = vmax.xlane.f32.xlu0 %v1695
        %v1846 = vpop.xlane.xlu0 %1845
        %1847 = vmax.xlane.f32.xlu0 %v1696
        %v1848 = vpop.xlane.xlu0 %1847
        %1849 = vmax.xlane.f32.xlu0 %v1697
        %v1850 = vpop.xlane.xlu0 %1849
        %1851 = vmax.xlane.f32.xlu0 %v1698
        %v1852 = vpop.xlane.xlu0 %1851
        %1853 = vmax.xlane.f32.xlu0 %v1699
        %v1854 = vpop.xlane.xlu0 %1853
        %1855 = vmax.xlane.f32.xlu0 %v1700
        %v1856 = vpop.xlane.xlu0 %1855
        %1857 = vmax.xlane.f32.xlu0 %v1701
        %v1858 = vpop.xlane.xlu0 %1857
        %1859 = vmax.xlane.f32.xlu0 %v1702
        %v1860 = vpop.xlane.xlu0 %1859
        %1861 = vmax.xlane.f32.xlu0 %v1703
        %v1862 = vpop.xlane.xlu0 %1861
        %1863 = vmax.xlane.f32.xlu0 %v1704
        %v1864 = vpop.xlane.xlu0 %1863
        %1865 = vmax.xlane.f32.xlu0 %v1705
        %v1866 = vpop.xlane.xlu0 %1865
        %1867 = vmax.xlane.f32.xlu0 %v1706
        %v1868 = vpop.xlane.xlu0 %1867
        %1869 = vmax.xlane.f32.xlu0 %v1707
        %v1870 = vpop.xlane.xlu0 %1869
        %1871 = vmax.xlane.f32.xlu0 %v1708
        %v1872 = vpop.xlane.xlu0 %1871
        %1873 = vmax.xlane.f32.xlu0 %v1709
        %v1874 = vpop.xlane.xlu0 %1873
        %1875 = vmax.xlane.f32.xlu0 %v1710
        %v1876 = vpop.xlane.xlu0 %1875
        %1877 = vmax.xlane.f32.xlu0 %v1711
        %v1878 = vpop.xlane.xlu0 %1877
        %1879 = vmax.xlane.f32.xlu0 %v1712
        %v1880 = vpop.xlane.xlu0 %1879
        %1881 = vmax.xlane.f32.xlu0 %v1713
        %v1882 = vpop.xlane.xlu0 %1881
        %1883 = vmax.xlane.f32.xlu0 %v1714
        %v1884 = vpop.xlane.xlu0 %1883
        %1885 = vmax.xlane.f32.xlu0 %v1715
        %v1886 = vpop.xlane.xlu0 %1885
        %1887 = vmax.xlane.f32.xlu0 %v1716
        %v1888 = vpop.xlane.xlu0 %1887
        %1889 = vmax.xlane.f32.xlu0 %v1717
        %v1890 = vpop.xlane.xlu0 %1889
        %1891 = vmax.xlane.f32.xlu0 %v1718
        %v1892 = vpop.xlane.xlu0 %1891
        %1893 = vmax.xlane.f32.xlu0 %v1719
        %v1894 = vpop.xlane.xlu0 %1893
        %1895 = vmax.xlane.f32.xlu0 %v1720
        %v1896 = vpop.xlane.xlu0 %1895
        %1897 = vmax.xlane.f32.xlu0 %v1721
        %v1898 = vpop.xlane.xlu0 %1897
        %1899 = vmax.xlane.f32.xlu0 %v1722
        %v1900 = vpop.xlane.xlu0 %1899
        %1901 = vmax.xlane.f32.xlu0 %v1723
        %v1902 = vpop.xlane.xlu0 %1901
        %1903 = vmax.xlane.f32.xlu0 %v1724
        %v1904 = vpop.xlane.xlu0 %1903
        %1905 = vmax.xlane.f32.xlu0 %v1725
        %v1906 = vpop.xlane.xlu0 %1905
        %1907 = vmax.xlane.f32.xlu0 %v1726
        %v1908 = vpop.xlane.xlu0 %1907
        %1909 = vmax.xlane.f32.xlu0 %v1727
        %v1910 = vpop.xlane.xlu0 %1909
        %1911 = vmax.xlane.f32.xlu0 %v1728
        %v1912 = vpop.xlane.xlu0 %1911
        %1913 = vmax.xlane.f32.xlu0 %v1729
        %v1914 = vpop.xlane.xlu0 %1913
        %1915 = vmax.xlane.f32.xlu0 %v1730
        %v1916 = vpop.xlane.xlu0 %1915
        %1917 = vmax.xlane.f32.xlu0 %v1731
        %v1918 = vpop.xlane.xlu0 %1917
        %1919 = vmax.xlane.f32.xlu0 %v1732
        %v1920 = vpop.xlane.xlu0 %1919
        %1921 = vmax.xlane.f32.xlu0 %v1733
        %v1922 = vpop.xlane.xlu0 %1921
        %1923 = vmax.xlane.f32.xlu0 %v1734
        %v1924 = vpop.xlane.xlu0 %1923
        %1925 = vmax.xlane.f32.xlu0 %v1735
        %v1926 = vpop.xlane.xlu0 %1925
        %1927 = vmax.xlane.f32.xlu0 %v1736
        %v1928 = vpop.xlane.xlu0 %1927
        %v1929 = vmax.f32 %v1737, %v1802
        %v1930 = vmax.f32 %v1738, %v1804
        %v1931 = vmax.f32 %v1739, %v1806
        %v1932 = vmax.f32 %v1740, %v1808
        %v1933 = vmax.f32 %v1741, %v1810
        %v1934 = vmax.f32 %v1742, %v1812
        %v1935 = vmax.f32 %v1743, %v1814
        %v1936 = vmax.f32 %v1744, %v1816
        %v1937 = vmax.f32 %v1745, %v1818
        %v1938 = vmax.f32 %v1746, %v1820
        %v1939 = vmax.f32 %v1747, %v1822
        %v1940 = vmax.f32 %v1748, %v1824
        %v1941 = vmax.f32 %v1749, %v1826
        %v1942 = vmax.f32 %v1750, %v1828
        %v1943 = vmax.f32 %v1751, %v1830
        %v1944 = vmax.f32 %v1752, %v1832
        %v1945 = vmax.f32 %v1753, %v1834
        %v1946 = vmax.f32 %v1754, %v1836
        %v1947 = vmax.f32 %v1755, %v1838
        %v1948 = vmax.f32 %v1756, %v1840
        %v1949 = vmax.f32 %v1757, %v1842
        %v1950 = vmax.f32 %v1758, %v1844
        %v1951 = vmax.f32 %v1759, %v1846
        %v1952 = vmax.f32 %v1760, %v1848
        %v1953 = vmax.f32 %v1761, %v1850
        %v1954 = vmax.f32 %v1762, %v1852
        %v1955 = vmax.f32 %v1763, %v1854
        %v1956 = vmax.f32 %v1764, %v1856
        %v1957 = vmax.f32 %v1765, %v1858
        %v1958 = vmax.f32 %v1766, %v1860
        %v1959 = vmax.f32 %v1767, %v1862
        %v1960 = vmax.f32 %v1768, %v1864
        %v1961 = vmax.f32 %v1769, %v1866
        %v1962 = vmax.f32 %v1770, %v1868
        %v1963 = vmax.f32 %v1771, %v1870
        %v1964 = vmax.f32 %v1772, %v1872
        %v1965 = vmax.f32 %v1773, %v1874
        %v1966 = vmax.f32 %v1774, %v1876
        %v1967 = vmax.f32 %v1775, %v1878
        %v1968 = vmax.f32 %v1776, %v1880
        %v1969 = vmax.f32 %v1777, %v1882
        %v1970 = vmax.f32 %v1778, %v1884
        %v1971 = vmax.f32 %v1779, %v1886
        %v1972 = vmax.f32 %v1780, %v1888
        %v1973 = vmax.f32 %v1781, %v1890
        %v1974 = vmax.f32 %v1782, %v1892
        %v1975 = vmax.f32 %v1783, %v1894
        %v1976 = vmax.f32 %v1784, %v1896
        %v1977 = vmax.f32 %v1785, %v1898
        %v1978 = vmax.f32 %v1786, %v1900
        %v1979 = vmax.f32 %v1787, %v1902
        %v1980 = vmax.f32 %v1788, %v1904
        %v1981 = vmax.f32 %v1789, %v1906
        %v1982 = vmax.f32 %v1790, %v1908
        %v1983 = vmax.f32 %v1791, %v1910
        %v1984 = vmax.f32 %v1792, %v1912
        %v1985 = vmax.f32 %v1793, %v1914
        %v1986 = vmax.f32 %v1794, %v1916
        %v1987 = vmax.f32 %v1795, %v1918
        %v1988 = vmax.f32 %v1796, %v1920
        %v1989 = vmax.f32 %v1797, %v1922
        %v1990 = vmax.f32 %v1798, %v1924
        %v1991 = vmax.f32 %v1799, %v1926
        %v1992 = vmax.f32 %v1800, %v1928
        %v1993 = vsub.f32 %v1737, %v1929
        %v1994 = vsub.f32 %v1738, %v1930
        %v1995 = vsub.f32 %v1739, %v1931
        %v1996 = vsub.f32 %v1740, %v1932
        %v1997 = vsub.f32 %v1741, %v1933
        %v1998 = vsub.f32 %v1742, %v1934
        %v1999 = vsub.f32 %v1743, %v1935
        %v2000 = vsub.f32 %v1744, %v1936
        %v2001 = vsub.f32 %v1745, %v1937
        %v2002 = vsub.f32 %v1746, %v1938
        %v2003 = vsub.f32 %v1747, %v1939
        %v2004 = vsub.f32 %v1748, %v1940
        %v2005 = vsub.f32 %v1749, %v1941
        %v2006 = vsub.f32 %v1750, %v1942
        %v2007 = vsub.f32 %v1751, %v1943
        %v2008 = vsub.f32 %v1752, %v1944
        %v2009 = vsub.f32 %v1753, %v1945
        %v2010 = vsub.f32 %v1754, %v1946
        %v2011 = vsub.f32 %v1755, %v1947
        %v2012 = vsub.f32 %v1756, %v1948
        %v2013 = vsub.f32 %v1757, %v1949
        %v2014 = vsub.f32 %v1758, %v1950
        %v2015 = vsub.f32 %v1759, %v1951
        %v2016 = vsub.f32 %v1760, %v1952
        %v2017 = vsub.f32 %v1761, %v1953
        %v2018 = vsub.f32 %v1762, %v1954
        %v2019 = vsub.f32 %v1763, %v1955
        %v2020 = vsub.f32 %v1764, %v1956
        %v2021 = vsub.f32 %v1765, %v1957
        %v2022 = vsub.f32 %v1766, %v1958
        %v2023 = vsub.f32 %v1767, %v1959
        %v2024 = vsub.f32 %v1768, %v1960
        %v2025 = vsub.f32 %v1769, %v1961
        %v2026 = vsub.f32 %v1770, %v1962
        %v2027 = vsub.f32 %v1771, %v1963
        %v2028 = vsub.f32 %v1772, %v1964
        %v2029 = vsub.f32 %v1773, %v1965
        %v2030 = vsub.f32 %v1774, %v1966
        %v2031 = vsub.f32 %v1775, %v1967
        %v2032 = vsub.f32 %v1776, %v1968
        %v2033 = vsub.f32 %v1777, %v1969
        %v2034 = vsub.f32 %v1778, %v1970
        %v2035 = vsub.f32 %v1779, %v1971
        %v2036 = vsub.f32 %v1780, %v1972
        %v2037 = vsub.f32 %v1781, %v1973
        %v2038 = vsub.f32 %v1782, %v1974
        %v2039 = vsub.f32 %v1783, %v1975
        %v2040 = vsub.f32 %v1784, %v1976
        %v2041 = vsub.f32 %v1785, %v1977
        %v2042 = vsub.f32 %v1786, %v1978
        %v2043 = vsub.f32 %v1787, %v1979
        %v2044 = vsub.f32 %v1788, %v1980
        %v2045 = vsub.f32 %v1789, %v1981
        %v2046 = vsub.f32 %v1790, %v1982
        %v2047 = vsub.f32 %v1791, %v1983
        %v2048 = vsub.f32 %v1792, %v1984
        %v2049 = vsub.f32 %v1793, %v1985
        %v2050 = vsub.f32 %v1794, %v1986
        %v2051 = vsub.f32 %v1795, %v1987
        %v2052 = vsub.f32 %v1796, %v1988
        %v2053 = vsub.f32 %v1797, %v1989
        %v2054 = vsub.f32 %v1798, %v1990
        %v2055 = vsub.f32 %v1799, %v1991
        %v2056 = vsub.f32 %v1800, %v1992
        %v2057 = vmul.f32 %v1993, 1.442695
        %v2058 = vpow.pop %v2057
        %v2059 = vmul.f32 %v1994, 1.442695
        %v2060 = vpow.pop %v2059
        %v2061 = vmul.f32 %v1995, 1.442695
        %v2062 = vpow.pop %v2061
        %v2063 = vmul.f32 %v1996, 1.442695
        %v2064 = vpow.pop %v2063
        %v2065 = vmul.f32 %v1997, 1.442695
        %v2066 = vpow.pop %v2065
        %v2067 = vmul.f32 %v1998, 1.442695
        %v2068 = vpow.pop %v2067
        %v2069 = vmul.f32 %v1999, 1.442695
        %v2070 = vpow.pop %v2069
        %v2071 = vmul.f32 %v2000, 1.442695
        %v2072 = vpow.pop %v2071
        %v2073 = vmul.f32 %v2001, 1.442695
        %v2074 = vpow.pop %v2073
        %v2075 = vmul.f32 %v2002, 1.442695
        %v2076 = vpow.pop %v2075
        %v2077 = vmul.f32 %v2003, 1.442695
        %v2078 = vpow.pop %v2077
        %v2079 = vmul.f32 %v2004, 1.442695
        %v2080 = vpow.pop %v2079
        %v2081 = vmul.f32 %v2005, 1.442695
        %v2082 = vpow.pop %v2081
        %v2083 = vmul.f32 %v2006, 1.442695
        %v2084 = vpow.pop %v2083
        %v2085 = vmul.f32 %v2007, 1.442695
        %v2086 = vpow.pop %v2085
        %v2087 = vmul.f32 %v2008, 1.442695
        %v2088 = vpow.pop %v2087
        %v2089 = vmul.f32 %v2009, 1.442695
        %v2090 = vpow.pop %v2089
        %v2091 = vmul.f32 %v2010, 1.442695
        %v2092 = vpow.pop %v2091
        %v2093 = vmul.f32 %v2011, 1.442695
        %v2094 = vpow.pop %v2093
        %v2095 = vmul.f32 %v2012, 1.442695
        %v2096 = vpow.pop %v2095
        %v2097 = vmul.f32 %v2013, 1.442695
        %v2098 = vpow.pop %v2097
        %v2099 = vmul.f32 %v2014, 1.442695
        %v2100 = vpow.pop %v2099
        %v2101 = vmul.f32 %v2015, 1.442695
        %v2102 = vpow.pop %v2101
        %v2103 = vmul.f32 %v2016, 1.442695
        %v2104 = vpow.pop %v2103
        %v2105 = vmul.f32 %v2017, 1.442695
        %v2106 = vpow.pop %v2105
        %v2107 = vmul.f32 %v2018, 1.442695
        %v2108 = vpow.pop %v2107
        %v2109 = vmul.f32 %v2019, 1.442695
        %v2110 = vpow.pop %v2109
        %v2111 = vmul.f32 %v2020, 1.442695
        %v2112 = vpow.pop %v2111
        %v2113 = vmul.f32 %v2021, 1.442695
        %v2114 = vpow.pop %v2113
        %v2115 = vmul.f32 %v2022, 1.442695
        %v2116 = vpow.pop %v2115
        %v2117 = vmul.f32 %v2023, 1.442695
        %v2118 = vpow.pop %v2117
        %v2119 = vmul.f32 %v2024, 1.442695
        %v2120 = vpow.pop %v2119
        %v2121 = vmul.f32 %v2025, 1.442695
        %v2122 = vpow.pop %v2121
        %v2123 = vmul.f32 %v2026, 1.442695
        %v2124 = vpow.pop %v2123
        %v2125 = vmul.f32 %v2027, 1.442695
        %v2126 = vpow.pop %v2125
        %v2127 = vmul.f32 %v2028, 1.442695
        %v2128 = vpow.pop %v2127
        %v2129 = vmul.f32 %v2029, 1.442695
        %v2130 = vpow.pop %v2129
        %v2131 = vmul.f32 %v2030, 1.442695
        %v2132 = vpow.pop %v2131
        %v2133 = vmul.f32 %v2031, 1.442695
        %v2134 = vpow.pop %v2133
        %v2135 = vmul.f32 %v2032, 1.442695
        %v2136 = vpow.pop %v2135
        %v2137 = vmul.f32 %v2033, 1.442695
        %v2138 = vpow.pop %v2137
        %v2139 = vmul.f32 %v2034, 1.442695
        %v2140 = vpow.pop %v2139
        %v2141 = vmul.f32 %v2035, 1.442695
        %v2142 = vpow.pop %v2141
        %v2143 = vmul.f32 %v2036, 1.442695
        %v2144 = vpow.pop %v2143
        %v2145 = vmul.f32 %v2037, 1.442695
        %v2146 = vpow.pop %v2145
        %v2147 = vmul.f32 %v2038, 1.442695
        %v2148 = vpow.pop %v2147
        %v2149 = vmul.f32 %v2039, 1.442695
        %v2150 = vpow.pop %v2149
        %v2151 = vmul.f32 %v2040, 1.442695
        %v2152 = vpow.pop %v2151
        %v2153 = vmul.f32 %v2041, 1.442695
        %v2154 = vpow.pop %v2153
        %v2155 = vmul.f32 %v2042, 1.442695
        %v2156 = vpow.pop %v2155
        %v2157 = vmul.f32 %v2043, 1.442695
        %v2158 = vpow.pop %v2157
        %v2159 = vmul.f32 %v2044, 1.442695
        %v2160 = vpow.pop %v2159
        %v2161 = vmul.f32 %v2045, 1.442695
        %v2162 = vpow.pop %v2161
        %v2163 = vmul.f32 %v2046, 1.442695
        %v2164 = vpow.pop %v2163
        %v2165 = vmul.f32 %v2047, 1.442695
        %v2166 = vpow.pop %v2165
        %v2167 = vmul.f32 %v2048, 1.442695
        %v2168 = vpow.pop %v2167
        %v2169 = vmul.f32 %v2049, 1.442695
        %v2170 = vpow.pop %v2169
        %v2171 = vmul.f32 %v2050, 1.442695
        %v2172 = vpow.pop %v2171
        %v2173 = vmul.f32 %v2051, 1.442695
        %v2174 = vpow.pop %v2173
        %v2175 = vmul.f32 %v2052, 1.442695
        %v2176 = vpow.pop %v2175
        %v2177 = vmul.f32 %v2053, 1.442695
        %v2178 = vpow.pop %v2177
        %v2179 = vmul.f32 %v2054, 1.442695
        %v2180 = vpow.pop %v2179
        %v2181 = vmul.f32 %v2055, 1.442695
        %v2182 = vpow.pop %v2181
        %v2183 = vmul.f32 %v2056, 1.442695
        %v2184 = vpow.pop %v2183
        %2186 = vset.pattern.permute.xlu0 0
        %2187 = vperm.xlu0 %2186, %v1929
        %v2188 = vpop.permute.xlu0 %2187
        %2191 = vset.pattern.permute.xlu0 0
        %2192 = vperm.xlu0 %2191, %v1930
        %v2193 = vpop.permute.xlu0 %2192
        %2196 = vset.pattern.permute.xlu0 0
        %2197 = vperm.xlu0 %2196, %v1931
        %v2198 = vpop.permute.xlu0 %2197
        %2201 = vset.pattern.permute.xlu0 0
        %2202 = vperm.xlu0 %2201, %v1932
        %v2203 = vpop.permute.xlu0 %2202
        %2206 = vset.pattern.permute.xlu0 0
        %2207 = vperm.xlu0 %2206, %v1933
        %v2208 = vpop.permute.xlu0 %2207
        %2211 = vset.pattern.permute.xlu0 0
        %2212 = vperm.xlu0 %2211, %v1934
        %v2213 = vpop.permute.xlu0 %2212
        %2216 = vset.pattern.permute.xlu0 0
        %2217 = vperm.xlu0 %2216, %v1935
        %v2218 = vpop.permute.xlu0 %2217
        %2221 = vset.pattern.permute.xlu0 0
        %2222 = vperm.xlu0 %2221, %v1936
        %v2223 = vpop.permute.xlu0 %2222
        %2226 = vset.pattern.permute.xlu0 0
        %2227 = vperm.xlu0 %2226, %v1937
        %v2228 = vpop.permute.xlu0 %2227
        %2231 = vset.pattern.permute.xlu0 0
        %2232 = vperm.xlu0 %2231, %v1938
        %v2233 = vpop.permute.xlu0 %2232
        %2236 = vset.pattern.permute.xlu0 0
        %2237 = vperm.xlu0 %2236, %v1939
        %v2238 = vpop.permute.xlu0 %2237
        %2241 = vset.pattern.permute.xlu0 0
        %2242 = vperm.xlu0 %2241, %v1940
        %v2243 = vpop.permute.xlu0 %2242
        %2246 = vset.pattern.permute.xlu0 0
        %2247 = vperm.xlu0 %2246, %v1941
        %v2248 = vpop.permute.xlu0 %2247
        %2251 = vset.pattern.permute.xlu0 0
        %2252 = vperm.xlu0 %2251, %v1942
        %v2253 = vpop.permute.xlu0 %2252
        %2256 = vset.pattern.permute.xlu0 0
        %2257 = vperm.xlu0 %2256, %v1943
        %v2258 = vpop.permute.xlu0 %2257
        %2261 = vset.pattern.permute.xlu0 0
        %2262 = vperm.xlu0 %2261, %v1944
        %v2263 = vpop.permute.xlu0 %2262
        %2266 = vset.pattern.permute.xlu0 0
        %2267 = vperm.xlu0 %2266, %v1945
        %v2268 = vpop.permute.xlu0 %2267
        %2271 = vset.pattern.permute.xlu0 0
        %2272 = vperm.xlu0 %2271, %v1946
        %v2273 = vpop.permute.xlu0 %2272
        %2276 = vset.pattern.permute.xlu0 0
        %2277 = vperm.xlu0 %2276, %v1947
        %v2278 = vpop.permute.xlu0 %2277
        %2281 = vset.pattern.permute.xlu0 0
        %2282 = vperm.xlu0 %2281, %v1948
        %v2283 = vpop.permute.xlu0 %2282
        %2286 = vset.pattern.permute.xlu0 0
        %2287 = vperm.xlu0 %2286, %v1949
        %v2288 = vpop.permute.xlu0 %2287
        %2291 = vset.pattern.permute.xlu0 0
        %2292 = vperm.xlu0 %2291, %v1950
        %v2293 = vpop.permute.xlu0 %2292
        %2296 = vset.pattern.permute.xlu0 0
        %2297 = vperm.xlu0 %2296, %v1951
        %v2298 = vpop.permute.xlu0 %2297
        %2301 = vset.pattern.permute.xlu0 0
        %2302 = vperm.xlu0 %2301, %v1952
        %v2303 = vpop.permute.xlu0 %2302
        %2306 = vset.pattern.permute.xlu0 0
        %2307 = vperm.xlu0 %2306, %v1953
        %v2308 = vpop.permute.xlu0 %2307
        %2311 = vset.pattern.permute.xlu0 0
        %2312 = vperm.xlu0 %2311, %v1954
        %v2313 = vpop.permute.xlu0 %2312
        %2316 = vset.pattern.permute.xlu0 0
        %2317 = vperm.xlu0 %2316, %v1955
        %v2318 = vpop.permute.xlu0 %2317
        %2321 = vset.pattern.permute.xlu0 0
        %2322 = vperm.xlu0 %2321, %v1956
        %v2323 = vpop.permute.xlu0 %2322
        %2326 = vset.pattern.permute.xlu0 0
        %2327 = vperm.xlu0 %2326, %v1957
        %v2328 = vpop.permute.xlu0 %2327
        %2331 = vset.pattern.permute.xlu0 0
        %2332 = vperm.xlu0 %2331, %v1958
        %v2333 = vpop.permute.xlu0 %2332
        %2336 = vset.pattern.permute.xlu0 0
        %2337 = vperm.xlu0 %2336, %v1959
        %v2338 = vpop.permute.xlu0 %2337
        %2341 = vset.pattern.permute.xlu0 0
        %2342 = vperm.xlu0 %2341, %v1960
        %v2343 = vpop.permute.xlu0 %2342
        %2346 = vset.pattern.permute.xlu0 0
        %2347 = vperm.xlu0 %2346, %v1961
        %v2348 = vpop.permute.xlu0 %2347
        %2351 = vset.pattern.permute.xlu0 0
        %2352 = vperm.xlu0 %2351, %v1962
        %v2353 = vpop.permute.xlu0 %2352
        %2356 = vset.pattern.permute.xlu0 0
        %2357 = vperm.xlu0 %2356, %v1963
        %v2358 = vpop.permute.xlu0 %2357
        %2361 = vset.pattern.permute.xlu0 0
        %2362 = vperm.xlu0 %2361, %v1964
        %v2363 = vpop.permute.xlu0 %2362
        %2366 = vset.pattern.permute.xlu0 0
        %2367 = vperm.xlu0 %2366, %v1965
        %v2368 = vpop.permute.xlu0 %2367
        %2371 = vset.pattern.permute.xlu0 0
        %2372 = vperm.xlu0 %2371, %v1966
        %v2373 = vpop.permute.xlu0 %2372
        %2376 = vset.pattern.permute.xlu0 0
        %2377 = vperm.xlu0 %2376, %v1967
        %v2378 = vpop.permute.xlu0 %2377
        %2381 = vset.pattern.permute.xlu0 0
        %2382 = vperm.xlu0 %2381, %v1968
        %v2383 = vpop.permute.xlu0 %2382
        %2386 = vset.pattern.permute.xlu0 0
        %2387 = vperm.xlu0 %2386, %v1969
        %v2388 = vpop.permute.xlu0 %2387
        %2391 = vset.pattern.permute.xlu0 0
        %2392 = vperm.xlu0 %2391, %v1970
        %v2393 = vpop.permute.xlu0 %2392
        %2396 = vset.pattern.permute.xlu0 0
        %2397 = vperm.xlu0 %2396, %v1971
        %v2398 = vpop.permute.xlu0 %2397
        %2401 = vset.pattern.permute.xlu0 0
        %2402 = vperm.xlu0 %2401, %v1972
        %v2403 = vpop.permute.xlu0 %2402
        %2406 = vset.pattern.permute.xlu0 0
        %2407 = vperm.xlu0 %2406, %v1973
        %v2408 = vpop.permute.xlu0 %2407
        %2411 = vset.pattern.permute.xlu0 0
        %2412 = vperm.xlu0 %2411, %v1974
        %v2413 = vpop.permute.xlu0 %2412
        %2416 = vset.pattern.permute.xlu0 0
        %2417 = vperm.xlu0 %2416, %v1975
        %v2418 = vpop.permute.xlu0 %2417
        %2421 = vset.pattern.permute.xlu0 0
        %2422 = vperm.xlu0 %2421, %v1976
        %v2423 = vpop.permute.xlu0 %2422
        %2426 = vset.pattern.permute.xlu0 0
        %2427 = vperm.xlu0 %2426, %v1977
        %v2428 = vpop.permute.xlu0 %2427
        %2431 = vset.pattern.permute.xlu0 0
        %2432 = vperm.xlu0 %2431, %v1978
        %v2433 = vpop.permute.xlu0 %2432
        %2436 = vset.pattern.permute.xlu0 0
        %2437 = vperm.xlu0 %2436, %v1979
        %v2438 = vpop.permute.xlu0 %2437
        %2441 = vset.pattern.permute.xlu0 0
        %2442 = vperm.xlu0 %2441, %v1980
        %v2443 = vpop.permute.xlu0 %2442
        %2446 = vset.pattern.permute.xlu0 0
        %2447 = vperm.xlu0 %2446, %v1981
        %v2448 = vpop.permute.xlu0 %2447
        %2451 = vset.pattern.permute.xlu0 0
        %2452 = vperm.xlu0 %2451, %v1982
        %v2453 = vpop.permute.xlu0 %2452
        %2456 = vset.pattern.permute.xlu0 0
        %2457 = vperm.xlu0 %2456, %v1983
        %v2458 = vpop.permute.xlu0 %2457
        %2461 = vset.pattern.permute.xlu0 0
        %2462 = vperm.xlu0 %2461, %v1984
        %v2463 = vpop.permute.xlu0 %2462
        %2466 = vset.pattern.permute.xlu0 0
        %2467 = vperm.xlu0 %2466, %v1985
        %v2468 = vpop.permute.xlu0 %2467
        %2471 = vset.pattern.permute.xlu0 0
        %2472 = vperm.xlu0 %2471, %v1986
        %v2473 = vpop.permute.xlu0 %2472
        %2476 = vset.pattern.permute.xlu0 0
        %2477 = vperm.xlu0 %2476, %v1987
        %v2478 = vpop.permute.xlu0 %2477
        %2481 = vset.pattern.permute.xlu0 0
        %2482 = vperm.xlu0 %2481, %v1988
        %v2483 = vpop.permute.xlu0 %2482
        %2486 = vset.pattern.permute.xlu0 0
        %2487 = vperm.xlu0 %2486, %v1989
        %v2488 = vpop.permute.xlu0 %2487
        %2491 = vset.pattern.permute.xlu0 0
        %2492 = vperm.xlu0 %2491, %v1990
        %v2493 = vpop.permute.xlu0 %2492
        %2496 = vset.pattern.permute.xlu0 0
        %2497 = vperm.xlu0 %2496, %v1991
        %v2498 = vpop.permute.xlu0 %2497
        %2501 = vset.pattern.permute.xlu0 0
        %2502 = vperm.xlu0 %2501, %v1992
        %v2503 = vpop.permute.xlu0 %2502
        %v2505 = vsub.f32 %v1673, %v2188
        %v2506 = vsub.f32 %v1674, %v2193
        %v2507 = vsub.f32 %v1675, %v2198
        %v2508 = vsub.f32 %v1676, %v2203
        %v2509 = vsub.f32 %v1677, %v2208
        %v2510 = vsub.f32 %v1678, %v2213
        %v2511 = vsub.f32 %v1679, %v2218
        %v2512 = vsub.f32 %v1680, %v2223
        %v2513 = vsub.f32 %v1681, %v2228
        %v2514 = vsub.f32 %v1682, %v2233
        %v2515 = vsub.f32 %v1683, %v2238
        %v2516 = vsub.f32 %v1684, %v2243
        %v2517 = vsub.f32 %v1685, %v2248
        %v2518 = vsub.f32 %v1686, %v2253
        %v2519 = vsub.f32 %v1687, %v2258
        %v2520 = vsub.f32 %v1688, %v2263
        %v2521 = vsub.f32 %v1689, %v2268
        %v2522 = vsub.f32 %v1690, %v2273
        %v2523 = vsub.f32 %v1691, %v2278
        %v2524 = vsub.f32 %v1692, %v2283
        %v2525 = vsub.f32 %v1693, %v2288
        %v2526 = vsub.f32 %v1694, %v2293
        %v2527 = vsub.f32 %v1695, %v2298
        %v2528 = vsub.f32 %v1696, %v2303
        %v2529 = vsub.f32 %v1697, %v2308
        %v2530 = vsub.f32 %v1698, %v2313
        %v2531 = vsub.f32 %v1699, %v2318
        %v2532 = vsub.f32 %v1700, %v2323
        %v2533 = vsub.f32 %v1701, %v2328
        %v2534 = vsub.f32 %v1702, %v2333
        %v2535 = vsub.f32 %v1703, %v2338
        %v2536 = vsub.f32 %v1704, %v2343
        %v2537 = vsub.f32 %v1705, %v2348
        %v2538 = vsub.f32 %v1706, %v2353
        %v2539 = vsub.f32 %v1707, %v2358
        %v2540 = vsub.f32 %v1708, %v2363
        %v2541 = vsub.f32 %v1709, %v2368
        %v2542 = vsub.f32 %v1710, %v2373
        %v2543 = vsub.f32 %v1711, %v2378
        %v2544 = vsub.f32 %v1712, %v2383
        %v2545 = vsub.f32 %v1713, %v2388
        %v2546 = vsub.f32 %v1714, %v2393
        %v2547 = vsub.f32 %v1715, %v2398
        %v2548 = vsub.f32 %v1716, %v2403
        %v2549 = vsub.f32 %v1717, %v2408
        %v2550 = vsub.f32 %v1718, %v2413
        %v2551 = vsub.f32 %v1719, %v2418
        %v2552 = vsub.f32 %v1720, %v2423
        %v2553 = vsub.f32 %v1721, %v2428
        %v2554 = vsub.f32 %v1722, %v2433
        %v2555 = vsub.f32 %v1723, %v2438
        %v2556 = vsub.f32 %v1724, %v2443
        %v2557 = vsub.f32 %v1725, %v2448
        %v2558 = vsub.f32 %v1726, %v2453
        %v2559 = vsub.f32 %v1727, %v2458
        %v2560 = vsub.f32 %v1728, %v2463
        %v2561 = vsub.f32 %v1729, %v2468
        %v2562 = vsub.f32 %v1730, %v2473
        %v2563 = vsub.f32 %v1731, %v2478
        %v2564 = vsub.f32 %v1732, %v2483
        %v2565 = vsub.f32 %v1733, %v2488
        %v2566 = vsub.f32 %v1734, %v2493
        %v2567 = vsub.f32 %v1735, %v2498
        %v2568 = vsub.f32 %v1736, %v2503
        %v2569 = vmul.f32 %v2505, 1.442695
        %v2570 = vpow.pop %v2569
        %v2571 = vmul.f32 %v2506, 1.442695
        %v2572 = vpow.pop %v2571
        %v2573 = vmul.f32 %v2507, 1.442695
        %v2574 = vpow.pop %v2573
        %v2575 = vmul.f32 %v2508, 1.442695
        %v2576 = vpow.pop %v2575
        %v2577 = vmul.f32 %v2509, 1.442695
        %v2578 = vpow.pop %v2577
        %v2579 = vmul.f32 %v2510, 1.442695
        %v2580 = vpow.pop %v2579
        %v2581 = vmul.f32 %v2511, 1.442695
        %v2582 = vpow.pop %v2581
        %v2583 = vmul.f32 %v2512, 1.442695
        %v2584 = vpow.pop %v2583
        %v2585 = vmul.f32 %v2513, 1.442695
        %v2586 = vpow.pop %v2585
        %v2587 = vmul.f32 %v2514, 1.442695
        %v2588 = vpow.pop %v2587
        %v2589 = vmul.f32 %v2515, 1.442695
        %v2590 = vpow.pop %v2589
        %v2591 = vmul.f32 %v2516, 1.442695
        %v2592 = vpow.pop %v2591
        %v2593 = vmul.f32 %v2517, 1.442695
        %v2594 = vpow.pop %v2593
        %v2595 = vmul.f32 %v2518, 1.442695
        %v2596 = vpow.pop %v2595
        %v2597 = vmul.f32 %v2519, 1.442695
        %v2598 = vpow.pop %v2597
        %v2599 = vmul.f32 %v2520, 1.442695
        %v2600 = vpow.pop %v2599
        %v2601 = vmul.f32 %v2521, 1.442695
        %v2602 = vpow.pop %v2601
        %v2603 = vmul.f32 %v2522, 1.442695
        %v2604 = vpow.pop %v2603
        %v2605 = vmul.f32 %v2523, 1.442695
        %v2606 = vpow.pop %v2605
        %v2607 = vmul.f32 %v2524, 1.442695
        %v2608 = vpow.pop %v2607
        %v2609 = vmul.f32 %v2525, 1.442695
        %v2610 = vpow.pop %v2609
        %v2611 = vmul.f32 %v2526, 1.442695
        %v2612 = vpow.pop %v2611
        %v2613 = vmul.f32 %v2527, 1.442695
        %v2614 = vpow.pop %v2613
        %v2615 = vmul.f32 %v2528, 1.442695
        %v2616 = vpow.pop %v2615
        %v2617 = vmul.f32 %v2529, 1.442695
        %v2618 = vpow.pop %v2617
        %v2619 = vmul.f32 %v2530, 1.442695
        %v2620 = vpow.pop %v2619
        %v2621 = vmul.f32 %v2531, 1.442695
        %v2622 = vpow.pop %v2621
        %v2623 = vmul.f32 %v2532, 1.442695
        %v2624 = vpow.pop %v2623
        %v2625 = vmul.f32 %v2533, 1.442695
        %v2626 = vpow.pop %v2625
        %v2627 = vmul.f32 %v2534, 1.442695
        %v2628 = vpow.pop %v2627
        %v2629 = vmul.f32 %v2535, 1.442695
        %v2630 = vpow.pop %v2629
        %v2631 = vmul.f32 %v2536, 1.442695
        %v2632 = vpow.pop %v2631
        %v2633 = vmul.f32 %v2537, 1.442695
        %v2634 = vpow.pop %v2633
        %v2635 = vmul.f32 %v2538, 1.442695
        %v2636 = vpow.pop %v2635
        %v2637 = vmul.f32 %v2539, 1.442695
        %v2638 = vpow.pop %v2637
        %v2639 = vmul.f32 %v2540, 1.442695
        %v2640 = vpow.pop %v2639
        %v2641 = vmul.f32 %v2541, 1.442695
        %v2642 = vpow.pop %v2641
        %v2643 = vmul.f32 %v2542, 1.442695
        %v2644 = vpow.pop %v2643
        %v2645 = vmul.f32 %v2543, 1.442695
        %v2646 = vpow.pop %v2645
        %v2647 = vmul.f32 %v2544, 1.442695
        %v2648 = vpow.pop %v2647
        %v2649 = vmul.f32 %v2545, 1.442695
        %v2650 = vpow.pop %v2649
        %v2651 = vmul.f32 %v2546, 1.442695
        %v2652 = vpow.pop %v2651
        %v2653 = vmul.f32 %v2547, 1.442695
        %v2654 = vpow.pop %v2653
        %v2655 = vmul.f32 %v2548, 1.442695
        %v2656 = vpow.pop %v2655
        %v2657 = vmul.f32 %v2549, 1.442695
        %v2658 = vpow.pop %v2657
        %v2659 = vmul.f32 %v2550, 1.442695
        %v2660 = vpow.pop %v2659
        %v2661 = vmul.f32 %v2551, 1.442695
        %v2662 = vpow.pop %v2661
        %v2663 = vmul.f32 %v2552, 1.442695
        %v2664 = vpow.pop %v2663
        %v2665 = vmul.f32 %v2553, 1.442695
        %v2666 = vpow.pop %v2665
        %v2667 = vmul.f32 %v2554, 1.442695
        %v2668 = vpow.pop %v2667
        %v2669 = vmul.f32 %v2555, 1.442695
        %v2670 = vpow.pop %v2669
        %v2671 = vmul.f32 %v2556, 1.442695
        %v2672 = vpow.pop %v2671
        %v2673 = vmul.f32 %v2557, 1.442695
        %v2674 = vpow.pop %v2673
        %v2675 = vmul.f32 %v2558, 1.442695
        %v2676 = vpow.pop %v2675
        %v2677 = vmul.f32 %v2559, 1.442695
        %v2678 = vpow.pop %v2677
        %v2679 = vmul.f32 %v2560, 1.442695
        %v2680 = vpow.pop %v2679
        %v2681 = vmul.f32 %v2561, 1.442695
        %v2682 = vpow.pop %v2681
        %v2683 = vmul.f32 %v2562, 1.442695
        %v2684 = vpow.pop %v2683
        %v2685 = vmul.f32 %v2563, 1.442695
        %v2686 = vpow.pop %v2685
        %v2687 = vmul.f32 %v2564, 1.442695
        %v2688 = vpow.pop %v2687
        %v2689 = vmul.f32 %v2565, 1.442695
        %v2690 = vpow.pop %v2689
        %v2691 = vmul.f32 %v2566, 1.442695
        %v2692 = vpow.pop %v2691
        %v2693 = vmul.f32 %v2567, 1.442695
        %v2694 = vpow.pop %v2693
        %v2695 = vmul.f32 %v2568, 1.442695
        %v2696 = vpow.pop %v2695
        %v2697 = vld [vmem:[#allocation3] sm:$0xff]
        %v2698 = vld [vmem:[#allocation3 + $0x8] sm:$0xff]
        %v2699 = vld [vmem:[#allocation3 + $0x10] sm:$0xff]
        %v2700 = vld [vmem:[#allocation3 + $0x18] sm:$0xff]
        %v2701 = vld [vmem:[#allocation3 + $0x20] sm:$0xff]
        %v2702 = vld [vmem:[#allocation3 + $0x28] sm:$0xff]
        %v2703 = vld [vmem:[#allocation3 + $0x30] sm:$0xff]
        %v2704 = vld [vmem:[#allocation3 + $0x38] sm:$0xff]
        %v2705 = vld [vmem:[#allocation3 + $0x40] sm:$0xff]
        %v2706 = vld [vmem:[#allocation3 + $0x48] sm:$0xff]
        %v2707 = vld [vmem:[#allocation3 + $0x50] sm:$0xff]
        %v2708 = vld [vmem:[#allocation3 + $0x58] sm:$0xff]
        %v2709 = vld [vmem:[#allocation3 + $0x60] sm:$0xff]
        %v2710 = vld [vmem:[#allocation3 + $0x68] sm:$0xff]
        %v2711 = vld [vmem:[#allocation3 + $0x70] sm:$0xff]
        %v2712 = vld [vmem:[#allocation3 + $0x78] sm:$0xff]
        %v2713 = vld [vmem:[#allocation3 + $0x80] sm:$0xff]
        %v2714 = vld [vmem:[#allocation3 + $0x88] sm:$0xff]
        %v2715 = vld [vmem:[#allocation3 + $0x90] sm:$0xff]
        %v2716 = vld [vmem:[#allocation3 + $0x98] sm:$0xff]
        %v2717 = vld [vmem:[#allocation3 + $0xa0] sm:$0xff]
        %v2718 = vld [vmem:[#allocation3 + $0xa8] sm:$0xff]
        %v2719 = vld [vmem:[#allocation3 + $0xb0] sm:$0xff]
        %v2720 = vld [vmem:[#allocation3 + $0xb8] sm:$0xff]
        %v2721 = vld [vmem:[#allocation3 + $0xc0] sm:$0xff]
        %v2722 = vld [vmem:[#allocation3 + $0xc8] sm:$0xff]
        %v2723 = vld [vmem:[#allocation3 + $0xd0] sm:$0xff]
        %v2724 = vld [vmem:[#allocation3 + $0xd8] sm:$0xff]
        %v2725 = vld [vmem:[#allocation3 + $0xe0] sm:$0xff]
        %v2726 = vld [vmem:[#allocation3 + $0xe8] sm:$0xff]
        %v2727 = vld [vmem:[#allocation3 + $0xf0] sm:$0xff]
        %v2728 = vld [vmem:[#allocation3 + $0xf8] sm:$0xff]
        %v2729 = vld [vmem:[#allocation3 + $0x100] sm:$0xff]
        %v2730 = vld [vmem:[#allocation3 + $0x108] sm:$0xff]
        %v2731 = vld [vmem:[#allocation3 + $0x110] sm:$0xff]
        %v2732 = vld [vmem:[#allocation3 + $0x118] sm:$0xff]
        %v2733 = vld [vmem:[#allocation3 + $0x120] sm:$0xff]
        %v2734 = vld [vmem:[#allocation3 + $0x128] sm:$0xff]
        %v2735 = vld [vmem:[#allocation3 + $0x130] sm:$0xff]
        %v2736 = vld [vmem:[#allocation3 + $0x138] sm:$0xff]
        %v2737 = vld [vmem:[#allocation3 + $0x140] sm:$0xff]
        %v2738 = vld [vmem:[#allocation3 + $0x148] sm:$0xff]
        %v2739 = vld [vmem:[#allocation3 + $0x150] sm:$0xff]
        %v2740 = vld [vmem:[#allocation3 + $0x158] sm:$0xff]
        %v2741 = vld [vmem:[#allocation3 + $0x160] sm:$0xff]
        %v2742 = vld [vmem:[#allocation3 + $0x168] sm:$0xff]
        %v2743 = vld [vmem:[#allocation3 + $0x170] sm:$0xff]
        %v2744 = vld [vmem:[#allocation3 + $0x178] sm:$0xff]
        %v2745 = vld [vmem:[#allocation3 + $0x180] sm:$0xff]
        %v2746 = vld [vmem:[#allocation3 + $0x188] sm:$0xff]
        %v2747 = vld [vmem:[#allocation3 + $0x190] sm:$0xff]
        %v2748 = vld [vmem:[#allocation3 + $0x198] sm:$0xff]
        %v2749 = vld [vmem:[#allocation3 + $0x1a0] sm:$0xff]
        %v2750 = vld [vmem:[#allocation3 + $0x1a8] sm:$0xff]
        %v2751 = vld [vmem:[#allocation3 + $0x1b0] sm:$0xff]
        %v2752 = vld [vmem:[#allocation3 + $0x1b8] sm:$0xff]
        %v2753 = vld [vmem:[#allocation3 + $0x1c0] sm:$0xff]
        %v2754 = vld [vmem:[#allocation3 + $0x1c8] sm:$0xff]
        %v2755 = vld [vmem:[#allocation3 + $0x1d0] sm:$0xff]
        %v2756 = vld [vmem:[#allocation3 + $0x1d8] sm:$0xff]
        %v2757 = vld [vmem:[#allocation3 + $0x1e0] sm:$0xff]
        %v2758 = vld [vmem:[#allocation3 + $0x1e8] sm:$0xff]
        %v2759 = vld [vmem:[#allocation3 + $0x1f0] sm:$0xff]
        %v2760 = vld [vmem:[#allocation3 + $0x1f8] sm:$0xff]
        %v2761 = vmul.f32 %v2058, %v2697
        %v2762 = vmul.f32 %v2060, %v2698
        %v2763 = vmul.f32 %v2062, %v2699
        %v2764 = vmul.f32 %v2064, %v2700
        %v2765 = vmul.f32 %v2066, %v2701
        %v2766 = vmul.f32 %v2068, %v2702
        %v2767 = vmul.f32 %v2070, %v2703
        %v2768 = vmul.f32 %v2072, %v2704
        %v2769 = vmul.f32 %v2074, %v2705
        %v2770 = vmul.f32 %v2076, %v2706
        %v2771 = vmul.f32 %v2078, %v2707
        %v2772 = vmul.f32 %v2080, %v2708
        %v2773 = vmul.f32 %v2082, %v2709
        %v2774 = vmul.f32 %v2084, %v2710
        %v2775 = vmul.f32 %v2086, %v2711
        %v2776 = vmul.f32 %v2088, %v2712
        %v2777 = vmul.f32 %v2090, %v2713
        %v2778 = vmul.f32 %v2092, %v2714
        %v2779 = vmul.f32 %v2094, %v2715
        %v2780 = vmul.f32 %v2096, %v2716
        %v2781 = vmul.f32 %v2098, %v2717
        %v2782 = vmul.f32 %v2100, %v2718
        %v2783 = vmul.f32 %v2102, %v2719
        %v2784 = vmul.f32 %v2104, %v2720
        %v2785 = vmul.f32 %v2106, %v2721
        %v2786 = vmul.f32 %v2108, %v2722
        %v2787 = vmul.f32 %v2110, %v2723
        %v2788 = vmul.f32 %v2112, %v2724
        %v2789 = vmul.f32 %v2114, %v2725
        %v2790 = vmul.f32 %v2116, %v2726
        %v2791 = vmul.f32 %v2118, %v2727
        %v2792 = vmul.f32 %v2120, %v2728
        %v2793 = vmul.f32 %v2122, %v2729
        %v2794 = vmul.f32 %v2124, %v2730
        %v2795 = vmul.f32 %v2126, %v2731
        %v2796 = vmul.f32 %v2128, %v2732
        %v2797 = vmul.f32 %v2130, %v2733
        %v2798 = vmul.f32 %v2132, %v2734
        %v2799 = vmul.f32 %v2134, %v2735
        %v2800 = vmul.f32 %v2136, %v2736
        %v2801 = vmul.f32 %v2138, %v2737
        %v2802 = vmul.f32 %v2140, %v2738
        %v2803 = vmul.f32 %v2142, %v2739
        %v2804 = vmul.f32 %v2144, %v2740
        %v2805 = vmul.f32 %v2146, %v2741
        %v2806 = vmul.f32 %v2148, %v2742
        %v2807 = vmul.f32 %v2150, %v2743
        %v2808 = vmul.f32 %v2152, %v2744
        %v2809 = vmul.f32 %v2154, %v2745
        %v2810 = vmul.f32 %v2156, %v2746
        %v2811 = vmul.f32 %v2158, %v2747
        %v2812 = vmul.f32 %v2160, %v2748
        %v2813 = vmul.f32 %v2162, %v2749
        %v2814 = vmul.f32 %v2164, %v2750
        %v2815 = vmul.f32 %v2166, %v2751
        %v2816 = vmul.f32 %v2168, %v2752
        %v2817 = vmul.f32 %v2170, %v2753
        %v2818 = vmul.f32 %v2172, %v2754
        %v2819 = vmul.f32 %v2174, %v2755
        %v2820 = vmul.f32 %v2176, %v2756
        %v2821 = vmul.f32 %v2178, %v2757
        %v2822 = vmul.f32 %v2180, %v2758
        %v2823 = vmul.f32 %v2182, %v2759
        %v2824 = vmul.f32 %v2184, %v2760
        %2825 = vadd.xlane.f32.xlu0 %v2570
        %v2826 = vpop.xlane.xlu0 %2825
        %2827 = vadd.xlane.f32.xlu0 %v2572
        %v2828 = vpop.xlane.xlu0 %2827
        %2829 = vadd.xlane.f32.xlu0 %v2574
        %v2830 = vpop.xlane.xlu0 %2829
        %2831 = vadd.xlane.f32.xlu0 %v2576
        %v2832 = vpop.xlane.xlu0 %2831
        %2833 = vadd.xlane.f32.xlu0 %v2578
        %v2834 = vpop.xlane.xlu0 %2833
        %2835 = vadd.xlane.f32.xlu0 %v2580
        %v2836 = vpop.xlane.xlu0 %2835
        %2837 = vadd.xlane.f32.xlu0 %v2582
        %v2838 = vpop.xlane.xlu0 %2837
        %2839 = vadd.xlane.f32.xlu0 %v2584
        %v2840 = vpop.xlane.xlu0 %2839
        %2841 = vadd.xlane.f32.xlu0 %v2586
        %v2842 = vpop.xlane.xlu0 %2841
        %2843 = vadd.xlane.f32.xlu0 %v2588
        %v2844 = vpop.xlane.xlu0 %2843
        %2845 = vadd.xlane.f32.xlu0 %v2590
        %v2846 = vpop.xlane.xlu0 %2845
        %2847 = vadd.xlane.f32.xlu0 %v2592
        %v2848 = vpop.xlane.xlu0 %2847
        %2849 = vadd.xlane.f32.xlu0 %v2594
        %v2850 = vpop.xlane.xlu0 %2849
        %2851 = vadd.xlane.f32.xlu0 %v2596
        %v2852 = vpop.xlane.xlu0 %2851
        %2853 = vadd.xlane.f32.xlu0 %v2598
        %v2854 = vpop.xlane.xlu0 %2853
        %2855 = vadd.xlane.f32.xlu0 %v2600
        %v2856 = vpop.xlane.xlu0 %2855
        %2857 = vadd.xlane.f32.xlu0 %v2602
        %v2858 = vpop.xlane.xlu0 %2857
        %2859 = vadd.xlane.f32.xlu0 %v2604
        %v2860 = vpop.xlane.xlu0 %2859
        %2861 = vadd.xlane.f32.xlu0 %v2606
        %v2862 = vpop.xlane.xlu0 %2861
        %2863 = vadd.xlane.f32.xlu0 %v2608
        %v2864 = vpop.xlane.xlu0 %2863
        %2865 = vadd.xlane.f32.xlu0 %v2610
        %v2866 = vpop.xlane.xlu0 %2865
        %2867 = vadd.xlane.f32.xlu0 %v2612
        %v2868 = vpop.xlane.xlu0 %2867
        %2869 = vadd.xlane.f32.xlu0 %v2614
        %v2870 = vpop.xlane.xlu0 %2869
        %2871 = vadd.xlane.f32.xlu0 %v2616
        %v2872 = vpop.xlane.xlu0 %2871
        %2873 = vadd.xlane.f32.xlu0 %v2618
        %v2874 = vpop.xlane.xlu0 %2873
        %2875 = vadd.xlane.f32.xlu0 %v2620
        %v2876 = vpop.xlane.xlu0 %2875
        %2877 = vadd.xlane.f32.xlu0 %v2622
        %v2878 = vpop.xlane.xlu0 %2877
        %2879 = vadd.xlane.f32.xlu0 %v2624
        %v2880 = vpop.xlane.xlu0 %2879
        %2881 = vadd.xlane.f32.xlu0 %v2626
        %v2882 = vpop.xlane.xlu0 %2881
        %2883 = vadd.xlane.f32.xlu0 %v2628
        %v2884 = vpop.xlane.xlu0 %2883
        %2885 = vadd.xlane.f32.xlu0 %v2630
        %v2886 = vpop.xlane.xlu0 %2885
        %2887 = vadd.xlane.f32.xlu0 %v2632
        %v2888 = vpop.xlane.xlu0 %2887
        %2889 = vadd.xlane.f32.xlu0 %v2634
        %v2890 = vpop.xlane.xlu0 %2889
        %2891 = vadd.xlane.f32.xlu0 %v2636
        %v2892 = vpop.xlane.xlu0 %2891
        %2893 = vadd.xlane.f32.xlu0 %v2638
        %v2894 = vpop.xlane.xlu0 %2893
        %2895 = vadd.xlane.f32.xlu0 %v2640
        %v2896 = vpop.xlane.xlu0 %2895
        %2897 = vadd.xlane.f32.xlu0 %v2642
        %v2898 = vpop.xlane.xlu0 %2897
        %2899 = vadd.xlane.f32.xlu0 %v2644
        %v2900 = vpop.xlane.xlu0 %2899
        %2901 = vadd.xlane.f32.xlu0 %v2646
        %v2902 = vpop.xlane.xlu0 %2901
        %2903 = vadd.xlane.f32.xlu0 %v2648
        %v2904 = vpop.xlane.xlu0 %2903
        %2905 = vadd.xlane.f32.xlu0 %v2650
        %v2906 = vpop.xlane.xlu0 %2905
        %2907 = vadd.xlane.f32.xlu0 %v2652
        %v2908 = vpop.xlane.xlu0 %2907
        %2909 = vadd.xlane.f32.xlu0 %v2654
        %v2910 = vpop.xlane.xlu0 %2909
        %2911 = vadd.xlane.f32.xlu0 %v2656
        %v2912 = vpop.xlane.xlu0 %2911
        %2913 = vadd.xlane.f32.xlu0 %v2658
        %v2914 = vpop.xlane.xlu0 %2913
        %2915 = vadd.xlane.f32.xlu0 %v2660
        %v2916 = vpop.xlane.xlu0 %2915
        %2917 = vadd.xlane.f32.xlu0 %v2662
        %v2918 = vpop.xlane.xlu0 %2917
        %2919 = vadd.xlane.f32.xlu0 %v2664
        %v2920 = vpop.xlane.xlu0 %2919
        %2921 = vadd.xlane.f32.xlu0 %v2666
        %v2922 = vpop.xlane.xlu0 %2921
        %2923 = vadd.xlane.f32.xlu0 %v2668
        %v2924 = vpop.xlane.xlu0 %2923
        %2925 = vadd.xlane.f32.xlu0 %v2670
        %v2926 = vpop.xlane.xlu0 %2925
        %2927 = vadd.xlane.f32.xlu0 %v2672
        %v2928 = vpop.xlane.xlu0 %2927
        %2929 = vadd.xlane.f32.xlu0 %v2674
        %v2930 = vpop.xlane.xlu0 %2929
        %2931 = vadd.xlane.f32.xlu0 %v2676
        %v2932 = vpop.xlane.xlu0 %2931
        %2933 = vadd.xlane.f32.xlu0 %v2678
        %v2934 = vpop.xlane.xlu0 %2933
        %2935 = vadd.xlane.f32.xlu0 %v2680
        %v2936 = vpop.xlane.xlu0 %2935
        %2937 = vadd.xlane.f32.xlu0 %v2682
        %v2938 = vpop.xlane.xlu0 %2937
        %2939 = vadd.xlane.f32.xlu0 %v2684
        %v2940 = vpop.xlane.xlu0 %2939
        %2941 = vadd.xlane.f32.xlu0 %v2686
        %v2942 = vpop.xlane.xlu0 %2941
        %2943 = vadd.xlane.f32.xlu0 %v2688
        %v2944 = vpop.xlane.xlu0 %2943
        %2945 = vadd.xlane.f32.xlu0 %v2690
        %v2946 = vpop.xlane.xlu0 %2945
        %2947 = vadd.xlane.f32.xlu0 %v2692
        %v2948 = vpop.xlane.xlu0 %2947
        %2949 = vadd.xlane.f32.xlu0 %v2694
        %v2950 = vpop.xlane.xlu0 %2949
        %2951 = vadd.xlane.f32.xlu0 %v2696
        %v2952 = vpop.xlane.xlu0 %2951
        %v2953 = vadd.f32 %v2761, %v2826
        %v2954 = vadd.f32 %v2762, %v2828
        %v2955 = vadd.f32 %v2763, %v2830
        %v2956 = vadd.f32 %v2764, %v2832
        %v2957 = vadd.f32 %v2765, %v2834
        %v2958 = vadd.f32 %v2766, %v2836
        %v2959 = vadd.f32 %v2767, %v2838
        %v2960 = vadd.f32 %v2768, %v2840
        %v2961 = vadd.f32 %v2769, %v2842
        %v2962 = vadd.f32 %v2770, %v2844
        %v2963 = vadd.f32 %v2771, %v2846
        %v2964 = vadd.f32 %v2772, %v2848
        %v2965 = vadd.f32 %v2773, %v2850
        %v2966 = vadd.f32 %v2774, %v2852
        %v2967 = vadd.f32 %v2775, %v2854
        %v2968 = vadd.f32 %v2776, %v2856
        %v2969 = vadd.f32 %v2777, %v2858
        %v2970 = vadd.f32 %v2778, %v2860
        %v2971 = vadd.f32 %v2779, %v2862
        %v2972 = vadd.f32 %v2780, %v2864
        %v2973 = vadd.f32 %v2781, %v2866
        %v2974 = vadd.f32 %v2782, %v2868
        %v2975 = vadd.f32 %v2783, %v2870
        %v2976 = vadd.f32 %v2784, %v2872
        %v2977 = vadd.f32 %v2785, %v2874
        %v2978 = vadd.f32 %v2786, %v2876
        %v2979 = vadd.f32 %v2787, %v2878
        %v2980 = vadd.f32 %v2788, %v2880
        %v2981 = vadd.f32 %v2789, %v2882
        %v2982 = vadd.f32 %v2790, %v2884
        %v2983 = vadd.f32 %v2791, %v2886
        %v2984 = vadd.f32 %v2792, %v2888
        %v2985 = vadd.f32 %v2793, %v2890
        %v2986 = vadd.f32 %v2794, %v2892
        %v2987 = vadd.f32 %v2795, %v2894
        %v2988 = vadd.f32 %v2796, %v2896
        %v2989 = vadd.f32 %v2797, %v2898
        %v2990 = vadd.f32 %v2798, %v2900
        %v2991 = vadd.f32 %v2799, %v2902
        %v2992 = vadd.f32 %v2800, %v2904
        %v2993 = vadd.f32 %v2801, %v2906
        %v2994 = vadd.f32 %v2802, %v2908
        %v2995 = vadd.f32 %v2803, %v2910
        %v2996 = vadd.f32 %v2804, %v2912
        %v2997 = vadd.f32 %v2805, %v2914
        %v2998 = vadd.f32 %v2806, %v2916
        %v2999 = vadd.f32 %v2807, %v2918
        %v3000 = vadd.f32 %v2808, %v2920
        %v3001 = vadd.f32 %v2809, %v2922
        %v3002 = vadd.f32 %v2810, %v2924
        %v3003 = vadd.f32 %v2811, %v2926
        %v3004 = vadd.f32 %v2812, %v2928
        %v3005 = vadd.f32 %v2813, %v2930
        %v3006 = vadd.f32 %v2814, %v2932
        %v3007 = vadd.f32 %v2815, %v2934
        %v3008 = vadd.f32 %v2816, %v2936
        %v3009 = vadd.f32 %v2817, %v2938
        %v3010 = vadd.f32 %v2818, %v2940
        %v3011 = vadd.f32 %v2819, %v2942
        %v3012 = vadd.f32 %v2820, %v2944
        %v3013 = vadd.f32 %v2821, %v2946
        %v3014 = vadd.f32 %v2822, %v2948
        %v3015 = vadd.f32 %v2823, %v2950
        %v3016 = vadd.f32 %v2824, %v2952
        %vm3017 = vcmask 7168
        %3018 = vst.msk [vmem:[#allocation3] sm:$0xff] %vm3017, %v2953
        %3019 = vst.msk [vmem:[#allocation3 + $0x8] sm:$0xff] %vm3017, %v2954
        %3020 = vst.msk [vmem:[#allocation3 + $0x10] sm:$0xff] %vm3017, %v2955
        %3021 = vst.msk [vmem:[#allocation3 + $0x18] sm:$0xff] %vm3017, %v2956
        %3022 = vst.msk [vmem:[#allocation3 + $0x20] sm:$0xff] %vm3017, %v2957
        %3023 = vst.msk [vmem:[#allocation3 + $0x28] sm:$0xff] %vm3017, %v2958
        %3024 = vst.msk [vmem:[#allocation3 + $0x30] sm:$0xff] %vm3017, %v2959
        %3025 = vst.msk [vmem:[#allocation3 + $0x38] sm:$0xff] %vm3017, %v2960
        %3026 = vst.msk [vmem:[#allocation3 + $0x40] sm:$0xff] %vm3017, %v2961
        %3027 = vst.msk [vmem:[#allocation3 + $0x48] sm:$0xff] %vm3017, %v2962
        %3028 = vst.msk [vmem:[#allocation3 + $0x50] sm:$0xff] %vm3017, %v2963
        %3029 = vst.msk [vmem:[#allocation3 + $0x58] sm:$0xff] %vm3017, %v2964
        %3030 = vst.msk [vmem:[#allocation3 + $0x60] sm:$0xff] %vm3017, %v2965
        %3031 = vst.msk [vmem:[#allocation3 + $0x68] sm:$0xff] %vm3017, %v2966
        %3032 = vst.msk [vmem:[#allocation3 + $0x70] sm:$0xff] %vm3017, %v2967
        %3033 = vst.msk [vmem:[#allocation3 + $0x78] sm:$0xff] %vm3017, %v2968
        %3034 = vst.msk [vmem:[#allocation3 + $0x80] sm:$0xff] %vm3017, %v2969
        %3035 = vst.msk [vmem:[#allocation3 + $0x88] sm:$0xff] %vm3017, %v2970
        %3036 = vst.msk [vmem:[#allocation3 + $0x90] sm:$0xff] %vm3017, %v2971
        %3037 = vst.msk [vmem:[#allocation3 + $0x98] sm:$0xff] %vm3017, %v2972
        %3038 = vst.msk [vmem:[#allocation3 + $0xa0] sm:$0xff] %vm3017, %v2973
        %3039 = vst.msk [vmem:[#allocation3 + $0xa8] sm:$0xff] %vm3017, %v2974
        %3040 = vst.msk [vmem:[#allocation3 + $0xb0] sm:$0xff] %vm3017, %v2975
        %3041 = vst.msk [vmem:[#allocation3 + $0xb8] sm:$0xff] %vm3017, %v2976
        %3042 = vst.msk [vmem:[#allocation3 + $0xc0] sm:$0xff] %vm3017, %v2977
        %3043 = vst.msk [vmem:[#allocation3 + $0xc8] sm:$0xff] %vm3017, %v2978
        %3044 = vst.msk [vmem:[#allocation3 + $0xd0] sm:$0xff] %vm3017, %v2979
        %3045 = vst.msk [vmem:[#allocation3 + $0xd8] sm:$0xff] %vm3017, %v2980
        %3046 = vst.msk [vmem:[#allocation3 + $0xe0] sm:$0xff] %vm3017, %v2981
        %3047 = vst.msk [vmem:[#allocation3 + $0xe8] sm:$0xff] %vm3017, %v2982
        %3048 = vst.msk [vmem:[#allocation3 + $0xf0] sm:$0xff] %vm3017, %v2983
        %3049 = vst.msk [vmem:[#allocation3 + $0xf8] sm:$0xff] %vm3017, %v2984
        %3050 = vst.msk [vmem:[#allocation3 + $0x100] sm:$0xff] %vm3017, %v2985
        %3051 = vst.msk [vmem:[#allocation3 + $0x108] sm:$0xff] %vm3017, %v2986
        %3052 = vst.msk [vmem:[#allocation3 + $0x110] sm:$0xff] %vm3017, %v2987
        %3053 = vst.msk [vmem:[#allocation3 + $0x118] sm:$0xff] %vm3017, %v2988
        %3054 = vst.msk [vmem:[#allocation3 + $0x120] sm:$0xff] %vm3017, %v2989
        %3055 = vst.msk [vmem:[#allocation3 + $0x128] sm:$0xff] %vm3017, %v2990
        %3056 = vst.msk [vmem:[#allocation3 + $0x130] sm:$0xff] %vm3017, %v2991
        %3057 = vst.msk [vmem:[#allocation3 + $0x138] sm:$0xff] %vm3017, %v2992
        %3058 = vst.msk [vmem:[#allocation3 + $0x140] sm:$0xff] %vm3017, %v2993
        %3059 = vst.msk [vmem:[#allocation3 + $0x148] sm:$0xff] %vm3017, %v2994
        %3060 = vst.msk [vmem:[#allocation3 + $0x150] sm:$0xff] %vm3017, %v2995
        %3061 = vst.msk [vmem:[#allocation3 + $0x158] sm:$0xff] %vm3017, %v2996
        %3062 = vst.msk [vmem:[#allocation3 + $0x160] sm:$0xff] %vm3017, %v2997
        %3063 = vst.msk [vmem:[#allocation3 + $0x168] sm:$0xff] %vm3017, %v2998
        %3064 = vst.msk [vmem:[#allocation3 + $0x170] sm:$0xff] %vm3017, %v2999
        %3065 = vst.msk [vmem:[#allocation3 + $0x178] sm:$0xff] %vm3017, %v3000
        %3066 = vst.msk [vmem:[#allocation3 + $0x180] sm:$0xff] %vm3017, %v3001
        %3067 = vst.msk [vmem:[#allocation3 + $0x188] sm:$0xff] %vm3017, %v3002
        %3068 = vst.msk [vmem:[#allocation3 + $0x190] sm:$0xff] %vm3017, %v3003
        %3069 = vst.msk [vmem:[#allocation3 + $0x198] sm:$0xff] %vm3017, %v3004
        %3070 = vst.msk [vmem:[#allocation3 + $0x1a0] sm:$0xff] %vm3017, %v3005
        %3071 = vst.msk [vmem:[#allocation3 + $0x1a8] sm:$0xff] %vm3017, %v3006
        %3072 = vst.msk [vmem:[#allocation3 + $0x1b0] sm:$0xff] %vm3017, %v3007
        %3073 = vst.msk [vmem:[#allocation3 + $0x1b8] sm:$0xff] %vm3017, %v3008
        %3074 = vst.msk [vmem:[#allocation3 + $0x1c0] sm:$0xff] %vm3017, %v3009
        %3075 = vst.msk [vmem:[#allocation3 + $0x1c8] sm:$0xff] %vm3017, %v3010
        %3076 = vst.msk [vmem:[#allocation3 + $0x1d0] sm:$0xff] %vm3017, %v3011
        %3077 = vst.msk [vmem:[#allocation3 + $0x1d8] sm:$0xff] %vm3017, %v3012
        %3078 = vst.msk [vmem:[#allocation3 + $0x1e0] sm:$0xff] %vm3017, %v3013
        %3079 = vst.msk [vmem:[#allocation3 + $0x1e8] sm:$0xff] %vm3017, %v3014
        %3080 = vst.msk [vmem:[#allocation3 + $0x1f0] sm:$0xff] %vm3017, %v3015
        %3081 = vst.msk [vmem:[#allocation3 + $0x1f8] sm:$0xff] %vm3017, %v3016
        %v3082 = vld [vmem:[#allocation4] sm:$0xff]
        %v3083 = vld [vmem:[#allocation4 + $0x8] sm:$0xff]
        %v3084 = vld [vmem:[#allocation4 + $0x10] sm:$0xff]
        %v3085 = vld [vmem:[#allocation4 + $0x18] sm:$0xff]
        %v3086 = vld [vmem:[#allocation4 + $0x20] sm:$0xff]
        %v3087 = vld [vmem:[#allocation4 + $0x28] sm:$0xff]
        %v3088 = vld [vmem:[#allocation4 + $0x30] sm:$0xff]
        %v3089 = vld [vmem:[#allocation4 + $0x38] sm:$0xff]
        %v3090 = vld [vmem:[#allocation4 + $0x40] sm:$0xff]
        %v3091 = vld [vmem:[#allocation4 + $0x48] sm:$0xff]
        %v3092 = vld [vmem:[#allocation4 + $0x50] sm:$0xff]
        %v3093 = vld [vmem:[#allocation4 + $0x58] sm:$0xff]
        %v3094 = vld [vmem:[#allocation4 + $0x60] sm:$0xff]
        %v3095 = vld [vmem:[#allocation4 + $0x68] sm:$0xff]
        %v3096 = vld [vmem:[#allocation4 + $0x70] sm:$0xff]
        %v3097 = vld [vmem:[#allocation4 + $0x78] sm:$0xff]
        %v3098 = vld [vmem:[#allocation4 + $0x80] sm:$0xff]
        %v3099 = vld [vmem:[#allocation4 + $0x88] sm:$0xff]
        %v3100 = vld [vmem:[#allocation4 + $0x90] sm:$0xff]
        %v3101 = vld [vmem:[#allocation4 + $0x98] sm:$0xff]
        %v3102 = vld [vmem:[#allocation4 + $0xa0] sm:$0xff]
        %v3103 = vld [vmem:[#allocation4 + $0xa8] sm:$0xff]
        %v3104 = vld [vmem:[#allocation4 + $0xb0] sm:$0xff]
        %v3105 = vld [vmem:[#allocation4 + $0xb8] sm:$0xff]
        %v3106 = vld [vmem:[#allocation4 + $0xc0] sm:$0xff]
        %v3107 = vld [vmem:[#allocation4 + $0xc8] sm:$0xff]
        %v3108 = vld [vmem:[#allocation4 + $0xd0] sm:$0xff]
        %v3109 = vld [vmem:[#allocation4 + $0xd8] sm:$0xff]
        %v3110 = vld [vmem:[#allocation4 + $0xe0] sm:$0xff]
        %v3111 = vld [vmem:[#allocation4 + $0xe8] sm:$0xff]
        %v3112 = vld [vmem:[#allocation4 + $0xf0] sm:$0xff]
        %v3113 = vld [vmem:[#allocation4 + $0xf8] sm:$0xff]
        %v3114 = vld [vmem:[#allocation4 + $0x100] sm:$0xff]
        %v3115 = vld [vmem:[#allocation4 + $0x108] sm:$0xff]
        %v3116 = vld [vmem:[#allocation4 + $0x110] sm:$0xff]
        %v3117 = vld [vmem:[#allocation4 + $0x118] sm:$0xff]
        %v3118 = vld [vmem:[#allocation4 + $0x120] sm:$0xff]
        %v3119 = vld [vmem:[#allocation4 + $0x128] sm:$0xff]
        %v3120 = vld [vmem:[#allocation4 + $0x130] sm:$0xff]
        %v3121 = vld [vmem:[#allocation4 + $0x138] sm:$0xff]
        %v3122 = vld [vmem:[#allocation4 + $0x140] sm:$0xff]
        %v3123 = vld [vmem:[#allocation4 + $0x148] sm:$0xff]
        %v3124 = vld [vmem:[#allocation4 + $0x150] sm:$0xff]
        %v3125 = vld [vmem:[#allocation4 + $0x158] sm:$0xff]
        %v3126 = vld [vmem:[#allocation4 + $0x160] sm:$0xff]
        %v3127 = vld [vmem:[#allocation4 + $0x168] sm:$0xff]
        %v3128 = vld [vmem:[#allocation4 + $0x170] sm:$0xff]
        %v3129 = vld [vmem:[#allocation4 + $0x178] sm:$0xff]
        %v3130 = vld [vmem:[#allocation4 + $0x180] sm:$0xff]
        %v3131 = vld [vmem:[#allocation4 + $0x188] sm:$0xff]
        %v3132 = vld [vmem:[#allocation4 + $0x190] sm:$0xff]
        %v3133 = vld [vmem:[#allocation4 + $0x198] sm:$0xff]
        %v3134 = vld [vmem:[#allocation4 + $0x1a0] sm:$0xff]
        %v3135 = vld [vmem:[#allocation4 + $0x1a8] sm:$0xff]
        %v3136 = vld [vmem:[#allocation4 + $0x1b0] sm:$0xff]
        %v3137 = vld [vmem:[#allocation4 + $0x1b8] sm:$0xff]
        %v3138 = vld [vmem:[#allocation4 + $0x1c0] sm:$0xff]
        %v3139 = vld [vmem:[#allocation4 + $0x1c8] sm:$0xff]
        %v3140 = vld [vmem:[#allocation4 + $0x1d0] sm:$0xff]
        %v3141 = vld [vmem:[#allocation4 + $0x1d8] sm:$0xff]
        %v3142 = vld [vmem:[#allocation4 + $0x1e0] sm:$0xff]
        %v3143 = vld [vmem:[#allocation4 + $0x1e8] sm:$0xff]
        %v3144 = vld [vmem:[#allocation4 + $0x1f0] sm:$0xff]
        %v3145 = vld [vmem:[#allocation4 + $0x1f8] sm:$0xff]
        %3147 = vset.pattern.permute.xlu0 0
        %3148 = vperm.xlu0 %3147, %v2058
        %v3149 = vpop.permute.xlu0 %3148
        %3152 = vset.pattern.permute.xlu0 0
        %3153 = vperm.xlu0 %3152, %v2060
        %v3154 = vpop.permute.xlu0 %3153
        %3157 = vset.pattern.permute.xlu0 0
        %3158 = vperm.xlu0 %3157, %v2062
        %v3159 = vpop.permute.xlu0 %3158
        %3162 = vset.pattern.permute.xlu0 0
        %3163 = vperm.xlu0 %3162, %v2064
        %v3164 = vpop.permute.xlu0 %3163
        %3167 = vset.pattern.permute.xlu0 0
        %3168 = vperm.xlu0 %3167, %v2066
        %v3169 = vpop.permute.xlu0 %3168
        %3172 = vset.pattern.permute.xlu0 0
        %3173 = vperm.xlu0 %3172, %v2068
        %v3174 = vpop.permute.xlu0 %3173
        %3177 = vset.pattern.permute.xlu0 0
        %3178 = vperm.xlu0 %3177, %v2070
        %v3179 = vpop.permute.xlu0 %3178
        %3182 = vset.pattern.permute.xlu0 0
        %3183 = vperm.xlu0 %3182, %v2072
        %v3184 = vpop.permute.xlu0 %3183
        %3187 = vset.pattern.permute.xlu0 0
        %3188 = vperm.xlu0 %3187, %v2074
        %v3189 = vpop.permute.xlu0 %3188
        %3192 = vset.pattern.permute.xlu0 0
        %3193 = vperm.xlu0 %3192, %v2076
        %v3194 = vpop.permute.xlu0 %3193
        %3197 = vset.pattern.permute.xlu0 0
        %3198 = vperm.xlu0 %3197, %v2078
        %v3199 = vpop.permute.xlu0 %3198
        %3202 = vset.pattern.permute.xlu0 0
        %3203 = vperm.xlu0 %3202, %v2080
        %v3204 = vpop.permute.xlu0 %3203
        %3207 = vset.pattern.permute.xlu0 0
        %3208 = vperm.xlu0 %3207, %v2082
        %v3209 = vpop.permute.xlu0 %3208
        %3212 = vset.pattern.permute.xlu0 0
        %3213 = vperm.xlu0 %3212, %v2084
        %v3214 = vpop.permute.xlu0 %3213
        %3217 = vset.pattern.permute.xlu0 0
        %3218 = vperm.xlu0 %3217, %v2086
        %v3219 = vpop.permute.xlu0 %3218
        %3222 = vset.pattern.permute.xlu0 0
        %3223 = vperm.xlu0 %3222, %v2088
        %v3224 = vpop.permute.xlu0 %3223
        %3227 = vset.pattern.permute.xlu0 0
        %3228 = vperm.xlu0 %3227, %v2090
        %v3229 = vpop.permute.xlu0 %3228
        %3232 = vset.pattern.permute.xlu0 0
        %3233 = vperm.xlu0 %3232, %v2092
        %v3234 = vpop.permute.xlu0 %3233
        %3237 = vset.pattern.permute.xlu0 0
        %3238 = vperm.xlu0 %3237, %v2094
        %v3239 = vpop.permute.xlu0 %3238
        %3242 = vset.pattern.permute.xlu0 0
        %3243 = vperm.xlu0 %3242, %v2096
        %v3244 = vpop.permute.xlu0 %3243
        %3247 = vset.pattern.permute.xlu0 0
        %3248 = vperm.xlu0 %3247, %v2098
        %v3249 = vpop.permute.xlu0 %3248
        %3252 = vset.pattern.permute.xlu0 0
        %3253 = vperm.xlu0 %3252, %v2100
        %v3254 = vpop.permute.xlu0 %3253
        %3257 = vset.pattern.permute.xlu0 0
        %3258 = vperm.xlu0 %3257, %v2102
        %v3259 = vpop.permute.xlu0 %3258
        %3262 = vset.pattern.permute.xlu0 0
        %3263 = vperm.xlu0 %3262, %v2104
        %v3264 = vpop.permute.xlu0 %3263
        %3267 = vset.pattern.permute.xlu0 0
        %3268 = vperm.xlu0 %3267, %v2106
        %v3269 = vpop.permute.xlu0 %3268
        %3272 = vset.pattern.permute.xlu0 0
        %3273 = vperm.xlu0 %3272, %v2108
        %v3274 = vpop.permute.xlu0 %3273
        %3277 = vset.pattern.permute.xlu0 0
        %3278 = vperm.xlu0 %3277, %v2110
        %v3279 = vpop.permute.xlu0 %3278
        %3282 = vset.pattern.permute.xlu0 0
        %3283 = vperm.xlu0 %3282, %v2112
        %v3284 = vpop.permute.xlu0 %3283
        %3287 = vset.pattern.permute.xlu0 0
        %3288 = vperm.xlu0 %3287, %v2114
        %v3289 = vpop.permute.xlu0 %3288
        %3292 = vset.pattern.permute.xlu0 0
        %3293 = vperm.xlu0 %3292, %v2116
        %v3294 = vpop.permute.xlu0 %3293
        %3297 = vset.pattern.permute.xlu0 0
        %3298 = vperm.xlu0 %3297, %v2118
        %v3299 = vpop.permute.xlu0 %3298
        %3302 = vset.pattern.permute.xlu0 0
        %3303 = vperm.xlu0 %3302, %v2120
        %v3304 = vpop.permute.xlu0 %3303
        %3307 = vset.pattern.permute.xlu0 0
        %3308 = vperm.xlu0 %3307, %v2122
        %v3309 = vpop.permute.xlu0 %3308
        %3312 = vset.pattern.permute.xlu0 0
        %3313 = vperm.xlu0 %3312, %v2124
        %v3314 = vpop.permute.xlu0 %3313
        %3317 = vset.pattern.permute.xlu0 0
        %3318 = vperm.xlu0 %3317, %v2126
        %v3319 = vpop.permute.xlu0 %3318
        %3322 = vset.pattern.permute.xlu0 0
        %3323 = vperm.xlu0 %3322, %v2128
        %v3324 = vpop.permute.xlu0 %3323
        %3327 = vset.pattern.permute.xlu0 0
        %3328 = vperm.xlu0 %3327, %v2130
        %v3329 = vpop.permute.xlu0 %3328
        %3332 = vset.pattern.permute.xlu0 0
        %3333 = vperm.xlu0 %3332, %v2132
        %v3334 = vpop.permute.xlu0 %3333
        %3337 = vset.pattern.permute.xlu0 0
        %3338 = vperm.xlu0 %3337, %v2134
        %v3339 = vpop.permute.xlu0 %3338
        %3342 = vset.pattern.permute.xlu0 0
        %3343 = vperm.xlu0 %3342, %v2136
        %v3344 = vpop.permute.xlu0 %3343
        %3347 = vset.pattern.permute.xlu0 0
        %3348 = vperm.xlu0 %3347, %v2138
        %v3349 = vpop.permute.xlu0 %3348
        %3352 = vset.pattern.permute.xlu0 0
        %3353 = vperm.xlu0 %3352, %v2140
        %v3354 = vpop.permute.xlu0 %3353
        %3357 = vset.pattern.permute.xlu0 0
        %3358 = vperm.xlu0 %3357, %v2142
        %v3359 = vpop.permute.xlu0 %3358
        %3362 = vset.pattern.permute.xlu0 0
        %3363 = vperm.xlu0 %3362, %v2144
        %v3364 = vpop.permute.xlu0 %3363
        %3367 = vset.pattern.permute.xlu0 0
        %3368 = vperm.xlu0 %3367, %v2146
        %v3369 = vpop.permute.xlu0 %3368
        %3372 = vset.pattern.permute.xlu0 0
        %3373 = vperm.xlu0 %3372, %v2148
        %v3374 = vpop.permute.xlu0 %3373
        %3377 = vset.pattern.permute.xlu0 0
        %3378 = vperm.xlu0 %3377, %v2150
        %v3379 = vpop.permute.xlu0 %3378
        %3382 = vset.pattern.permute.xlu0 0
        %3383 = vperm.xlu0 %3382, %v2152
        %v3384 = vpop.permute.xlu0 %3383
        %3387 = vset.pattern.permute.xlu0 0
        %3388 = vperm.xlu0 %3387, %v2154
        %v3389 = vpop.permute.xlu0 %3388
        %3392 = vset.pattern.permute.xlu0 0
        %3393 = vperm.xlu0 %3392, %v2156
        %v3394 = vpop.permute.xlu0 %3393
        %3397 = vset.pattern.permute.xlu0 0
        %3398 = vperm.xlu0 %3397, %v2158
        %v3399 = vpop.permute.xlu0 %3398
        %3402 = vset.pattern.permute.xlu0 0
        %3403 = vperm.xlu0 %3402, %v2160
        %v3404 = vpop.permute.xlu0 %3403
        %3407 = vset.pattern.permute.xlu0 0
        %3408 = vperm.xlu0 %3407, %v2162
        %v3409 = vpop.permute.xlu0 %3408
        %3412 = vset.pattern.permute.xlu0 0
        %3413 = vperm.xlu0 %3412, %v2164
        %v3414 = vpop.permute.xlu0 %3413
        %3417 = vset.pattern.permute.xlu0 0
        %3418 = vperm.xlu0 %3417, %v2166
        %v3419 = vpop.permute.xlu0 %3418
        %3422 = vset.pattern.permute.xlu0 0
        %3423 = vperm.xlu0 %3422, %v2168
        %v3424 = vpop.permute.xlu0 %3423
        %3427 = vset.pattern.permute.xlu0 0
        %3428 = vperm.xlu0 %3427, %v2170
        %v3429 = vpop.permute.xlu0 %3428
        %3432 = vset.pattern.permute.xlu0 0
        %3433 = vperm.xlu0 %3432, %v2172
        %v3434 = vpop.permute.xlu0 %3433
        %3437 = vset.pattern.permute.xlu0 0
        %3438 = vperm.xlu0 %3437, %v2174
        %v3439 = vpop.permute.xlu0 %3438
        %3442 = vset.pattern.permute.xlu0 0
        %3443 = vperm.xlu0 %3442, %v2176
        %v3444 = vpop.permute.xlu0 %3443
        %3447 = vset.pattern.permute.xlu0 0
        %3448 = vperm.xlu0 %3447, %v2178
        %v3449 = vpop.permute.xlu0 %3448
        %3452 = vset.pattern.permute.xlu0 0
        %3453 = vperm.xlu0 %3452, %v2180
        %v3454 = vpop.permute.xlu0 %3453
        %3457 = vset.pattern.permute.xlu0 0
        %3458 = vperm.xlu0 %3457, %v2182
        %v3459 = vpop.permute.xlu0 %3458
        %3462 = vset.pattern.permute.xlu0 0
        %3463 = vperm.xlu0 %3462, %v2184
        %v3464 = vpop.permute.xlu0 %3463
        %v3466 = vmul.f32 %v3149, %v3082
        %v3467 = vmul.f32 %v3154, %v3083
        %v3468 = vmul.f32 %v3159, %v3084
        %v3469 = vmul.f32 %v3164, %v3085
        %v3470 = vmul.f32 %v3169, %v3086
        %v3471 = vmul.f32 %v3174, %v3087
        %v3472 = vmul.f32 %v3179, %v3088
        %v3473 = vmul.f32 %v3184, %v3089
        %v3474 = vmul.f32 %v3189, %v3090
        %v3475 = vmul.f32 %v3194, %v3091
        %v3476 = vmul.f32 %v3199, %v3092
        %v3477 = vmul.f32 %v3204, %v3093
        %v3478 = vmul.f32 %v3209, %v3094
        %v3479 = vmul.f32 %v3214, %v3095
        %v3480 = vmul.f32 %v3219, %v3096
        %v3481 = vmul.f32 %v3224, %v3097
        %v3482 = vmul.f32 %v3229, %v3098
        %v3483 = vmul.f32 %v3234, %v3099
        %v3484 = vmul.f32 %v3239, %v3100
        %v3485 = vmul.f32 %v3244, %v3101
        %v3486 = vmul.f32 %v3249, %v3102
        %v3487 = vmul.f32 %v3254, %v3103
        %v3488 = vmul.f32 %v3259, %v3104
        %v3489 = vmul.f32 %v3264, %v3105
        %v3490 = vmul.f32 %v3269, %v3106
        %v3491 = vmul.f32 %v3274, %v3107
        %v3492 = vmul.f32 %v3279, %v3108
        %v3493 = vmul.f32 %v3284, %v3109
        %v3494 = vmul.f32 %v3289, %v3110
        %v3495 = vmul.f32 %v3294, %v3111
        %v3496 = vmul.f32 %v3299, %v3112
        %v3497 = vmul.f32 %v3304, %v3113
        %v3498 = vmul.f32 %v3309, %v3114
        %v3499 = vmul.f32 %v3314, %v3115
        %v3500 = vmul.f32 %v3319, %v3116
        %v3501 = vmul.f32 %v3324, %v3117
        %v3502 = vmul.f32 %v3329, %v3118
        %v3503 = vmul.f32 %v3334, %v3119
        %v3504 = vmul.f32 %v3339, %v3120
        %v3505 = vmul.f32 %v3344, %v3121
        %v3506 = vmul.f32 %v3349, %v3122
        %v3507 = vmul.f32 %v3354, %v3123
        %v3508 = vmul.f32 %v3359, %v3124
        %v3509 = vmul.f32 %v3364, %v3125
        %v3510 = vmul.f32 %v3369, %v3126
        %v3511 = vmul.f32 %v3374, %v3127
        %v3512 = vmul.f32 %v3379, %v3128
        %v3513 = vmul.f32 %v3384, %v3129
        %v3514 = vmul.f32 %v3389, %v3130
        %v3515 = vmul.f32 %v3394, %v3131
        %v3516 = vmul.f32 %v3399, %v3132
        %v3517 = vmul.f32 %v3404, %v3133
        %v3518 = vmul.f32 %v3409, %v3134
        %v3519 = vmul.f32 %v3414, %v3135
        %v3520 = vmul.f32 %v3419, %v3136
        %v3521 = vmul.f32 %v3424, %v3137
        %v3522 = vmul.f32 %v3429, %v3138
        %v3523 = vmul.f32 %v3434, %v3139
        %v3524 = vmul.f32 %v3439, %v3140
        %v3525 = vmul.f32 %v3444, %v3141
        %v3526 = vmul.f32 %v3449, %v3142
        %v3527 = vmul.f32 %v3454, %v3143
        %v3528 = vmul.f32 %v3459, %v3144
        %v3529 = vmul.f32 %v3464, %v3145
        %v3530 = vpack.c.bf16 %v2570, %v2570
        %v3531 = vpack.c.bf16 %v2572, %v2572
        %v3532 = vpack.c.bf16 %v2574, %v2574
        %v3533 = vpack.c.bf16 %v2576, %v2576
        %v3534 = vpack.c.bf16 %v2578, %v2578
        %v3535 = vpack.c.bf16 %v2580, %v2580
        %v3536 = vpack.c.bf16 %v2582, %v2582
        %v3537 = vpack.c.bf16 %v2584, %v2584
        %v3538 = vpack.c.bf16 %v2586, %v2586
        %v3539 = vpack.c.bf16 %v2588, %v2588
        %v3540 = vpack.c.bf16 %v2590, %v2590
        %v3541 = vpack.c.bf16 %v2592, %v2592
        %v3542 = vpack.c.bf16 %v2594, %v2594
        %v3543 = vpack.c.bf16 %v2596, %v2596
        %v3544 = vpack.c.bf16 %v2598, %v2598
        %v3545 = vpack.c.bf16 %v2600, %v2600
        %v3546 = vpack.c.bf16 %v2602, %v2602
        %v3547 = vpack.c.bf16 %v2604, %v2604
        %v3548 = vpack.c.bf16 %v2606, %v2606
        %v3549 = vpack.c.bf16 %v2608, %v2608
        %v3550 = vpack.c.bf16 %v2610, %v2610
        %v3551 = vpack.c.bf16 %v2612, %v2612
        %v3552 = vpack.c.bf16 %v2614, %v2614
        %v3553 = vpack.c.bf16 %v2616, %v2616
        %v3554 = vpack.c.bf16 %v2618, %v2618
        %v3555 = vpack.c.bf16 %v2620, %v2620
        %v3556 = vpack.c.bf16 %v2622, %v2622
        %v3557 = vpack.c.bf16 %v2624, %v2624
        %v3558 = vpack.c.bf16 %v2626, %v2626
        %v3559 = vpack.c.bf16 %v2628, %v2628
        %v3560 = vpack.c.bf16 %v2630, %v2630
        %v3561 = vpack.c.bf16 %v2632, %v2632
        %v3562 = vpack.c.bf16 %v2634, %v2634
        %v3563 = vpack.c.bf16 %v2636, %v2636
        %v3564 = vpack.c.bf16 %v2638, %v2638
        %v3565 = vpack.c.bf16 %v2640, %v2640
        %v3566 = vpack.c.bf16 %v2642, %v2642
        %v3567 = vpack.c.bf16 %v2644, %v2644
        %v3568 = vpack.c.bf16 %v2646, %v2646
        %v3569 = vpack.c.bf16 %v2648, %v2648
        %v3570 = vpack.c.bf16 %v2650, %v2650
        %v3571 = vpack.c.bf16 %v2652, %v2652
        %v3572 = vpack.c.bf16 %v2654, %v2654
        %v3573 = vpack.c.bf16 %v2656, %v2656
        %v3574 = vpack.c.bf16 %v2658, %v2658
        %v3575 = vpack.c.bf16 %v2660, %v2660
        %v3576 = vpack.c.bf16 %v2662, %v2662
        %v3577 = vpack.c.bf16 %v2664, %v2664
        %v3578 = vpack.c.bf16 %v2666, %v2666
        %v3579 = vpack.c.bf16 %v2668, %v2668
        %v3580 = vpack.c.bf16 %v2670, %v2670
        %v3581 = vpack.c.bf16 %v2672, %v2672
        %v3582 = vpack.c.bf16 %v2674, %v2674
        %v3583 = vpack.c.bf16 %v2676, %v2676
        %v3584 = vpack.c.bf16 %v2678, %v2678
        %v3585 = vpack.c.bf16 %v2680, %v2680
        %v3586 = vpack.c.bf16 %v2682, %v2682
        %v3587 = vpack.c.bf16 %v2684, %v2684
        %v3588 = vpack.c.bf16 %v2686, %v2686
        %v3589 = vpack.c.bf16 %v2688, %v2688
        %v3590 = vpack.c.bf16 %v2690, %v2690
        %v3591 = vpack.c.bf16 %v2692, %v2692
        %v3592 = vpack.c.bf16 %v2694, %v2694
        %v3593 = vpack.c.bf16 %v2696, %v2696
        %v3610 = vunpack.c.l.b16 %v3530
        %v3611 = vunpack.c.l.b16 %v3531
        %v3612 = vunpack.c.l.b16 %v3532
        %v3613 = vunpack.c.l.b16 %v3533
        %v3614 = vunpack.c.l.b16 %v3534
        %v3615 = vunpack.c.l.b16 %v3535
        %v3616 = vunpack.c.l.b16 %v3536
        %v3617 = vunpack.c.l.b16 %v3537
        %v3618 = vunpack.c.l.b16 %v3538
        %v3619 = vunpack.c.l.b16 %v3539
        %v3620 = vunpack.c.l.b16 %v3540
        %v3621 = vunpack.c.l.b16 %v3541
        %v3622 = vunpack.c.l.b16 %v3542
        %v3623 = vunpack.c.l.b16 %v3543
        %v3624 = vunpack.c.l.b16 %v3544
        %v3625 = vunpack.c.l.b16 %v3545
        %v3626 = vpack.c.b16 %v3611, %v3610
        %v3627 = vpack.c.b16 %v3613, %v3612
        %v3628 = vpack.c.b16 %v3615, %v3614
        %v3629 = vpack.c.b16 %v3617, %v3616
        %v3630 = vpack.c.b16 %v3619, %v3618
        %v3631 = vpack.c.b16 %v3621, %v3620
        %v3632 = vpack.c.b16 %v3623, %v3622
        %v3633 = vpack.c.b16 %v3625, %v3624
        %v3658 = vunpack.c.l.b16 %v814
        %v3659 = vunpack.c.l.b16 %v815
        %v3660 = vunpack.c.l.b16 %v816
        %v3661 = vunpack.c.l.b16 %v817
        %v3662 = vunpack.c.l.b16 %v818
        %v3663 = vunpack.c.l.b16 %v819
        %v3664 = vunpack.c.l.b16 %v820
        %v3665 = vunpack.c.l.b16 %v821
        %v3666 = vunpack.c.l.b16 %v822
        %v3667 = vunpack.c.l.b16 %v823
        %v3668 = vunpack.c.l.b16 %v824
        %v3669 = vunpack.c.l.b16 %v825
        %v3670 = vunpack.c.l.b16 %v826
        %v3671 = vunpack.c.l.b16 %v827
        %v3672 = vunpack.c.l.b16 %v828
        %v3673 = vunpack.c.l.b16 %v829
        %v3674 = vpack.c.b16 %v3659, %v3658
        %v3675 = vpack.c.b16 %v3661, %v3660
        %v3676 = vpack.c.b16 %v3663, %v3662
        %v3677 = vpack.c.b16 %v3665, %v3664
        %v3678 = vpack.c.b16 %v3667, %v3666
        %v3679 = vpack.c.b16 %v3669, %v3668
        %v3680 = vpack.c.b16 %v3671, %v3670
        %v3681 = vpack.c.b16 %v3673, %v3672
        %3690 = vmatpush.bf16.msra.mxu0 %v3681
        %3691 = vmatpush.bf16.msra.mxu0 %v3680
        %3692 = vmatpush.bf16.msra.mxu0 %v3679
        %3693 = vmatpush.bf16.msra.mxu0 %v3678
        %3694 = vmatpush.bf16.msra.mxu0 %v3677
        %3695 = vmatpush.bf16.msra.mxu0 %v3676
        %3696 = vmatpush.bf16.msra.mxu0 %v3675
        %3697 = vmatpush.bf16.msra.mxu0 %v3674
        %3698 = vmatmul.bf16.gmra.mxu0 %v3626
        %v3699 = vpop.f32.mrf.mxu0
        %v3700 = vadd.f32 0.0, %v3699
        %v3701 = vpop.f32.mrf.mxu0
        %v3702 = vadd.f32 0.0, %v3701
        %3703 = vmatmul.bf16.gmra.mxu0 %v3627
        %v3704 = vpop.f32.mrf.mxu0
        %v3705 = vadd.f32 0.0, %v3704
        %v3706 = vpop.f32.mrf.mxu0
        %v3707 = vadd.f32 0.0, %v3706
        %3708 = vmatmul.bf16.gmra.mxu0 %v3628
        %v3709 = vpop.f32.mrf.mxu0
        %v3710 = vadd.f32 0.0, %v3709
        %v3711 = vpop.f32.mrf.mxu0
        %v3712 = vadd.f32 0.0, %v3711
        %3713 = vmatmul.bf16.gmra.mxu0 %v3629
        %v3714 = vpop.f32.mrf.mxu0
        %v3715 = vadd.f32 0.0, %v3714
        %v3716 = vpop.f32.mrf.mxu0
        %v3717 = vadd.f32 0.0, %v3716
        %3718 = vmatmul.bf16.gmra.mxu0 %v3630
        %v3719 = vpop.f32.mrf.mxu0
        %v3720 = vadd.f32 0.0, %v3719
        %v3721 = vpop.f32.mrf.mxu0
        %v3722 = vadd.f32 0.0, %v3721
        %3723 = vmatmul.bf16.gmra.mxu0 %v3631
        %v3724 = vpop.f32.mrf.mxu0
        %v3725 = vadd.f32 0.0, %v3724
        %v3726 = vpop.f32.mrf.mxu0
        %v3727 = vadd.f32 0.0, %v3726
        %3728 = vmatmul.bf16.gmra.mxu0 %v3632
        %v3729 = vpop.f32.mrf.mxu0
        %v3730 = vadd.f32 0.0, %v3729
        %v3731 = vpop.f32.mrf.mxu0
        %v3732 = vadd.f32 0.0, %v3731
        %3733 = vmatmul.bf16.gmra.mxu0 %v3633
        %v3734 = vpop.f32.mrf.mxu0
        %v3735 = vadd.f32 0.0, %v3734
        %v3736 = vpop.f32.mrf.mxu0
        %v3737 = vadd.f32 0.0, %v3736
        %3738 = vdwg.mxu0
        %v3755 = vunpack.c.l.b16 %v3546
        %v3756 = vunpack.c.l.b16 %v3547
        %v3757 = vunpack.c.l.b16 %v3548
        %v3758 = vunpack.c.l.b16 %v3549
        %v3759 = vunpack.c.l.b16 %v3550
        %v3760 = vunpack.c.l.b16 %v3551
        %v3761 = vunpack.c.l.b16 %v3552
        %v3762 = vunpack.c.l.b16 %v3553
        %v3763 = vunpack.c.l.b16 %v3554
        %v3764 = vunpack.c.l.b16 %v3555
        %v3765 = vunpack.c.l.b16 %v3556
        %v3766 = vunpack.c.l.b16 %v3557
        %v3767 = vunpack.c.l.b16 %v3558
        %v3768 = vunpack.c.l.b16 %v3559
        %v3769 = vunpack.c.l.b16 %v3560
        %v3770 = vunpack.c.l.b16 %v3561
        %v3771 = vpack.c.b16 %v3756, %v3755
        %v3772 = vpack.c.b16 %v3758, %v3757
        %v3773 = vpack.c.b16 %v3760, %v3759
        %v3774 = vpack.c.b16 %v3762, %v3761
        %v3775 = vpack.c.b16 %v3764, %v3763
        %v3776 = vpack.c.b16 %v3766, %v3765
        %v3777 = vpack.c.b16 %v3768, %v3767
        %v3778 = vpack.c.b16 %v3770, %v3769
        %v3803 = vunpack.c.l.b16 %v830
        %v3804 = vunpack.c.l.b16 %v831
        %v3805 = vunpack.c.l.b16 %v832
        %v3806 = vunpack.c.l.b16 %v833
        %v3807 = vunpack.c.l.b16 %v834
        %v3808 = vunpack.c.l.b16 %v835
        %v3809 = vunpack.c.l.b16 %v836
        %v3810 = vunpack.c.l.b16 %v837
        %v3811 = vunpack.c.l.b16 %v838
        %v3812 = vunpack.c.l.b16 %v839
        %v3813 = vunpack.c.l.b16 %v840
        %v3814 = vunpack.c.l.b16 %v841
        %v3815 = vunpack.c.l.b16 %v842
        %v3816 = vunpack.c.l.b16 %v843
        %v3817 = vunpack.c.l.b16 %v844
        %v3818 = vunpack.c.l.b16 %v845
        %v3819 = vpack.c.b16 %v3804, %v3803
        %v3820 = vpack.c.b16 %v3806, %v3805
        %v3821 = vpack.c.b16 %v3808, %v3807
        %v3822 = vpack.c.b16 %v3810, %v3809
        %v3823 = vpack.c.b16 %v3812, %v3811
        %v3824 = vpack.c.b16 %v3814, %v3813
        %v3825 = vpack.c.b16 %v3816, %v3815
        %v3826 = vpack.c.b16 %v3818, %v3817
        %3835 = vmatpush.bf16.msra.mxu0 %v3826
        %3836 = vmatpush.bf16.msra.mxu0 %v3825
        %3837 = vmatpush.bf16.msra.mxu0 %v3824
        %3838 = vmatpush.bf16.msra.mxu0 %v3823
        %3839 = vmatpush.bf16.msra.mxu0 %v3822
        %3840 = vmatpush.bf16.msra.mxu0 %v3821
        %3841 = vmatpush.bf16.msra.mxu0 %v3820
        %3842 = vmatpush.bf16.msra.mxu0 %v3819
        %3843 = vmatmul.bf16.gmra.mxu0 %v3771
        %v3844 = vpop.f32.mrf.mxu0
        %v3845 = vadd.f32 0.0, %v3844
        %v3846 = vpop.f32.mrf.mxu0
        %v3847 = vadd.f32 0.0, %v3846
        %3848 = vmatmul.bf16.gmra.mxu0 %v3772
        %v3849 = vpop.f32.mrf.mxu0
        %v3850 = vadd.f32 0.0, %v3849
        %v3851 = vpop.f32.mrf.mxu0
        %v3852 = vadd.f32 0.0, %v3851
        %3853 = vmatmul.bf16.gmra.mxu0 %v3773
        %v3854 = vpop.f32.mrf.mxu0
        %v3855 = vadd.f32 0.0, %v3854
        %v3856 = vpop.f32.mrf.mxu0
        %v3857 = vadd.f32 0.0, %v3856
        %3858 = vmatmul.bf16.gmra.mxu0 %v3774
        %v3859 = vpop.f32.mrf.mxu0
        %v3860 = vadd.f32 0.0, %v3859
        %v3861 = vpop.f32.mrf.mxu0
        %v3862 = vadd.f32 0.0, %v3861
        %3863 = vmatmul.bf16.gmra.mxu0 %v3775
        %v3864 = vpop.f32.mrf.mxu0
        %v3865 = vadd.f32 0.0, %v3864
        %v3866 = vpop.f32.mrf.mxu0
        %v3867 = vadd.f32 0.0, %v3866
        %3868 = vmatmul.bf16.gmra.mxu0 %v3776
        %v3869 = vpop.f32.mrf.mxu0
        %v3870 = vadd.f32 0.0, %v3869
        %v3871 = vpop.f32.mrf.mxu0
        %v3872 = vadd.f32 0.0, %v3871
        %3873 = vmatmul.bf16.gmra.mxu0 %v3777
        %v3874 = vpop.f32.mrf.mxu0
        %v3875 = vadd.f32 0.0, %v3874
        %v3876 = vpop.f32.mrf.mxu0
        %v3877 = vadd.f32 0.0, %v3876
        %3878 = vmatmul.bf16.gmra.mxu0 %v3778
        %v3879 = vpop.f32.mrf.mxu0
        %v3880 = vadd.f32 0.0, %v3879
        %v3881 = vpop.f32.mrf.mxu0
        %v3882 = vadd.f32 0.0, %v3881
        %3883 = vdwg.mxu0
        %v3900 = vunpack.c.l.b16 %v3562
        %v3901 = vunpack.c.l.b16 %v3563
        %v3902 = vunpack.c.l.b16 %v3564
        %v3903 = vunpack.c.l.b16 %v3565
        %v3904 = vunpack.c.l.b16 %v3566
        %v3905 = vunpack.c.l.b16 %v3567
        %v3906 = vunpack.c.l.b16 %v3568
        %v3907 = vunpack.c.l.b16 %v3569
        %v3908 = vunpack.c.l.b16 %v3570
        %v3909 = vunpack.c.l.b16 %v3571
        %v3910 = vunpack.c.l.b16 %v3572
        %v3911 = vunpack.c.l.b16 %v3573
        %v3912 = vunpack.c.l.b16 %v3574
        %v3913 = vunpack.c.l.b16 %v3575
        %v3914 = vunpack.c.l.b16 %v3576
        %v3915 = vunpack.c.l.b16 %v3577
        %v3916 = vpack.c.b16 %v3901, %v3900
        %v3917 = vpack.c.b16 %v3903, %v3902
        %v3918 = vpack.c.b16 %v3905, %v3904
        %v3919 = vpack.c.b16 %v3907, %v3906
        %v3920 = vpack.c.b16 %v3909, %v3908
        %v3921 = vpack.c.b16 %v3911, %v3910
        %v3922 = vpack.c.b16 %v3913, %v3912
        %v3923 = vpack.c.b16 %v3915, %v3914
        %v3948 = vunpack.c.l.b16 %v846
        %v3949 = vunpack.c.l.b16 %v847
        %v3950 = vunpack.c.l.b16 %v848
        %v3951 = vunpack.c.l.b16 %v849
        %v3952 = vunpack.c.l.b16 %v850
        %v3953 = vunpack.c.l.b16 %v851
        %v3954 = vunpack.c.l.b16 %v852
        %v3955 = vunpack.c.l.b16 %v853
        %v3956 = vunpack.c.l.b16 %v854
        %v3957 = vunpack.c.l.b16 %v855
        %v3958 = vunpack.c.l.b16 %v856
        %v3959 = vunpack.c.l.b16 %v857
        %v3960 = vunpack.c.l.b16 %v858
        %v3961 = vunpack.c.l.b16 %v859
        %v3962 = vunpack.c.l.b16 %v860
        %v3963 = vunpack.c.l.b16 %v861
        %v3964 = vpack.c.b16 %v3949, %v3948
        %v3965 = vpack.c.b16 %v3951, %v3950
        %v3966 = vpack.c.b16 %v3953, %v3952
        %v3967 = vpack.c.b16 %v3955, %v3954
        %v3968 = vpack.c.b16 %v3957, %v3956
        %v3969 = vpack.c.b16 %v3959, %v3958
        %v3970 = vpack.c.b16 %v3961, %v3960
        %v3971 = vpack.c.b16 %v3963, %v3962
        %3980 = vmatpush.bf16.msra.mxu0 %v3971
        %3981 = vmatpush.bf16.msra.mxu0 %v3970
        %3982 = vmatpush.bf16.msra.mxu0 %v3969
        %3983 = vmatpush.bf16.msra.mxu0 %v3968
        %3984 = vmatpush.bf16.msra.mxu0 %v3967
        %3985 = vmatpush.bf16.msra.mxu0 %v3966
        %3986 = vmatpush.bf16.msra.mxu0 %v3965
        %3987 = vmatpush.bf16.msra.mxu0 %v3964
        %3988 = vmatmul.bf16.gmra.mxu0 %v3916
        %v3989 = vpop.f32.mrf.mxu0
        %v3990 = vadd.f32 0.0, %v3989
        %v3991 = vpop.f32.mrf.mxu0
        %v3992 = vadd.f32 0.0, %v3991
        %3993 = vmatmul.bf16.gmra.mxu0 %v3917
        %v3994 = vpop.f32.mrf.mxu0
        %v3995 = vadd.f32 0.0, %v3994
        %v3996 = vpop.f32.mrf.mxu0
        %v3997 = vadd.f32 0.0, %v3996
        %3998 = vmatmul.bf16.gmra.mxu0 %v3918
        %v3999 = vpop.f32.mrf.mxu0
        %v4000 = vadd.f32 0.0, %v3999
        %v4001 = vpop.f32.mrf.mxu0
        %v4002 = vadd.f32 0.0, %v4001
        %4003 = vmatmul.bf16.gmra.mxu0 %v3919
        %v4004 = vpop.f32.mrf.mxu0
        %v4005 = vadd.f32 0.0, %v4004
        %v4006 = vpop.f32.mrf.mxu0
        %v4007 = vadd.f32 0.0, %v4006
        %4008 = vmatmul.bf16.gmra.mxu0 %v3920
        %v4009 = vpop.f32.mrf.mxu0
        %v4010 = vadd.f32 0.0, %v4009
        %v4011 = vpop.f32.mrf.mxu0
        %v4012 = vadd.f32 0.0, %v4011
        %4013 = vmatmul.bf16.gmra.mxu0 %v3921
        %v4014 = vpop.f32.mrf.mxu0
        %v4015 = vadd.f32 0.0, %v4014
        %v4016 = vpop.f32.mrf.mxu0
        %v4017 = vadd.f32 0.0, %v4016
        %4018 = vmatmul.bf16.gmra.mxu0 %v3922
        %v4019 = vpop.f32.mrf.mxu0
        %v4020 = vadd.f32 0.0, %v4019
        %v4021 = vpop.f32.mrf.mxu0
        %v4022 = vadd.f32 0.0, %v4021
        %4023 = vmatmul.bf16.gmra.mxu0 %v3923
        %v4024 = vpop.f32.mrf.mxu0
        %v4025 = vadd.f32 0.0, %v4024
        %v4026 = vpop.f32.mrf.mxu0
        %v4027 = vadd.f32 0.0, %v4026
        %4028 = vdwg.mxu0
        %v4045 = vunpack.c.l.b16 %v3578
        %v4046 = vunpack.c.l.b16 %v3579
        %v4047 = vunpack.c.l.b16 %v3580
        %v4048 = vunpack.c.l.b16 %v3581
        %v4049 = vunpack.c.l.b16 %v3582
        %v4050 = vunpack.c.l.b16 %v3583
        %v4051 = vunpack.c.l.b16 %v3584
        %v4052 = vunpack.c.l.b16 %v3585
        %v4053 = vunpack.c.l.b16 %v3586
        %v4054 = vunpack.c.l.b16 %v3587
        %v4055 = vunpack.c.l.b16 %v3588
        %v4056 = vunpack.c.l.b16 %v3589
        %v4057 = vunpack.c.l.b16 %v3590
        %v4058 = vunpack.c.l.b16 %v3591
        %v4059 = vunpack.c.l.b16 %v3592
        %v4060 = vunpack.c.l.b16 %v3593
        %v4061 = vpack.c.b16 %v4046, %v4045
        %v4062 = vpack.c.b16 %v4048, %v4047
        %v4063 = vpack.c.b16 %v4050, %v4049
        %v4064 = vpack.c.b16 %v4052, %v4051
        %v4065 = vpack.c.b16 %v4054, %v4053
        %v4066 = vpack.c.b16 %v4056, %v4055
        %v4067 = vpack.c.b16 %v4058, %v4057
        %v4068 = vpack.c.b16 %v4060, %v4059
        %v4093 = vunpack.c.l.b16 %v862
        %v4094 = vunpack.c.l.b16 %v863
        %v4095 = vunpack.c.l.b16 %v864
        %v4096 = vunpack.c.l.b16 %v865
        %v4097 = vunpack.c.l.b16 %v866
        %v4098 = vunpack.c.l.b16 %v867
        %v4099 = vunpack.c.l.b16 %v868
        %v4100 = vunpack.c.l.b16 %v869
        %v4101 = vunpack.c.l.b16 %v870
        %v4102 = vunpack.c.l.b16 %v871
        %v4103 = vunpack.c.l.b16 %v872
        %v4104 = vunpack.c.l.b16 %v873
        %v4105 = vunpack.c.l.b16 %v874
        %v4106 = vunpack.c.l.b16 %v875
        %v4107 = vunpack.c.l.b16 %v876
        %v4108 = vunpack.c.l.b16 %v877
        %v4109 = vpack.c.b16 %v4094, %v4093
        %v4110 = vpack.c.b16 %v4096, %v4095
        %v4111 = vpack.c.b16 %v4098, %v4097
        %v4112 = vpack.c.b16 %v4100, %v4099
        %v4113 = vpack.c.b16 %v4102, %v4101
        %v4114 = vpack.c.b16 %v4104, %v4103
        %v4115 = vpack.c.b16 %v4106, %v4105
        %v4116 = vpack.c.b16 %v4108, %v4107
        %4125 = vmatpush.bf16.msra.mxu0 %v4116
        %4126 = vmatpush.bf16.msra.mxu0 %v4115
        %4127 = vmatpush.bf16.msra.mxu0 %v4114
        %4128 = vmatpush.bf16.msra.mxu0 %v4113
        %4129 = vmatpush.bf16.msra.mxu0 %v4112
        %4130 = vmatpush.bf16.msra.mxu0 %v4111
        %4131 = vmatpush.bf16.msra.mxu0 %v4110
        %4132 = vmatpush.bf16.msra.mxu0 %v4109
        %4133 = vmatmul.bf16.gmra.mxu0 %v4061
        %v4134 = vpop.f32.mrf.mxu0
        %v4135 = vadd.f32 0.0, %v4134
        %v4136 = vpop.f32.mrf.mxu0
        %v4137 = vadd.f32 0.0, %v4136
        %4138 = vmatmul.bf16.gmra.mxu0 %v4062
        %v4139 = vpop.f32.mrf.mxu0
        %v4140 = vadd.f32 0.0, %v4139
        %v4141 = vpop.f32.mrf.mxu0
        %v4142 = vadd.f32 0.0, %v4141
        %4143 = vmatmul.bf16.gmra.mxu0 %v4063
        %v4144 = vpop.f32.mrf.mxu0
        %v4145 = vadd.f32 0.0, %v4144
        %v4146 = vpop.f32.mrf.mxu0
        %v4147 = vadd.f32 0.0, %v4146
        %4148 = vmatmul.bf16.gmra.mxu0 %v4064
        %v4149 = vpop.f32.mrf.mxu0
        %v4150 = vadd.f32 0.0, %v4149
        %v4151 = vpop.f32.mrf.mxu0
        %v4152 = vadd.f32 0.0, %v4151
        %4153 = vmatmul.bf16.gmra.mxu0 %v4065
        %v4154 = vpop.f32.mrf.mxu0
        %v4155 = vadd.f32 0.0, %v4154
        %v4156 = vpop.f32.mrf.mxu0
        %v4157 = vadd.f32 0.0, %v4156
        %4158 = vmatmul.bf16.gmra.mxu0 %v4066
        %v4159 = vpop.f32.mrf.mxu0
        %v4160 = vadd.f32 0.0, %v4159
        %v4161 = vpop.f32.mrf.mxu0
        %v4162 = vadd.f32 0.0, %v4161
        %4163 = vmatmul.bf16.gmra.mxu0 %v4067
        %v4164 = vpop.f32.mrf.mxu0
        %v4165 = vadd.f32 0.0, %v4164
        %v4166 = vpop.f32.mrf.mxu0
        %v4167 = vadd.f32 0.0, %v4166
        %4168 = vmatmul.bf16.gmra.mxu0 %v4068
        %v4169 = vpop.f32.mrf.mxu0
        %v4170 = vadd.f32 0.0, %v4169
        %v4171 = vpop.f32.mrf.mxu0
        %v4172 = vadd.f32 0.0, %v4171
        %4173 = vdwg.mxu0
        %v4174 = vadd.f32 %v3466, %v3700
        %v4175 = vadd.f32 %v3467, %v3702
        %v4176 = vadd.f32 %v3468, %v3705
        %v4177 = vadd.f32 %v3469, %v3707
        %v4178 = vadd.f32 %v3470, %v3710
        %v4179 = vadd.f32 %v3471, %v3712
        %v4180 = vadd.f32 %v3472, %v3715
        %v4181 = vadd.f32 %v3473, %v3717
        %v4182 = vadd.f32 %v3474, %v3720
        %v4183 = vadd.f32 %v3475, %v3722
        %v4184 = vadd.f32 %v3476, %v3725
        %v4185 = vadd.f32 %v3477, %v3727
        %v4186 = vadd.f32 %v3478, %v3730
        %v4187 = vadd.f32 %v3479, %v3732
        %v4188 = vadd.f32 %v3480, %v3735
        %v4189 = vadd.f32 %v3481, %v3737
        %v4190 = vadd.f32 %v3482, %v3845
        %v4191 = vadd.f32 %v3483, %v3847
        %v4192 = vadd.f32 %v3484, %v3850
        %v4193 = vadd.f32 %v3485, %v3852
        %v4194 = vadd.f32 %v3486, %v3855
        %v4195 = vadd.f32 %v3487, %v3857
        %v4196 = vadd.f32 %v3488, %v3860
        %v4197 = vadd.f32 %v3489, %v3862
        %v4198 = vadd.f32 %v3490, %v3865
        %v4199 = vadd.f32 %v3491, %v3867
        %v4200 = vadd.f32 %v3492, %v3870
        %v4201 = vadd.f32 %v3493, %v3872
        %v4202 = vadd.f32 %v3494, %v3875
        %v4203 = vadd.f32 %v3495, %v3877
        %v4204 = vadd.f32 %v3496, %v3880
        %v4205 = vadd.f32 %v3497, %v3882
        %v4206 = vadd.f32 %v3498, %v3990
        %v4207 = vadd.f32 %v3499, %v3992
        %v4208 = vadd.f32 %v3500, %v3995
        %v4209 = vadd.f32 %v3501, %v3997
        %v4210 = vadd.f32 %v3502, %v4000
        %v4211 = vadd.f32 %v3503, %v4002
        %v4212 = vadd.f32 %v3504, %v4005
        %v4213 = vadd.f32 %v3505, %v4007
        %v4214 = vadd.f32 %v3506, %v4010
        %v4215 = vadd.f32 %v3507, %v4012
        %v4216 = vadd.f32 %v3508, %v4015
        %v4217 = vadd.f32 %v3509, %v4017
        %v4218 = vadd.f32 %v3510, %v4020
        %v4219 = vadd.f32 %v3511, %v4022
        %v4220 = vadd.f32 %v3512, %v4025
        %v4221 = vadd.f32 %v3513, %v4027
        %v4222 = vadd.f32 %v3514, %v4135
        %v4223 = vadd.f32 %v3515, %v4137
        %v4224 = vadd.f32 %v3516, %v4140
        %v4225 = vadd.f32 %v3517, %v4142
        %v4226 = vadd.f32 %v3518, %v4145
        %v4227 = vadd.f32 %v3519, %v4147
        %v4228 = vadd.f32 %v3520, %v4150
        %v4229 = vadd.f32 %v3521, %v4152
        %v4230 = vadd.f32 %v3522, %v4155
        %v4231 = vadd.f32 %v3523, %v4157
        %v4232 = vadd.f32 %v3524, %v4160
        %v4233 = vadd.f32 %v3525, %v4162
        %v4234 = vadd.f32 %v3526, %v4165
        %v4235 = vadd.f32 %v3527, %v4167
        %v4236 = vadd.f32 %v3528, %v4170
        %v4237 = vadd.f32 %v3529, %v4172
        %4238 = vst.msk [vmem:[#allocation4] sm:$0xff] %vm958, %v4174
        %4239 = vst.msk [vmem:[#allocation4 + $0x8] sm:$0xff] %vm958, %v4175
        %4240 = vst.msk [vmem:[#allocation4 + $0x10] sm:$0xff] %vm958, %v4176
        %4241 = vst.msk [vmem:[#allocation4 + $0x18] sm:$0xff] %vm958, %v4177
        %4242 = vst.msk [vmem:[#allocation4 + $0x20] sm:$0xff] %vm958, %v4178
        %4243 = vst.msk [vmem:[#allocation4 + $0x28] sm:$0xff] %vm958, %v4179
        %4244 = vst.msk [vmem:[#allocation4 + $0x30] sm:$0xff] %vm958, %v4180
        %4245 = vst.msk [vmem:[#allocation4 + $0x38] sm:$0xff] %vm958, %v4181
        %4246 = vst.msk [vmem:[#allocation4 + $0x40] sm:$0xff] %vm958, %v4182
        %4247 = vst.msk [vmem:[#allocation4 + $0x48] sm:$0xff] %vm958, %v4183
        %4248 = vst.msk [vmem:[#allocation4 + $0x50] sm:$0xff] %vm958, %v4184
        %4249 = vst.msk [vmem:[#allocation4 + $0x58] sm:$0xff] %vm958, %v4185
        %4250 = vst.msk [vmem:[#allocation4 + $0x60] sm:$0xff] %vm958, %v4186
        %4251 = vst.msk [vmem:[#allocation4 + $0x68] sm:$0xff] %vm958, %v4187
        %4252 = vst.msk [vmem:[#allocation4 + $0x70] sm:$0xff] %vm958, %v4188
        %4253 = vst.msk [vmem:[#allocation4 + $0x78] sm:$0xff] %vm958, %v4189
        %4254 = vst.msk [vmem:[#allocation4 + $0x80] sm:$0xff] %vm958, %v4190
        %4255 = vst.msk [vmem:[#allocation4 + $0x88] sm:$0xff] %vm958, %v4191
        %4256 = vst.msk [vmem:[#allocation4 + $0x90] sm:$0xff] %vm958, %v4192
        %4257 = vst.msk [vmem:[#allocation4 + $0x98] sm:$0xff] %vm958, %v4193
        %4258 = vst.msk [vmem:[#allocation4 + $0xa0] sm:$0xff] %vm958, %v4194
        %4259 = vst.msk [vmem:[#allocation4 + $0xa8] sm:$0xff] %vm958, %v4195
        %4260 = vst.msk [vmem:[#allocation4 + $0xb0] sm:$0xff] %vm958, %v4196
        %4261 = vst.msk [vmem:[#allocation4 + $0xb8] sm:$0xff] %vm958, %v4197
        %4262 = vst.msk [vmem:[#allocation4 + $0xc0] sm:$0xff] %vm958, %v4198
        %4263 = vst.msk [vmem:[#allocation4 + $0xc8] sm:$0xff] %vm958, %v4199
        %4264 = vst.msk [vmem:[#allocation4 + $0xd0] sm:$0xff] %vm958, %v4200
        %4265 = vst.msk [vmem:[#allocation4 + $0xd8] sm:$0xff] %vm958, %v4201
        %4266 = vst.msk [vmem:[#allocation4 + $0xe0] sm:$0xff] %vm958, %v4202
        %4267 = vst.msk [vmem:[#allocation4 + $0xe8] sm:$0xff] %vm958, %v4203
        %4268 = vst.msk [vmem:[#allocation4 + $0xf0] sm:$0xff] %vm958, %v4204
        %4269 = vst.msk [vmem:[#allocation4 + $0xf8] sm:$0xff] %vm958, %v4205
        %4270 = vst.msk [vmem:[#allocation4 + $0x100] sm:$0xff] %vm958, %v4206
        %4271 = vst.msk [vmem:[#allocation4 + $0x108] sm:$0xff] %vm958, %v4207
        %4272 = vst.msk [vmem:[#allocation4 + $0x110] sm:$0xff] %vm958, %v4208
        %4273 = vst.msk [vmem:[#allocation4 + $0x118] sm:$0xff] %vm958, %v4209
        %4274 = vst.msk [vmem:[#allocation4 + $0x120] sm:$0xff] %vm958, %v4210
        %4275 = vst.msk [vmem:[#allocation4 + $0x128] sm:$0xff] %vm958, %v4211
        %4276 = vst.msk [vmem:[#allocation4 + $0x130] sm:$0xff] %vm958, %v4212
        %4277 = vst.msk [vmem:[#allocation4 + $0x138] sm:$0xff] %vm958, %v4213
        %4278 = vst.msk [vmem:[#allocation4 + $0x140] sm:$0xff] %vm958, %v4214
        %4279 = vst.msk [vmem:[#allocation4 + $0x148] sm:$0xff] %vm958, %v4215
        %4280 = vst.msk [vmem:[#allocation4 + $0x150] sm:$0xff] %vm958, %v4216
        %4281 = vst.msk [vmem:[#allocation4 + $0x158] sm:$0xff] %vm958, %v4217
        %4282 = vst.msk [vmem:[#allocation4 + $0x160] sm:$0xff] %vm958, %v4218
        %4283 = vst.msk [vmem:[#allocation4 + $0x168] sm:$0xff] %vm958, %v4219
        %4284 = vst.msk [vmem:[#allocation4 + $0x170] sm:$0xff] %vm958, %v4220
        %4285 = vst.msk [vmem:[#allocation4 + $0x178] sm:$0xff] %vm958, %v4221
        %4286 = vst.msk [vmem:[#allocation4 + $0x180] sm:$0xff] %vm958, %v4222
        %4287 = vst.msk [vmem:[#allocation4 + $0x188] sm:$0xff] %vm958, %v4223
        %4288 = vst.msk [vmem:[#allocation4 + $0x190] sm:$0xff] %vm958, %v4224
        %4289 = vst.msk [vmem:[#allocation4 + $0x198] sm:$0xff] %vm958, %v4225
        %4290 = vst.msk [vmem:[#allocation4 + $0x1a0] sm:$0xff] %vm958, %v4226
        %4291 = vst.msk [vmem:[#allocation4 + $0x1a8] sm:$0xff] %vm958, %v4227
        %4292 = vst.msk [vmem:[#allocation4 + $0x1b0] sm:$0xff] %vm958, %v4228
        %4293 = vst.msk [vmem:[#allocation4 + $0x1b8] sm:$0xff] %vm958, %v4229
        %4294 = vst.msk [vmem:[#allocation4 + $0x1c0] sm:$0xff] %vm958, %v4230
        %4295 = vst.msk [vmem:[#allocation4 + $0x1c8] sm:$0xff] %vm958, %v4231
        %4296 = vst.msk [vmem:[#allocation4 + $0x1d0] sm:$0xff] %vm958, %v4232
        %4297 = vst.msk [vmem:[#allocation4 + $0x1d8] sm:$0xff] %vm958, %v4233
        %4298 = vst.msk [vmem:[#allocation4 + $0x1e0] sm:$0xff] %vm958, %v4234
        %4299 = vst.msk [vmem:[#allocation4 + $0x1e8] sm:$0xff] %vm958, %v4235
        %4300 = vst.msk [vmem:[#allocation4 + $0x1f0] sm:$0xff] %vm958, %v4236
        %4301 = vst.msk [vmem:[#allocation4 + $0x1f8] sm:$0xff] %vm958, %v4237
        %4302 = vst.msk [vmem:[#allocation2] sm:$0xff] %vm3017, %v1929
        %4303 = vst.msk [vmem:[#allocation2 + $0x8] sm:$0xff] %vm3017, %v1930
        %4304 = vst.msk [vmem:[#allocation2 + $0x10] sm:$0xff] %vm3017, %v1931
        %4305 = vst.msk [vmem:[#allocation2 + $0x18] sm:$0xff] %vm3017, %v1932
        %4306 = vst.msk [vmem:[#allocation2 + $0x20] sm:$0xff] %vm3017, %v1933
        %4307 = vst.msk [vmem:[#allocation2 + $0x28] sm:$0xff] %vm3017, %v1934
        %4308 = vst.msk [vmem:[#allocation2 + $0x30] sm:$0xff] %vm3017, %v1935
        %4309 = vst.msk [vmem:[#allocation2 + $0x38] sm:$0xff] %vm3017, %v1936
        %4310 = vst.msk [vmem:[#allocation2 + $0x40] sm:$0xff] %vm3017, %v1937
        %4311 = vst.msk [vmem:[#allocation2 + $0x48] sm:$0xff] %vm3017, %v1938
        %4312 = vst.msk [vmem:[#allocation2 + $0x50] sm:$0xff] %vm3017, %v1939
        %4313 = vst.msk [vmem:[#allocation2 + $0x58] sm:$0xff] %vm3017, %v1940
        %4314 = vst.msk [vmem:[#allocation2 + $0x60] sm:$0xff] %vm3017, %v1941
        %4315 = vst.msk [vmem:[#allocation2 + $0x68] sm:$0xff] %vm3017, %v1942
        %4316 = vst.msk [vmem:[#allocation2 + $0x70] sm:$0xff] %vm3017, %v1943
        %4317 = vst.msk [vmem:[#allocation2 + $0x78] sm:$0xff] %vm3017, %v1944
        %4318 = vst.msk [vmem:[#allocation2 + $0x80] sm:$0xff] %vm3017, %v1945
        %4319 = vst.msk [vmem:[#allocation2 + $0x88] sm:$0xff] %vm3017, %v1946
        %4320 = vst.msk [vmem:[#allocation2 + $0x90] sm:$0xff] %vm3017, %v1947
        %4321 = vst.msk [vmem:[#allocation2 + $0x98] sm:$0xff] %vm3017, %v1948
        %4322 = vst.msk [vmem:[#allocation2 + $0xa0] sm:$0xff] %vm3017, %v1949
        %4323 = vst.msk [vmem:[#allocation2 + $0xa8] sm:$0xff] %vm3017, %v1950
        %4324 = vst.msk [vmem:[#allocation2 + $0xb0] sm:$0xff] %vm3017, %v1951
        %4325 = vst.msk [vmem:[#allocation2 + $0xb8] sm:$0xff] %vm3017, %v1952
        %4326 = vst.msk [vmem:[#allocation2 + $0xc0] sm:$0xff] %vm3017, %v1953
        %4327 = vst.msk [vmem:[#allocation2 + $0xc8] sm:$0xff] %vm3017, %v1954
        %4328 = vst.msk [vmem:[#allocation2 + $0xd0] sm:$0xff] %vm3017, %v1955
        %4329 = vst.msk [vmem:[#allocation2 + $0xd8] sm:$0xff] %vm3017, %v1956
        %4330 = vst.msk [vmem:[#allocation2 + $0xe0] sm:$0xff] %vm3017, %v1957
        %4331 = vst.msk [vmem:[#allocation2 + $0xe8] sm:$0xff] %vm3017, %v1958
        %4332 = vst.msk [vmem:[#allocation2 + $0xf0] sm:$0xff] %vm3017, %v1959
        %4333 = vst.msk [vmem:[#allocation2 + $0xf8] sm:$0xff] %vm3017, %v1960
        %4334 = vst.msk [vmem:[#allocation2 + $0x100] sm:$0xff] %vm3017, %v1961
        %4335 = vst.msk [vmem:[#allocation2 + $0x108] sm:$0xff] %vm3017, %v1962
        %4336 = vst.msk [vmem:[#allocation2 + $0x110] sm:$0xff] %vm3017, %v1963
        %4337 = vst.msk [vmem:[#allocation2 + $0x118] sm:$0xff] %vm3017, %v1964
        %4338 = vst.msk [vmem:[#allocation2 + $0x120] sm:$0xff] %vm3017, %v1965
        %4339 = vst.msk [vmem:[#allocation2 + $0x128] sm:$0xff] %vm3017, %v1966
        %4340 = vst.msk [vmem:[#allocation2 + $0x130] sm:$0xff] %vm3017, %v1967
        %4341 = vst.msk [vmem:[#allocation2 + $0x138] sm:$0xff] %vm3017, %v1968
        %4342 = vst.msk [vmem:[#allocation2 + $0x140] sm:$0xff] %vm3017, %v1969
        %4343 = vst.msk [vmem:[#allocation2 + $0x148] sm:$0xff] %vm3017, %v1970
        %4344 = vst.msk [vmem:[#allocation2 + $0x150] sm:$0xff] %vm3017, %v1971
        %4345 = vst.msk [vmem:[#allocation2 + $0x158] sm:$0xff] %vm3017, %v1972
        %4346 = vst.msk [vmem:[#allocation2 + $0x160] sm:$0xff] %vm3017, %v1973
        %4347 = vst.msk [vmem:[#allocation2 + $0x168] sm:$0xff] %vm3017, %v1974
        %4348 = vst.msk [vmem:[#allocation2 + $0x170] sm:$0xff] %vm3017, %v1975
        %4349 = vst.msk [vmem:[#allocation2 + $0x178] sm:$0xff] %vm3017, %v1976
        %4350 = vst.msk [vmem:[#allocation2 + $0x180] sm:$0xff] %vm3017, %v1977
        %4351 = vst.msk [vmem:[#allocation2 + $0x188] sm:$0xff] %vm3017, %v1978
        %4352 = vst.msk [vmem:[#allocation2 + $0x190] sm:$0xff] %vm3017, %v1979
        %4353 = vst.msk [vmem:[#allocation2 + $0x198] sm:$0xff] %vm3017, %v1980
        %4354 = vst.msk [vmem:[#allocation2 + $0x1a0] sm:$0xff] %vm3017, %v1981
        %4355 = vst.msk [vmem:[#allocation2 + $0x1a8] sm:$0xff] %vm3017, %v1982
        %4356 = vst.msk [vmem:[#allocation2 + $0x1b0] sm:$0xff] %vm3017, %v1983
        %4357 = vst.msk [vmem:[#allocation2 + $0x1b8] sm:$0xff] %vm3017, %v1984
        %4358 = vst.msk [vmem:[#allocation2 + $0x1c0] sm:$0xff] %vm3017, %v1985
        %4359 = vst.msk [vmem:[#allocation2 + $0x1c8] sm:$0xff] %vm3017, %v1986
        %4360 = vst.msk [vmem:[#allocation2 + $0x1d0] sm:$0xff] %vm3017, %v1987
        %4361 = vst.msk [vmem:[#allocation2 + $0x1d8] sm:$0xff] %vm3017, %v1988
        %4362 = vst.msk [vmem:[#allocation2 + $0x1e0] sm:$0xff] %vm3017, %v1989
        %4363 = vst.msk [vmem:[#allocation2 + $0x1e8] sm:$0xff] %vm3017, %v1990
        %4364 = vst.msk [vmem:[#allocation2 + $0x1f0] sm:$0xff] %vm3017, %v1991
        %4365 = vst.msk [vmem:[#allocation2 + $0x1f8] sm:$0xff] %vm3017, %v1992
      $region40: #{transformer_forward.8} parent=31 // pred_fallthru
        _
      // Predicated region
      $region41: #{transformer_forward.8} parent=31 // pred_check
        %p4366 = pneg %p289
      $region42: #{transformer_forward.8} parent=31 // pred_check_branch
        %4368 = sbr.rel (%p4366) target = $region44
      $region43: #{transformer_forward.8} parent=31 // pred_region
        %v4369 = vld [vmem:[#allocation3] sm:$0xff]
        %v4370 = vld [vmem:[#allocation3 + $0x8] sm:$0xff]
        %v4371 = vld [vmem:[#allocation3 + $0x10] sm:$0xff]
        %v4372 = vld [vmem:[#allocation3 + $0x18] sm:$0xff]
        %v4373 = vld [vmem:[#allocation3 + $0x20] sm:$0xff]
        %v4374 = vld [vmem:[#allocation3 + $0x28] sm:$0xff]
        %v4375 = vld [vmem:[#allocation3 + $0x30] sm:$0xff]
        %v4376 = vld [vmem:[#allocation3 + $0x38] sm:$0xff]
        %v4377 = vld [vmem:[#allocation3 + $0x40] sm:$0xff]
        %v4378 = vld [vmem:[#allocation3 + $0x48] sm:$0xff]
        %v4379 = vld [vmem:[#allocation3 + $0x50] sm:$0xff]
        %v4380 = vld [vmem:[#allocation3 + $0x58] sm:$0xff]
        %v4381 = vld [vmem:[#allocation3 + $0x60] sm:$0xff]
        %v4382 = vld [vmem:[#allocation3 + $0x68] sm:$0xff]
        %v4383 = vld [vmem:[#allocation3 + $0x70] sm:$0xff]
        %v4384 = vld [vmem:[#allocation3 + $0x78] sm:$0xff]
        %v4385 = vld [vmem:[#allocation3 + $0x80] sm:$0xff]
        %v4386 = vld [vmem:[#allocation3 + $0x88] sm:$0xff]
        %v4387 = vld [vmem:[#allocation3 + $0x90] sm:$0xff]
        %v4388 = vld [vmem:[#allocation3 + $0x98] sm:$0xff]
        %v4389 = vld [vmem:[#allocation3 + $0xa0] sm:$0xff]
        %v4390 = vld [vmem:[#allocation3 + $0xa8] sm:$0xff]
        %v4391 = vld [vmem:[#allocation3 + $0xb0] sm:$0xff]
        %v4392 = vld [vmem:[#allocation3 + $0xb8] sm:$0xff]
        %v4393 = vld [vmem:[#allocation3 + $0xc0] sm:$0xff]
        %v4394 = vld [vmem:[#allocation3 + $0xc8] sm:$0xff]
        %v4395 = vld [vmem:[#allocation3 + $0xd0] sm:$0xff]
        %v4396 = vld [vmem:[#allocation3 + $0xd8] sm:$0xff]
        %v4397 = vld [vmem:[#allocation3 + $0xe0] sm:$0xff]
        %v4398 = vld [vmem:[#allocation3 + $0xe8] sm:$0xff]
        %v4399 = vld [vmem:[#allocation3 + $0xf0] sm:$0xff]
        %v4400 = vld [vmem:[#allocation3 + $0xf8] sm:$0xff]
        %v4401 = vld [vmem:[#allocation3 + $0x100] sm:$0xff]
        %v4402 = vld [vmem:[#allocation3 + $0x108] sm:$0xff]
        %v4403 = vld [vmem:[#allocation3 + $0x110] sm:$0xff]
        %v4404 = vld [vmem:[#allocation3 + $0x118] sm:$0xff]
        %v4405 = vld [vmem:[#allocation3 + $0x120] sm:$0xff]
        %v4406 = vld [vmem:[#allocation3 + $0x128] sm:$0xff]
        %v4407 = vld [vmem:[#allocation3 + $0x130] sm:$0xff]
        %v4408 = vld [vmem:[#allocation3 + $0x138] sm:$0xff]
        %v4409 = vld [vmem:[#allocation3 + $0x140] sm:$0xff]
        %v4410 = vld [vmem:[#allocation3 + $0x148] sm:$0xff]
        %v4411 = vld [vmem:[#allocation3 + $0x150] sm:$0xff]
        %v4412 = vld [vmem:[#allocation3 + $0x158] sm:$0xff]
        %v4413 = vld [vmem:[#allocation3 + $0x160] sm:$0xff]
        %v4414 = vld [vmem:[#allocation3 + $0x168] sm:$0xff]
        %v4415 = vld [vmem:[#allocation3 + $0x170] sm:$0xff]
        %v4416 = vld [vmem:[#allocation3 + $0x178] sm:$0xff]
        %v4417 = vld [vmem:[#allocation3 + $0x180] sm:$0xff]
        %v4418 = vld [vmem:[#allocation3 + $0x188] sm:$0xff]
        %v4419 = vld [vmem:[#allocation3 + $0x190] sm:$0xff]
        %v4420 = vld [vmem:[#allocation3 + $0x198] sm:$0xff]
        %v4421 = vld [vmem:[#allocation3 + $0x1a0] sm:$0xff]
        %v4422 = vld [vmem:[#allocation3 + $0x1a8] sm:$0xff]
        %v4423 = vld [vmem:[#allocation3 + $0x1b0] sm:$0xff]
        %v4424 = vld [vmem:[#allocation3 + $0x1b8] sm:$0xff]
        %v4425 = vld [vmem:[#allocation3 + $0x1c0] sm:$0xff]
        %v4426 = vld [vmem:[#allocation3 + $0x1c8] sm:$0xff]
        %v4427 = vld [vmem:[#allocation3 + $0x1d0] sm:$0xff]
        %v4428 = vld [vmem:[#allocation3 + $0x1d8] sm:$0xff]
        %v4429 = vld [vmem:[#allocation3 + $0x1e0] sm:$0xff]
        %v4430 = vld [vmem:[#allocation3 + $0x1e8] sm:$0xff]
        %v4431 = vld [vmem:[#allocation3 + $0x1f0] sm:$0xff]
        %v4432 = vld [vmem:[#allocation3 + $0x1f8] sm:$0xff]
        %v4433 = vrcp.pop %v4369
        %v4434 = vrcp.pop %v4370
        %v4435 = vrcp.pop %v4371
        %v4436 = vrcp.pop %v4372
        %v4437 = vrcp.pop %v4373
        %v4438 = vrcp.pop %v4374
        %v4439 = vrcp.pop %v4375
        %v4440 = vrcp.pop %v4376
        %v4441 = vrcp.pop %v4377
        %v4442 = vrcp.pop %v4378
        %v4443 = vrcp.pop %v4379
        %v4444 = vrcp.pop %v4380
        %v4445 = vrcp.pop %v4381
        %v4446 = vrcp.pop %v4382
        %v4447 = vrcp.pop %v4383
        %v4448 = vrcp.pop %v4384
        %v4449 = vrcp.pop %v4385
        %v4450 = vrcp.pop %v4386
        %v4451 = vrcp.pop %v4387
        %v4452 = vrcp.pop %v4388
        %v4453 = vrcp.pop %v4389
        %v4454 = vrcp.pop %v4390
        %v4455 = vrcp.pop %v4391
        %v4456 = vrcp.pop %v4392
        %v4457 = vrcp.pop %v4393
        %v4458 = vrcp.pop %v4394
        %v4459 = vrcp.pop %v4395
        %v4460 = vrcp.pop %v4396
        %v4461 = vrcp.pop %v4397
        %v4462 = vrcp.pop %v4398
        %v4463 = vrcp.pop %v4399
        %v4464 = vrcp.pop %v4400
        %v4465 = vrcp.pop %v4401
        %v4466 = vrcp.pop %v4402
        %v4467 = vrcp.pop %v4403
        %v4468 = vrcp.pop %v4404
        %v4469 = vrcp.pop %v4405
        %v4470 = vrcp.pop %v4406
        %v4471 = vrcp.pop %v4407
        %v4472 = vrcp.pop %v4408
        %v4473 = vrcp.pop %v4409
        %v4474 = vrcp.pop %v4410
        %v4475 = vrcp.pop %v4411
        %v4476 = vrcp.pop %v4412
        %v4477 = vrcp.pop %v4413
        %v4478 = vrcp.pop %v4414
        %v4479 = vrcp.pop %v4415
        %v4480 = vrcp.pop %v4416
        %v4481 = vrcp.pop %v4417
        %v4482 = vrcp.pop %v4418
        %v4483 = vrcp.pop %v4419
        %v4484 = vrcp.pop %v4420
        %v4485 = vrcp.pop %v4421
        %v4486 = vrcp.pop %v4422
        %v4487 = vrcp.pop %v4423
        %v4488 = vrcp.pop %v4424
        %v4489 = vrcp.pop %v4425
        %v4490 = vrcp.pop %v4426
        %v4491 = vrcp.pop %v4427
        %v4492 = vrcp.pop %v4428
        %v4493 = vrcp.pop %v4429
        %v4494 = vrcp.pop %v4430
        %v4495 = vrcp.pop %v4431
        %v4496 = vrcp.pop %v4432
        %v4497 = vld [vmem:[#allocation4] sm:$0xff]
        %v4498 = vld [vmem:[#allocation4 + $0x8] sm:$0xff]
        %v4499 = vld [vmem:[#allocation4 + $0x10] sm:$0xff]
        %v4500 = vld [vmem:[#allocation4 + $0x18] sm:$0xff]
        %v4501 = vld [vmem:[#allocation4 + $0x20] sm:$0xff]
        %v4502 = vld [vmem:[#allocation4 + $0x28] sm:$0xff]
        %v4503 = vld [vmem:[#allocation4 + $0x30] sm:$0xff]
        %v4504 = vld [vmem:[#allocation4 + $0x38] sm:$0xff]
        %v4505 = vld [vmem:[#allocation4 + $0x40] sm:$0xff]
        %v4506 = vld [vmem:[#allocation4 + $0x48] sm:$0xff]
        %v4507 = vld [vmem:[#allocation4 + $0x50] sm:$0xff]
        %v4508 = vld [vmem:[#allocation4 + $0x58] sm:$0xff]
        %v4509 = vld [vmem:[#allocation4 + $0x60] sm:$0xff]
        %v4510 = vld [vmem:[#allocation4 + $0x68] sm:$0xff]
        %v4511 = vld [vmem:[#allocation4 + $0x70] sm:$0xff]
        %v4512 = vld [vmem:[#allocation4 + $0x78] sm:$0xff]
        %v4513 = vld [vmem:[#allocation4 + $0x80] sm:$0xff]
        %v4514 = vld [vmem:[#allocation4 + $0x88] sm:$0xff]
        %v4515 = vld [vmem:[#allocation4 + $0x90] sm:$0xff]
        %v4516 = vld [vmem:[#allocation4 + $0x98] sm:$0xff]
        %v4517 = vld [vmem:[#allocation4 + $0xa0] sm:$0xff]
        %v4518 = vld [vmem:[#allocation4 + $0xa8] sm:$0xff]
        %v4519 = vld [vmem:[#allocation4 + $0xb0] sm:$0xff]
        %v4520 = vld [vmem:[#allocation4 + $0xb8] sm:$0xff]
        %v4521 = vld [vmem:[#allocation4 + $0xc0] sm:$0xff]
        %v4522 = vld [vmem:[#allocation4 + $0xc8] sm:$0xff]
        %v4523 = vld [vmem:[#allocation4 + $0xd0] sm:$0xff]
        %v4524 = vld [vmem:[#allocation4 + $0xd8] sm:$0xff]
        %v4525 = vld [vmem:[#allocation4 + $0xe0] sm:$0xff]
        %v4526 = vld [vmem:[#allocation4 + $0xe8] sm:$0xff]
        %v4527 = vld [vmem:[#allocation4 + $0xf0] sm:$0xff]
        %v4528 = vld [vmem:[#allocation4 + $0xf8] sm:$0xff]
        %v4529 = vld [vmem:[#allocation4 + $0x100] sm:$0xff]
        %v4530 = vld [vmem:[#allocation4 + $0x108] sm:$0xff]
        %v4531 = vld [vmem:[#allocation4 + $0x110] sm:$0xff]
        %v4532 = vld [vmem:[#allocation4 + $0x118] sm:$0xff]
        %v4533 = vld [vmem:[#allocation4 + $0x120] sm:$0xff]
        %v4534 = vld [vmem:[#allocation4 + $0x128] sm:$0xff]
        %v4535 = vld [vmem:[#allocation4 + $0x130] sm:$0xff]
        %v4536 = vld [vmem:[#allocation4 + $0x138] sm:$0xff]
        %v4537 = vld [vmem:[#allocation4 + $0x140] sm:$0xff]
        %v4538 = vld [vmem:[#allocation4 + $0x148] sm:$0xff]
        %v4539 = vld [vmem:[#allocation4 + $0x150] sm:$0xff]
        %v4540 = vld [vmem:[#allocation4 + $0x158] sm:$0xff]
        %v4541 = vld [vmem:[#allocation4 + $0x160] sm:$0xff]
        %v4542 = vld [vmem:[#allocation4 + $0x168] sm:$0xff]
        %v4543 = vld [vmem:[#allocation4 + $0x170] sm:$0xff]
        %v4544 = vld [vmem:[#allocation4 + $0x178] sm:$0xff]
        %v4545 = vld [vmem:[#allocation4 + $0x180] sm:$0xff]
        %v4546 = vld [vmem:[#allocation4 + $0x188] sm:$0xff]
        %v4547 = vld [vmem:[#allocation4 + $0x190] sm:$0xff]
        %v4548 = vld [vmem:[#allocation4 + $0x198] sm:$0xff]
        %v4549 = vld [vmem:[#allocation4 + $0x1a0] sm:$0xff]
        %v4550 = vld [vmem:[#allocation4 + $0x1a8] sm:$0xff]
        %v4551 = vld [vmem:[#allocation4 + $0x1b0] sm:$0xff]
        %v4552 = vld [vmem:[#allocation4 + $0x1b8] sm:$0xff]
        %v4553 = vld [vmem:[#allocation4 + $0x1c0] sm:$0xff]
        %v4554 = vld [vmem:[#allocation4 + $0x1c8] sm:$0xff]
        %v4555 = vld [vmem:[#allocation4 + $0x1d0] sm:$0xff]
        %v4556 = vld [vmem:[#allocation4 + $0x1d8] sm:$0xff]
        %v4557 = vld [vmem:[#allocation4 + $0x1e0] sm:$0xff]
        %v4558 = vld [vmem:[#allocation4 + $0x1e8] sm:$0xff]
        %v4559 = vld [vmem:[#allocation4 + $0x1f0] sm:$0xff]
        %v4560 = vld [vmem:[#allocation4 + $0x1f8] sm:$0xff]
        %4562 = vset.pattern.permute.xlu0 0
        %4563 = vperm.xlu0 %4562, %v4433
        %v4564 = vpop.permute.xlu0 %4563
        %4567 = vset.pattern.permute.xlu0 0
        %4568 = vperm.xlu0 %4567, %v4434
        %v4569 = vpop.permute.xlu0 %4568
        %4572 = vset.pattern.permute.xlu0 0
        %4573 = vperm.xlu0 %4572, %v4435
        %v4574 = vpop.permute.xlu0 %4573
        %4577 = vset.pattern.permute.xlu0 0
        %4578 = vperm.xlu0 %4577, %v4436
        %v4579 = vpop.permute.xlu0 %4578
        %4582 = vset.pattern.permute.xlu0 0
        %4583 = vperm.xlu0 %4582, %v4437
        %v4584 = vpop.permute.xlu0 %4583
        %4587 = vset.pattern.permute.xlu0 0
        %4588 = vperm.xlu0 %4587, %v4438
        %v4589 = vpop.permute.xlu0 %4588
        %4592 = vset.pattern.permute.xlu0 0
        %4593 = vperm.xlu0 %4592, %v4439
        %v4594 = vpop.permute.xlu0 %4593
        %4597 = vset.pattern.permute.xlu0 0
        %4598 = vperm.xlu0 %4597, %v4440
        %v4599 = vpop.permute.xlu0 %4598
        %4602 = vset.pattern.permute.xlu0 0
        %4603 = vperm.xlu0 %4602, %v4441
        %v4604 = vpop.permute.xlu0 %4603
        %4607 = vset.pattern.permute.xlu0 0
        %4608 = vperm.xlu0 %4607, %v4442
        %v4609 = vpop.permute.xlu0 %4608
        %4612 = vset.pattern.permute.xlu0 0
        %4613 = vperm.xlu0 %4612, %v4443
        %v4614 = vpop.permute.xlu0 %4613
        %4617 = vset.pattern.permute.xlu0 0
        %4618 = vperm.xlu0 %4617, %v4444
        %v4619 = vpop.permute.xlu0 %4618
        %4622 = vset.pattern.permute.xlu0 0
        %4623 = vperm.xlu0 %4622, %v4445
        %v4624 = vpop.permute.xlu0 %4623
        %4627 = vset.pattern.permute.xlu0 0
        %4628 = vperm.xlu0 %4627, %v4446
        %v4629 = vpop.permute.xlu0 %4628
        %4632 = vset.pattern.permute.xlu0 0
        %4633 = vperm.xlu0 %4632, %v4447
        %v4634 = vpop.permute.xlu0 %4633
        %4637 = vset.pattern.permute.xlu0 0
        %4638 = vperm.xlu0 %4637, %v4448
        %v4639 = vpop.permute.xlu0 %4638
        %4642 = vset.pattern.permute.xlu0 0
        %4643 = vperm.xlu0 %4642, %v4449
        %v4644 = vpop.permute.xlu0 %4643
        %4647 = vset.pattern.permute.xlu0 0
        %4648 = vperm.xlu0 %4647, %v4450
        %v4649 = vpop.permute.xlu0 %4648
        %4652 = vset.pattern.permute.xlu0 0
        %4653 = vperm.xlu0 %4652, %v4451
        %v4654 = vpop.permute.xlu0 %4653
        %4657 = vset.pattern.permute.xlu0 0
        %4658 = vperm.xlu0 %4657, %v4452
        %v4659 = vpop.permute.xlu0 %4658
        %4662 = vset.pattern.permute.xlu0 0
        %4663 = vperm.xlu0 %4662, %v4453
        %v4664 = vpop.permute.xlu0 %4663
        %4667 = vset.pattern.permute.xlu0 0
        %4668 = vperm.xlu0 %4667, %v4454
        %v4669 = vpop.permute.xlu0 %4668
        %4672 = vset.pattern.permute.xlu0 0
        %4673 = vperm.xlu0 %4672, %v4455
        %v4674 = vpop.permute.xlu0 %4673
        %4677 = vset.pattern.permute.xlu0 0
        %4678 = vperm.xlu0 %4677, %v4456
        %v4679 = vpop.permute.xlu0 %4678
        %4682 = vset.pattern.permute.xlu0 0
        %4683 = vperm.xlu0 %4682, %v4457
        %v4684 = vpop.permute.xlu0 %4683
        %4687 = vset.pattern.permute.xlu0 0
        %4688 = vperm.xlu0 %4687, %v4458
        %v4689 = vpop.permute.xlu0 %4688
        %4692 = vset.pattern.permute.xlu0 0
        %4693 = vperm.xlu0 %4692, %v4459
        %v4694 = vpop.permute.xlu0 %4693
        %4697 = vset.pattern.permute.xlu0 0
        %4698 = vperm.xlu0 %4697, %v4460
        %v4699 = vpop.permute.xlu0 %4698
        %4702 = vset.pattern.permute.xlu0 0
        %4703 = vperm.xlu0 %4702, %v4461
        %v4704 = vpop.permute.xlu0 %4703
        %4707 = vset.pattern.permute.xlu0 0
        %4708 = vperm.xlu0 %4707, %v4462
        %v4709 = vpop.permute.xlu0 %4708
        %4712 = vset.pattern.permute.xlu0 0
        %4713 = vperm.xlu0 %4712, %v4463
        %v4714 = vpop.permute.xlu0 %4713
        %4717 = vset.pattern.permute.xlu0 0
        %4718 = vperm.xlu0 %4717, %v4464
        %v4719 = vpop.permute.xlu0 %4718
        %4722 = vset.pattern.permute.xlu0 0
        %4723 = vperm.xlu0 %4722, %v4465
        %v4724 = vpop.permute.xlu0 %4723
        %4727 = vset.pattern.permute.xlu0 0
        %4728 = vperm.xlu0 %4727, %v4466
        %v4729 = vpop.permute.xlu0 %4728
        %4732 = vset.pattern.permute.xlu0 0
        %4733 = vperm.xlu0 %4732, %v4467
        %v4734 = vpop.permute.xlu0 %4733
        %4737 = vset.pattern.permute.xlu0 0
        %4738 = vperm.xlu0 %4737, %v4468
        %v4739 = vpop.permute.xlu0 %4738
        %4742 = vset.pattern.permute.xlu0 0
        %4743 = vperm.xlu0 %4742, %v4469
        %v4744 = vpop.permute.xlu0 %4743
        %4747 = vset.pattern.permute.xlu0 0
        %4748 = vperm.xlu0 %4747, %v4470
        %v4749 = vpop.permute.xlu0 %4748
        %4752 = vset.pattern.permute.xlu0 0
        %4753 = vperm.xlu0 %4752, %v4471
        %v4754 = vpop.permute.xlu0 %4753
        %4757 = vset.pattern.permute.xlu0 0
        %4758 = vperm.xlu0 %4757, %v4472
        %v4759 = vpop.permute.xlu0 %4758
        %4762 = vset.pattern.permute.xlu0 0
        %4763 = vperm.xlu0 %4762, %v4473
        %v4764 = vpop.permute.xlu0 %4763
        %4767 = vset.pattern.permute.xlu0 0
        %4768 = vperm.xlu0 %4767, %v4474
        %v4769 = vpop.permute.xlu0 %4768
        %4772 = vset.pattern.permute.xlu0 0
        %4773 = vperm.xlu0 %4772, %v4475
        %v4774 = vpop.permute.xlu0 %4773
        %4777 = vset.pattern.permute.xlu0 0
        %4778 = vperm.xlu0 %4777, %v4476
        %v4779 = vpop.permute.xlu0 %4778
        %4782 = vset.pattern.permute.xlu0 0
        %4783 = vperm.xlu0 %4782, %v4477
        %v4784 = vpop.permute.xlu0 %4783
        %4787 = vset.pattern.permute.xlu0 0
        %4788 = vperm.xlu0 %4787, %v4478
        %v4789 = vpop.permute.xlu0 %4788
        %4792 = vset.pattern.permute.xlu0 0
        %4793 = vperm.xlu0 %4792, %v4479
        %v4794 = vpop.permute.xlu0 %4793
        %4797 = vset.pattern.permute.xlu0 0
        %4798 = vperm.xlu0 %4797, %v4480
        %v4799 = vpop.permute.xlu0 %4798
        %4802 = vset.pattern.permute.xlu0 0
        %4803 = vperm.xlu0 %4802, %v4481
        %v4804 = vpop.permute.xlu0 %4803
        %4807 = vset.pattern.permute.xlu0 0
        %4808 = vperm.xlu0 %4807, %v4482
        %v4809 = vpop.permute.xlu0 %4808
        %4812 = vset.pattern.permute.xlu0 0
        %4813 = vperm.xlu0 %4812, %v4483
        %v4814 = vpop.permute.xlu0 %4813
        %4817 = vset.pattern.permute.xlu0 0
        %4818 = vperm.xlu0 %4817, %v4484
        %v4819 = vpop.permute.xlu0 %4818
        %4822 = vset.pattern.permute.xlu0 0
        %4823 = vperm.xlu0 %4822, %v4485
        %v4824 = vpop.permute.xlu0 %4823
        %4827 = vset.pattern.permute.xlu0 0
        %4828 = vperm.xlu0 %4827, %v4486
        %v4829 = vpop.permute.xlu0 %4828
        %4832 = vset.pattern.permute.xlu0 0
        %4833 = vperm.xlu0 %4832, %v4487
        %v4834 = vpop.permute.xlu0 %4833
        %4837 = vset.pattern.permute.xlu0 0
        %4838 = vperm.xlu0 %4837, %v4488
        %v4839 = vpop.permute.xlu0 %4838
        %4842 = vset.pattern.permute.xlu0 0
        %4843 = vperm.xlu0 %4842, %v4489
        %v4844 = vpop.permute.xlu0 %4843
        %4847 = vset.pattern.permute.xlu0 0
        %4848 = vperm.xlu0 %4847, %v4490
        %v4849 = vpop.permute.xlu0 %4848
        %4852 = vset.pattern.permute.xlu0 0
        %4853 = vperm.xlu0 %4852, %v4491
        %v4854 = vpop.permute.xlu0 %4853
        %4857 = vset.pattern.permute.xlu0 0
        %4858 = vperm.xlu0 %4857, %v4492
        %v4859 = vpop.permute.xlu0 %4858
        %4862 = vset.pattern.permute.xlu0 0
        %4863 = vperm.xlu0 %4862, %v4493
        %v4864 = vpop.permute.xlu0 %4863
        %4867 = vset.pattern.permute.xlu0 0
        %4868 = vperm.xlu0 %4867, %v4494
        %v4869 = vpop.permute.xlu0 %4868
        %4872 = vset.pattern.permute.xlu0 0
        %4873 = vperm.xlu0 %4872, %v4495
        %v4874 = vpop.permute.xlu0 %4873
        %4877 = vset.pattern.permute.xlu0 0
        %4878 = vperm.xlu0 %4877, %v4496
        %v4879 = vpop.permute.xlu0 %4878
        %v4881 = vmul.f32 %v4497, %v4564
        %v4882 = vmul.f32 %v4498, %v4569
        %v4883 = vmul.f32 %v4499, %v4574
        %v4884 = vmul.f32 %v4500, %v4579
        %v4885 = vmul.f32 %v4501, %v4584
        %v4886 = vmul.f32 %v4502, %v4589
        %v4887 = vmul.f32 %v4503, %v4594
        %v4888 = vmul.f32 %v4504, %v4599
        %v4889 = vmul.f32 %v4505, %v4604
        %v4890 = vmul.f32 %v4506, %v4609
        %v4891 = vmul.f32 %v4507, %v4614
        %v4892 = vmul.f32 %v4508, %v4619
        %v4893 = vmul.f32 %v4509, %v4624
        %v4894 = vmul.f32 %v4510, %v4629
        %v4895 = vmul.f32 %v4511, %v4634
        %v4896 = vmul.f32 %v4512, %v4639
        %v4897 = vmul.f32 %v4513, %v4644
        %v4898 = vmul.f32 %v4514, %v4649
        %v4899 = vmul.f32 %v4515, %v4654
        %v4900 = vmul.f32 %v4516, %v4659
        %v4901 = vmul.f32 %v4517, %v4664
        %v4902 = vmul.f32 %v4518, %v4669
        %v4903 = vmul.f32 %v4519, %v4674
        %v4904 = vmul.f32 %v4520, %v4679
        %v4905 = vmul.f32 %v4521, %v4684
        %v4906 = vmul.f32 %v4522, %v4689
        %v4907 = vmul.f32 %v4523, %v4694
        %v4908 = vmul.f32 %v4524, %v4699
        %v4909 = vmul.f32 %v4525, %v4704
        %v4910 = vmul.f32 %v4526, %v4709
        %v4911 = vmul.f32 %v4527, %v4714
        %v4912 = vmul.f32 %v4528, %v4719
        %v4913 = vmul.f32 %v4529, %v4724
        %v4914 = vmul.f32 %v4530, %v4729
        %v4915 = vmul.f32 %v4531, %v4734
        %v4916 = vmul.f32 %v4532, %v4739
        %v4917 = vmul.f32 %v4533, %v4744
        %v4918 = vmul.f32 %v4534, %v4749
        %v4919 = vmul.f32 %v4535, %v4754
        %v4920 = vmul.f32 %v4536, %v4759
        %v4921 = vmul.f32 %v4537, %v4764
        %v4922 = vmul.f32 %v4538, %v4769
        %v4923 = vmul.f32 %v4539, %v4774
        %v4924 = vmul.f32 %v4540, %v4779
        %v4925 = vmul.f32 %v4541, %v4784
        %v4926 = vmul.f32 %v4542, %v4789
        %v4927 = vmul.f32 %v4543, %v4794
        %v4928 = vmul.f32 %v4544, %v4799
        %v4929 = vmul.f32 %v4545, %v4804
        %v4930 = vmul.f32 %v4546, %v4809
        %v4931 = vmul.f32 %v4547, %v4814
        %v4932 = vmul.f32 %v4548, %v4819
        %v4933 = vmul.f32 %v4549, %v4824
        %v4934 = vmul.f32 %v4550, %v4829
        %v4935 = vmul.f32 %v4551, %v4834
        %v4936 = vmul.f32 %v4552, %v4839
        %v4937 = vmul.f32 %v4553, %v4844
        %v4938 = vmul.f32 %v4554, %v4849
        %v4939 = vmul.f32 %v4555, %v4854
        %v4940 = vmul.f32 %v4556, %v4859
        %v4941 = vmul.f32 %v4557, %v4864
        %v4942 = vmul.f32 %v4558, %v4869
        %v4943 = vmul.f32 %v4559, %v4874
        %v4944 = vmul.f32 %v4560, %v4879
        %v4945 = vpack.c.bf16 %v4881, %v4881
        %v4946 = vpack.c.bf16 %v4882, %v4882
        %v4947 = vpack.c.bf16 %v4883, %v4883
        %v4948 = vpack.c.bf16 %v4884, %v4884
        %v4949 = vpack.c.bf16 %v4885, %v4885
        %v4950 = vpack.c.bf16 %v4886, %v4886
        %v4951 = vpack.c.bf16 %v4887, %v4887
        %v4952 = vpack.c.bf16 %v4888, %v4888
        %v4953 = vpack.c.bf16 %v4889, %v4889
        %v4954 = vpack.c.bf16 %v4890, %v4890
        %v4955 = vpack.c.bf16 %v4891, %v4891
        %v4956 = vpack.c.bf16 %v4892, %v4892
        %v4957 = vpack.c.bf16 %v4893, %v4893
        %v4958 = vpack.c.bf16 %v4894, %v4894
        %v4959 = vpack.c.bf16 %v4895, %v4895
        %v4960 = vpack.c.bf16 %v4896, %v4896
        %v4961 = vpack.c.bf16 %v4897, %v4897
        %v4962 = vpack.c.bf16 %v4898, %v4898
        %v4963 = vpack.c.bf16 %v4899, %v4899
        %v4964 = vpack.c.bf16 %v4900, %v4900
        %v4965 = vpack.c.bf16 %v4901, %v4901
        %v4966 = vpack.c.bf16 %v4902, %v4902
        %v4967 = vpack.c.bf16 %v4903, %v4903
        %v4968 = vpack.c.bf16 %v4904, %v4904
        %v4969 = vpack.c.bf16 %v4905, %v4905
        %v4970 = vpack.c.bf16 %v4906, %v4906
        %v4971 = vpack.c.bf16 %v4907, %v4907
        %v4972 = vpack.c.bf16 %v4908, %v4908
        %v4973 = vpack.c.bf16 %v4909, %v4909
        %v4974 = vpack.c.bf16 %v4910, %v4910
        %v4975 = vpack.c.bf16 %v4911, %v4911
        %v4976 = vpack.c.bf16 %v4912, %v4912
        %v4977 = vpack.c.bf16 %v4913, %v4913
        %v4978 = vpack.c.bf16 %v4914, %v4914
        %v4979 = vpack.c.bf16 %v4915, %v4915
        %v4980 = vpack.c.bf16 %v4916, %v4916
        %v4981 = vpack.c.bf16 %v4917, %v4917
        %v4982 = vpack.c.bf16 %v4918, %v4918
        %v4983 = vpack.c.bf16 %v4919, %v4919
        %v4984 = vpack.c.bf16 %v4920, %v4920
        %v4985 = vpack.c.bf16 %v4921, %v4921
        %v4986 = vpack.c.bf16 %v4922, %v4922
        %v4987 = vpack.c.bf16 %v4923, %v4923
        %v4988 = vpack.c.bf16 %v4924, %v4924
        %v4989 = vpack.c.bf16 %v4925, %v4925
        %v4990 = vpack.c.bf16 %v4926, %v4926
        %v4991 = vpack.c.bf16 %v4927, %v4927
        %v4992 = vpack.c.bf16 %v4928, %v4928
        %v4993 = vpack.c.bf16 %v4929, %v4929
        %v4994 = vpack.c.bf16 %v4930, %v4930
        %v4995 = vpack.c.bf16 %v4931, %v4931
        %v4996 = vpack.c.bf16 %v4932, %v4932
        %v4997 = vpack.c.bf16 %v4933, %v4933
        %v4998 = vpack.c.bf16 %v4934, %v4934
        %v4999 = vpack.c.bf16 %v4935, %v4935
        %v5000 = vpack.c.bf16 %v4936, %v4936
        %v5001 = vpack.c.bf16 %v4937, %v4937
        %v5002 = vpack.c.bf16 %v4938, %v4938
        %v5003 = vpack.c.bf16 %v4939, %v4939
        %v5004 = vpack.c.bf16 %v4940, %v4940
        %v5005 = vpack.c.bf16 %v4941, %v4941
        %v5006 = vpack.c.bf16 %v4942, %v4942
        %v5007 = vpack.c.bf16 %v4943, %v4943
        %v5008 = vpack.c.bf16 %v4944, %v4944
        %vm5009 = vcmask 257024
        %5010 = vst.msk [vmem:[%s287] sm:$0xf] %vm5009, %v4945
        %5011 = vst.msk [vmem:[%s287 + $0x4] sm:$0xf] %vm5009, %v4946
        %5012 = vst.msk [vmem:[%s287 + $0x8] sm:$0xf] %vm5009, %v4947
        %5013 = vst.msk [vmem:[%s287 + $0xc] sm:$0xf] %vm5009, %v4948
        %5014 = vst.msk [vmem:[%s287 + $0x10] sm:$0xf] %vm5009, %v4949
        %5015 = vst.msk [vmem:[%s287 + $0x14] sm:$0xf] %vm5009, %v4950
        %5016 = vst.msk [vmem:[%s287 + $0x18] sm:$0xf] %vm5009, %v4951
        %5017 = vst.msk [vmem:[%s287 + $0x1c] sm:$0xf] %vm5009, %v4952
        %5018 = vst.msk [vmem:[%s287 + $0x20] sm:$0xf] %vm5009, %v4953
        %5019 = vst.msk [vmem:[%s287 + $0x24] sm:$0xf] %vm5009, %v4954
        %5020 = vst.msk [vmem:[%s287 + $0x28] sm:$0xf] %vm5009, %v4955
        %5021 = vst.msk [vmem:[%s287 + $0x2c] sm:$0xf] %vm5009, %v4956
        %5022 = vst.msk [vmem:[%s287 + $0x30] sm:$0xf] %vm5009, %v4957
        %5023 = vst.msk [vmem:[%s287 + $0x34] sm:$0xf] %vm5009, %v4958
        %5024 = vst.msk [vmem:[%s287 + $0x38] sm:$0xf] %vm5009, %v4959
        %5025 = vst.msk [vmem:[%s287 + $0x3c] sm:$0xf] %vm5009, %v4960
        %5026 = vst.msk [vmem:[%s287 + $0x40] sm:$0xf] %vm5009, %v4961
        %5027 = vst.msk [vmem:[%s287 + $0x44] sm:$0xf] %vm5009, %v4962
        %5028 = vst.msk [vmem:[%s287 + $0x48] sm:$0xf] %vm5009, %v4963
        %5029 = vst.msk [vmem:[%s287 + $0x4c] sm:$0xf] %vm5009, %v4964
        %5030 = vst.msk [vmem:[%s287 + $0x50] sm:$0xf] %vm5009, %v4965
        %5031 = vst.msk [vmem:[%s287 + $0x54] sm:$0xf] %vm5009, %v4966
        %5032 = vst.msk [vmem:[%s287 + $0x58] sm:$0xf] %vm5009, %v4967
        %5033 = vst.msk [vmem:[%s287 + $0x5c] sm:$0xf] %vm5009, %v4968
        %5034 = vst.msk [vmem:[%s287 + $0x60] sm:$0xf] %vm5009, %v4969
        %5035 = vst.msk [vmem:[%s287 + $0x64] sm:$0xf] %vm5009, %v4970
        %5036 = vst.msk [vmem:[%s287 + $0x68] sm:$0xf] %vm5009, %v4971
        %5037 = vst.msk [vmem:[%s287 + $0x6c] sm:$0xf] %vm5009, %v4972
        %5038 = vst.msk [vmem:[%s287 + $0x70] sm:$0xf] %vm5009, %v4973
        %5039 = vst.msk [vmem:[%s287 + $0x74] sm:$0xf] %vm5009, %v4974
        %5040 = vst.msk [vmem:[%s287 + $0x78] sm:$0xf] %vm5009, %v4975
        %5041 = vst.msk [vmem:[%s287 + $0x7c] sm:$0xf] %vm5009, %v4976
        %5042 = vst.msk [vmem:[%s287 + $0x80] sm:$0xf] %vm5009, %v4977
        %5043 = vst.msk [vmem:[%s287 + $0x84] sm:$0xf] %vm5009, %v4978
        %5044 = vst.msk [vmem:[%s287 + $0x88] sm:$0xf] %vm5009, %v4979
        %5045 = vst.msk [vmem:[%s287 + $0x8c] sm:$0xf] %vm5009, %v4980
        %5046 = vst.msk [vmem:[%s287 + $0x90] sm:$0xf] %vm5009, %v4981
        %5047 = vst.msk [vmem:[%s287 + $0x94] sm:$0xf] %vm5009, %v4982
        %5048 = vst.msk [vmem:[%s287 + $0x98] sm:$0xf] %vm5009, %v4983
        %5049 = vst.msk [vmem:[%s287 + $0x9c] sm:$0xf] %vm5009, %v4984
        %5050 = vst.msk [vmem:[%s287 + $0xa0] sm:$0xf] %vm5009, %v4985
        %5051 = vst.msk [vmem:[%s287 + $0xa4] sm:$0xf] %vm5009, %v4986
        %5052 = vst.msk [vmem:[%s287 + $0xa8] sm:$0xf] %vm5009, %v4987
        %5053 = vst.msk [vmem:[%s287 + $0xac] sm:$0xf] %vm5009, %v4988
        %5054 = vst.msk [vmem:[%s287 + $0xb0] sm:$0xf] %vm5009, %v4989
        %5055 = vst.msk [vmem:[%s287 + $0xb4] sm:$0xf] %vm5009, %v4990
        %5056 = vst.msk [vmem:[%s287 + $0xb8] sm:$0xf] %vm5009, %v4991
        %5057 = vst.msk [vmem:[%s287 + $0xbc] sm:$0xf] %vm5009, %v4992
        %5058 = vst.msk [vmem:[%s287 + $0xc0] sm:$0xf] %vm5009, %v4993
        %5059 = vst.msk [vmem:[%s287 + $0xc4] sm:$0xf] %vm5009, %v4994
        %5060 = vst.msk [vmem:[%s287 + $0xc8] sm:$0xf] %vm5009, %v4995
        %5061 = vst.msk [vmem:[%s287 + $0xcc] sm:$0xf] %vm5009, %v4996
        %5062 = vst.msk [vmem:[%s287 + $0xd0] sm:$0xf] %vm5009, %v4997
        %5063 = vst.msk [vmem:[%s287 + $0xd4] sm:$0xf] %vm5009, %v4998
        %5064 = vst.msk [vmem:[%s287 + $0xd8] sm:$0xf] %vm5009, %v4999
        %5065 = vst.msk [vmem:[%s287 + $0xdc] sm:$0xf] %vm5009, %v5000
        %5066 = vst.msk [vmem:[%s287 + $0xe0] sm:$0xf] %vm5009, %v5001
        %5067 = vst.msk [vmem:[%s287 + $0xe4] sm:$0xf] %vm5009, %v5002
        %5068 = vst.msk [vmem:[%s287 + $0xe8] sm:$0xf] %vm5009, %v5003
        %5069 = vst.msk [vmem:[%s287 + $0xec] sm:$0xf] %vm5009, %v5004
        %5070 = vst.msk [vmem:[%s287 + $0xf0] sm:$0xf] %vm5009, %v5005
        %5071 = vst.msk [vmem:[%s287 + $0xf4] sm:$0xf] %vm5009, %v5006
        %5072 = vst.msk [vmem:[%s287 + $0xf8] sm:$0xf] %vm5009, %v5007
        %5073 = vst.msk [vmem:[%s287 + $0xfc] sm:$0xf] %vm5009, %v5008
      $region44: #{transformer_forward.8} parent=31 // pred_fallthru
        _
      %s5074 = smul.u32 16, %s20
      %p5075 = scmp.lt.s32.totalorder %s19, 1
      %s5076 = scalar_select %p5075, %s19, 1
      %p5077 = scmp.lt.s32.totalorder %s5074, 15
      %s5078 = scalar_select %p5077, %s5074, 15
      %s5079 = smul.addr %s5076, 64
      %s5080 = sadd.s32 %s5078, %s5079
      %s5081 = smul.addr %s5080, 4
      %s5082 = scalar_lea.vmem %s3, %s5081
      // Predicated region
      $region45: #{transformer_forward.8} parent=31 // pred_check
        %p5083 = pneg %p137
      $region46: #{transformer_forward.8} parent=31 // pred_check_branch
        %5085 = sbr.rel (%p5083) target = $region48
      $region47: #{transformer_forward.8} parent=31 // pred_region
        %s5086 = smul.u32 16, %s20
      $region48: #{transformer_forward.8} parent=31 // pred_fallthru
        _
    $region32: #{transformer_forward.8} parent=5 // pred_fallthru
      _
    %p5087 = scmp.le.s32.totalorder 2, %s9
    // Predicated region
    $region49: #{transformer_forward.8} parent=5 // pred_check
      %p5088 = pneg %p5087
    $region50: #{transformer_forward.8} parent=5 // pred_check_branch
      %5090 = sbr.rel (%p5088) target = $region52
    $region51: #{transformer_forward.8} parent=5 // pred_region
      %s5091 = ssub.s32 %s9, 2
      // Predicated region
      $region53: #{transformer_forward.8} parent=51 // pred_check
        %p5092 = pneg %p143
      $region54: #{transformer_forward.8} parent=51 // pred_check_branch
        %5094 = sbr.rel (%p5092) target = $region56
      $region55: #{transformer_forward.8} parent=51 // pred_region
        %s5095 = smul.u32 16, %s23
        %p5096 = scmp.lt.s32.totalorder %s22, 1
        %s5097 = scalar_select %p5096, %s22, 1
        %p5098 = scmp.lt.s32.totalorder %s5095, 15
        %s5099 = scalar_select %p5098, %s5095, 15
        %s5100 = smul.addr %s5097, 64
        %s5101 = sadd.s32 %s5099, %s5100
        %s5102 = smul.addr %s5101, 4
        %s5103 = scalar_lea.vmem %s3, %s5102
      $region56: #{transformer_forward.8} parent=51 // pred_fallthru
        _
    $region52: #{transformer_forward.8} parent=5 // pred_fallthru
      _
  $region6: #{transformer_forward.8} parent=0 // loop_footer
    %s13 = sadd.s32 1, %s9
  $region7: #{transformer_forward.8} parent=0 // loop_footer_branch
    %8 = sbr.rel target = $region3
  $region8: #{transformer_forward.8} parent=0 // loop_exit
    _

</llo_original>
